<compile_context>
chip_gen: v7x
topology: tpu7x:2x2x1
jax: 0.10.0
libtpu: 0.0.40
codegen_flags: <defaults>
</compile_context>

<pallas_src>
import jax
import jax.numpy as jnp
from jax.experimental import pallas as pl
from jax.experimental.pallas import tpu as pltpu

HID = 256        # hidden width of every fc layer
OUT_PAD = 128    # lane-dense padded output width


def deepsdf_kernel(x1_ref,
                   w1, w2, w3, w4, w5a, w5b, w6, w7, w8,
                   b1, b2, b3, b4, b5, b6, b7, b8,
                   o_ref):
    f32 = jnp.float32
    bf16 = jnp.bfloat16
    x1 = x1_ref[...].astype(bf16)          # (tile_b, d0)

    def lin_relu(h, w, b):
        acc = jnp.dot(h, w[...], preferred_element_type=f32) + b[...]
        return jnp.maximum(acc, 0.0).astype(bf16)

    h = lin_relu(x1, w1, b1)               # fc1 + relu   (tile_b, 256)
    h = lin_relu(h, w2, b2)                # fc2 + relu
    h = lin_relu(h, w3, b3)                # fc3 + relu
    x5 = lin_relu(h, w4, b4)               # fc4 + relu (zero-padded to 256 lanes)

    # y = cat(x1, x5);  fc5(y) = x1 @ W5[:d0] + x5 @ W5[d0:] + b5
    h = jnp.maximum(
        jnp.dot(x1, w5a[...], preferred_element_type=f32)
        + jnp.dot(x5, w5b[...], preferred_element_type=f32)
        + b5[...], 0.0).astype(bf16)       # fc5 + relu

    h = lin_relu(h, w6, b6)                # fc6 + relu
    h = lin_relu(h, w7, b7)                # fc7 + relu
    # fc8: output padded to 128 lanes (cols >= out_ch have zero weight/bias)
    o_ref[...] = jnp.dot(h, w8[...], preferred_element_type=f32) + b8[...]


def deepsdf_forward(x, latent, params, *, tile_b=512):
    """x: (N, in_ch) f32; latent: (1, latent_size) f32. Returns (N, out_ch) f32."""
    N, in_ch = x.shape
    latent_size = latent.shape[1]
    d0 = in_ch + latent_size
    out_ch = params["w8"].shape[1]
    mid = HID - d0                                  # fc4 output width (e.g. 248)

    bf16 = jnp.bfloat16
    f32 = jnp.float32

    # Glue: x1 = cat(x, latent.expand(N, -1)), row-padded to a multiple of tile_b.
    x1 = jnp.concatenate(
        [x, jnp.broadcast_to(latent, (N, latent_size))], axis=1).astype(f32)
    n_tiles = pl.cdiv(N, tile_b)
    n_pad = n_tiles * tile_b
    if n_pad != N:
        x1 = jnp.pad(x1, ((0, n_pad - N), (0, 0)))

    # ---- weight prep: bf16 operands, lane-aligned zero paddings ----
    w4p = jnp.pad(params["w4"], ((0, 0), (0, HID - mid)))          # (256, 256)
    b4p = jnp.pad(params["b4"], ((0, 0), (0, HID - mid)))          # (1, 256)
    w5a = params["w5"][:d0, :]                                     # (d0, 256)
    w5b = jnp.pad(params["w5"][d0:, :], ((0, HID - mid), (0, 0)))  # (256, 256)
    w8p = jnp.pad(params["w8"], ((0, 0), (0, OUT_PAD - out_ch)))   # (256, 128)
    b8p = jnp.pad(params["b8"], ((0, 0), (0, OUT_PAD - out_ch)))   # (1, 128)

    weights = [params["w1"], params["w2"], params["w3"], w4p, w5a, w5b,
               params["w6"], params["w7"], w8p]
    weights = [w.astype(bf16) for w in weights]
    biases = [params["b1"], params["b2"], params["b3"], b4p, params["b5"],
              params["b6"], params["b7"], b8p]
    biases = [b.astype(f32) for b in biases]

    def full(arr):
        return pl.BlockSpec(arr.shape, lambda i: (0, 0))

    in_specs = (
        [pl.BlockSpec((tile_b, d0), lambda i: (i, 0))]
        + [full(w) for w in weights]
        + [full(b) for b in biases]
    )
    out_spec = pl.BlockSpec((tile_b, OUT_PAD), lambda i: (i, 0))

    # Advisory cost estimate so XLA schedules neighbors around a compute-bound call.
    flops_per_row = 2 * (2 * d0 * HID + 6 * HID * HID + HID * OUT_PAD)
    weight_bytes = (sum(int(w.size) for w in weights) * 2
                    + sum(int(b.size) for b in biases) * 4)
    cost = pl.CostEstimate(
        flops=int(flops_per_row) * int(n_pad),
        transcendentals=0,
        bytes_accessed=int(weight_bytes + n_pad * (d0 * 4 + OUT_PAD * 4)),
    )

    out = pl.pallas_call(
        deepsdf_kernel,
        out_shape=jax.ShapeDtypeStruct((n_pad, OUT_PAD), f32),
        grid_spec=pltpu.PrefetchScalarGridSpec(
            num_scalar_prefetch=0,
            grid=(n_tiles,),
            in_specs=in_specs,
            out_specs=out_spec,
        ),
        compiler_params=pltpu.CompilerParams(
            dimension_semantics=("parallel",),
            vmem_limit_bytes=32 * 1024 * 1024,
        ),
        cost_estimate=cost,
    )(x1, *weights, *biases)

    return out[:N, :out_ch]


def init_params(key, in_ch, latent_size, out_ch):
    """Deterministic synthetic params matching nn.Linear shapes (stored as (in, out))."""
    d0 = in_ch + latent_size
    dims = [
        (d0, 256),              # fc1
        (256, 256),             # fc2
        (256, 256),             # fc3
        (256, 256 - d0),        # fc4
        (256, 256),             # fc5  (input = cat(x1, x5), size 256)
        (256, 256),             # fc6
        (256, 256),             # fc7
        (256, out_ch),          # fc8
    ]
    params = {}
    keys = jax.random.split(key, 2 * len(dims) + 1)
    for idx, (fan_in, fan_out) in enumerate(dims):
        bound = 1.0 / jnp.sqrt(fan_in)
        w = jax.random.uniform(keys[2 * idx], (fan_in, fan_out),
                               minval=-bound, maxval=bound, dtype=jnp.float32)
        b = jax.random.uniform(keys[2 * idx + 1], (1, fan_out),
                               minval=-bound, maxval=bound, dtype=jnp.float32)
        name = str(idx + 1)
        params["w" + name] = w
        params["b" + name] = b
    # latent_parameter ~ N(0, 1e-4)
    latent = 1e-4 * jax.random.normal(keys[-1], (1, latent_size), dtype=jnp.float32)
    return params, latent


def reference_forward(x, latent, params):
    """Pure-JAX f32 reference mirroring the PyTorch module."""
    N = x.shape[0]
    x1 = jnp.concatenate([x, jnp.broadcast_to(latent, (N, latent.shape[1]))], axis=1)
    relu = lambda v: jnp.maximum(v, 0.0)
    x2 = relu(x1 @ params["w1"] + params["b1"])
    x3 = relu(x2 @ params["w2"] + params["b2"])
    x4 = relu(x3 @ params["w3"] + params["b3"])
    x5 = relu(x4 @ params["w4"] + params["b4"])
    y = jnp.concatenate([x1, x5], axis=1)
    x6 = relu(y @ params["w5"] + params["b5"])
    x7 = relu(x6 @ params["w6"] + params["b6"])
    x8 = relu(x7 @ params["w7"] + params["b7"])
    return x8 @ params["w8"] + params["b8"]


if __name__ == "__main__":
    in_ch, latent_size, out_ch = 4, 4, 4
    N = 16

    key = jax.random.PRNGKey(0)
    kx, kp = jax.random.split(key)
    x = jax.random.normal(kx, (N, in_ch), dtype=jnp.float32)
    params, latent = init_params(kp, in_ch, latent_size, out_ch)

    out = deepsdf_forward(x, latent, params)   # tile_b default 512; N is padded inside
    out = jax.block_until_ready(out)

    ref = reference_forward(x, latent, params)
    assert out.shape == (N, out_ch)
    # bf16 operands / f32 accumulation -> relaxed tolerance vs f32 reference.
    assert jnp.allclose(out, ref, atol=5e-2, rtol=5e-2), "mismatch vs reference"
    print("KERNEL_OK")
</pallas_src>

<mosaic_0001>
module attributes {stable_mosaic.version = 11 : i64} {
  func.func @deepsdf_kernel(%arg0: i32, %arg1: memref<512x8xf32, #tpu.memory_space<vmem>>, %arg2: memref<8x256xbf16, #tpu.memory_space<vmem>>, %arg3: memref<256x256xbf16, #tpu.memory_space<vmem>>, %arg4: memref<256x256xbf16, #tpu.memory_space<vmem>>, %arg5: memref<256x256xbf16, #tpu.memory_space<vmem>>, %arg6: memref<8x256xbf16, #tpu.memory_space<vmem>>, %arg7: memref<256x256xbf16, #tpu.memory_space<vmem>>, %arg8: memref<256x256xbf16, #tpu.memory_space<vmem>>, %arg9: memref<256x256xbf16, #tpu.memory_space<vmem>>, %arg10: memref<256x128xbf16, #tpu.memory_space<vmem>>, %arg11: memref<1x256xf32, #tpu.memory_space<vmem>>, %arg12: memref<1x256xf32, #tpu.memory_space<vmem>>, %arg13: memref<1x256xf32, #tpu.memory_space<vmem>>, %arg14: memref<1x256xf32, #tpu.memory_space<vmem>>, %arg15: memref<1x256xf32, #tpu.memory_space<vmem>>, %arg16: memref<1x256xf32, #tpu.memory_space<vmem>>, %arg17: memref<1x256xf32, #tpu.memory_space<vmem>>, %arg18: memref<1x128xf32, #tpu.memory_space<vmem>>, %arg19: memref<512x128xf32, #tpu.memory_space<vmem>>) attributes {dimension_semantics = [#tpu.dimension_semantics<parallel>], iteration_bounds = array<i64: 1>, scalar_prefetch = 0 : i64, scratch_operands = 0 : i64, tpu.core_type = #tpu.core_type<tc>, window_params = [{transform_indices = @transform_0, window_bounds = array<i64: 512, 8>}, {pipeline_mode = #tpu.pipeline_mode<synchronous>, transform_indices = @transform_1, window_bounds = array<i64: 8, 256>}, {pipeline_mode = #tpu.pipeline_mode<synchronous>, transform_indices = @transform_2, window_bounds = array<i64: 256, 256>}, {pipeline_mode = #tpu.pipeline_mode<synchronous>, transform_indices = @transform_3, window_bounds = array<i64: 256, 256>}, {pipeline_mode = #tpu.pipeline_mode<synchronous>, transform_indices = @transform_4, window_bounds = array<i64: 256, 256>}, {pipeline_mode = #tpu.pipeline_mode<synchronous>, transform_indices = @transform_5, window_bounds = array<i64: 8, 256>}, {pipeline_mode = #tpu.pipeline_mode<synchronous>, transform_indices = @transform_6, window_bounds = array<i64: 256, 256>}, {pipeline_mode = #tpu.pipeline_mode<synchronous>, transform_indices = @transform_7, window_bounds = array<i64: 256, 256>}, {pipeline_mode = #tpu.pipeline_mode<synchronous>, transform_indices = @transform_8, window_bounds = array<i64: 256, 256>}, {pipeline_mode = #tpu.pipeline_mode<synchronous>, transform_indices = @transform_9, window_bounds = array<i64: 256, 128>}, {pipeline_mode = #tpu.pipeline_mode<synchronous>, transform_indices = @transform_10, window_bounds = array<i64: 1, 256>}, {pipeline_mode = #tpu.pipeline_mode<synchronous>, transform_indices = @transform_11, window_bounds = array<i64: 1, 256>}, {pipeline_mode = #tpu.pipeline_mode<synchronous>, transform_indices = @transform_12, window_bounds = array<i64: 1, 256>}, {pipeline_mode = #tpu.pipeline_mode<synchronous>, transform_indices = @transform_13, window_bounds = array<i64: 1, 256>}, {pipeline_mode = #tpu.pipeline_mode<synchronous>, transform_indices = @transform_14, window_bounds = array<i64: 1, 256>}, {pipeline_mode = #tpu.pipeline_mode<synchronous>, transform_indices = @transform_15, window_bounds = array<i64: 1, 256>}, {pipeline_mode = #tpu.pipeline_mode<synchronous>, transform_indices = @transform_16, window_bounds = array<i64: 1, 256>}, {pipeline_mode = #tpu.pipeline_mode<synchronous>, transform_indices = @transform_17, window_bounds = array<i64: 1, 128>}, {transform_indices = @transform_18, window_bounds = array<i64: 512, 128>}]} {
    %c0 = arith.constant 0 : index
    %c0_0 = arith.constant 0 : index
    %0 = vector.load %arg1[%c0, %c0_0] : memref<512x8xf32, #tpu.memory_space<vmem>>, vector<512x8xf32>
    %1 = arith.truncf %0 : vector<512x8xf32> to vector<512x8xbf16>
    %c0_1 = arith.constant 0 : index
    %c0_2 = arith.constant 0 : index
    %2 = vector.load %arg2[%c0_1, %c0_2] : memref<8x256xbf16, #tpu.memory_space<vmem>>, vector<8x256xbf16>
    %cst = arith.constant dense<0.000000e+00> : vector<512x256xf32>
    %3 = tpu.matmul %1, %2, %cst {dimension_numbers = #tpu.dot_dimension_numbers<[1], [0], [0], [1], [0, 0, 1, 1], [], []>} : vector<512x8xbf16>, vector<8x256xbf16>, vector<512x256xf32> -> vector<512x256xf32>
    %c0_3 = arith.constant 0 : index
    %c0_4 = arith.constant 0 : index
    %4 = vector.load %arg11[%c0_3, %c0_4] : memref<1x256xf32, #tpu.memory_space<vmem>>, vector<1x256xf32>
    %5 = vector.broadcast %4 : vector<1x256xf32> to vector<512x256xf32>
    %6 = arith.addf %3, %5 : vector<512x256xf32>
    %cst_5 = arith.constant 0.000000e+00 : f32
    %7 = vector.broadcast %cst_5 : f32 to vector<512x256xf32>
    %8 = arith.maximumf %6, %7 : vector<512x256xf32>
    %9 = arith.truncf %8 : vector<512x256xf32> to vector<512x256xbf16>
    %c0_6 = arith.constant 0 : index
    %c0_7 = arith.constant 0 : index
    %10 = vector.load %arg3[%c0_6, %c0_7] : memref<256x256xbf16, #tpu.memory_space<vmem>>, vector<256x256xbf16>
    %cst_8 = arith.constant dense<0.000000e+00> : vector<512x256xf32>
    %11 = tpu.matmul %9, %10, %cst_8 {dimension_numbers = #tpu.dot_dimension_numbers<[1], [0], [0], [1], [0, 0, 1, 1], [], []>} : vector<512x256xbf16>, vector<256x256xbf16>, vector<512x256xf32> -> vector<512x256xf32>
    %c0_9 = arith.constant 0 : index
    %c0_10 = arith.constant 0 : index
    %12 = vector.load %arg12[%c0_9, %c0_10] : memref<1x256xf32, #tpu.memory_space<vmem>>, vector<1x256xf32>
    %13 = vector.broadcast %12 : vector<1x256xf32> to vector<512x256xf32>
    %14 = arith.addf %11, %13 : vector<512x256xf32>
    %cst_11 = arith.constant 0.000000e+00 : f32
    %15 = vector.broadcast %cst_11 : f32 to vector<512x256xf32>
    %16 = arith.maximumf %14, %15 : vector<512x256xf32>
    %17 = arith.truncf %16 : vector<512x256xf32> to vector<512x256xbf16>
    %c0_12 = arith.constant 0 : index
    %c0_13 = arith.constant 0 : index
    %18 = vector.load %arg4[%c0_12, %c0_13] : memref<256x256xbf16, #tpu.memory_space<vmem>>, vector<256x256xbf16>
    %cst_14 = arith.constant dense<0.000000e+00> : vector<512x256xf32>
    %19 = tpu.matmul %17, %18, %cst_14 {dimension_numbers = #tpu.dot_dimension_numbers<[1], [0], [0], [1], [0, 0, 1, 1], [], []>} : vector<512x256xbf16>, vector<256x256xbf16>, vector<512x256xf32> -> vector<512x256xf32>
    %c0_15 = arith.constant 0 : index
    %c0_16 = arith.constant 0 : index
    %20 = vector.load %arg13[%c0_15, %c0_16] : memref<1x256xf32, #tpu.memory_space<vmem>>, vector<1x256xf32>
    %21 = vector.broadcast %20 : vector<1x256xf32> to vector<512x256xf32>
    %22 = arith.addf %19, %21 : vector<512x256xf32>
    %cst_17 = arith.constant 0.000000e+00 : f32
    %23 = vector.broadcast %cst_17 : f32 to vector<512x256xf32>
    %24 = arith.maximumf %22, %23 : vector<512x256xf32>
    %25 = arith.truncf %24 : vector<512x256xf32> to vector<512x256xbf16>
    %c0_18 = arith.constant 0 : index
    %c0_19 = arith.constant 0 : index
    %26 = vector.load %arg5[%c0_18, %c0_19] : memref<256x256xbf16, #tpu.memory_space<vmem>>, vector<256x256xbf16>
    %cst_20 = arith.constant dense<0.000000e+00> : vector<512x256xf32>
    %27 = tpu.matmul %25, %26, %cst_20 {dimension_numbers = #tpu.dot_dimension_numbers<[1], [0], [0], [1], [0, 0, 1, 1], [], []>} : vector<512x256xbf16>, vector<256x256xbf16>, vector<512x256xf32> -> vector<512x256xf32>
    %c0_21 = arith.constant 0 : index
    %c0_22 = arith.constant 0 : index
    %28 = vector.load %arg14[%c0_21, %c0_22] : memref<1x256xf32, #tpu.memory_space<vmem>>, vector<1x256xf32>
    %29 = vector.broadcast %28 : vector<1x256xf32> to vector<512x256xf32>
    %30 = arith.addf %27, %29 : vector<512x256xf32>
    %cst_23 = arith.constant 0.000000e+00 : f32
    %31 = vector.broadcast %cst_23 : f32 to vector<512x256xf32>
    %32 = arith.maximumf %30, %31 : vector<512x256xf32>
    %33 = arith.truncf %32 : vector<512x256xf32> to vector<512x256xbf16>
    %c0_24 = arith.constant 0 : index
    %c0_25 = arith.constant 0 : index
    %34 = vector.load %arg6[%c0_24, %c0_25] : memref<8x256xbf16, #tpu.memory_space<vmem>>, vector<8x256xbf16>
    %cst_26 = arith.constant dense<0.000000e+00> : vector<512x256xf32>
    %35 = tpu.matmul %1, %34, %cst_26 {dimension_numbers = #tpu.dot_dimension_numbers<[1], [0], [0], [1], [0, 0, 1, 1], [], []>} : vector<512x8xbf16>, vector<8x256xbf16>, vector<512x256xf32> -> vector<512x256xf32>
    %c0_27 = arith.constant 0 : index
    %c0_28 = arith.constant 0 : index
    %36 = vector.load %arg7[%c0_27, %c0_28] : memref<256x256xbf16, #tpu.memory_space<vmem>>, vector<256x256xbf16>
    %cst_29 = arith.constant dense<0.000000e+00> : vector<512x256xf32>
    %37 = tpu.matmul %33, %36, %cst_29 {dimension_numbers = #tpu.dot_dimension_numbers<[1], [0], [0], [1], [0, 0, 1, 1], [], []>} : vector<512x256xbf16>, vector<256x256xbf16>, vector<512x256xf32> -> vector<512x256xf32>
    %38 = arith.addf %35, %37 : vector<512x256xf32>
    %c0_30 = arith.constant 0 : index
    %c0_31 = arith.constant 0 : index
    %39 = vector.load %arg15[%c0_30, %c0_31] : memref<1x256xf32, #tpu.memory_space<vmem>>, vector<1x256xf32>
    %40 = vector.broadcast %39 : vector<1x256xf32> to vector<512x256xf32>
    %41 = arith.addf %38, %40 : vector<512x256xf32>
    %cst_32 = arith.constant 0.000000e+00 : f32
    %42 = vector.broadcast %cst_32 : f32 to vector<512x256xf32>
    %43 = arith.maximumf %41, %42 : vector<512x256xf32>
    %44 = arith.truncf %43 : vector<512x256xf32> to vector<512x256xbf16>
    %c0_33 = arith.constant 0 : index
    %c0_34 = arith.constant 0 : index
    %45 = vector.load %arg8[%c0_33, %c0_34] : memref<256x256xbf16, #tpu.memory_space<vmem>>, vector<256x256xbf16>
    %cst_35 = arith.constant dense<0.000000e+00> : vector<512x256xf32>
    %46 = tpu.matmul %44, %45, %cst_35 {dimension_numbers = #tpu.dot_dimension_numbers<[1], [0], [0], [1], [0, 0, 1, 1], [], []>} : vector<512x256xbf16>, vector<256x256xbf16>, vector<512x256xf32> -> vector<512x256xf32>
    %c0_36 = arith.constant 0 : index
    %c0_37 = arith.constant 0 : index
    %47 = vector.load %arg16[%c0_36, %c0_37] : memref<1x256xf32, #tpu.memory_space<vmem>>, vector<1x256xf32>
    %48 = vector.broadcast %47 : vector<1x256xf32> to vector<512x256xf32>
    %49 = arith.addf %46, %48 : vector<512x256xf32>
    %cst_38 = arith.constant 0.000000e+00 : f32
    %50 = vector.broadcast %cst_38 : f32 to vector<512x256xf32>
    %51 = arith.maximumf %49, %50 : vector<512x256xf32>
    %52 = arith.truncf %51 : vector<512x256xf32> to vector<512x256xbf16>
    %c0_39 = arith.constant 0 : index
    %c0_40 = arith.constant 0 : index
    %53 = vector.load %arg9[%c0_39, %c0_40] : memref<256x256xbf16, #tpu.memory_space<vmem>>, vector<256x256xbf16>
    %cst_41 = arith.constant dense<0.000000e+00> : vector<512x256xf32>
    %54 = tpu.matmul %52, %53, %cst_41 {dimension_numbers = #tpu.dot_dimension_numbers<[1], [0], [0], [1], [0, 0, 1, 1], [], []>} : vector<512x256xbf16>, vector<256x256xbf16>, vector<512x256xf32> -> vector<512x256xf32>
    %c0_42 = arith.constant 0 : index
    %c0_43 = arith.constant 0 : index
    %55 = vector.load %arg17[%c0_42, %c0_43] : memref<1x256xf32, #tpu.memory_space<vmem>>, vector<1x256xf32>
    %56 = vector.broadcast %55 : vector<1x256xf32> to vector<512x256xf32>
    %57 = arith.addf %54, %56 : vector<512x256xf32>
    %cst_44 = arith.constant 0.000000e+00 : f32
    %58 = vector.broadcast %cst_44 : f32 to vector<512x256xf32>
    %59 = arith.maximumf %57, %58 : vector<512x256xf32>
    %60 = arith.truncf %59 : vector<512x256xf32> to vector<512x256xbf16>
    %c0_45 = arith.constant 0 : index
    %c0_46 = arith.constant 0 : index
    %61 = vector.load %arg10[%c0_45, %c0_46] : memref<256x128xbf16, #tpu.memory_space<vmem>>, vector<256x128xbf16>
    %cst_47 = arith.constant dense<0.000000e+00> : vector<512x128xf32>
    %62 = tpu.matmul %60, %61, %cst_47 {dimension_numbers = #tpu.dot_dimension_numbers<[1], [0], [0], [1], [0, 0, 1, 1], [], []>} : vector<512x256xbf16>, vector<256x128xbf16>, vector<512x128xf32> -> vector<512x128xf32>
    %c0_48 = arith.constant 0 : index
    %c0_49 = arith.constant 0 : index
    %63 = vector.load %arg18[%c0_48, %c0_49] : memref<1x128xf32, #tpu.memory_space<vmem>>, vector<1x128xf32>
    %64 = vector.broadcast %63 : vector<1x128xf32> to vector<512x128xf32>
    %65 = arith.addf %62, %64 : vector<512x128xf32>
    %c0_50 = arith.constant 0 : index
    %c0_51 = arith.constant 0 : index
    %66 = vector.load %arg19[%c0_50, %c0_51] : memref<512x128xf32, #tpu.memory_space<vmem>>, vector<512x128xf32>
    tpu.vector_store %arg19[%c0_50, %c0_51], %65 {strides = array<i32>} : memref<512x128xf32, #tpu.memory_space<vmem>>, vector<512x128xf32>,
    return
  }
  func.func @transform_0(%arg0: i32) -> (i32, i32) {
    %c0_i32 = arith.constant 0 : i32
    %c0_i32_0 = arith.constant 0 : i32
    return %arg0, %c0_i32 : i32, i32
  }
  func.func @transform_1(%arg0: i32) -> (i32, i32) {
    %c0_i32 = arith.constant 0 : i32
    %c0_i32_0 = arith.constant 0 : i32
    %c0_i32_1 = arith.constant 0 : i32
    return %c0_i32, %c0_i32_0 : i32, i32
  }
  func.func @transform_2(%arg0: i32) -> (i32, i32) {
    %c0_i32 = arith.constant 0 : i32
    %c0_i32_0 = arith.constant 0 : i32
    %c0_i32_1 = arith.constant 0 : i32
    return %c0_i32, %c0_i32_0 : i32, i32
  }
  func.func @transform_3(%arg0: i32) -> (i32, i32) {
    %c0_i32 = arith.constant 0 : i32
    %c0_i32_0 = arith.constant 0 : i32
    %c0_i32_1 = arith.constant 0 : i32
    return %c0_i32, %c0_i32_0 : i32, i32
  }
  func.func @transform_4(%arg0: i32) -> (i32, i32) {
    %c0_i32 = arith.constant 0 : i32
    %c0_i32_0 = arith.constant 0 : i32
    %c0_i32_1 = arith.constant 0 : i32
    return %c0_i32, %c0_i32_0 : i32, i32
  }
  func.func @transform_5(%arg0: i32) -> (i32, i32) {
    %c0_i32 = arith.constant 0 : i32
    %c0_i32_0 = arith.constant 0 : i32
    %c0_i32_1 = arith.constant 0 : i32
    return %c0_i32, %c0_i32_0 : i32, i32
  }
  func.func @transform_6(%arg0: i32) -> (i32, i32) {
    %c0_i32 = arith.constant 0 : i32
    %c0_i32_0 = arith.constant 0 : i32
    %c0_i32_1 = arith.constant 0 : i32
    return %c0_i32, %c0_i32_0 : i32, i32
  }
  func.func @transform_7(%arg0: i32) -> (i32, i32) {
    %c0_i32 = arith.constant 0 : i32
    %c0_i32_0 = arith.constant 0 : i32
    %c0_i32_1 = arith.constant 0 : i32
    return %c0_i32, %c0_i32_0 : i32, i32
  }
  func.func @transform_8(%arg0: i32) -> (i32, i32) {
    %c0_i32 = arith.constant 0 : i32
    %c0_i32_0 = arith.constant 0 : i32
    %c0_i32_1 = arith.constant 0 : i32
    return %c0_i32, %c0_i32_0 : i32, i32
  }
  func.func @transform_9(%arg0: i32) -> (i32, i32) {
    %c0_i32 = arith.constant 0 : i32
    %c0_i32_0 = arith.constant 0 : i32
    %c0_i32_1 = arith.constant 0 : i32
    return %c0_i32, %c0_i32_0 : i32, i32
  }
  func.func @transform_10(%arg0: i32) -> (i32, i32) {
    %c0_i32 = arith.constant 0 : i32
    %c0_i32_0 = arith.constant 0 : i32
    %c0_i32_1 = arith.constant 0 : i32
    return %c0_i32, %c0_i32_0 : i32, i32
  }
  func.func @transform_11(%arg0: i32) -> (i32, i32) {
    %c0_i32 = arith.constant 0 : i32
    %c0_i32_0 = arith.constant 0 : i32
    %c0_i32_1 = arith.constant 0 : i32
    return %c0_i32, %c0_i32_0 : i32, i32
  }
  func.func @transform_12(%arg0: i32) -> (i32, i32) {
    %c0_i32 = arith.constant 0 : i32
    %c0_i32_0 = arith.constant 0 : i32
    %c0_i32_1 = arith.constant 0 : i32
    return %c0_i32, %c0_i32_0 : i32, i32
  }
  func.func @transform_13(%arg0: i32) -> (i32, i32) {
    %c0_i32 = arith.constant 0 : i32
    %c0_i32_0 = arith.constant 0 : i32
    %c0_i32_1 = arith.constant 0 : i32
    return %c0_i32, %c0_i32_0 : i32, i32
  }
  func.func @transform_14(%arg0: i32) -> (i32, i32) {
    %c0_i32 = arith.constant 0 : i32
    %c0_i32_0 = arith.constant 0 : i32
    %c0_i32_1 = arith.constant 0 : i32
    return %c0_i32, %c0_i32_0 : i32, i32
  }
  func.func @transform_15(%arg0: i32) -> (i32, i32) {
    %c0_i32 = arith.constant 0 : i32
    %c0_i32_0 = arith.constant 0 : i32
    %c0_i32_1 = arith.constant 0 : i32
    return %c0_i32, %c0_i32_0 : i32, i32
  }
  func.func @transform_16(%arg0: i32) -> (i32, i32) {
    %c0_i32 = arith.constant 0 : i32
    %c0_i32_0 = arith.constant 0 : i32
    %c0_i32_1 = arith.constant 0 : i32
    return %c0_i32, %c0_i32_0 : i32, i32
  }
  func.func @transform_17(%arg0: i32) -> (i32, i32) {
    %c0_i32 = arith.constant 0 : i32
    %c0_i32_0 = arith.constant 0 : i32
    %c0_i32_1 = arith.constant 0 : i32
    return %c0_i32, %c0_i32_0 : i32, i32
  }
  func.func @transform_18(%arg0: i32) -> (i32, i32) {
    %c0_i32 = arith.constant 0 : i32
    %c0_i32_0 = arith.constant 0 : i32
    return %arg0, %c0_i32 : i32, i32
  }
}

</mosaic_0001>

<llo_original>
// kernel: tpu_custom_call.1
$region0: #{tpu_custom_call.1}
  #allocation0 [shape = 'u32[]', space=smem, size = 0x4, offset = 0x4, fixed_abs, tag = 'smem constant byte address 0x4 - core index']
  #allocation1 [shape = 'u32[144,128]{1,0:T(1,128)}', space=vmem, size = 0x12000, scoped, tag = 'internal scratch']
  %s0 = inlined_call_operand.vmem [shape: f32[512,8], index: 0, kind: input, shape index: {}]
  %s1 = inlined_call_operand.vmem [shape: bf16[8,256], index: 1, kind: input, shape index: {}]
  %s2 = inlined_call_operand.vmem [shape: bf16[256,256], index: 2, kind: input, shape index: {}]
  %s3 = inlined_call_operand.vmem [shape: bf16[256,256], index: 3, kind: input, shape index: {}]
  %s4 = inlined_call_operand.hbm [shape: bf16[256,256], index: 4, kind: input, shape index: {}]
  %s5 = inlined_call_operand.vmem [shape: bf16[8,256], index: 5, kind: input, shape index: {}]
  %s6 = inlined_call_operand.hbm [shape: bf16[256,256], index: 6, kind: input, shape index: {}]
  %s7 = inlined_call_operand.hbm [shape: bf16[256,256], index: 7, kind: input, shape index: {}]
  %s8 = inlined_call_operand.hbm [shape: bf16[256,256], index: 8, kind: input, shape index: {}]
  %s9 = inlined_call_operand.hbm [shape: bf16[256,128], index: 9, kind: input, shape index: {}]
  %s10 = inlined_call_operand.vmem [shape: f32[1,256], index: 10, kind: input, shape index: {}]
  %s11 = inlined_call_operand.vmem [shape: f32[1,256], index: 11, kind: input, shape index: {}]
  %s12 = inlined_call_operand.vmem [shape: f32[1,256], index: 12, kind: input, shape index: {}]
  %s13 = inlined_call_operand.vmem [shape: f32[1,256], index: 13, kind: input, shape index: {}]
  %s14 = inlined_call_operand.vmem [shape: f32[1,256], index: 14, kind: input, shape index: {}]
  %s15 = inlined_call_operand.vmem [shape: f32[1,256], index: 15, kind: input, shape index: {}]
  %s16 = inlined_call_operand.vmem [shape: f32[1,256], index: 16, kind: input, shape index: {}]
  %s17 = inlined_call_operand.vmem [shape: f32[1,128], index: 17, kind: input, shape index: {}]
  %s18 = inlined_call_operand.hbm [shape: f32[512,128], index: 18, kind: output, shape index: {}]
  %s19 = sld [smem:[#allocation0]]
  $region102: #{tpu_custom_call.1} parent=0
    _
  %s21 = ssub.s32 1, %s19
  %s22 = scalar_select 0, %s21, %s19
  $region1: #{tpu_custom_call.1} parent=0
    #allocation2 [shape = 'u8[131072]{0}', space=vmem, size = 0x20000, scoped, tag = 'input window, operand 4, single buffered']
    #allocation3 [shape = 's32[1]{0}', space=sflag, size = 0x4, scoped, tag = 'scoped memory for tpu_custom_call.1']
    #allocation4 [shape = 's32[1]{0}', space=sflag, size = 0x4, scoped, tag = 'scoped memory for tpu_custom_call.1']
    #allocation5 [shape = 'u8[131072]{0}', space=vmem, size = 0x20000, scoped, tag = 'input window, operand 6, single buffered']
    #allocation6 [shape = 's32[1]{0}', space=sflag, size = 0x4, scoped, tag = 'scoped memory for tpu_custom_call.1']
    #allocation7 [shape = 'u8[131072]{0}', space=vmem, size = 0x20000, scoped, tag = 'input window, operand 7, single buffered']
    #allocation8 [shape = 'u8[131072]{0}', space=vmem, size = 0x20000, scoped, tag = 'input window, operand 8, single buffered']
    #allocation9 [shape = 's32[1]{0}', space=sflag, size = 0x4, scoped, tag = 'scoped memory for tpu_custom_call.1']
    #allocation10 [shape = 'u8[65536]{0}', space=vmem, size = 0x10000, scoped, tag = 'input window, operand 9, single buffered']
    #allocation11 [shape = 'u8[262144]{0}', space=vmem, size = 0x40000, scoped, tag = 'output window, operand 0, single buffered']
    %23 = vsyncpa [#allocation3], 0
    %24 = vsyncpa [#allocation6], 0
    %25 = vsyncpa [#allocation9], 0
    %26 = vsyncpa [#allocation4], 0
    // Predicated region
    $region2: #{tpu_custom_call.1} parent=1 // pred_check
      _
    $region3: #{tpu_custom_call.1} parent=1 // pred_check_branch
      %28 = sbr.rel (0) target = $region5
    $region4: #{tpu_custom_call.1} parent=1 // pred_region
      _
    $region5: #{tpu_custom_call.1} parent=1 // pred_fallthru
      _
    // Predicated region
    $region6: #{tpu_custom_call.1} parent=1 // pred_check
      _
    $region7: #{tpu_custom_call.1} parent=1 // pred_check_branch
      %30 = sbr.rel (0) target = $region9
    $region8: #{tpu_custom_call.1} parent=1 // pred_region
      _
    $region9: #{tpu_custom_call.1} parent=1 // pred_fallthru
      _
    // Predicated region
    $region10: #{tpu_custom_call.1} parent=1 // pred_check
      _
    $region11: #{tpu_custom_call.1} parent=1 // pred_check_branch
      %32 = sbr.rel (0) target = $region13
    $region12: #{tpu_custom_call.1} parent=1 // pred_region
      _
    $region13: #{tpu_custom_call.1} parent=1 // pred_fallthru
      _
    // Predicated region
    $region14: #{tpu_custom_call.1} parent=1 // pred_check
      _
    $region15: #{tpu_custom_call.1} parent=1 // pred_check_branch
      %34 = sbr.rel (0) target = $region17
    $region16: #{tpu_custom_call.1} parent=1 // pred_region
      _
    $region17: #{tpu_custom_call.1} parent=1 // pred_fallthru
      _
    // Predicated region
    $region18: #{tpu_custom_call.1} parent=1 // pred_check
      _
    $region19: #{tpu_custom_call.1} parent=1 // pred_check_branch
      %36 = sbr.rel (0) target = $region21
    $region20: #{tpu_custom_call.1} parent=1 // pred_region
      %s38 = ssub.s32 4096, 4096
      %39 = vsyncadd [#allocation3], %s38
      %s40 = sshll.u32 [#allocation2], 4
      %s41 = int_to_ptr.vmem [resolvable:$true] %s40
      %46 = dma.hbm_to_vmem [thread:$0]  %s4, 4096, %s41, [#allocation3], 128, 128, 8
    $region21: #{tpu_custom_call.1} parent=1 // pred_fallthru
      _
    // Predicated region
    $region22: #{tpu_custom_call.1} parent=1 // pred_check
      _
    $region23: #{tpu_custom_call.1} parent=1 // pred_check_branch
      %48 = sbr.rel (0) target = $region25
    $region24: #{tpu_custom_call.1} parent=1 // pred_region
      _
    $region25: #{tpu_custom_call.1} parent=1 // pred_fallthru
      _
    // Predicated region
    $region26: #{tpu_custom_call.1} parent=1 // pred_check
      _
    $region27: #{tpu_custom_call.1} parent=1 // pred_check_branch
      %50 = sbr.rel (0) target = $region29
    $region28: #{tpu_custom_call.1} parent=1 // pred_region
      %s52 = ssub.s32 4096, 4096
      %53 = vsyncadd [#allocation6], %s52
      %s54 = sshll.u32 [#allocation5], 4
      %s55 = int_to_ptr.vmem [resolvable:$true] %s54
      %60 = dma.hbm_to_vmem [thread:$0]  %s6, 4096, %s55, [#allocation6], 128, 128, 8
    $region29: #{tpu_custom_call.1} parent=1 // pred_fallthru
      _
    // Predicated region
    $region30: #{tpu_custom_call.1} parent=1 // pred_check
      _
    $region31: #{tpu_custom_call.1} parent=1 // pred_check_branch
      %62 = sbr.rel (0) target = $region33
    $region32: #{tpu_custom_call.1} parent=1 // pred_region
      %s64 = ssub.s32 4096, 4096
      %65 = vsyncadd [#allocation6], %s64
      %s66 = sshll.u32 [#allocation7], 4
      %s67 = int_to_ptr.vmem [resolvable:$true] %s66
      %72 = dma.hbm_to_vmem [thread:$0]  %s7, 4096, %s67, [#allocation6], 128, 128, 8
    $region33: #{tpu_custom_call.1} parent=1 // pred_fallthru
      _
    // Predicated region
    $region34: #{tpu_custom_call.1} parent=1 // pred_check
      _
    $region35: #{tpu_custom_call.1} parent=1 // pred_check_branch
      %74 = sbr.rel (0) target = $region37
    $region36: #{tpu_custom_call.1} parent=1 // pred_region
      %s76 = ssub.s32 4096, 4096
      %77 = vsyncadd [#allocation9], %s76
      %s78 = sshll.u32 [#allocation8], 4
      %s79 = int_to_ptr.vmem [resolvable:$true] %s78
      %84 = dma.hbm_to_vmem [thread:$0]  %s8, 4096, %s79, [#allocation9], 128, 128, 8
    $region37: #{tpu_custom_call.1} parent=1 // pred_fallthru
      _
    // Predicated region
    $region38: #{tpu_custom_call.1} parent=1 // pred_check
      _
    $region39: #{tpu_custom_call.1} parent=1 // pred_check_branch
      %86 = sbr.rel (0) target = $region41
    $region40: #{tpu_custom_call.1} parent=1 // pred_region
      %s88 = ssub.s32 2048, 2048
      %89 = vsyncadd [#allocation9], %s88
      %s90 = sshll.u32 [#allocation10], 4
      %s91 = int_to_ptr.vmem [resolvable:$true] %s90
      %96 = dma.hbm_to_vmem [thread:$0]  %s9, 2048, %s91, [#allocation9], 64, 64, 4
    $region41: #{tpu_custom_call.1} parent=1 // pred_fallthru
      _
    // Predicated region
    $region42: #{tpu_custom_call.1} parent=1 // pred_check
      _
    $region43: #{tpu_custom_call.1} parent=1 // pred_check_branch
      %98 = sbr.rel (0) target = $region45
    $region44: #{tpu_custom_call.1} parent=1 // pred_region
      _
    $region45: #{tpu_custom_call.1} parent=1 // pred_fallthru
      _
    // Predicated region
    $region46: #{tpu_custom_call.1} parent=1 // pred_check
      _
    $region47: #{tpu_custom_call.1} parent=1 // pred_check_branch
      %100 = sbr.rel (0) target = $region49
    $region48: #{tpu_custom_call.1} parent=1 // pred_region
      _
    $region49: #{tpu_custom_call.1} parent=1 // pred_fallthru
      _
    // Predicated region
    $region50: #{tpu_custom_call.1} parent=1 // pred_check
      _
    $region51: #{tpu_custom_call.1} parent=1 // pred_check_branch
      %102 = sbr.rel (0) target = $region53
    $region52: #{tpu_custom_call.1} parent=1 // pred_region
      _
    $region53: #{tpu_custom_call.1} parent=1 // pred_fallthru
      _
    // Predicated region
    $region54: #{tpu_custom_call.1} parent=1 // pred_check
      _
    $region55: #{tpu_custom_call.1} parent=1 // pred_check_branch
      %104 = sbr.rel (0) target = $region57
    $region56: #{tpu_custom_call.1} parent=1 // pred_region
      _
    $region57: #{tpu_custom_call.1} parent=1 // pred_fallthru
      _
    // Predicated region
    $region58: #{tpu_custom_call.1} parent=1 // pred_check
      _
    $region59: #{tpu_custom_call.1} parent=1 // pred_check_branch
      %106 = sbr.rel (0) target = $region61
    $region60: #{tpu_custom_call.1} parent=1 // pred_region
      _
    $region61: #{tpu_custom_call.1} parent=1 // pred_fallthru
      _
    // Predicated region
    $region62: #{tpu_custom_call.1} parent=1 // pred_check
      _
    $region63: #{tpu_custom_call.1} parent=1 // pred_check_branch
      %108 = sbr.rel (0) target = $region65
    $region64: #{tpu_custom_call.1} parent=1 // pred_region
      _
    $region65: #{tpu_custom_call.1} parent=1 // pred_fallthru
      _
    // Predicated region
    $region66: #{tpu_custom_call.1} parent=1 // pred_check
      _
    $region67: #{tpu_custom_call.1} parent=1 // pred_check_branch
      %110 = sbr.rel (0) target = $region69
    $region68: #{tpu_custom_call.1} parent=1 // pred_region
      _
    $region69: #{tpu_custom_call.1} parent=1 // pred_fallthru
      _
    // Predicated region
    $region70: #{tpu_custom_call.1} parent=1 // pred_check
      _
    $region71: #{tpu_custom_call.1} parent=1 // pred_check_branch
      %112 = sbr.rel (0) target = $region73
    $region72: #{tpu_custom_call.1} parent=1 // pred_region
      _
    $region73: #{tpu_custom_call.1} parent=1 // pred_fallthru
      _
    // Predicated region
    $region74: #{tpu_custom_call.1} parent=1 // pred_check
      _
    $region75: #{tpu_custom_call.1} parent=1 // pred_check_branch
      %114 = sbr.rel (0) target = $region77
    $region76: #{tpu_custom_call.1} parent=1 // pred_region
      %115 = dma.done [#allocation3], 4096
    $region77: #{tpu_custom_call.1} parent=1 // pred_fallthru
      _
    // Predicated region
    $region78: #{tpu_custom_call.1} parent=1 // pred_check
      _
    $region79: #{tpu_custom_call.1} parent=1 // pred_check_branch
      %117 = sbr.rel (0) target = $region81
    $region80: #{tpu_custom_call.1} parent=1 // pred_region
      %118 = dma.done [#allocation6], 4096
    $region81: #{tpu_custom_call.1} parent=1 // pred_fallthru
      _
    // Predicated region
    $region82: #{tpu_custom_call.1} parent=1 // pred_check
      _
    $region83: #{tpu_custom_call.1} parent=1 // pred_check_branch
      %120 = sbr.rel (0) target = $region85
    $region84: #{tpu_custom_call.1} parent=1 // pred_region
      %121 = dma.done [#allocation6], 4096
    $region85: #{tpu_custom_call.1} parent=1 // pred_fallthru
      _
    // Predicated region
    $region86: #{tpu_custom_call.1} parent=1 // pred_check
      _
    $region87: #{tpu_custom_call.1} parent=1 // pred_check_branch
      %123 = sbr.rel (0) target = $region89
    $region88: #{tpu_custom_call.1} parent=1 // pred_region
      %124 = dma.done [#allocation9], 4096
    $region89: #{tpu_custom_call.1} parent=1 // pred_fallthru
      _
    // Predicated region
    $region90: #{tpu_custom_call.1} parent=1 // pred_check
      _
    $region91: #{tpu_custom_call.1} parent=1 // pred_check_branch
      %126 = sbr.rel (0) target = $region93
    $region92: #{tpu_custom_call.1} parent=1 // pred_region
      %127 = dma.done [#allocation9], 2048
    $region93: #{tpu_custom_call.1} parent=1 // pred_fallthru
      _
    %v129 = vld [vmem:[%s0] sm:$0xff]
    %v130 = vld [vmem:[%s0 + $0x8] sm:$0xff]
    %v131 = vld [vmem:[%s0 + $0x10] sm:$0xff]
    %v132 = vld [vmem:[%s0 + $0x18] sm:$0xff]
    %v133 = vld [vmem:[%s0 + $0x20] sm:$0xff]
    %v134 = vld [vmem:[%s0 + $0x28] sm:$0xff]
    %v135 = vld [vmem:[%s0 + $0x30] sm:$0xff]
    %v136 = vld [vmem:[%s0 + $0x38] sm:$0xff]
    %v137 = vld [vmem:[%s0 + $0x40] sm:$0xff]
    %v138 = vld [vmem:[%s0 + $0x48] sm:$0xff]
    %v139 = vld [vmem:[%s0 + $0x50] sm:$0xff]
    %v140 = vld [vmem:[%s0 + $0x58] sm:$0xff]
    %v141 = vld [vmem:[%s0 + $0x60] sm:$0xff]
    %v142 = vld [vmem:[%s0 + $0x68] sm:$0xff]
    %v143 = vld [vmem:[%s0 + $0x70] sm:$0xff]
    %v144 = vld [vmem:[%s0 + $0x78] sm:$0xff]
    %v145 = vld [vmem:[%s0 + $0x80] sm:$0xff]
    %v146 = vld [vmem:[%s0 + $0x88] sm:$0xff]
    %v147 = vld [vmem:[%s0 + $0x90] sm:$0xff]
    %v148 = vld [vmem:[%s0 + $0x98] sm:$0xff]
    %v149 = vld [vmem:[%s0 + $0xa0] sm:$0xff]
    %v150 = vld [vmem:[%s0 + $0xa8] sm:$0xff]
    %v151 = vld [vmem:[%s0 + $0xb0] sm:$0xff]
    %v152 = vld [vmem:[%s0 + $0xb8] sm:$0xff]
    %v153 = vld [vmem:[%s0 + $0xc0] sm:$0xff]
    %v154 = vld [vmem:[%s0 + $0xc8] sm:$0xff]
    %v155 = vld [vmem:[%s0 + $0xd0] sm:$0xff]
    %v156 = vld [vmem:[%s0 + $0xd8] sm:$0xff]
    %v157 = vld [vmem:[%s0 + $0xe0] sm:$0xff]
    %v158 = vld [vmem:[%s0 + $0xe8] sm:$0xff]
    %v159 = vld [vmem:[%s0 + $0xf0] sm:$0xff]
    %v160 = vld [vmem:[%s0 + $0xf8] sm:$0xff]
    %v161 = vld [vmem:[%s0 + $0x100] sm:$0xff]
    %v162 = vld [vmem:[%s0 + $0x108] sm:$0xff]
    %v163 = vld [vmem:[%s0 + $0x110] sm:$0xff]
    %v164 = vld [vmem:[%s0 + $0x118] sm:$0xff]
    %v165 = vld [vmem:[%s0 + $0x120] sm:$0xff]
    %v166 = vld [vmem:[%s0 + $0x128] sm:$0xff]
    %v167 = vld [vmem:[%s0 + $0x130] sm:$0xff]
    %v168 = vld [vmem:[%s0 + $0x138] sm:$0xff]
    %v169 = vld [vmem:[%s0 + $0x140] sm:$0xff]
    %v170 = vld [vmem:[%s0 + $0x148] sm:$0xff]
    %v171 = vld [vmem:[%s0 + $0x150] sm:$0xff]
    %v172 = vld [vmem:[%s0 + $0x158] sm:$0xff]
    %v173 = vld [vmem:[%s0 + $0x160] sm:$0xff]
    %v174 = vld [vmem:[%s0 + $0x168] sm:$0xff]
    %v175 = vld [vmem:[%s0 + $0x170] sm:$0xff]
    %v176 = vld [vmem:[%s0 + $0x178] sm:$0xff]
    %v177 = vld [vmem:[%s0 + $0x180] sm:$0xff]
    %v178 = vld [vmem:[%s0 + $0x188] sm:$0xff]
    %v179 = vld [vmem:[%s0 + $0x190] sm:$0xff]
    %v180 = vld [vmem:[%s0 + $0x198] sm:$0xff]
    %v181 = vld [vmem:[%s0 + $0x1a0] sm:$0xff]
    %v182 = vld [vmem:[%s0 + $0x1a8] sm:$0xff]
    %v183 = vld [vmem:[%s0 + $0x1b0] sm:$0xff]
    %v184 = vld [vmem:[%s0 + $0x1b8] sm:$0xff]
    %v185 = vld [vmem:[%s0 + $0x1c0] sm:$0xff]
    %v186 = vld [vmem:[%s0 + $0x1c8] sm:$0xff]
    %v187 = vld [vmem:[%s0 + $0x1d0] sm:$0xff]
    %v188 = vld [vmem:[%s0 + $0x1d8] sm:$0xff]
    %v189 = vld [vmem:[%s0 + $0x1e0] sm:$0xff]
    %v190 = vld [vmem:[%s0 + $0x1e8] sm:$0xff]
    %v191 = vld [vmem:[%s0 + $0x1f0] sm:$0xff]
    %v192 = vld [vmem:[%s0 + $0x1f8] sm:$0xff]
    %v193 = vpack.c.bf16 %v130, %v129
    %v194 = vpack.c.bf16 %v132, %v131
    %v195 = vpack.c.bf16 %v134, %v133
    %v196 = vpack.c.bf16 %v136, %v135
    %v197 = vpack.c.bf16 %v138, %v137
    %v198 = vpack.c.bf16 %v140, %v139
    %v199 = vpack.c.bf16 %v142, %v141
    %v200 = vpack.c.bf16 %v144, %v143
    %v201 = vpack.c.bf16 %v146, %v145
    %v202 = vpack.c.bf16 %v148, %v147
    %v203 = vpack.c.bf16 %v150, %v149
    %v204 = vpack.c.bf16 %v152, %v151
    %v205 = vpack.c.bf16 %v154, %v153
    %v206 = vpack.c.bf16 %v156, %v155
    %v207 = vpack.c.bf16 %v158, %v157
    %v208 = vpack.c.bf16 %v160, %v159
    %v209 = vpack.c.bf16 %v162, %v161
    %v210 = vpack.c.bf16 %v164, %v163
    %v211 = vpack.c.bf16 %v166, %v165
    %v212 = vpack.c.bf16 %v168, %v167
    %v213 = vpack.c.bf16 %v170, %v169
    %v214 = vpack.c.bf16 %v172, %v171
    %v215 = vpack.c.bf16 %v174, %v173
    %v216 = vpack.c.bf16 %v176, %v175
    %v217 = vpack.c.bf16 %v178, %v177
    %v218 = vpack.c.bf16 %v180, %v179
    %v219 = vpack.c.bf16 %v182, %v181
    %v220 = vpack.c.bf16 %v184, %v183
    %v221 = vpack.c.bf16 %v186, %v185
    %v222 = vpack.c.bf16 %v188, %v187
    %v223 = vpack.c.bf16 %v190, %v189
    %v224 = vpack.c.bf16 %v192, %v191
    %v225 = vld [vmem:[%s1] sm:$0xff]
    %v226 = vld [vmem:[%s10] sm:$0x3]
    %v228 = vlaneseq
    %v229 = vshrl.u32 %v228, 7
    %v230 = vsub.s32 0, %v229
    %v231 = vrot.slane %v226, %v230
    %v232 = vlaneseq
    %v233 = vshrl.u32 %v232, 7
    %v234 = vsub.s32 1, %v233
    %v235 = vrot.slane %v226, %v234
    %v239 = vunpack.c.l.b16 %v225
    %v240 = vunpack.c.h.b16 %v225
    %v241 = vpack.c.b16 %v239, %v239
    %v242 = vpack.c.b16 %v240, %v240
    %vm243 = vcmask 64512
    %v245 = vsel %vm243, %v193, 0
    %v248 = vsel %vm243, %v194, 0
    %v251 = vsel %vm243, %v195, 0
    %v254 = vsel %vm243, %v196, 0
    %v257 = vsel %vm243, %v197, 0
    %v260 = vsel %vm243, %v198, 0
    %v263 = vsel %vm243, %v199, 0
    %v266 = vsel %vm243, %v200, 0
    %v269 = vsel %vm243, %v201, 0
    %v272 = vsel %vm243, %v202, 0
    %v275 = vsel %vm243, %v203, 0
    %v278 = vsel %vm243, %v204, 0
    %v281 = vsel %vm243, %v205, 0
    %v284 = vsel %vm243, %v206, 0
    %v287 = vsel %vm243, %v207, 0
    %v290 = vsel %vm243, %v208, 0
    %v293 = vsel %vm243, %v209, 0
    %v296 = vsel %vm243, %v210, 0
    %v299 = vsel %vm243, %v211, 0
    %v302 = vsel %vm243, %v212, 0
    %v305 = vsel %vm243, %v213, 0
    %v308 = vsel %vm243, %v214, 0
    %v311 = vsel %vm243, %v215, 0
    %v314 = vsel %vm243, %v216, 0
    %v317 = vsel %vm243, %v217, 0
    %v320 = vsel %vm243, %v218, 0
    %v323 = vsel %vm243, %v219, 0
    %v326 = vsel %vm243, %v220, 0
    %v329 = vsel %vm243, %v221, 0
    %v332 = vsel %vm243, %v222, 0
    %v335 = vsel %vm243, %v223, 0
    %v338 = vsel %vm243, %v224, 0
    %vm340 = vcmask 1043456
    %v342 = vsel %vm340, %v241, 0
    %v345 = vsel %vm340, %v242, 0
    %347 = vmatprep.subr.bf16.mxu0 %v345
    %348 = vmatpush1.bf16.msra.mxu0 %v342
    %349 = vmatprep.subr.bf16.mxu0 0
    %350 = vmatpush1.bf16.msra.mxu0 0
    %351 = vmatprep.subr.bf16.mxu0 0
    %352 = vmatpush1.bf16.msra.mxu0 0
    %353 = vmatprep.subr.bf16.mxu0 0
    %354 = vmatpush1.bf16.msra.mxu0 0
    %355 = vmatprep.subr.bf16.mxu0 0
    %356 = vmatpush1.bf16.msra.mxu0 0
    %357 = vmatprep.subr.bf16.mxu0 0
    %358 = vmatpush1.bf16.msra.mxu0 0
    %359 = vmatprep.subr.bf16.mxu0 0
    %360 = vmatpush1.bf16.msra.mxu0 0
    %361 = vmatprep.subr.bf16.mxu0 0
    %362 = vmatpush1.bf16.msra.mxu0 0
    %363 = vmatprep.subr.bf16.mxu0 0
    %364 = vmatpush1.bf16.msra.mxu0 0
    %365 = vmatprep.subr.bf16.mxu0 0
    %366 = vmatpush1.bf16.msra.mxu0 0
    %367 = vmatprep.subr.bf16.mxu0 0
    %368 = vmatpush1.bf16.msra.mxu0 0
    %369 = vmatprep.subr.bf16.mxu0 0
    %370 = vmatpush1.bf16.msra.mxu0 0
    %371 = vmatprep.subr.bf16.mxu0 0
    %372 = vmatpush1.bf16.msra.mxu0 0
    %373 = vmatprep.subr.bf16.mxu0 0
    %374 = vmatpush1.bf16.msra.mxu0 0
    %375 = vmatprep.subr.bf16.mxu0 0
    %376 = vmatpush1.bf16.msra.mxu0 0
    %377 = vmatprep.subr.bf16.mxu0 0
    %378 = vmatpush1.bf16.msra.mxu0 0
    %379 = vmatprep.mubr.bf16.mxu0 0
    %380 = vmatmul.mubr.bf16.gmra.mrb[0].mxu0 %v245
    %v381 = vpop.f32.mrb[0].mxu0
    %v382 = vadd.f32 %v231, %v381
    %v383 = vpop.f32.mrb[0].mxu0
    %v384 = vadd.f32 %v235, %v383
    %v385 = vpop.f32.mrb[0].mxu0
    %v386 = vadd.f32 %v231, %v385
    %v387 = vpop.f32.mrb[0].mxu0
    %v388 = vadd.f32 %v235, %v387
    %389 = vmatprep.mubr.bf16.mxu0 0
    %390 = vmatmul.mubr.bf16.gmra.mrb[0].mxu0 %v248
    %v391 = vpop.f32.mrb[0].mxu0
    %v392 = vadd.f32 %v231, %v391
    %v393 = vpop.f32.mrb[0].mxu0
    %v394 = vadd.f32 %v235, %v393
    %v395 = vpop.f32.mrb[0].mxu0
    %v396 = vadd.f32 %v231, %v395
    %v397 = vpop.f32.mrb[0].mxu0
    %v398 = vadd.f32 %v235, %v397
    %399 = vmatprep.mubr.bf16.mxu0 0
    %400 = vmatmul.mubr.bf16.gmra.mrb[0].mxu0 %v251
    %v401 = vpop.f32.mrb[0].mxu0
    %v402 = vadd.f32 %v231, %v401
    %v403 = vpop.f32.mrb[0].mxu0
    %v404 = vadd.f32 %v235, %v403
    %v405 = vpop.f32.mrb[0].mxu0
    %v406 = vadd.f32 %v231, %v405
    %v407 = vpop.f32.mrb[0].mxu0
    %v408 = vadd.f32 %v235, %v407
    %409 = vmatprep.mubr.bf16.mxu0 0
    %410 = vmatmul.mubr.bf16.gmra.mrb[0].mxu0 %v254
    %v411 = vpop.f32.mrb[0].mxu0
    %v412 = vadd.f32 %v231, %v411
    %v413 = vpop.f32.mrb[0].mxu0
    %v414 = vadd.f32 %v235, %v413
    %v415 = vpop.f32.mrb[0].mxu0
    %v416 = vadd.f32 %v231, %v415
    %v417 = vpop.f32.mrb[0].mxu0
    %v418 = vadd.f32 %v235, %v417
    %419 = vmatprep.mubr.bf16.mxu0 0
    %420 = vmatmul.mubr.bf16.gmra.mrb[0].mxu0 %v257
    %v421 = vpop.f32.mrb[0].mxu0
    %v422 = vadd.f32 %v231, %v421
    %v423 = vpop.f32.mrb[0].mxu0
    %v424 = vadd.f32 %v235, %v423
    %v425 = vpop.f32.mrb[0].mxu0
    %v426 = vadd.f32 %v231, %v425
    %v427 = vpop.f32.mrb[0].mxu0
    %v428 = vadd.f32 %v235, %v427
    %429 = vmatprep.mubr.bf16.mxu0 0
    %430 = vmatmul.mubr.bf16.gmra.mrb[0].mxu0 %v260
    %v431 = vpop.f32.mrb[0].mxu0
    %v432 = vadd.f32 %v231, %v431
    %v433 = vpop.f32.mrb[0].mxu0
    %v434 = vadd.f32 %v235, %v433
    %v435 = vpop.f32.mrb[0].mxu0
    %v436 = vadd.f32 %v231, %v435
    %v437 = vpop.f32.mrb[0].mxu0
    %v438 = vadd.f32 %v235, %v437
    %439 = vmatprep.mubr.bf16.mxu0 0
    %440 = vmatmul.mubr.bf16.gmra.mrb[0].mxu0 %v263
    %v441 = vpop.f32.mrb[0].mxu0
    %v442 = vadd.f32 %v231, %v441
    %v443 = vpop.f32.mrb[0].mxu0
    %v444 = vadd.f32 %v235, %v443
    %v445 = vpop.f32.mrb[0].mxu0
    %v446 = vadd.f32 %v231, %v445
    %v447 = vpop.f32.mrb[0].mxu0
    %v448 = vadd.f32 %v235, %v447
    %449 = vmatprep.mubr.bf16.mxu0 0
    %450 = vmatmul.mubr.bf16.gmra.mrb[0].mxu0 %v266
    %v451 = vpop.f32.mrb[0].mxu0
    %v452 = vadd.f32 %v231, %v451
    %v453 = vpop.f32.mrb[0].mxu0
    %v454 = vadd.f32 %v235, %v453
    %v455 = vpop.f32.mrb[0].mxu0
    %v456 = vadd.f32 %v231, %v455
    %v457 = vpop.f32.mrb[0].mxu0
    %v458 = vadd.f32 %v235, %v457
    %459 = vmatprep.mubr.bf16.mxu0 0
    %460 = vmatmul.mubr.bf16.gmra.mrb[0].mxu0 %v269
    %v461 = vpop.f32.mrb[0].mxu0
    %v462 = vadd.f32 %v231, %v461
    %v463 = vpop.f32.mrb[0].mxu0
    %v464 = vadd.f32 %v235, %v463
    %v465 = vpop.f32.mrb[0].mxu0
    %v466 = vadd.f32 %v231, %v465
    %v467 = vpop.f32.mrb[0].mxu0
    %v468 = vadd.f32 %v235, %v467
    %469 = vmatprep.mubr.bf16.mxu0 0
    %470 = vmatmul.mubr.bf16.gmra.mrb[0].mxu0 %v272
    %v471 = vpop.f32.mrb[0].mxu0
    %v472 = vadd.f32 %v231, %v471
    %v473 = vpop.f32.mrb[0].mxu0
    %v474 = vadd.f32 %v235, %v473
    %v475 = vpop.f32.mrb[0].mxu0
    %v476 = vadd.f32 %v231, %v475
    %v477 = vpop.f32.mrb[0].mxu0
    %v478 = vadd.f32 %v235, %v477
    %479 = vmatprep.mubr.bf16.mxu0 0
    %480 = vmatmul.mubr.bf16.gmra.mrb[0].mxu0 %v275
    %v481 = vpop.f32.mrb[0].mxu0
    %v482 = vadd.f32 %v231, %v481
    %v483 = vpop.f32.mrb[0].mxu0
    %v484 = vadd.f32 %v235, %v483
    %v485 = vpop.f32.mrb[0].mxu0
    %v486 = vadd.f32 %v231, %v485
    %v487 = vpop.f32.mrb[0].mxu0
    %v488 = vadd.f32 %v235, %v487
    %489 = vmatprep.mubr.bf16.mxu0 0
    %490 = vmatmul.mubr.bf16.gmra.mrb[0].mxu0 %v278
    %v491 = vpop.f32.mrb[0].mxu0
    %v492 = vadd.f32 %v231, %v491
    %v493 = vpop.f32.mrb[0].mxu0
    %v494 = vadd.f32 %v235, %v493
    %v495 = vpop.f32.mrb[0].mxu0
    %v496 = vadd.f32 %v231, %v495
    %v497 = vpop.f32.mrb[0].mxu0
    %v498 = vadd.f32 %v235, %v497
    %499 = vmatprep.mubr.bf16.mxu0 0
    %500 = vmatmul.mubr.bf16.gmra.mrb[0].mxu0 %v281
    %v501 = vpop.f32.mrb[0].mxu0
    %v502 = vadd.f32 %v231, %v501
    %v503 = vpop.f32.mrb[0].mxu0
    %v504 = vadd.f32 %v235, %v503
    %v505 = vpop.f32.mrb[0].mxu0
    %v506 = vadd.f32 %v231, %v505
    %v507 = vpop.f32.mrb[0].mxu0
    %v508 = vadd.f32 %v235, %v507
    %509 = vmatprep.mubr.bf16.mxu0 0
    %510 = vmatmul.mubr.bf16.gmra.mrb[0].mxu0 %v284
    %v511 = vpop.f32.mrb[0].mxu0
    %v512 = vadd.f32 %v231, %v511
    %v513 = vpop.f32.mrb[0].mxu0
    %v514 = vadd.f32 %v235, %v513
    %v515 = vpop.f32.mrb[0].mxu0
    %v516 = vadd.f32 %v231, %v515
    %v517 = vpop.f32.mrb[0].mxu0
    %v518 = vadd.f32 %v235, %v517
    %519 = vmatprep.mubr.bf16.mxu0 0
    %520 = vmatmul.mubr.bf16.gmra.mrb[0].mxu0 %v287
    %v521 = vpop.f32.mrb[0].mxu0
    %v522 = vadd.f32 %v231, %v521
    %v523 = vpop.f32.mrb[0].mxu0
    %v524 = vadd.f32 %v235, %v523
    %v525 = vpop.f32.mrb[0].mxu0
    %v526 = vadd.f32 %v231, %v525
    %v527 = vpop.f32.mrb[0].mxu0
    %v528 = vadd.f32 %v235, %v527
    %529 = vmatprep.mubr.bf16.mxu0 0
    %530 = vmatmul.mubr.bf16.gmra.mrb[0].mxu0 %v290
    %v531 = vpop.f32.mrb[0].mxu0
    %v532 = vadd.f32 %v231, %v531
    %v533 = vpop.f32.mrb[0].mxu0
    %v534 = vadd.f32 %v235, %v533
    %v535 = vpop.f32.mrb[0].mxu0
    %v536 = vadd.f32 %v231, %v535
    %v537 = vpop.f32.mrb[0].mxu0
    %v538 = vadd.f32 %v235, %v537
    %539 = vmatprep.mubr.bf16.mxu0 0
    %540 = vmatmul.mubr.bf16.gmra.mrb[0].mxu0 %v293
    %v541 = vpop.f32.mrb[0].mxu0
    %v542 = vadd.f32 %v231, %v541
    %v543 = vpop.f32.mrb[0].mxu0
    %v544 = vadd.f32 %v235, %v543
    %v545 = vpop.f32.mrb[0].mxu0
    %v546 = vadd.f32 %v231, %v545
    %v547 = vpop.f32.mrb[0].mxu0
    %v548 = vadd.f32 %v235, %v547
    %549 = vmatprep.mubr.bf16.mxu0 0
    %550 = vmatmul.mubr.bf16.gmra.mrb[0].mxu0 %v296
    %v551 = vpop.f32.mrb[0].mxu0
    %v552 = vadd.f32 %v231, %v551
    %v553 = vpop.f32.mrb[0].mxu0
    %v554 = vadd.f32 %v235, %v553
    %v555 = vpop.f32.mrb[0].mxu0
    %v556 = vadd.f32 %v231, %v555
    %v557 = vpop.f32.mrb[0].mxu0
    %v558 = vadd.f32 %v235, %v557
    %559 = vmatprep.mubr.bf16.mxu0 0
    %560 = vmatmul.mubr.bf16.gmra.mrb[0].mxu0 %v299
    %v561 = vpop.f32.mrb[0].mxu0
    %v562 = vadd.f32 %v231, %v561
    %v563 = vpop.f32.mrb[0].mxu0
    %v564 = vadd.f32 %v235, %v563
    %v565 = vpop.f32.mrb[0].mxu0
    %v566 = vadd.f32 %v231, %v565
    %v567 = vpop.f32.mrb[0].mxu0
    %v568 = vadd.f32 %v235, %v567
    %569 = vmatprep.mubr.bf16.mxu0 0
    %570 = vmatmul.mubr.bf16.gmra.mrb[0].mxu0 %v302
    %v571 = vpop.f32.mrb[0].mxu0
    %v572 = vadd.f32 %v231, %v571
    %v573 = vpop.f32.mrb[0].mxu0
    %v574 = vadd.f32 %v235, %v573
    %v575 = vpop.f32.mrb[0].mxu0
    %v576 = vadd.f32 %v231, %v575
    %v577 = vpop.f32.mrb[0].mxu0
    %v578 = vadd.f32 %v235, %v577
    %579 = vmatprep.mubr.bf16.mxu0 0
    %580 = vmatmul.mubr.bf16.gmra.mrb[0].mxu0 %v305
    %v581 = vpop.f32.mrb[0].mxu0
    %v582 = vadd.f32 %v231, %v581
    %v583 = vpop.f32.mrb[0].mxu0
    %v584 = vadd.f32 %v235, %v583
    %v585 = vpop.f32.mrb[0].mxu0
    %v586 = vadd.f32 %v231, %v585
    %v587 = vpop.f32.mrb[0].mxu0
    %v588 = vadd.f32 %v235, %v587
    %589 = vmatprep.mubr.bf16.mxu0 0
    %590 = vmatmul.mubr.bf16.gmra.mrb[0].mxu0 %v308
    %v591 = vpop.f32.mrb[0].mxu0
    %v592 = vadd.f32 %v231, %v591
    %v593 = vpop.f32.mrb[0].mxu0
    %v594 = vadd.f32 %v235, %v593
    %v595 = vpop.f32.mrb[0].mxu0
    %v596 = vadd.f32 %v231, %v595
    %v597 = vpop.f32.mrb[0].mxu0
    %v598 = vadd.f32 %v235, %v597
    %599 = vmatprep.mubr.bf16.mxu0 0
    %600 = vmatmul.mubr.bf16.gmra.mrb[0].mxu0 %v311
    %v601 = vpop.f32.mrb[0].mxu0
    %v602 = vadd.f32 %v231, %v601
    %v603 = vpop.f32.mrb[0].mxu0
    %v604 = vadd.f32 %v235, %v603
    %v605 = vpop.f32.mrb[0].mxu0
    %v606 = vadd.f32 %v231, %v605
    %v607 = vpop.f32.mrb[0].mxu0
    %v608 = vadd.f32 %v235, %v607
    %609 = vmatprep.mubr.bf16.mxu0 0
    %610 = vmatmul.mubr.bf16.gmra.mrb[0].mxu0 %v314
    %v611 = vpop.f32.mrb[0].mxu0
    %v612 = vadd.f32 %v231, %v611
    %v613 = vpop.f32.mrb[0].mxu0
    %v614 = vadd.f32 %v235, %v613
    %v615 = vpop.f32.mrb[0].mxu0
    %v616 = vadd.f32 %v231, %v615
    %v617 = vpop.f32.mrb[0].mxu0
    %v618 = vadd.f32 %v235, %v617
    %619 = vmatprep.mubr.bf16.mxu0 0
    %620 = vmatmul.mubr.bf16.gmra.mrb[0].mxu0 %v317
    %v621 = vpop.f32.mrb[0].mxu0
    %v622 = vadd.f32 %v231, %v621
    %v623 = vpop.f32.mrb[0].mxu0
    %v624 = vadd.f32 %v235, %v623
    %v625 = vpop.f32.mrb[0].mxu0
    %v626 = vadd.f32 %v231, %v625
    %v627 = vpop.f32.mrb[0].mxu0
    %v628 = vadd.f32 %v235, %v627
    %629 = vmatprep.mubr.bf16.mxu0 0
    %630 = vmatmul.mubr.bf16.gmra.mrb[0].mxu0 %v320
    %v631 = vpop.f32.mrb[0].mxu0
    %v632 = vadd.f32 %v231, %v631
    %v633 = vpop.f32.mrb[0].mxu0
    %v634 = vadd.f32 %v235, %v633
    %v635 = vpop.f32.mrb[0].mxu0
    %v636 = vadd.f32 %v231, %v635
    %v637 = vpop.f32.mrb[0].mxu0
    %v638 = vadd.f32 %v235, %v637
    %639 = vmatprep.mubr.bf16.mxu0 0
    %640 = vmatmul.mubr.bf16.gmra.mrb[0].mxu0 %v323
    %v641 = vpop.f32.mrb[0].mxu0
    %v642 = vadd.f32 %v231, %v641
    %v643 = vpop.f32.mrb[0].mxu0
    %v644 = vadd.f32 %v235, %v643
    %v645 = vpop.f32.mrb[0].mxu0
    %v646 = vadd.f32 %v231, %v645
    %v647 = vpop.f32.mrb[0].mxu0
    %v648 = vadd.f32 %v235, %v647
    %649 = vmatprep.mubr.bf16.mxu0 0
    %650 = vmatmul.mubr.bf16.gmra.mrb[0].mxu0 %v326
    %v651 = vpop.f32.mrb[0].mxu0
    %v652 = vadd.f32 %v231, %v651
    %v653 = vpop.f32.mrb[0].mxu0
    %v654 = vadd.f32 %v235, %v653
    %v655 = vpop.f32.mrb[0].mxu0
    %v656 = vadd.f32 %v231, %v655
    %v657 = vpop.f32.mrb[0].mxu0
    %v658 = vadd.f32 %v235, %v657
    %659 = vmatprep.mubr.bf16.mxu0 0
    %660 = vmatmul.mubr.bf16.gmra.mrb[0].mxu0 %v329
    %v661 = vpop.f32.mrb[0].mxu0
    %v662 = vadd.f32 %v231, %v661
    %v663 = vpop.f32.mrb[0].mxu0
    %v664 = vadd.f32 %v235, %v663
    %v665 = vpop.f32.mrb[0].mxu0
    %v666 = vadd.f32 %v231, %v665
    %v667 = vpop.f32.mrb[0].mxu0
    %v668 = vadd.f32 %v235, %v667
    %669 = vmatprep.mubr.bf16.mxu0 0
    %670 = vmatmul.mubr.bf16.gmra.mrb[0].mxu0 %v332
    %v671 = vpop.f32.mrb[0].mxu0
    %v672 = vadd.f32 %v231, %v671
    %v673 = vpop.f32.mrb[0].mxu0
    %v674 = vadd.f32 %v235, %v673
    %v675 = vpop.f32.mrb[0].mxu0
    %v676 = vadd.f32 %v231, %v675
    %v677 = vpop.f32.mrb[0].mxu0
    %v678 = vadd.f32 %v235, %v677
    %679 = vmatprep.mubr.bf16.mxu0 0
    %680 = vmatmul.mubr.bf16.gmra.mrb[0].mxu0 %v335
    %v681 = vpop.f32.mrb[0].mxu0
    %v682 = vadd.f32 %v231, %v681
    %v683 = vpop.f32.mrb[0].mxu0
    %v684 = vadd.f32 %v235, %v683
    %v685 = vpop.f32.mrb[0].mxu0
    %v686 = vadd.f32 %v231, %v685
    %v687 = vpop.f32.mrb[0].mxu0
    %v688 = vadd.f32 %v235, %v687
    %689 = vmatprep.mubr.bf16.mxu0 0
    %690 = vmatmul.mubr.bf16.gmra.mrb[0].mxu0 %v338
    %v691 = vpop.f32.mrb[0].mxu0
    %v692 = vadd.f32 %v231, %v691
    %v693 = vpop.f32.mrb[0].mxu0
    %v694 = vadd.f32 %v235, %v693
    %v695 = vpop.f32.mrb[0].mxu0
    %v696 = vadd.f32 %v231, %v695
    %v697 = vpop.f32.mrb[0].mxu0
    %v698 = vadd.f32 %v235, %v697
    %699 = vdwg.mxu0
    %v700 = vmax.f32 %v382, 0.0
    %v701 = vmax.f32 %v384, 0.0
    %v702 = vmax.f32 %v386, 0.0
    %v703 = vmax.f32 %v388, 0.0
    %v704 = vmax.f32 %v392, 0.0
    %v705 = vmax.f32 %v394, 0.0
    %v706 = vmax.f32 %v396, 0.0
    %v707 = vmax.f32 %v398, 0.0
    %v708 = vmax.f32 %v402, 0.0
    %v709 = vmax.f32 %v404, 0.0
    %v710 = vmax.f32 %v406, 0.0
    %v711 = vmax.f32 %v408, 0.0
    %v712 = vmax.f32 %v412, 0.0
    %v713 = vmax.f32 %v414, 0.0
    %v714 = vmax.f32 %v416, 0.0
    %v715 = vmax.f32 %v418, 0.0
    %v716 = vmax.f32 %v422, 0.0
    %v717 = vmax.f32 %v424, 0.0
    %v718 = vmax.f32 %v426, 0.0
    %v719 = vmax.f32 %v428, 0.0
    %v720 = vmax.f32 %v432, 0.0
    %v721 = vmax.f32 %v434, 0.0
    %v722 = vmax.f32 %v436, 0.0
    %v723 = vmax.f32 %v438, 0.0
    %v724 = vmax.f32 %v442, 0.0
    %v725 = vmax.f32 %v444, 0.0
    %v726 = vmax.f32 %v446, 0.0
    %v727 = vmax.f32 %v448, 0.0
    %v728 = vmax.f32 %v452, 0.0
    %v729 = vmax.f32 %v454, 0.0
    %v730 = vmax.f32 %v456, 0.0
    %v731 = vmax.f32 %v458, 0.0
    %v732 = vmax.f32 %v462, 0.0
    %v733 = vmax.f32 %v464, 0.0
    %v734 = vmax.f32 %v466, 0.0
    %v735 = vmax.f32 %v468, 0.0
    %v736 = vmax.f32 %v472, 0.0
    %v737 = vmax.f32 %v474, 0.0
    %v738 = vmax.f32 %v476, 0.0
    %v739 = vmax.f32 %v478, 0.0
    %v740 = vmax.f32 %v482, 0.0
    %v741 = vmax.f32 %v484, 0.0
    %v742 = vmax.f32 %v486, 0.0
    %v743 = vmax.f32 %v488, 0.0
    %v744 = vmax.f32 %v492, 0.0
    %v745 = vmax.f32 %v494, 0.0
    %v746 = vmax.f32 %v496, 0.0
    %v747 = vmax.f32 %v498, 0.0
    %v748 = vmax.f32 %v502, 0.0
    %v749 = vmax.f32 %v504, 0.0
    %v750 = vmax.f32 %v506, 0.0
    %v751 = vmax.f32 %v508, 0.0
    %v752 = vmax.f32 %v512, 0.0
    %v753 = vmax.f32 %v514, 0.0
    %v754 = vmax.f32 %v516, 0.0
    %v755 = vmax.f32 %v518, 0.0
    %v756 = vmax.f32 %v522, 0.0
    %v757 = vmax.f32 %v524, 0.0
    %v758 = vmax.f32 %v526, 0.0
    %v759 = vmax.f32 %v528, 0.0
    %v760 = vmax.f32 %v532, 0.0
    %v761 = vmax.f32 %v534, 0.0
    %v762 = vmax.f32 %v536, 0.0
    %v763 = vmax.f32 %v538, 0.0
    %v764 = vmax.f32 %v542, 0.0
    %v765 = vmax.f32 %v544, 0.0
    %v766 = vmax.f32 %v546, 0.0
    %v767 = vmax.f32 %v548, 0.0
    %v768 = vmax.f32 %v552, 0.0
    %v769 = vmax.f32 %v554, 0.0
    %v770 = vmax.f32 %v556, 0.0
    %v771 = vmax.f32 %v558, 0.0
    %v772 = vmax.f32 %v562, 0.0
    %v773 = vmax.f32 %v564, 0.0
    %v774 = vmax.f32 %v566, 0.0
    %v775 = vmax.f32 %v568, 0.0
    %v776 = vmax.f32 %v572, 0.0
    %v777 = vmax.f32 %v574, 0.0
    %v778 = vmax.f32 %v576, 0.0
    %v779 = vmax.f32 %v578, 0.0
    %v780 = vmax.f32 %v582, 0.0
    %v781 = vmax.f32 %v584, 0.0
    %v782 = vmax.f32 %v586, 0.0
    %v783 = vmax.f32 %v588, 0.0
    %v784 = vmax.f32 %v592, 0.0
    %v785 = vmax.f32 %v594, 0.0
    %v786 = vmax.f32 %v596, 0.0
    %v787 = vmax.f32 %v598, 0.0
    %v788 = vmax.f32 %v602, 0.0
    %v789 = vmax.f32 %v604, 0.0
    %v790 = vmax.f32 %v606, 0.0
    %v791 = vmax.f32 %v608, 0.0
    %v792 = vmax.f32 %v612, 0.0
    %v793 = vmax.f32 %v614, 0.0
    %v794 = vmax.f32 %v616, 0.0
    %v795 = vmax.f32 %v618, 0.0
    %v796 = vmax.f32 %v622, 0.0
    %v797 = vmax.f32 %v624, 0.0
    %v798 = vmax.f32 %v626, 0.0
    %v799 = vmax.f32 %v628, 0.0
    %v800 = vmax.f32 %v632, 0.0
    %v801 = vmax.f32 %v634, 0.0
    %v802 = vmax.f32 %v636, 0.0
    %v803 = vmax.f32 %v638, 0.0
    %v804 = vmax.f32 %v642, 0.0
    %v805 = vmax.f32 %v644, 0.0
    %v806 = vmax.f32 %v646, 0.0
    %v807 = vmax.f32 %v648, 0.0
    %v808 = vmax.f32 %v652, 0.0
    %v809 = vmax.f32 %v654, 0.0
    %v810 = vmax.f32 %v656, 0.0
    %v811 = vmax.f32 %v658, 0.0
    %v812 = vmax.f32 %v662, 0.0
    %v813 = vmax.f32 %v664, 0.0
    %v814 = vmax.f32 %v666, 0.0
    %v815 = vmax.f32 %v668, 0.0
    %v816 = vmax.f32 %v672, 0.0
    %v817 = vmax.f32 %v674, 0.0
    %v818 = vmax.f32 %v676, 0.0
    %v819 = vmax.f32 %v678, 0.0
    %v820 = vmax.f32 %v682, 0.0
    %v821 = vmax.f32 %v684, 0.0
    %v822 = vmax.f32 %v686, 0.0
    %v823 = vmax.f32 %v688, 0.0
    %v824 = vmax.f32 %v692, 0.0
    %v825 = vmax.f32 %v694, 0.0
    %v826 = vmax.f32 %v696, 0.0
    %v827 = vmax.f32 %v698, 0.0
    %v828 = vpack.c.bf16 %v702, %v700
    %v829 = vpack.c.bf16 %v703, %v701
    %v830 = vpack.c.bf16 %v706, %v704
    %v831 = vpack.c.bf16 %v707, %v705
    %v832 = vpack.c.bf16 %v710, %v708
    %v833 = vpack.c.bf16 %v711, %v709
    %v834 = vpack.c.bf16 %v714, %v712
    %v835 = vpack.c.bf16 %v715, %v713
    %v836 = vpack.c.bf16 %v718, %v716
    %v837 = vpack.c.bf16 %v719, %v717
    %v838 = vpack.c.bf16 %v722, %v720
    %v839 = vpack.c.bf16 %v723, %v721
    %v840 = vpack.c.bf16 %v726, %v724
    %v841 = vpack.c.bf16 %v727, %v725
    %v842 = vpack.c.bf16 %v730, %v728
    %v843 = vpack.c.bf16 %v731, %v729
    %v844 = vpack.c.bf16 %v734, %v732
    %v845 = vpack.c.bf16 %v735, %v733
    %v846 = vpack.c.bf16 %v738, %v736
    %v847 = vpack.c.bf16 %v739, %v737
    %v848 = vpack.c.bf16 %v742, %v740
    %v849 = vpack.c.bf16 %v743, %v741
    %v850 = vpack.c.bf16 %v746, %v744
    %v851 = vpack.c.bf16 %v747, %v745
    %v852 = vpack.c.bf16 %v750, %v748
    %v853 = vpack.c.bf16 %v751, %v749
    %v854 = vpack.c.bf16 %v754, %v752
    %v855 = vpack.c.bf16 %v755, %v753
    %v856 = vpack.c.bf16 %v758, %v756
    %v857 = vpack.c.bf16 %v759, %v757
    %v858 = vpack.c.bf16 %v762, %v760
    %v859 = vpack.c.bf16 %v763, %v761
    %v860 = vpack.c.bf16 %v766, %v764
    %v861 = vpack.c.bf16 %v767, %v765
    %v862 = vpack.c.bf16 %v770, %v768
    %v863 = vpack.c.bf16 %v771, %v769
    %v864 = vpack.c.bf16 %v774, %v772
    %v865 = vpack.c.bf16 %v775, %v773
    %v866 = vpack.c.bf16 %v778, %v776
    %v867 = vpack.c.bf16 %v779, %v777
    %v868 = vpack.c.bf16 %v782, %v780
    %v869 = vpack.c.bf16 %v783, %v781
    %v870 = vpack.c.bf16 %v786, %v784
    %v871 = vpack.c.bf16 %v787, %v785
    %v872 = vpack.c.bf16 %v790, %v788
    %v873 = vpack.c.bf16 %v791, %v789
    %v874 = vpack.c.bf16 %v794, %v792
    %v875 = vpack.c.bf16 %v795, %v793
    %v876 = vpack.c.bf16 %v798, %v796
    %v877 = vpack.c.bf16 %v799, %v797
    %v878 = vpack.c.bf16 %v802, %v800
    %v879 = vpack.c.bf16 %v803, %v801
    %v880 = vpack.c.bf16 %v806, %v804
    %v881 = vpack.c.bf16 %v807, %v805
    %v882 = vpack.c.bf16 %v810, %v808
    %v883 = vpack.c.bf16 %v811, %v809
    %v884 = vpack.c.bf16 %v814, %v812
    %v885 = vpack.c.bf16 %v815, %v813
    %v886 = vpack.c.bf16 %v818, %v816
    %v887 = vpack.c.bf16 %v819, %v817
    %v888 = vpack.c.bf16 %v822, %v820
    %v889 = vpack.c.bf16 %v823, %v821
    %v890 = vpack.c.bf16 %v826, %v824
    %v891 = vpack.c.bf16 %v827, %v825
    %v892 = vld [vmem:[%s2] sm:$0xff]
    %v893 = vld [vmem:[%s2 + $0x8] sm:$0xff]
    %v894 = vld [vmem:[%s2 + $0x10] sm:$0xff]
    %v895 = vld [vmem:[%s2 + $0x18] sm:$0xff]
    %v896 = vld [vmem:[%s2 + $0x20] sm:$0xff]
    %v897 = vld [vmem:[%s2 + $0x28] sm:$0xff]
    %v898 = vld [vmem:[%s2 + $0x30] sm:$0xff]
    %v899 = vld [vmem:[%s2 + $0x38] sm:$0xff]
    %v900 = vld [vmem:[%s2 + $0x40] sm:$0xff]
    %v901 = vld [vmem:[%s2 + $0x48] sm:$0xff]
    %v902 = vld [vmem:[%s2 + $0x50] sm:$0xff]
    %v903 = vld [vmem:[%s2 + $0x58] sm:$0xff]
    %v904 = vld [vmem:[%s2 + $0x60] sm:$0xff]
    %v905 = vld [vmem:[%s2 + $0x68] sm:$0xff]
    %v906 = vld [vmem:[%s2 + $0x70] sm:$0xff]
    %v907 = vld [vmem:[%s2 + $0x78] sm:$0xff]
    %v908 = vld [vmem:[%s2 + $0x80] sm:$0xff]
    %v909 = vld [vmem:[%s2 + $0x88] sm:$0xff]
    %v910 = vld [vmem:[%s2 + $0x90] sm:$0xff]
    %v911 = vld [vmem:[%s2 + $0x98] sm:$0xff]
    %v912 = vld [vmem:[%s2 + $0xa0] sm:$0xff]
    %v913 = vld [vmem:[%s2 + $0xa8] sm:$0xff]
    %v914 = vld [vmem:[%s2 + $0xb0] sm:$0xff]
    %v915 = vld [vmem:[%s2 + $0xb8] sm:$0xff]
    %v916 = vld [vmem:[%s2 + $0xc0] sm:$0xff]
    %v917 = vld [vmem:[%s2 + $0xc8] sm:$0xff]
    %v918 = vld [vmem:[%s2 + $0xd0] sm:$0xff]
    %v919 = vld [vmem:[%s2 + $0xd8] sm:$0xff]
    %v920 = vld [vmem:[%s2 + $0xe0] sm:$0xff]
    %v921 = vld [vmem:[%s2 + $0xe8] sm:$0xff]
    %v922 = vld [vmem:[%s2 + $0xf0] sm:$0xff]
    %v923 = vld [vmem:[%s2 + $0xf8] sm:$0xff]
    %v924 = vld [vmem:[%s11] sm:$0x3]
    %v926 = vlaneseq
    %v927 = vshrl.u32 %v926, 7
    %v928 = vsub.s32 0, %v927
    %v929 = vrot.slane %v924, %v928
    %v930 = vlaneseq
    %v931 = vshrl.u32 %v930, 7
    %v932 = vsub.s32 1, %v931
    %v933 = vrot.slane %v924, %v932
    %v968 = vunpack.c.l.b16 %v892
    %v969 = vunpack.c.h.b16 %v892
    %v970 = vunpack.c.l.b16 %v893
    %v971 = vunpack.c.h.b16 %v893
    %v972 = vunpack.c.l.b16 %v894
    %v973 = vunpack.c.h.b16 %v894
    %v974 = vunpack.c.l.b16 %v895
    %v975 = vunpack.c.h.b16 %v895
    %v976 = vunpack.c.l.b16 %v896
    %v977 = vunpack.c.h.b16 %v896
    %v978 = vunpack.c.l.b16 %v897
    %v979 = vunpack.c.h.b16 %v897
    %v980 = vunpack.c.l.b16 %v898
    %v981 = vunpack.c.h.b16 %v898
    %v982 = vunpack.c.l.b16 %v899
    %v983 = vunpack.c.h.b16 %v899
    %v984 = vunpack.c.l.b16 %v900
    %v985 = vunpack.c.h.b16 %v900
    %v986 = vunpack.c.l.b16 %v901
    %v987 = vunpack.c.h.b16 %v901
    %v988 = vunpack.c.l.b16 %v902
    %v989 = vunpack.c.h.b16 %v902
    %v990 = vunpack.c.l.b16 %v903
    %v991 = vunpack.c.h.b16 %v903
    %v992 = vunpack.c.l.b16 %v904
    %v993 = vunpack.c.h.b16 %v904
    %v994 = vunpack.c.l.b16 %v905
    %v995 = vunpack.c.h.b16 %v905
    %v996 = vunpack.c.l.b16 %v906
    %v997 = vunpack.c.h.b16 %v906
    %v998 = vunpack.c.l.b16 %v907
    %v999 = vunpack.c.h.b16 %v907
    %v1000 = vunpack.c.l.b16 %v908
    %v1001 = vunpack.c.h.b16 %v908
    %v1002 = vunpack.c.l.b16 %v909
    %v1003 = vunpack.c.h.b16 %v909
    %v1004 = vunpack.c.l.b16 %v910
    %v1005 = vunpack.c.h.b16 %v910
    %v1006 = vunpack.c.l.b16 %v911
    %v1007 = vunpack.c.h.b16 %v911
    %v1008 = vunpack.c.l.b16 %v912
    %v1009 = vunpack.c.h.b16 %v912
    %v1010 = vunpack.c.l.b16 %v913
    %v1011 = vunpack.c.h.b16 %v913
    %v1012 = vunpack.c.l.b16 %v914
    %v1013 = vunpack.c.h.b16 %v914
    %v1014 = vunpack.c.l.b16 %v915
    %v1015 = vunpack.c.h.b16 %v915
    %v1016 = vunpack.c.l.b16 %v916
    %v1017 = vunpack.c.h.b16 %v916
    %v1018 = vunpack.c.l.b16 %v917
    %v1019 = vunpack.c.h.b16 %v917
    %v1020 = vunpack.c.l.b16 %v918
    %v1021 = vunpack.c.h.b16 %v918
    %v1022 = vunpack.c.l.b16 %v919
    %v1023 = vunpack.c.h.b16 %v919
    %v1024 = vunpack.c.l.b16 %v920
    %v1025 = vunpack.c.h.b16 %v920
    %v1026 = vunpack.c.l.b16 %v921
    %v1027 = vunpack.c.h.b16 %v921
    %v1028 = vunpack.c.l.b16 %v922
    %v1029 = vunpack.c.h.b16 %v922
    %v1030 = vunpack.c.l.b16 %v923
    %v1031 = vunpack.c.h.b16 %v923
    %v1032 = vpack.c.b16 %v970, %v968
    %v1033 = vpack.c.b16 %v971, %v969
    %v1034 = vpack.c.b16 %v974, %v972
    %v1035 = vpack.c.b16 %v975, %v973
    %v1036 = vpack.c.b16 %v978, %v976
    %v1037 = vpack.c.b16 %v979, %v977
    %v1038 = vpack.c.b16 %v982, %v980
    %v1039 = vpack.c.b16 %v983, %v981
    %v1040 = vpack.c.b16 %v986, %v984
    %v1041 = vpack.c.b16 %v987, %v985
    %v1042 = vpack.c.b16 %v990, %v988
    %v1043 = vpack.c.b16 %v991, %v989
    %v1044 = vpack.c.b16 %v994, %v992
    %v1045 = vpack.c.b16 %v995, %v993
    %v1046 = vpack.c.b16 %v998, %v996
    %v1047 = vpack.c.b16 %v999, %v997
    %v1048 = vpack.c.b16 %v1002, %v1000
    %v1049 = vpack.c.b16 %v1003, %v1001
    %v1050 = vpack.c.b16 %v1006, %v1004
    %v1051 = vpack.c.b16 %v1007, %v1005
    %v1052 = vpack.c.b16 %v1010, %v1008
    %v1053 = vpack.c.b16 %v1011, %v1009
    %v1054 = vpack.c.b16 %v1014, %v1012
    %v1055 = vpack.c.b16 %v1015, %v1013
    %v1056 = vpack.c.b16 %v1018, %v1016
    %v1057 = vpack.c.b16 %v1019, %v1017
    %v1058 = vpack.c.b16 %v1022, %v1020
    %v1059 = vpack.c.b16 %v1023, %v1021
    %v1060 = vpack.c.b16 %v1026, %v1024
    %v1061 = vpack.c.b16 %v1027, %v1025
    %v1062 = vpack.c.b16 %v1030, %v1028
    %v1063 = vpack.c.b16 %v1031, %v1029
    %1096 = vmatprep.subr.bf16.mxu0 %v1033
    %1097 = vmatpush1.bf16.msra.mxu0 %v1032
    %1098 = vmatprep.subr.bf16.mxu0 %v1035
    %1099 = vmatpush1.bf16.msra.mxu0 %v1034
    %1100 = vmatprep.subr.bf16.mxu0 %v1037
    %1101 = vmatpush1.bf16.msra.mxu0 %v1036
    %1102 = vmatprep.subr.bf16.mxu0 %v1039
    %1103 = vmatpush1.bf16.msra.mxu0 %v1038
    %1104 = vmatprep.subr.bf16.mxu0 %v1041
    %1105 = vmatpush1.bf16.msra.mxu0 %v1040
    %1106 = vmatprep.subr.bf16.mxu0 %v1043
    %1107 = vmatpush1.bf16.msra.mxu0 %v1042
    %1108 = vmatprep.subr.bf16.mxu0 %v1045
    %1109 = vmatpush1.bf16.msra.mxu0 %v1044
    %1110 = vmatprep.subr.bf16.mxu0 %v1047
    %1111 = vmatpush1.bf16.msra.mxu0 %v1046
    %1112 = vmatprep.subr.bf16.mxu0 %v1049
    %1113 = vmatpush1.bf16.msra.mxu0 %v1048
    %1114 = vmatprep.subr.bf16.mxu0 %v1051
    %1115 = vmatpush1.bf16.msra.mxu0 %v1050
    %1116 = vmatprep.subr.bf16.mxu0 %v1053
    %1117 = vmatpush1.bf16.msra.mxu0 %v1052
    %1118 = vmatprep.subr.bf16.mxu0 %v1055
    %1119 = vmatpush1.bf16.msra.mxu0 %v1054
    %1120 = vmatprep.subr.bf16.mxu0 %v1057
    %1121 = vmatpush1.bf16.msra.mxu0 %v1056
    %1122 = vmatprep.subr.bf16.mxu0 %v1059
    %1123 = vmatpush1.bf16.msra.mxu0 %v1058
    %1124 = vmatprep.subr.bf16.mxu0 %v1061
    %1125 = vmatpush1.bf16.msra.mxu0 %v1060
    %1126 = vmatprep.subr.bf16.mxu0 %v1063
    %1127 = vmatpush1.bf16.msra.mxu0 %v1062
    %1128 = vmatprep.mubr.bf16.mxu0 %v829
    %1129 = vmatmul.mubr.bf16.gmra.mrb[0].mxu0 %v828
    %v1130 = vpop.f32.mrb[0].mxu0
    %v1131 = vadd.f32 %v929, %v1130
    %v1132 = vpop.f32.mrb[0].mxu0
    %v1133 = vadd.f32 %v933, %v1132
    %v1134 = vpop.f32.mrb[0].mxu0
    %v1135 = vadd.f32 %v929, %v1134
    %v1136 = vpop.f32.mrb[0].mxu0
    %v1137 = vadd.f32 %v933, %v1136
    %1138 = vmatprep.mubr.bf16.mxu0 %v831
    %1139 = vmatmul.mubr.bf16.gmra.mrb[0].mxu0 %v830
    %v1140 = vpop.f32.mrb[0].mxu0
    %v1141 = vadd.f32 %v929, %v1140
    %v1142 = vpop.f32.mrb[0].mxu0
    %v1143 = vadd.f32 %v933, %v1142
    %v1144 = vpop.f32.mrb[0].mxu0
    %v1145 = vadd.f32 %v929, %v1144
    %v1146 = vpop.f32.mrb[0].mxu0
    %v1147 = vadd.f32 %v933, %v1146
    %1148 = vmatprep.mubr.bf16.mxu0 %v833
    %1149 = vmatmul.mubr.bf16.gmra.mrb[0].mxu0 %v832
    %v1150 = vpop.f32.mrb[0].mxu0
    %v1151 = vadd.f32 %v929, %v1150
    %v1152 = vpop.f32.mrb[0].mxu0
    %v1153 = vadd.f32 %v933, %v1152
    %v1154 = vpop.f32.mrb[0].mxu0
    %v1155 = vadd.f32 %v929, %v1154
    %v1156 = vpop.f32.mrb[0].mxu0
    %v1157 = vadd.f32 %v933, %v1156
    %1158 = vmatprep.mubr.bf16.mxu0 %v835
    %1159 = vmatmul.mubr.bf16.gmra.mrb[0].mxu0 %v834
    %v1160 = vpop.f32.mrb[0].mxu0
    %v1161 = vadd.f32 %v929, %v1160
    %v1162 = vpop.f32.mrb[0].mxu0
    %v1163 = vadd.f32 %v933, %v1162
    %v1164 = vpop.f32.mrb[0].mxu0
    %v1165 = vadd.f32 %v929, %v1164
    %v1166 = vpop.f32.mrb[0].mxu0
    %v1167 = vadd.f32 %v933, %v1166
    %1168 = vmatprep.mubr.bf16.mxu0 %v837
    %1169 = vmatmul.mubr.bf16.gmra.mrb[0].mxu0 %v836
    %v1170 = vpop.f32.mrb[0].mxu0
    %v1171 = vadd.f32 %v929, %v1170
    %v1172 = vpop.f32.mrb[0].mxu0
    %v1173 = vadd.f32 %v933, %v1172
    %v1174 = vpop.f32.mrb[0].mxu0
    %v1175 = vadd.f32 %v929, %v1174
    %v1176 = vpop.f32.mrb[0].mxu0
    %v1177 = vadd.f32 %v933, %v1176
    %1178 = vmatprep.mubr.bf16.mxu0 %v839
    %1179 = vmatmul.mubr.bf16.gmra.mrb[0].mxu0 %v838
    %v1180 = vpop.f32.mrb[0].mxu0
    %v1181 = vadd.f32 %v929, %v1180
    %v1182 = vpop.f32.mrb[0].mxu0
    %v1183 = vadd.f32 %v933, %v1182
    %v1184 = vpop.f32.mrb[0].mxu0
    %v1185 = vadd.f32 %v929, %v1184
    %v1186 = vpop.f32.mrb[0].mxu0
    %v1187 = vadd.f32 %v933, %v1186
    %1188 = vmatprep.mubr.bf16.mxu0 %v841
    %1189 = vmatmul.mubr.bf16.gmra.mrb[0].mxu0 %v840
    %v1190 = vpop.f32.mrb[0].mxu0
    %v1191 = vadd.f32 %v929, %v1190
    %v1192 = vpop.f32.mrb[0].mxu0
    %v1193 = vadd.f32 %v933, %v1192
    %v1194 = vpop.f32.mrb[0].mxu0
    %v1195 = vadd.f32 %v929, %v1194
    %v1196 = vpop.f32.mrb[0].mxu0
    %v1197 = vadd.f32 %v933, %v1196
    %1198 = vmatprep.mubr.bf16.mxu0 %v843
    %1199 = vmatmul.mubr.bf16.gmra.mrb[0].mxu0 %v842
    %v1200 = vpop.f32.mrb[0].mxu0
    %v1201 = vadd.f32 %v929, %v1200
    %v1202 = vpop.f32.mrb[0].mxu0
    %v1203 = vadd.f32 %v933, %v1202
    %v1204 = vpop.f32.mrb[0].mxu0
    %v1205 = vadd.f32 %v929, %v1204
    %v1206 = vpop.f32.mrb[0].mxu0
    %v1207 = vadd.f32 %v933, %v1206
    %1208 = vmatprep.mubr.bf16.mxu0 %v845
    %1209 = vmatmul.mubr.bf16.gmra.mrb[0].mxu0 %v844
    %v1210 = vpop.f32.mrb[0].mxu0
    %v1211 = vadd.f32 %v929, %v1210
    %v1212 = vpop.f32.mrb[0].mxu0
    %v1213 = vadd.f32 %v933, %v1212
    %v1214 = vpop.f32.mrb[0].mxu0
    %v1215 = vadd.f32 %v929, %v1214
    %v1216 = vpop.f32.mrb[0].mxu0
    %v1217 = vadd.f32 %v933, %v1216
    %1218 = vmatprep.mubr.bf16.mxu0 %v847
    %1219 = vmatmul.mubr.bf16.gmra.mrb[0].mxu0 %v846
    %v1220 = vpop.f32.mrb[0].mxu0
    %v1221 = vadd.f32 %v929, %v1220
    %v1222 = vpop.f32.mrb[0].mxu0
    %v1223 = vadd.f32 %v933, %v1222
    %v1224 = vpop.f32.mrb[0].mxu0
    %v1225 = vadd.f32 %v929, %v1224
    %v1226 = vpop.f32.mrb[0].mxu0
    %v1227 = vadd.f32 %v933, %v1226
    %1228 = vmatprep.mubr.bf16.mxu0 %v849
    %1229 = vmatmul.mubr.bf16.gmra.mrb[0].mxu0 %v848
    %v1230 = vpop.f32.mrb[0].mxu0
    %v1231 = vadd.f32 %v929, %v1230
    %v1232 = vpop.f32.mrb[0].mxu0
    %v1233 = vadd.f32 %v933, %v1232
    %v1234 = vpop.f32.mrb[0].mxu0
    %v1235 = vadd.f32 %v929, %v1234
    %v1236 = vpop.f32.mrb[0].mxu0
    %v1237 = vadd.f32 %v933, %v1236
    %1238 = vmatprep.mubr.bf16.mxu0 %v851
    %1239 = vmatmul.mubr.bf16.gmra.mrb[0].mxu0 %v850
    %v1240 = vpop.f32.mrb[0].mxu0
    %v1241 = vadd.f32 %v929, %v1240
    %v1242 = vpop.f32.mrb[0].mxu0
    %v1243 = vadd.f32 %v933, %v1242
    %v1244 = vpop.f32.mrb[0].mxu0
    %v1245 = vadd.f32 %v929, %v1244
    %v1246 = vpop.f32.mrb[0].mxu0
    %v1247 = vadd.f32 %v933, %v1246
    %1248 = vmatprep.mubr.bf16.mxu0 %v853
    %1249 = vmatmul.mubr.bf16.gmra.mrb[0].mxu0 %v852
    %v1250 = vpop.f32.mrb[0].mxu0
    %v1251 = vadd.f32 %v929, %v1250
    %v1252 = vpop.f32.mrb[0].mxu0
    %v1253 = vadd.f32 %v933, %v1252
    %v1254 = vpop.f32.mrb[0].mxu0
    %v1255 = vadd.f32 %v929, %v1254
    %v1256 = vpop.f32.mrb[0].mxu0
    %v1257 = vadd.f32 %v933, %v1256
    %1258 = vmatprep.mubr.bf16.mxu0 %v855
    %1259 = vmatmul.mubr.bf16.gmra.mrb[0].mxu0 %v854
    %v1260 = vpop.f32.mrb[0].mxu0
    %v1261 = vadd.f32 %v929, %v1260
    %v1262 = vpop.f32.mrb[0].mxu0
    %v1263 = vadd.f32 %v933, %v1262
    %v1264 = vpop.f32.mrb[0].mxu0
    %v1265 = vadd.f32 %v929, %v1264
    %v1266 = vpop.f32.mrb[0].mxu0
    %v1267 = vadd.f32 %v933, %v1266
    %1268 = vmatprep.mubr.bf16.mxu0 %v857
    %1269 = vmatmul.mubr.bf16.gmra.mrb[0].mxu0 %v856
    %v1270 = vpop.f32.mrb[0].mxu0
    %v1271 = vadd.f32 %v929, %v1270
    %v1272 = vpop.f32.mrb[0].mxu0
    %v1273 = vadd.f32 %v933, %v1272
    %v1274 = vpop.f32.mrb[0].mxu0
    %v1275 = vadd.f32 %v929, %v1274
    %v1276 = vpop.f32.mrb[0].mxu0
    %v1277 = vadd.f32 %v933, %v1276
    %1278 = vmatprep.mubr.bf16.mxu0 %v859
    %1279 = vmatmul.mubr.bf16.gmra.mrb[0].mxu0 %v858
    %v1280 = vpop.f32.mrb[0].mxu0
    %v1281 = vadd.f32 %v929, %v1280
    %v1282 = vpop.f32.mrb[0].mxu0
    %v1283 = vadd.f32 %v933, %v1282
    %v1284 = vpop.f32.mrb[0].mxu0
    %v1285 = vadd.f32 %v929, %v1284
    %v1286 = vpop.f32.mrb[0].mxu0
    %v1287 = vadd.f32 %v933, %v1286
    %1288 = vmatprep.mubr.bf16.mxu0 %v861
    %1289 = vmatmul.mubr.bf16.gmra.mrb[0].mxu0 %v860
    %v1290 = vpop.f32.mrb[0].mxu0
    %v1291 = vadd.f32 %v929, %v1290
    %v1292 = vpop.f32.mrb[0].mxu0
    %v1293 = vadd.f32 %v933, %v1292
    %v1294 = vpop.f32.mrb[0].mxu0
    %v1295 = vadd.f32 %v929, %v1294
    %v1296 = vpop.f32.mrb[0].mxu0
    %v1297 = vadd.f32 %v933, %v1296
    %1298 = vmatprep.mubr.bf16.mxu0 %v863
    %1299 = vmatmul.mubr.bf16.gmra.mrb[0].mxu0 %v862
    %v1300 = vpop.f32.mrb[0].mxu0
    %v1301 = vadd.f32 %v929, %v1300
    %v1302 = vpop.f32.mrb[0].mxu0
    %v1303 = vadd.f32 %v933, %v1302
    %v1304 = vpop.f32.mrb[0].mxu0
    %v1305 = vadd.f32 %v929, %v1304
    %v1306 = vpop.f32.mrb[0].mxu0
    %v1307 = vadd.f32 %v933, %v1306
    %1308 = vmatprep.mubr.bf16.mxu0 %v865
    %1309 = vmatmul.mubr.bf16.gmra.mrb[0].mxu0 %v864
    %v1310 = vpop.f32.mrb[0].mxu0
    %v1311 = vadd.f32 %v929, %v1310
    %v1312 = vpop.f32.mrb[0].mxu0
    %v1313 = vadd.f32 %v933, %v1312
    %v1314 = vpop.f32.mrb[0].mxu0
    %v1315 = vadd.f32 %v929, %v1314
    %v1316 = vpop.f32.mrb[0].mxu0
    %v1317 = vadd.f32 %v933, %v1316
    %1318 = vmatprep.mubr.bf16.mxu0 %v867
    %1319 = vmatmul.mubr.bf16.gmra.mrb[0].mxu0 %v866
    %v1320 = vpop.f32.mrb[0].mxu0
    %v1321 = vadd.f32 %v929, %v1320
    %v1322 = vpop.f32.mrb[0].mxu0
    %v1323 = vadd.f32 %v933, %v1322
    %v1324 = vpop.f32.mrb[0].mxu0
    %v1325 = vadd.f32 %v929, %v1324
    %v1326 = vpop.f32.mrb[0].mxu0
    %v1327 = vadd.f32 %v933, %v1326
    %1328 = vmatprep.mubr.bf16.mxu0 %v869
    %1329 = vmatmul.mubr.bf16.gmra.mrb[0].mxu0 %v868
    %v1330 = vpop.f32.mrb[0].mxu0
    %v1331 = vadd.f32 %v929, %v1330
    %v1332 = vpop.f32.mrb[0].mxu0
    %v1333 = vadd.f32 %v933, %v1332
    %v1334 = vpop.f32.mrb[0].mxu0
    %v1335 = vadd.f32 %v929, %v1334
    %v1336 = vpop.f32.mrb[0].mxu0
    %v1337 = vadd.f32 %v933, %v1336
    %1338 = vmatprep.mubr.bf16.mxu0 %v871
    %1339 = vmatmul.mubr.bf16.gmra.mrb[0].mxu0 %v870
    %v1340 = vpop.f32.mrb[0].mxu0
    %v1341 = vadd.f32 %v929, %v1340
    %v1342 = vpop.f32.mrb[0].mxu0
    %v1343 = vadd.f32 %v933, %v1342
    %v1344 = vpop.f32.mrb[0].mxu0
    %v1345 = vadd.f32 %v929, %v1344
    %v1346 = vpop.f32.mrb[0].mxu0
    %v1347 = vadd.f32 %v933, %v1346
    %1348 = vmatprep.mubr.bf16.mxu0 %v873
    %1349 = vmatmul.mubr.bf16.gmra.mrb[0].mxu0 %v872
    %v1350 = vpop.f32.mrb[0].mxu0
    %v1351 = vadd.f32 %v929, %v1350
    %v1352 = vpop.f32.mrb[0].mxu0
    %v1353 = vadd.f32 %v933, %v1352
    %v1354 = vpop.f32.mrb[0].mxu0
    %v1355 = vadd.f32 %v929, %v1354
    %v1356 = vpop.f32.mrb[0].mxu0
    %v1357 = vadd.f32 %v933, %v1356
    %1358 = vmatprep.mubr.bf16.mxu0 %v875
    %1359 = vmatmul.mubr.bf16.gmra.mrb[0].mxu0 %v874
    %v1360 = vpop.f32.mrb[0].mxu0
    %v1361 = vadd.f32 %v929, %v1360
    %v1362 = vpop.f32.mrb[0].mxu0
    %v1363 = vadd.f32 %v933, %v1362
    %v1364 = vpop.f32.mrb[0].mxu0
    %v1365 = vadd.f32 %v929, %v1364
    %v1366 = vpop.f32.mrb[0].mxu0
    %v1367 = vadd.f32 %v933, %v1366
    %1368 = vmatprep.mubr.bf16.mxu0 %v877
    %1369 = vmatmul.mubr.bf16.gmra.mrb[0].mxu0 %v876
    %v1370 = vpop.f32.mrb[0].mxu0
    %v1371 = vadd.f32 %v929, %v1370
    %v1372 = vpop.f32.mrb[0].mxu0
    %v1373 = vadd.f32 %v933, %v1372
    %v1374 = vpop.f32.mrb[0].mxu0
    %v1375 = vadd.f32 %v929, %v1374
    %v1376 = vpop.f32.mrb[0].mxu0
    %v1377 = vadd.f32 %v933, %v1376
    %1378 = vmatprep.mubr.bf16.mxu0 %v879
    %1379 = vmatmul.mubr.bf16.gmra.mrb[0].mxu0 %v878
    %v1380 = vpop.f32.mrb[0].mxu0
    %v1381 = vadd.f32 %v929, %v1380
    %v1382 = vpop.f32.mrb[0].mxu0
    %v1383 = vadd.f32 %v933, %v1382
    %v1384 = vpop.f32.mrb[0].mxu0
    %v1385 = vadd.f32 %v929, %v1384
    %v1386 = vpop.f32.mrb[0].mxu0
    %v1387 = vadd.f32 %v933, %v1386
    %1388 = vmatprep.mubr.bf16.mxu0 %v881
    %1389 = vmatmul.mubr.bf16.gmra.mrb[0].mxu0 %v880
    %v1390 = vpop.f32.mrb[0].mxu0
    %v1391 = vadd.f32 %v929, %v1390
    %v1392 = vpop.f32.mrb[0].mxu0
    %v1393 = vadd.f32 %v933, %v1392
    %v1394 = vpop.f32.mrb[0].mxu0
    %v1395 = vadd.f32 %v929, %v1394
    %v1396 = vpop.f32.mrb[0].mxu0
    %v1397 = vadd.f32 %v933, %v1396
    %1398 = vmatprep.mubr.bf16.mxu0 %v883
    %1399 = vmatmul.mubr.bf16.gmra.mrb[0].mxu0 %v882
    %v1400 = vpop.f32.mrb[0].mxu0
    %v1401 = vadd.f32 %v929, %v1400
    %v1402 = vpop.f32.mrb[0].mxu0
    %v1403 = vadd.f32 %v933, %v1402
    %v1404 = vpop.f32.mrb[0].mxu0
    %v1405 = vadd.f32 %v929, %v1404
    %v1406 = vpop.f32.mrb[0].mxu0
    %v1407 = vadd.f32 %v933, %v1406
    %1408 = vmatprep.mubr.bf16.mxu0 %v885
    %1409 = vmatmul.mubr.bf16.gmra.mrb[0].mxu0 %v884
    %v1410 = vpop.f32.mrb[0].mxu0
    %v1411 = vadd.f32 %v929, %v1410
    %v1412 = vpop.f32.mrb[0].mxu0
    %v1413 = vadd.f32 %v933, %v1412
    %v1414 = vpop.f32.mrb[0].mxu0
    %v1415 = vadd.f32 %v929, %v1414
    %v1416 = vpop.f32.mrb[0].mxu0
    %v1417 = vadd.f32 %v933, %v1416
    %1418 = vmatprep.mubr.bf16.mxu0 %v887
    %1419 = vmatmul.mubr.bf16.gmra.mrb[0].mxu0 %v886
    %v1420 = vpop.f32.mrb[0].mxu0
    %v1421 = vadd.f32 %v929, %v1420
    %v1422 = vpop.f32.mrb[0].mxu0
    %v1423 = vadd.f32 %v933, %v1422
    %v1424 = vpop.f32.mrb[0].mxu0
    %v1425 = vadd.f32 %v929, %v1424
    %v1426 = vpop.f32.mrb[0].mxu0
    %v1427 = vadd.f32 %v933, %v1426
    %1428 = vmatprep.mubr.bf16.mxu0 %v889
    %1429 = vmatmul.mubr.bf16.gmra.mrb[0].mxu0 %v888
    %v1430 = vpop.f32.mrb[0].mxu0
    %v1431 = vadd.f32 %v929, %v1430
    %v1432 = vpop.f32.mrb[0].mxu0
    %v1433 = vadd.f32 %v933, %v1432
    %v1434 = vpop.f32.mrb[0].mxu0
    %v1435 = vadd.f32 %v929, %v1434
    %v1436 = vpop.f32.mrb[0].mxu0
    %v1437 = vadd.f32 %v933, %v1436
    %1438 = vmatprep.mubr.bf16.mxu0 %v891
    %1439 = vmatmul.mubr.bf16.gmra.mrb[0].mxu0 %v890
    %v1440 = vpop.f32.mrb[0].mxu0
    %v1441 = vadd.f32 %v929, %v1440
    %v1442 = vpop.f32.mrb[0].mxu0
    %v1443 = vadd.f32 %v933, %v1442
    %v1444 = vpop.f32.mrb[0].mxu0
    %v1445 = vadd.f32 %v929, %v1444
    %v1446 = vpop.f32.mrb[0].mxu0
    %v1447 = vadd.f32 %v933, %v1446
    %1448 = vdwg.mxu0
    %v1449 = vmax.f32 %v1131, 0.0
    %v1450 = vmax.f32 %v1133, 0.0
    %v1451 = vmax.f32 %v1135, 0.0
    %v1452 = vmax.f32 %v1137, 0.0
    %v1453 = vmax.f32 %v1141, 0.0
    %v1454 = vmax.f32 %v1143, 0.0
    %v1455 = vmax.f32 %v1145, 0.0
    %v1456 = vmax.f32 %v1147, 0.0
    %v1457 = vmax.f32 %v1151, 0.0
    %v1458 = vmax.f32 %v1153, 0.0
    %v1459 = vmax.f32 %v1155, 0.0
    %v1460 = vmax.f32 %v1157, 0.0
    %v1461 = vmax.f32 %v1161, 0.0
    %v1462 = vmax.f32 %v1163, 0.0
    %v1463 = vmax.f32 %v1165, 0.0
    %v1464 = vmax.f32 %v1167, 0.0
    %v1465 = vmax.f32 %v1171, 0.0
    %v1466 = vmax.f32 %v1173, 0.0
    %v1467 = vmax.f32 %v1175, 0.0
    %v1468 = vmax.f32 %v1177, 0.0
    %v1469 = vmax.f32 %v1181, 0.0
    %v1470 = vmax.f32 %v1183, 0.0
    %v1471 = vmax.f32 %v1185, 0.0
    %v1472 = vmax.f32 %v1187, 0.0
    %v1473 = vmax.f32 %v1191, 0.0
    %v1474 = vmax.f32 %v1193, 0.0
    %v1475 = vmax.f32 %v1195, 0.0
    %v1476 = vmax.f32 %v1197, 0.0
    %v1477 = vmax.f32 %v1201, 0.0
    %v1478 = vmax.f32 %v1203, 0.0
    %v1479 = vmax.f32 %v1205, 0.0
    %v1480 = vmax.f32 %v1207, 0.0
    %v1481 = vmax.f32 %v1211, 0.0
    %v1482 = vmax.f32 %v1213, 0.0
    %v1483 = vmax.f32 %v1215, 0.0
    %v1484 = vmax.f32 %v1217, 0.0
    %v1485 = vmax.f32 %v1221, 0.0
    %v1486 = vmax.f32 %v1223, 0.0
    %v1487 = vmax.f32 %v1225, 0.0
    %v1488 = vmax.f32 %v1227, 0.0
    %v1489 = vmax.f32 %v1231, 0.0
    %v1490 = vmax.f32 %v1233, 0.0
    %v1491 = vmax.f32 %v1235, 0.0
    %v1492 = vmax.f32 %v1237, 0.0
    %v1493 = vmax.f32 %v1241, 0.0
    %v1494 = vmax.f32 %v1243, 0.0
    %v1495 = vmax.f32 %v1245, 0.0
    %v1496 = vmax.f32 %v1247, 0.0
    %v1497 = vmax.f32 %v1251, 0.0
    %v1498 = vmax.f32 %v1253, 0.0
    %v1499 = vmax.f32 %v1255, 0.0
    %v1500 = vmax.f32 %v1257, 0.0
    %v1501 = vmax.f32 %v1261, 0.0
    %v1502 = vmax.f32 %v1263, 0.0
    %v1503 = vmax.f32 %v1265, 0.0
    %v1504 = vmax.f32 %v1267, 0.0
    %v1505 = vmax.f32 %v1271, 0.0
    %v1506 = vmax.f32 %v1273, 0.0
    %v1507 = vmax.f32 %v1275, 0.0
    %v1508 = vmax.f32 %v1277, 0.0
    %v1509 = vmax.f32 %v1281, 0.0
    %v1510 = vmax.f32 %v1283, 0.0
    %v1511 = vmax.f32 %v1285, 0.0
    %v1512 = vmax.f32 %v1287, 0.0
    %v1513 = vmax.f32 %v1291, 0.0
    %v1514 = vmax.f32 %v1293, 0.0
    %v1515 = vmax.f32 %v1295, 0.0
    %v1516 = vmax.f32 %v1297, 0.0
    %v1517 = vmax.f32 %v1301, 0.0
    %v1518 = vmax.f32 %v1303, 0.0
    %v1519 = vmax.f32 %v1305, 0.0
    %v1520 = vmax.f32 %v1307, 0.0
    %v1521 = vmax.f32 %v1311, 0.0
    %v1522 = vmax.f32 %v1313, 0.0
    %v1523 = vmax.f32 %v1315, 0.0
    %v1524 = vmax.f32 %v1317, 0.0
    %v1525 = vmax.f32 %v1321, 0.0
    %v1526 = vmax.f32 %v1323, 0.0
    %v1527 = vmax.f32 %v1325, 0.0
    %v1528 = vmax.f32 %v1327, 0.0
    %v1529 = vmax.f32 %v1331, 0.0
    %v1530 = vmax.f32 %v1333, 0.0
    %v1531 = vmax.f32 %v1335, 0.0
    %v1532 = vmax.f32 %v1337, 0.0
    %v1533 = vmax.f32 %v1341, 0.0
    %v1534 = vmax.f32 %v1343, 0.0
    %v1535 = vmax.f32 %v1345, 0.0
    %v1536 = vmax.f32 %v1347, 0.0
    %v1537 = vmax.f32 %v1351, 0.0
    %v1538 = vmax.f32 %v1353, 0.0
    %v1539 = vmax.f32 %v1355, 0.0
    %v1540 = vmax.f32 %v1357, 0.0
    %v1541 = vmax.f32 %v1361, 0.0
    %v1542 = vmax.f32 %v1363, 0.0
    %v1543 = vmax.f32 %v1365, 0.0
    %v1544 = vmax.f32 %v1367, 0.0
    %v1545 = vmax.f32 %v1371, 0.0
    %v1546 = vmax.f32 %v1373, 0.0
    %v1547 = vmax.f32 %v1375, 0.0
    %v1548 = vmax.f32 %v1377, 0.0
    %v1549 = vmax.f32 %v1381, 0.0
    %v1550 = vmax.f32 %v1383, 0.0
    %v1551 = vmax.f32 %v1385, 0.0
    %v1552 = vmax.f32 %v1387, 0.0
    %v1553 = vmax.f32 %v1391, 0.0
    %v1554 = vmax.f32 %v1393, 0.0
    %v1555 = vmax.f32 %v1395, 0.0
    %v1556 = vmax.f32 %v1397, 0.0
    %v1557 = vmax.f32 %v1401, 0.0
    %v1558 = vmax.f32 %v1403, 0.0
    %v1559 = vmax.f32 %v1405, 0.0
    %v1560 = vmax.f32 %v1407, 0.0
    %v1561 = vmax.f32 %v1411, 0.0
    %v1562 = vmax.f32 %v1413, 0.0
    %v1563 = vmax.f32 %v1415, 0.0
    %v1564 = vmax.f32 %v1417, 0.0
    %v1565 = vmax.f32 %v1421, 0.0
    %v1566 = vmax.f32 %v1423, 0.0
    %v1567 = vmax.f32 %v1425, 0.0
    %v1568 = vmax.f32 %v1427, 0.0
    %v1569 = vmax.f32 %v1431, 0.0
    %v1570 = vmax.f32 %v1433, 0.0
    %v1571 = vmax.f32 %v1435, 0.0
    %v1572 = vmax.f32 %v1437, 0.0
    %v1573 = vmax.f32 %v1441, 0.0
    %v1574 = vmax.f32 %v1443, 0.0
    %v1575 = vmax.f32 %v1445, 0.0
    %v1576 = vmax.f32 %v1447, 0.0
    %v1577 = vpack.c.bf16 %v1451, %v1449
    %v1578 = vpack.c.bf16 %v1452, %v1450
    %v1579 = vpack.c.bf16 %v1455, %v1453
    %v1580 = vpack.c.bf16 %v1456, %v1454
    %v1581 = vpack.c.bf16 %v1459, %v1457
    %v1582 = vpack.c.bf16 %v1460, %v1458
    %v1583 = vpack.c.bf16 %v1463, %v1461
    %v1584 = vpack.c.bf16 %v1464, %v1462
    %v1585 = vpack.c.bf16 %v1467, %v1465
    %v1586 = vpack.c.bf16 %v1468, %v1466
    %v1587 = vpack.c.bf16 %v1471, %v1469
    %v1588 = vpack.c.bf16 %v1472, %v1470
    %v1589 = vpack.c.bf16 %v1475, %v1473
    %v1590 = vpack.c.bf16 %v1476, %v1474
    %v1591 = vpack.c.bf16 %v1479, %v1477
    %v1592 = vpack.c.bf16 %v1480, %v1478
    %v1593 = vpack.c.bf16 %v1483, %v1481
    %v1594 = vpack.c.bf16 %v1484, %v1482
    %v1595 = vpack.c.bf16 %v1487, %v1485
    %v1596 = vpack.c.bf16 %v1488, %v1486
    %v1597 = vpack.c.bf16 %v1491, %v1489
    %v1598 = vpack.c.bf16 %v1492, %v1490
    %v1599 = vpack.c.bf16 %v1495, %v1493
    %v1600 = vpack.c.bf16 %v1496, %v1494
    %v1601 = vpack.c.bf16 %v1499, %v1497
    %v1602 = vpack.c.bf16 %v1500, %v1498
    %v1603 = vpack.c.bf16 %v1503, %v1501
    %v1604 = vpack.c.bf16 %v1504, %v1502
    %v1605 = vpack.c.bf16 %v1507, %v1505
    %v1606 = vpack.c.bf16 %v1508, %v1506
    %v1607 = vpack.c.bf16 %v1511, %v1509
    %v1608 = vpack.c.bf16 %v1512, %v1510
    %v1609 = vpack.c.bf16 %v1515, %v1513
    %v1610 = vpack.c.bf16 %v1516, %v1514
    %v1611 = vpack.c.bf16 %v1519, %v1517
    %v1612 = vpack.c.bf16 %v1520, %v1518
    %v1613 = vpack.c.bf16 %v1523, %v1521
    %v1614 = vpack.c.bf16 %v1524, %v1522
    %v1615 = vpack.c.bf16 %v1527, %v1525
    %v1616 = vpack.c.bf16 %v1528, %v1526
    %v1617 = vpack.c.bf16 %v1531, %v1529
    %v1618 = vpack.c.bf16 %v1532, %v1530
    %v1619 = vpack.c.bf16 %v1535, %v1533
    %v1620 = vpack.c.bf16 %v1536, %v1534
    %v1621 = vpack.c.bf16 %v1539, %v1537
    %v1622 = vpack.c.bf16 %v1540, %v1538
    %v1623 = vpack.c.bf16 %v1543, %v1541
    %v1624 = vpack.c.bf16 %v1544, %v1542
    %v1625 = vpack.c.bf16 %v1547, %v1545
    %v1626 = vpack.c.bf16 %v1548, %v1546
    %v1627 = vpack.c.bf16 %v1551, %v1549
    %v1628 = vpack.c.bf16 %v1552, %v1550
    %v1629 = vpack.c.bf16 %v1555, %v1553
    %v1630 = vpack.c.bf16 %v1556, %v1554
    %v1631 = vpack.c.bf16 %v1559, %v1557
    %v1632 = vpack.c.bf16 %v1560, %v1558
    %v1633 = vpack.c.bf16 %v1563, %v1561
    %v1634 = vpack.c.bf16 %v1564, %v1562
    %v1635 = vpack.c.bf16 %v1567, %v1565
    %v1636 = vpack.c.bf16 %v1568, %v1566
    %v1637 = vpack.c.bf16 %v1571, %v1569
    %v1638 = vpack.c.bf16 %v1572, %v1570
    %v1639 = vpack.c.bf16 %v1575, %v1573
    %v1640 = vpack.c.bf16 %v1576, %v1574
    %v1641 = vld [vmem:[%s3] sm:$0xff]
    %v1642 = vld [vmem:[%s3 + $0x8] sm:$0xff]
    %v1643 = vld [vmem:[%s3 + $0x10] sm:$0xff]
    %v1644 = vld [vmem:[%s3 + $0x18] sm:$0xff]
    %v1645 = vld [vmem:[%s3 + $0x20] sm:$0xff]
    %v1646 = vld [vmem:[%s3 + $0x28] sm:$0xff]
    %v1647 = vld [vmem:[%s3 + $0x30] sm:$0xff]
    %v1648 = vld [vmem:[%s3 + $0x38] sm:$0xff]
    %v1649 = vld [vmem:[%s3 + $0x40] sm:$0xff]
    %v1650 = vld [vmem:[%s3 + $0x48] sm:$0xff]
    %v1651 = vld [vmem:[%s3 + $0x50] sm:$0xff]
    %v1652 = vld [vmem:[%s3 + $0x58] sm:$0xff]
    %v1653 = vld [vmem:[%s3 + $0x60] sm:$0xff]
    %v1654 = vld [vmem:[%s3 + $0x68] sm:$0xff]
    %v1655 = vld [vmem:[%s3 + $0x70] sm:$0xff]
    %v1656 = vld [vmem:[%s3 + $0x78] sm:$0xff]
    %v1657 = vld [vmem:[%s3 + $0x80] sm:$0xff]
    %v1658 = vld [vmem:[%s3 + $0x88] sm:$0xff]
    %v1659 = vld [vmem:[%s3 + $0x90] sm:$0xff]
    %v1660 = vld [vmem:[%s3 + $0x98] sm:$0xff]
    %v1661 = vld [vmem:[%s3 + $0xa0] sm:$0xff]
    %v1662 = vld [vmem:[%s3 + $0xa8] sm:$0xff]
    %v1663 = vld [vmem:[%s3 + $0xb0] sm:$0xff]
    %v1664 = vld [vmem:[%s3 + $0xb8] sm:$0xff]
    %v1665 = vld [vmem:[%s3 + $0xc0] sm:$0xff]
    %v1666 = vld [vmem:[%s3 + $0xc8] sm:$0xff]
    %v1667 = vld [vmem:[%s3 + $0xd0] sm:$0xff]
    %v1668 = vld [vmem:[%s3 + $0xd8] sm:$0xff]
    %v1669 = vld [vmem:[%s3 + $0xe0] sm:$0xff]
    %v1670 = vld [vmem:[%s3 + $0xe8] sm:$0xff]
    %v1671 = vld [vmem:[%s3 + $0xf0] sm:$0xff]
    %v1672 = vld [vmem:[%s3 + $0xf8] sm:$0xff]
    %v1673 = vld [vmem:[%s12] sm:$0x3]
    %v1675 = vlaneseq
    %v1676 = vshrl.u32 %v1675, 7
    %v1677 = vsub.s32 0, %v1676
    %v1678 = vrot.slane %v1673, %v1677
    %v1679 = vlaneseq
    %v1680 = vshrl.u32 %v1679, 7
    %v1681 = vsub.s32 1, %v1680
    %v1682 = vrot.slane %v1673, %v1681
    %v1717 = vunpack.c.l.b16 %v1641
    %v1718 = vunpack.c.h.b16 %v1641
    %v1719 = vunpack.c.l.b16 %v1642
    %v1720 = vunpack.c.h.b16 %v1642
    %v1721 = vunpack.c.l.b16 %v1643
    %v1722 = vunpack.c.h.b16 %v1643
    %v1723 = vunpack.c.l.b16 %v1644
    %v1724 = vunpack.c.h.b16 %v1644
    %v1725 = vunpack.c.l.b16 %v1645
    %v1726 = vunpack.c.h.b16 %v1645
    %v1727 = vunpack.c.l.b16 %v1646
    %v1728 = vunpack.c.h.b16 %v1646
    %v1729 = vunpack.c.l.b16 %v1647
    %v1730 = vunpack.c.h.b16 %v1647
    %v1731 = vunpack.c.l.b16 %v1648
    %v1732 = vunpack.c.h.b16 %v1648
    %v1733 = vunpack.c.l.b16 %v1649
    %v1734 = vunpack.c.h.b16 %v1649
    %v1735 = vunpack.c.l.b16 %v1650
    %v1736 = vunpack.c.h.b16 %v1650
    %v1737 = vunpack.c.l.b16 %v1651
    %v1738 = vunpack.c.h.b16 %v1651
    %v1739 = vunpack.c.l.b16 %v1652
    %v1740 = vunpack.c.h.b16 %v1652
    %v1741 = vunpack.c.l.b16 %v1653
    %v1742 = vunpack.c.h.b16 %v1653
    %v1743 = vunpack.c.l.b16 %v1654
    %v1744 = vunpack.c.h.b16 %v1654
    %v1745 = vunpack.c.l.b16 %v1655
    %v1746 = vunpack.c.h.b16 %v1655
    %v1747 = vunpack.c.l.b16 %v1656
    %v1748 = vunpack.c.h.b16 %v1656
    %v1749 = vunpack.c.l.b16 %v1657
    %v1750 = vunpack.c.h.b16 %v1657
    %v1751 = vunpack.c.l.b16 %v1658
    %v1752 = vunpack.c.h.b16 %v1658
    %v1753 = vunpack.c.l.b16 %v1659
    %v1754 = vunpack.c.h.b16 %v1659
    %v1755 = vunpack.c.l.b16 %v1660
    %v1756 = vunpack.c.h.b16 %v1660
    %v1757 = vunpack.c.l.b16 %v1661
    %v1758 = vunpack.c.h.b16 %v1661
    %v1759 = vunpack.c.l.b16 %v1662
    %v1760 = vunpack.c.h.b16 %v1662
    %v1761 = vunpack.c.l.b16 %v1663
    %v1762 = vunpack.c.h.b16 %v1663
    %v1763 = vunpack.c.l.b16 %v1664
    %v1764 = vunpack.c.h.b16 %v1664
    %v1765 = vunpack.c.l.b16 %v1665
    %v1766 = vunpack.c.h.b16 %v1665
    %v1767 = vunpack.c.l.b16 %v1666
    %v1768 = vunpack.c.h.b16 %v1666
    %v1769 = vunpack.c.l.b16 %v1667
    %v1770 = vunpack.c.h.b16 %v1667
    %v1771 = vunpack.c.l.b16 %v1668
    %v1772 = vunpack.c.h.b16 %v1668
    %v1773 = vunpack.c.l.b16 %v1669
    %v1774 = vunpack.c.h.b16 %v1669
    %v1775 = vunpack.c.l.b16 %v1670
    %v1776 = vunpack.c.h.b16 %v1670
    %v1777 = vunpack.c.l.b16 %v1671
    %v1778 = vunpack.c.h.b16 %v1671
    %v1779 = vunpack.c.l.b16 %v1672
    %v1780 = vunpack.c.h.b16 %v1672
    %v1781 = vpack.c.b16 %v1719, %v1717
    %v1782 = vpack.c.b16 %v1720, %v1718
    %v1783 = vpack.c.b16 %v1723, %v1721
    %v1784 = vpack.c.b16 %v1724, %v1722
    %v1785 = vpack.c.b16 %v1727, %v1725
    %v1786 = vpack.c.b16 %v1728, %v1726
    %v1787 = vpack.c.b16 %v1731, %v1729
    %v1788 = vpack.c.b16 %v1732, %v1730
    %v1789 = vpack.c.b16 %v1735, %v1733
    %v1790 = vpack.c.b16 %v1736, %v1734
    %v1791 = vpack.c.b16 %v1739, %v1737
    %v1792 = vpack.c.b16 %v1740, %v1738
    %v1793 = vpack.c.b16 %v1743, %v1741
    %v1794 = vpack.c.b16 %v1744, %v1742
    %v1795 = vpack.c.b16 %v1747, %v1745
    %v1796 = vpack.c.b16 %v1748, %v1746
    %v1797 = vpack.c.b16 %v1751, %v1749
    %v1798 = vpack.c.b16 %v1752, %v1750
    %v1799 = vpack.c.b16 %v1755, %v1753
    %v1800 = vpack.c.b16 %v1756, %v1754
    %v1801 = vpack.c.b16 %v1759, %v1757
    %v1802 = vpack.c.b16 %v1760, %v1758
    %v1803 = vpack.c.b16 %v1763, %v1761
    %v1804 = vpack.c.b16 %v1764, %v1762
    %v1805 = vpack.c.b16 %v1767, %v1765
    %v1806 = vpack.c.b16 %v1768, %v1766
    %v1807 = vpack.c.b16 %v1771, %v1769
    %v1808 = vpack.c.b16 %v1772, %v1770
    %v1809 = vpack.c.b16 %v1775, %v1773
    %v1810 = vpack.c.b16 %v1776, %v1774
    %v1811 = vpack.c.b16 %v1779, %v1777
    %v1812 = vpack.c.b16 %v1780, %v1778
    %1845 = vmatprep.subr.bf16.mxu0 %v1782
    %1846 = vmatpush1.bf16.msra.mxu0 %v1781
    %1847 = vmatprep.subr.bf16.mxu0 %v1784
    %1848 = vmatpush1.bf16.msra.mxu0 %v1783
    %1849 = vmatprep.subr.bf16.mxu0 %v1786
    %1850 = vmatpush1.bf16.msra.mxu0 %v1785
    %1851 = vmatprep.subr.bf16.mxu0 %v1788
    %1852 = vmatpush1.bf16.msra.mxu0 %v1787
    %1853 = vmatprep.subr.bf16.mxu0 %v1790
    %1854 = vmatpush1.bf16.msra.mxu0 %v1789
    %1855 = vmatprep.subr.bf16.mxu0 %v1792
    %1856 = vmatpush1.bf16.msra.mxu0 %v1791
    %1857 = vmatprep.subr.bf16.mxu0 %v1794
    %1858 = vmatpush1.bf16.msra.mxu0 %v1793
    %1859 = vmatprep.subr.bf16.mxu0 %v1796
    %1860 = vmatpush1.bf16.msra.mxu0 %v1795
    %1861 = vmatprep.subr.bf16.mxu0 %v1798
    %1862 = vmatpush1.bf16.msra.mxu0 %v1797
    %1863 = vmatprep.subr.bf16.mxu0 %v1800
    %1864 = vmatpush1.bf16.msra.mxu0 %v1799
    %1865 = vmatprep.subr.bf16.mxu0 %v1802
    %1866 = vmatpush1.bf16.msra.mxu0 %v1801
    %1867 = vmatprep.subr.bf16.mxu0 %v1804
    %1868 = vmatpush1.bf16.msra.mxu0 %v1803
    %1869 = vmatprep.subr.bf16.mxu0 %v1806
    %1870 = vmatpush1.bf16.msra.mxu0 %v1805
    %1871 = vmatprep.subr.bf16.mxu0 %v1808
    %1872 = vmatpush1.bf16.msra.mxu0 %v1807
    %1873 = vmatprep.subr.bf16.mxu0 %v1810
    %1874 = vmatpush1.bf16.msra.mxu0 %v1809
    %1875 = vmatprep.subr.bf16.mxu0 %v1812
    %1876 = vmatpush1.bf16.msra.mxu0 %v1811
    %1877 = vmatprep.mubr.bf16.mxu0 %v1578
    %1878 = vmatmul.mubr.bf16.gmra.mrb[0].mxu0 %v1577
    %v1879 = vpop.f32.mrb[0].mxu0
    %v1880 = vadd.f32 %v1678, %v1879
    %v1881 = vpop.f32.mrb[0].mxu0
    %v1882 = vadd.f32 %v1682, %v1881
    %v1883 = vpop.f32.mrb[0].mxu0
    %v1884 = vadd.f32 %v1678, %v1883
    %v1885 = vpop.f32.mrb[0].mxu0
    %v1886 = vadd.f32 %v1682, %v1885
    %1887 = vmatprep.mubr.bf16.mxu0 %v1580
    %1888 = vmatmul.mubr.bf16.gmra.mrb[0].mxu0 %v1579
    %v1889 = vpop.f32.mrb[0].mxu0
    %v1890 = vadd.f32 %v1678, %v1889
    %v1891 = vpop.f32.mrb[0].mxu0
    %v1892 = vadd.f32 %v1682, %v1891
    %v1893 = vpop.f32.mrb[0].mxu0
    %v1894 = vadd.f32 %v1678, %v1893
    %v1895 = vpop.f32.mrb[0].mxu0
    %v1896 = vadd.f32 %v1682, %v1895
    %1897 = vmatprep.mubr.bf16.mxu0 %v1582
    %1898 = vmatmul.mubr.bf16.gmra.mrb[0].mxu0 %v1581
    %v1899 = vpop.f32.mrb[0].mxu0
    %v1900 = vadd.f32 %v1678, %v1899
    %v1901 = vpop.f32.mrb[0].mxu0
    %v1902 = vadd.f32 %v1682, %v1901
    %v1903 = vpop.f32.mrb[0].mxu0
    %v1904 = vadd.f32 %v1678, %v1903
    %v1905 = vpop.f32.mrb[0].mxu0
    %v1906 = vadd.f32 %v1682, %v1905
    %1907 = vmatprep.mubr.bf16.mxu0 %v1584
    %1908 = vmatmul.mubr.bf16.gmra.mrb[0].mxu0 %v1583
    %v1909 = vpop.f32.mrb[0].mxu0
    %v1910 = vadd.f32 %v1678, %v1909
    %v1911 = vpop.f32.mrb[0].mxu0
    %v1912 = vadd.f32 %v1682, %v1911
    %v1913 = vpop.f32.mrb[0].mxu0
    %v1914 = vadd.f32 %v1678, %v1913
    %v1915 = vpop.f32.mrb[0].mxu0
    %v1916 = vadd.f32 %v1682, %v1915
    %1917 = vmatprep.mubr.bf16.mxu0 %v1586
    %1918 = vmatmul.mubr.bf16.gmra.mrb[0].mxu0 %v1585
    %v1919 = vpop.f32.mrb[0].mxu0
    %v1920 = vadd.f32 %v1678, %v1919
    %v1921 = vpop.f32.mrb[0].mxu0
    %v1922 = vadd.f32 %v1682, %v1921
    %v1923 = vpop.f32.mrb[0].mxu0
    %v1924 = vadd.f32 %v1678, %v1923
    %v1925 = vpop.f32.mrb[0].mxu0
    %v1926 = vadd.f32 %v1682, %v1925
    %1927 = vmatprep.mubr.bf16.mxu0 %v1588
    %1928 = vmatmul.mubr.bf16.gmra.mrb[0].mxu0 %v1587
    %v1929 = vpop.f32.mrb[0].mxu0
    %v1930 = vadd.f32 %v1678, %v1929
    %v1931 = vpop.f32.mrb[0].mxu0
    %v1932 = vadd.f32 %v1682, %v1931
    %v1933 = vpop.f32.mrb[0].mxu0
    %v1934 = vadd.f32 %v1678, %v1933
    %v1935 = vpop.f32.mrb[0].mxu0
    %v1936 = vadd.f32 %v1682, %v1935
    %1937 = vmatprep.mubr.bf16.mxu0 %v1590
    %1938 = vmatmul.mubr.bf16.gmra.mrb[0].mxu0 %v1589
    %v1939 = vpop.f32.mrb[0].mxu0
    %v1940 = vadd.f32 %v1678, %v1939
    %v1941 = vpop.f32.mrb[0].mxu0
    %v1942 = vadd.f32 %v1682, %v1941
    %v1943 = vpop.f32.mrb[0].mxu0
    %v1944 = vadd.f32 %v1678, %v1943
    %v1945 = vpop.f32.mrb[0].mxu0
    %v1946 = vadd.f32 %v1682, %v1945
    %1947 = vmatprep.mubr.bf16.mxu0 %v1592
    %1948 = vmatmul.mubr.bf16.gmra.mrb[0].mxu0 %v1591
    %v1949 = vpop.f32.mrb[0].mxu0
    %v1950 = vadd.f32 %v1678, %v1949
    %v1951 = vpop.f32.mrb[0].mxu0
    %v1952 = vadd.f32 %v1682, %v1951
    %v1953 = vpop.f32.mrb[0].mxu0
    %v1954 = vadd.f32 %v1678, %v1953
    %v1955 = vpop.f32.mrb[0].mxu0
    %v1956 = vadd.f32 %v1682, %v1955
    %1957 = vmatprep.mubr.bf16.mxu0 %v1594
    %1958 = vmatmul.mubr.bf16.gmra.mrb[0].mxu0 %v1593
    %v1959 = vpop.f32.mrb[0].mxu0
    %v1960 = vadd.f32 %v1678, %v1959
    %v1961 = vpop.f32.mrb[0].mxu0
    %v1962 = vadd.f32 %v1682, %v1961
    %v1963 = vpop.f32.mrb[0].mxu0
    %v1964 = vadd.f32 %v1678, %v1963
    %v1965 = vpop.f32.mrb[0].mxu0
    %v1966 = vadd.f32 %v1682, %v1965
    %1967 = vmatprep.mubr.bf16.mxu0 %v1596
    %1968 = vmatmul.mubr.bf16.gmra.mrb[0].mxu0 %v1595
    %v1969 = vpop.f32.mrb[0].mxu0
    %v1970 = vadd.f32 %v1678, %v1969
    %v1971 = vpop.f32.mrb[0].mxu0
    %v1972 = vadd.f32 %v1682, %v1971
    %v1973 = vpop.f32.mrb[0].mxu0
    %v1974 = vadd.f32 %v1678, %v1973
    %v1975 = vpop.f32.mrb[0].mxu0
    %v1976 = vadd.f32 %v1682, %v1975
    %1977 = vmatprep.mubr.bf16.mxu0 %v1598
    %1978 = vmatmul.mubr.bf16.gmra.mrb[0].mxu0 %v1597
    %v1979 = vpop.f32.mrb[0].mxu0
    %v1980 = vadd.f32 %v1678, %v1979
    %v1981 = vpop.f32.mrb[0].mxu0
    %v1982 = vadd.f32 %v1682, %v1981
    %v1983 = vpop.f32.mrb[0].mxu0
    %v1984 = vadd.f32 %v1678, %v1983
    %v1985 = vpop.f32.mrb[0].mxu0
    %v1986 = vadd.f32 %v1682, %v1985
    %1987 = vmatprep.mubr.bf16.mxu0 %v1600
    %1988 = vmatmul.mubr.bf16.gmra.mrb[0].mxu0 %v1599
    %v1989 = vpop.f32.mrb[0].mxu0
    %v1990 = vadd.f32 %v1678, %v1989
    %v1991 = vpop.f32.mrb[0].mxu0
    %v1992 = vadd.f32 %v1682, %v1991
    %v1993 = vpop.f32.mrb[0].mxu0
    %v1994 = vadd.f32 %v1678, %v1993
    %v1995 = vpop.f32.mrb[0].mxu0
    %v1996 = vadd.f32 %v1682, %v1995
    %1997 = vmatprep.mubr.bf16.mxu0 %v1602
    %1998 = vmatmul.mubr.bf16.gmra.mrb[0].mxu0 %v1601
    %v1999 = vpop.f32.mrb[0].mxu0
    %v2000 = vadd.f32 %v1678, %v1999
    %v2001 = vpop.f32.mrb[0].mxu0
    %v2002 = vadd.f32 %v1682, %v2001
    %v2003 = vpop.f32.mrb[0].mxu0
    %v2004 = vadd.f32 %v1678, %v2003
    %v2005 = vpop.f32.mrb[0].mxu0
    %v2006 = vadd.f32 %v1682, %v2005
    %2007 = vmatprep.mubr.bf16.mxu0 %v1604
    %2008 = vmatmul.mubr.bf16.gmra.mrb[0].mxu0 %v1603
    %v2009 = vpop.f32.mrb[0].mxu0
    %v2010 = vadd.f32 %v1678, %v2009
    %v2011 = vpop.f32.mrb[0].mxu0
    %v2012 = vadd.f32 %v1682, %v2011
    %v2013 = vpop.f32.mrb[0].mxu0
    %v2014 = vadd.f32 %v1678, %v2013
    %v2015 = vpop.f32.mrb[0].mxu0
    %v2016 = vadd.f32 %v1682, %v2015
    %2017 = vmatprep.mubr.bf16.mxu0 %v1606
    %2018 = vmatmul.mubr.bf16.gmra.mrb[0].mxu0 %v1605
    %v2019 = vpop.f32.mrb[0].mxu0
    %v2020 = vadd.f32 %v1678, %v2019
    %v2021 = vpop.f32.mrb[0].mxu0
    %v2022 = vadd.f32 %v1682, %v2021
    %v2023 = vpop.f32.mrb[0].mxu0
    %v2024 = vadd.f32 %v1678, %v2023
    %v2025 = vpop.f32.mrb[0].mxu0
    %v2026 = vadd.f32 %v1682, %v2025
    %2027 = vmatprep.mubr.bf16.mxu0 %v1608
    %2028 = vmatmul.mubr.bf16.gmra.mrb[0].mxu0 %v1607
    %v2029 = vpop.f32.mrb[0].mxu0
    %v2030 = vadd.f32 %v1678, %v2029
    %v2031 = vpop.f32.mrb[0].mxu0
    %v2032 = vadd.f32 %v1682, %v2031
    %v2033 = vpop.f32.mrb[0].mxu0
    %v2034 = vadd.f32 %v1678, %v2033
    %v2035 = vpop.f32.mrb[0].mxu0
    %v2036 = vadd.f32 %v1682, %v2035
    %2037 = vmatprep.mubr.bf16.mxu0 %v1610
    %2038 = vmatmul.mubr.bf16.gmra.mrb[0].mxu0 %v1609
    %v2039 = vpop.f32.mrb[0].mxu0
    %v2040 = vadd.f32 %v1678, %v2039
    %v2041 = vpop.f32.mrb[0].mxu0
    %v2042 = vadd.f32 %v1682, %v2041
    %v2043 = vpop.f32.mrb[0].mxu0
    %v2044 = vadd.f32 %v1678, %v2043
    %v2045 = vpop.f32.mrb[0].mxu0
    %v2046 = vadd.f32 %v1682, %v2045
    %2047 = vmatprep.mubr.bf16.mxu0 %v1612
    %2048 = vmatmul.mubr.bf16.gmra.mrb[0].mxu0 %v1611
    %v2049 = vpop.f32.mrb[0].mxu0
    %v2050 = vadd.f32 %v1678, %v2049
    %v2051 = vpop.f32.mrb[0].mxu0
    %v2052 = vadd.f32 %v1682, %v2051
    %v2053 = vpop.f32.mrb[0].mxu0
    %v2054 = vadd.f32 %v1678, %v2053
    %v2055 = vpop.f32.mrb[0].mxu0
    %v2056 = vadd.f32 %v1682, %v2055
    %2057 = vmatprep.mubr.bf16.mxu0 %v1614
    %2058 = vmatmul.mubr.bf16.gmra.mrb[0].mxu0 %v1613
    %v2059 = vpop.f32.mrb[0].mxu0
    %v2060 = vadd.f32 %v1678, %v2059
    %v2061 = vpop.f32.mrb[0].mxu0
    %v2062 = vadd.f32 %v1682, %v2061
    %v2063 = vpop.f32.mrb[0].mxu0
    %v2064 = vadd.f32 %v1678, %v2063
    %v2065 = vpop.f32.mrb[0].mxu0
    %v2066 = vadd.f32 %v1682, %v2065
    %2067 = vmatprep.mubr.bf16.mxu0 %v1616
    %2068 = vmatmul.mubr.bf16.gmra.mrb[0].mxu0 %v1615
    %v2069 = vpop.f32.mrb[0].mxu0
    %v2070 = vadd.f32 %v1678, %v2069
    %v2071 = vpop.f32.mrb[0].mxu0
    %v2072 = vadd.f32 %v1682, %v2071
    %v2073 = vpop.f32.mrb[0].mxu0
    %v2074 = vadd.f32 %v1678, %v2073
    %v2075 = vpop.f32.mrb[0].mxu0
    %v2076 = vadd.f32 %v1682, %v2075
    %2077 = vmatprep.mubr.bf16.mxu0 %v1618
    %2078 = vmatmul.mubr.bf16.gmra.mrb[0].mxu0 %v1617
    %v2079 = vpop.f32.mrb[0].mxu0
    %v2080 = vadd.f32 %v1678, %v2079
    %v2081 = vpop.f32.mrb[0].mxu0
    %v2082 = vadd.f32 %v1682, %v2081
    %v2083 = vpop.f32.mrb[0].mxu0
    %v2084 = vadd.f32 %v1678, %v2083
    %v2085 = vpop.f32.mrb[0].mxu0
    %v2086 = vadd.f32 %v1682, %v2085
    %2087 = vmatprep.mubr.bf16.mxu0 %v1620
    %2088 = vmatmul.mubr.bf16.gmra.mrb[0].mxu0 %v1619
    %v2089 = vpop.f32.mrb[0].mxu0
    %v2090 = vadd.f32 %v1678, %v2089
    %v2091 = vpop.f32.mrb[0].mxu0
    %v2092 = vadd.f32 %v1682, %v2091
    %v2093 = vpop.f32.mrb[0].mxu0
    %v2094 = vadd.f32 %v1678, %v2093
    %v2095 = vpop.f32.mrb[0].mxu0
    %v2096 = vadd.f32 %v1682, %v2095
    %2097 = vmatprep.mubr.bf16.mxu0 %v1622
    %2098 = vmatmul.mubr.bf16.gmra.mrb[0].mxu0 %v1621
    %v2099 = vpop.f32.mrb[0].mxu0
    %v2100 = vadd.f32 %v1678, %v2099
    %v2101 = vpop.f32.mrb[0].mxu0
    %v2102 = vadd.f32 %v1682, %v2101
    %v2103 = vpop.f32.mrb[0].mxu0
    %v2104 = vadd.f32 %v1678, %v2103
    %v2105 = vpop.f32.mrb[0].mxu0
    %v2106 = vadd.f32 %v1682, %v2105
    %2107 = vmatprep.mubr.bf16.mxu0 %v1624
    %2108 = vmatmul.mubr.bf16.gmra.mrb[0].mxu0 %v1623
    %v2109 = vpop.f32.mrb[0].mxu0
    %v2110 = vadd.f32 %v1678, %v2109
    %v2111 = vpop.f32.mrb[0].mxu0
    %v2112 = vadd.f32 %v1682, %v2111
    %v2113 = vpop.f32.mrb[0].mxu0
    %v2114 = vadd.f32 %v1678, %v2113
    %v2115 = vpop.f32.mrb[0].mxu0
    %v2116 = vadd.f32 %v1682, %v2115
    %2117 = vmatprep.mubr.bf16.mxu0 %v1626
    %2118 = vmatmul.mubr.bf16.gmra.mrb[0].mxu0 %v1625
    %v2119 = vpop.f32.mrb[0].mxu0
    %v2120 = vadd.f32 %v1678, %v2119
    %v2121 = vpop.f32.mrb[0].mxu0
    %v2122 = vadd.f32 %v1682, %v2121
    %v2123 = vpop.f32.mrb[0].mxu0
    %v2124 = vadd.f32 %v1678, %v2123
    %v2125 = vpop.f32.mrb[0].mxu0
    %v2126 = vadd.f32 %v1682, %v2125
    %2127 = vmatprep.mubr.bf16.mxu0 %v1628
    %2128 = vmatmul.mubr.bf16.gmra.mrb[0].mxu0 %v1627
    %v2129 = vpop.f32.mrb[0].mxu0
    %v2130 = vadd.f32 %v1678, %v2129
    %v2131 = vpop.f32.mrb[0].mxu0
    %v2132 = vadd.f32 %v1682, %v2131
    %v2133 = vpop.f32.mrb[0].mxu0
    %v2134 = vadd.f32 %v1678, %v2133
    %v2135 = vpop.f32.mrb[0].mxu0
    %v2136 = vadd.f32 %v1682, %v2135
    %2137 = vmatprep.mubr.bf16.mxu0 %v1630
    %2138 = vmatmul.mubr.bf16.gmra.mrb[0].mxu0 %v1629
    %v2139 = vpop.f32.mrb[0].mxu0
    %v2140 = vadd.f32 %v1678, %v2139
    %v2141 = vpop.f32.mrb[0].mxu0
    %v2142 = vadd.f32 %v1682, %v2141
    %v2143 = vpop.f32.mrb[0].mxu0
    %v2144 = vadd.f32 %v1678, %v2143
    %v2145 = vpop.f32.mrb[0].mxu0
    %v2146 = vadd.f32 %v1682, %v2145
    %2147 = vmatprep.mubr.bf16.mxu0 %v1632
    %2148 = vmatmul.mubr.bf16.gmra.mrb[0].mxu0 %v1631
    %v2149 = vpop.f32.mrb[0].mxu0
    %v2150 = vadd.f32 %v1678, %v2149
    %v2151 = vpop.f32.mrb[0].mxu0
    %v2152 = vadd.f32 %v1682, %v2151
    %v2153 = vpop.f32.mrb[0].mxu0
    %v2154 = vadd.f32 %v1678, %v2153
    %v2155 = vpop.f32.mrb[0].mxu0
    %v2156 = vadd.f32 %v1682, %v2155
    %2157 = vmatprep.mubr.bf16.mxu0 %v1634
    %2158 = vmatmul.mubr.bf16.gmra.mrb[0].mxu0 %v1633
    %v2159 = vpop.f32.mrb[0].mxu0
    %v2160 = vadd.f32 %v1678, %v2159
    %v2161 = vpop.f32.mrb[0].mxu0
    %v2162 = vadd.f32 %v1682, %v2161
    %v2163 = vpop.f32.mrb[0].mxu0
    %v2164 = vadd.f32 %v1678, %v2163
    %v2165 = vpop.f32.mrb[0].mxu0
    %v2166 = vadd.f32 %v1682, %v2165
    %2167 = vmatprep.mubr.bf16.mxu0 %v1636
    %2168 = vmatmul.mubr.bf16.gmra.mrb[0].mxu0 %v1635
    %v2169 = vpop.f32.mrb[0].mxu0
    %v2170 = vadd.f32 %v1678, %v2169
    %v2171 = vpop.f32.mrb[0].mxu0
    %v2172 = vadd.f32 %v1682, %v2171
    %v2173 = vpop.f32.mrb[0].mxu0
    %v2174 = vadd.f32 %v1678, %v2173
    %v2175 = vpop.f32.mrb[0].mxu0
    %v2176 = vadd.f32 %v1682, %v2175
    %2177 = vmatprep.mubr.bf16.mxu0 %v1638
    %2178 = vmatmul.mubr.bf16.gmra.mrb[0].mxu0 %v1637
    %v2179 = vpop.f32.mrb[0].mxu0
    %v2180 = vadd.f32 %v1678, %v2179
    %v2181 = vpop.f32.mrb[0].mxu0
    %v2182 = vadd.f32 %v1682, %v2181
    %v2183 = vpop.f32.mrb[0].mxu0
    %v2184 = vadd.f32 %v1678, %v2183
    %v2185 = vpop.f32.mrb[0].mxu0
    %v2186 = vadd.f32 %v1682, %v2185
    %2187 = vmatprep.mubr.bf16.mxu0 %v1640
    %2188 = vmatmul.mubr.bf16.gmra.mrb[0].mxu0 %v1639
    %v2189 = vpop.f32.mrb[0].mxu0
    %v2190 = vadd.f32 %v1678, %v2189
    %v2191 = vpop.f32.mrb[0].mxu0
    %v2192 = vadd.f32 %v1682, %v2191
    %v2193 = vpop.f32.mrb[0].mxu0
    %v2194 = vadd.f32 %v1678, %v2193
    %v2195 = vpop.f32.mrb[0].mxu0
    %v2196 = vadd.f32 %v1682, %v2195
    %2197 = vdwg.mxu0
    %v2198 = vmax.f32 %v1880, 0.0
    %v2199 = vmax.f32 %v1882, 0.0
    %v2200 = vmax.f32 %v1884, 0.0
    %v2201 = vmax.f32 %v1886, 0.0
    %v2202 = vmax.f32 %v1890, 0.0
    %v2203 = vmax.f32 %v1892, 0.0
    %v2204 = vmax.f32 %v1894, 0.0
    %v2205 = vmax.f32 %v1896, 0.0
    %v2206 = vmax.f32 %v1900, 0.0
    %v2207 = vmax.f32 %v1902, 0.0
    %v2208 = vmax.f32 %v1904, 0.0
    %v2209 = vmax.f32 %v1906, 0.0
    %v2210 = vmax.f32 %v1910, 0.0
    %v2211 = vmax.f32 %v1912, 0.0
    %v2212 = vmax.f32 %v1914, 0.0
    %v2213 = vmax.f32 %v1916, 0.0
    %v2214 = vmax.f32 %v1920, 0.0
    %v2215 = vmax.f32 %v1922, 0.0
    %v2216 = vmax.f32 %v1924, 0.0
    %v2217 = vmax.f32 %v1926, 0.0
    %v2218 = vmax.f32 %v1930, 0.0
    %v2219 = vmax.f32 %v1932, 0.0
    %v2220 = vmax.f32 %v1934, 0.0
    %v2221 = vmax.f32 %v1936, 0.0
    %v2222 = vmax.f32 %v1940, 0.0
    %v2223 = vmax.f32 %v1942, 0.0
    %v2224 = vmax.f32 %v1944, 0.0
    %v2225 = vmax.f32 %v1946, 0.0
    %v2226 = vmax.f32 %v1950, 0.0
    %v2227 = vmax.f32 %v1952, 0.0
    %v2228 = vmax.f32 %v1954, 0.0
    %v2229 = vmax.f32 %v1956, 0.0
    %v2230 = vmax.f32 %v1960, 0.0
    %v2231 = vmax.f32 %v1962, 0.0
    %v2232 = vmax.f32 %v1964, 0.0
    %v2233 = vmax.f32 %v1966, 0.0
    %v2234 = vmax.f32 %v1970, 0.0
    %v2235 = vmax.f32 %v1972, 0.0
    %v2236 = vmax.f32 %v1974, 0.0
    %v2237 = vmax.f32 %v1976, 0.0
    %v2238 = vmax.f32 %v1980, 0.0
    %v2239 = vmax.f32 %v1982, 0.0
    %v2240 = vmax.f32 %v1984, 0.0
    %v2241 = vmax.f32 %v1986, 0.0
    %v2242 = vmax.f32 %v1990, 0.0
    %v2243 = vmax.f32 %v1992, 0.0
    %v2244 = vmax.f32 %v1994, 0.0
    %v2245 = vmax.f32 %v1996, 0.0
    %v2246 = vmax.f32 %v2000, 0.0
    %v2247 = vmax.f32 %v2002, 0.0
    %v2248 = vmax.f32 %v2004, 0.0
    %v2249 = vmax.f32 %v2006, 0.0
    %v2250 = vmax.f32 %v2010, 0.0
    %v2251 = vmax.f32 %v2012, 0.0
    %v2252 = vmax.f32 %v2014, 0.0
    %v2253 = vmax.f32 %v2016, 0.0
    %v2254 = vmax.f32 %v2020, 0.0
    %v2255 = vmax.f32 %v2022, 0.0
    %v2256 = vmax.f32 %v2024, 0.0
    %v2257 = vmax.f32 %v2026, 0.0
    %v2258 = vmax.f32 %v2030, 0.0
    %v2259 = vmax.f32 %v2032, 0.0
    %v2260 = vmax.f32 %v2034, 0.0
    %v2261 = vmax.f32 %v2036, 0.0
    %v2262 = vmax.f32 %v2040, 0.0
    %v2263 = vmax.f32 %v2042, 0.0
    %v2264 = vmax.f32 %v2044, 0.0
    %v2265 = vmax.f32 %v2046, 0.0
    %v2266 = vmax.f32 %v2050, 0.0
    %v2267 = vmax.f32 %v2052, 0.0
    %v2268 = vmax.f32 %v2054, 0.0
    %v2269 = vmax.f32 %v2056, 0.0
    %v2270 = vmax.f32 %v2060, 0.0
    %v2271 = vmax.f32 %v2062, 0.0
    %v2272 = vmax.f32 %v2064, 0.0
    %v2273 = vmax.f32 %v2066, 0.0
    %v2274 = vmax.f32 %v2070, 0.0
    %v2275 = vmax.f32 %v2072, 0.0
    %v2276 = vmax.f32 %v2074, 0.0
    %v2277 = vmax.f32 %v2076, 0.0
    %v2278 = vmax.f32 %v2080, 0.0
    %v2279 = vmax.f32 %v2082, 0.0
    %v2280 = vmax.f32 %v2084, 0.0
    %v2281 = vmax.f32 %v2086, 0.0
    %v2282 = vmax.f32 %v2090, 0.0
    %v2283 = vmax.f32 %v2092, 0.0
    %v2284 = vmax.f32 %v2094, 0.0
    %v2285 = vmax.f32 %v2096, 0.0
    %v2286 = vmax.f32 %v2100, 0.0
    %v2287 = vmax.f32 %v2102, 0.0
    %v2288 = vmax.f32 %v2104, 0.0
    %v2289 = vmax.f32 %v2106, 0.0
    %v2290 = vmax.f32 %v2110, 0.0
    %v2291 = vmax.f32 %v2112, 0.0
    %v2292 = vmax.f32 %v2114, 0.0
    %v2293 = vmax.f32 %v2116, 0.0
    %v2294 = vmax.f32 %v2120, 0.0
    %v2295 = vmax.f32 %v2122, 0.0
    %v2296 = vmax.f32 %v2124, 0.0
    %v2297 = vmax.f32 %v2126, 0.0
    %v2298 = vmax.f32 %v2130, 0.0
    %v2299 = vmax.f32 %v2132, 0.0
    %v2300 = vmax.f32 %v2134, 0.0
    %v2301 = vmax.f32 %v2136, 0.0
    %v2302 = vmax.f32 %v2140, 0.0
    %v2303 = vmax.f32 %v2142, 0.0
    %v2304 = vmax.f32 %v2144, 0.0
    %v2305 = vmax.f32 %v2146, 0.0
    %v2306 = vmax.f32 %v2150, 0.0
    %v2307 = vmax.f32 %v2152, 0.0
    %v2308 = vmax.f32 %v2154, 0.0
    %v2309 = vmax.f32 %v2156, 0.0
    %v2310 = vmax.f32 %v2160, 0.0
    %v2311 = vmax.f32 %v2162, 0.0
    %v2312 = vmax.f32 %v2164, 0.0
    %v2313 = vmax.f32 %v2166, 0.0
    %v2314 = vmax.f32 %v2170, 0.0
    %v2315 = vmax.f32 %v2172, 0.0
    %v2316 = vmax.f32 %v2174, 0.0
    %v2317 = vmax.f32 %v2176, 0.0
    %v2318 = vmax.f32 %v2180, 0.0
    %v2319 = vmax.f32 %v2182, 0.0
    %v2320 = vmax.f32 %v2184, 0.0
    %v2321 = vmax.f32 %v2186, 0.0
    %v2322 = vmax.f32 %v2190, 0.0
    %v2323 = vmax.f32 %v2192, 0.0
    %v2324 = vmax.f32 %v2194, 0.0
    %v2325 = vmax.f32 %v2196, 0.0
    %v2326 = vpack.c.bf16 %v2200, %v2198
    %v2327 = vpack.c.bf16 %v2201, %v2199
    %v2328 = vpack.c.bf16 %v2204, %v2202
    %v2329 = vpack.c.bf16 %v2205, %v2203
    %v2330 = vpack.c.bf16 %v2208, %v2206
    %v2331 = vpack.c.bf16 %v2209, %v2207
    %v2332 = vpack.c.bf16 %v2212, %v2210
    %v2333 = vpack.c.bf16 %v2213, %v2211
    %v2334 = vpack.c.bf16 %v2216, %v2214
    %v2335 = vpack.c.bf16 %v2217, %v2215
    %v2336 = vpack.c.bf16 %v2220, %v2218
    %v2337 = vpack.c.bf16 %v2221, %v2219
    %v2338 = vpack.c.bf16 %v2224, %v2222
    %v2339 = vpack.c.bf16 %v2225, %v2223
    %v2340 = vpack.c.bf16 %v2228, %v2226
    %v2341 = vpack.c.bf16 %v2229, %v2227
    %v2342 = vpack.c.bf16 %v2232, %v2230
    %v2343 = vpack.c.bf16 %v2233, %v2231
    %v2344 = vpack.c.bf16 %v2236, %v2234
    %v2345 = vpack.c.bf16 %v2237, %v2235
    %v2346 = vpack.c.bf16 %v2240, %v2238
    %v2347 = vpack.c.bf16 %v2241, %v2239
    %v2348 = vpack.c.bf16 %v2244, %v2242
    %v2349 = vpack.c.bf16 %v2245, %v2243
    %v2350 = vpack.c.bf16 %v2248, %v2246
    %v2351 = vpack.c.bf16 %v2249, %v2247
    %v2352 = vpack.c.bf16 %v2252, %v2250
    %v2353 = vpack.c.bf16 %v2253, %v2251
    %v2354 = vpack.c.bf16 %v2256, %v2254
    %v2355 = vpack.c.bf16 %v2257, %v2255
    %v2356 = vpack.c.bf16 %v2260, %v2258
    %v2357 = vpack.c.bf16 %v2261, %v2259
    %v2358 = vpack.c.bf16 %v2264, %v2262
    %v2359 = vpack.c.bf16 %v2265, %v2263
    %v2360 = vpack.c.bf16 %v2268, %v2266
    %v2361 = vpack.c.bf16 %v2269, %v2267
    %v2362 = vpack.c.bf16 %v2272, %v2270
    %v2363 = vpack.c.bf16 %v2273, %v2271
    %v2364 = vpack.c.bf16 %v2276, %v2274
    %v2365 = vpack.c.bf16 %v2277, %v2275
    %v2366 = vpack.c.bf16 %v2280, %v2278
    %v2367 = vpack.c.bf16 %v2281, %v2279
    %v2368 = vpack.c.bf16 %v2284, %v2282
    %v2369 = vpack.c.bf16 %v2285, %v2283
    %v2370 = vpack.c.bf16 %v2288, %v2286
    %v2371 = vpack.c.bf16 %v2289, %v2287
    %v2372 = vpack.c.bf16 %v2292, %v2290
    %v2373 = vpack.c.bf16 %v2293, %v2291
    %v2374 = vpack.c.bf16 %v2296, %v2294
    %v2375 = vpack.c.bf16 %v2297, %v2295
    %v2376 = vpack.c.bf16 %v2300, %v2298
    %v2377 = vpack.c.bf16 %v2301, %v2299
    %v2378 = vpack.c.bf16 %v2304, %v2302
    %v2379 = vpack.c.bf16 %v2305, %v2303
    %v2380 = vpack.c.bf16 %v2308, %v2306
    %v2381 = vpack.c.bf16 %v2309, %v2307
    %v2382 = vpack.c.bf16 %v2312, %v2310
    %v2383 = vpack.c.bf16 %v2313, %v2311
    %v2384 = vpack.c.bf16 %v2316, %v2314
    %v2385 = vpack.c.bf16 %v2317, %v2315
    %v2386 = vpack.c.bf16 %v2320, %v2318
    %v2387 = vpack.c.bf16 %v2321, %v2319
    %v2388 = vpack.c.bf16 %v2324, %v2322
    %v2389 = vpack.c.bf16 %v2325, %v2323
    %v2390 = vld [vmem:[#allocation2] sm:$0xff]
    %v2391 = vld [vmem:[#allocation2 + $0x8] sm:$0xff]
    %v2392 = vld [vmem:[#allocation2 + $0x10] sm:$0xff]
    %v2393 = vld [vmem:[#allocation2 + $0x18] sm:$0xff]
    %v2394 = vld [vmem:[#allocation2 + $0x20] sm:$0xff]
    %v2395 = vld [vmem:[#allocation2 + $0x28] sm:$0xff]
    %v2396 = vld [vmem:[#allocation2 + $0x30] sm:$0xff]
    %v2397 = vld [vmem:[#allocation2 + $0x38] sm:$0xff]
    %v2398 = vld [vmem:[#allocation2 + $0x40] sm:$0xff]
    %v2399 = vld [vmem:[#allocation2 + $0x48] sm:$0xff]
    %v2400 = vld [vmem:[#allocation2 + $0x50] sm:$0xff]
    %v2401 = vld [vmem:[#allocation2 + $0x58] sm:$0xff]
    %v2402 = vld [vmem:[#allocation2 + $0x60] sm:$0xff]
    %v2403 = vld [vmem:[#allocation2 + $0x68] sm:$0xff]
    %v2404 = vld [vmem:[#allocation2 + $0x70] sm:$0xff]
    %v2405 = vld [vmem:[#allocation2 + $0x78] sm:$0xff]
    %v2406 = vld [vmem:[#allocation2 + $0x80] sm:$0xff]
    %v2407 = vld [vmem:[#allocation2 + $0x88] sm:$0xff]
    %v2408 = vld [vmem:[#allocation2 + $0x90] sm:$0xff]
    %v2409 = vld [vmem:[#allocation2 + $0x98] sm:$0xff]
    %v2410 = vld [vmem:[#allocation2 + $0xa0] sm:$0xff]
    %v2411 = vld [vmem:[#allocation2 + $0xa8] sm:$0xff]
    %v2412 = vld [vmem:[#allocation2 + $0xb0] sm:$0xff]
    %v2413 = vld [vmem:[#allocation2 + $0xb8] sm:$0xff]
    %v2414 = vld [vmem:[#allocation2 + $0xc0] sm:$0xff]
    %v2415 = vld [vmem:[#allocation2 + $0xc8] sm:$0xff]
    %v2416 = vld [vmem:[#allocation2 + $0xd0] sm:$0xff]
    %v2417 = vld [vmem:[#allocation2 + $0xd8] sm:$0xff]
    %v2418 = vld [vmem:[#allocation2 + $0xe0] sm:$0xff]
    %v2419 = vld [vmem:[#allocation2 + $0xe8] sm:$0xff]
    %v2420 = vld [vmem:[#allocation2 + $0xf0] sm:$0xff]
    %v2421 = vld [vmem:[#allocation2 + $0xf8] sm:$0xff]
    %v2422 = vld [vmem:[%s13] sm:$0x3]
    %v2424 = vlaneseq
    %v2425 = vshrl.u32 %v2424, 7
    %v2426 = vsub.s32 0, %v2425
    %v2427 = vrot.slane %v2422, %v2426
    %v2428 = vlaneseq
    %v2429 = vshrl.u32 %v2428, 7
    %v2430 = vsub.s32 1, %v2429
    %v2431 = vrot.slane %v2422, %v2430
    %v2466 = vunpack.c.l.b16 %v2390
    %v2467 = vunpack.c.h.b16 %v2390
    %v2468 = vunpack.c.l.b16 %v2391
    %v2469 = vunpack.c.h.b16 %v2391
    %v2470 = vunpack.c.l.b16 %v2392
    %v2471 = vunpack.c.h.b16 %v2392
    %v2472 = vunpack.c.l.b16 %v2393
    %v2473 = vunpack.c.h.b16 %v2393
    %v2474 = vunpack.c.l.b16 %v2394
    %v2475 = vunpack.c.h.b16 %v2394
    %v2476 = vunpack.c.l.b16 %v2395
    %v2477 = vunpack.c.h.b16 %v2395
    %v2478 = vunpack.c.l.b16 %v2396
    %v2479 = vunpack.c.h.b16 %v2396
    %v2480 = vunpack.c.l.b16 %v2397
    %v2481 = vunpack.c.h.b16 %v2397
    %v2482 = vunpack.c.l.b16 %v2398
    %v2483 = vunpack.c.h.b16 %v2398
    %v2484 = vunpack.c.l.b16 %v2399
    %v2485 = vunpack.c.h.b16 %v2399
    %v2486 = vunpack.c.l.b16 %v2400
    %v2487 = vunpack.c.h.b16 %v2400
    %v2488 = vunpack.c.l.b16 %v2401
    %v2489 = vunpack.c.h.b16 %v2401
    %v2490 = vunpack.c.l.b16 %v2402
    %v2491 = vunpack.c.h.b16 %v2402
    %v2492 = vunpack.c.l.b16 %v2403
    %v2493 = vunpack.c.h.b16 %v2403
    %v2494 = vunpack.c.l.b16 %v2404
    %v2495 = vunpack.c.h.b16 %v2404
    %v2496 = vunpack.c.l.b16 %v2405
    %v2497 = vunpack.c.h.b16 %v2405
    %v2498 = vunpack.c.l.b16 %v2406
    %v2499 = vunpack.c.h.b16 %v2406
    %v2500 = vunpack.c.l.b16 %v2407
    %v2501 = vunpack.c.h.b16 %v2407
    %v2502 = vunpack.c.l.b16 %v2408
    %v2503 = vunpack.c.h.b16 %v2408
    %v2504 = vunpack.c.l.b16 %v2409
    %v2505 = vunpack.c.h.b16 %v2409
    %v2506 = vunpack.c.l.b16 %v2410
    %v2507 = vunpack.c.h.b16 %v2410
    %v2508 = vunpack.c.l.b16 %v2411
    %v2509 = vunpack.c.h.b16 %v2411
    %v2510 = vunpack.c.l.b16 %v2412
    %v2511 = vunpack.c.h.b16 %v2412
    %v2512 = vunpack.c.l.b16 %v2413
    %v2513 = vunpack.c.h.b16 %v2413
    %v2514 = vunpack.c.l.b16 %v2414
    %v2515 = vunpack.c.h.b16 %v2414
    %v2516 = vunpack.c.l.b16 %v2415
    %v2517 = vunpack.c.h.b16 %v2415
    %v2518 = vunpack.c.l.b16 %v2416
    %v2519 = vunpack.c.h.b16 %v2416
    %v2520 = vunpack.c.l.b16 %v2417
    %v2521 = vunpack.c.h.b16 %v2417
    %v2522 = vunpack.c.l.b16 %v2418
    %v2523 = vunpack.c.h.b16 %v2418
    %v2524 = vunpack.c.l.b16 %v2419
    %v2525 = vunpack.c.h.b16 %v2419
    %v2526 = vunpack.c.l.b16 %v2420
    %v2527 = vunpack.c.h.b16 %v2420
    %v2528 = vunpack.c.l.b16 %v2421
    %v2529 = vunpack.c.h.b16 %v2421
    %v2530 = vpack.c.b16 %v2468, %v2466
    %v2531 = vpack.c.b16 %v2469, %v2467
    %v2532 = vpack.c.b16 %v2472, %v2470
    %v2533 = vpack.c.b16 %v2473, %v2471
    %v2534 = vpack.c.b16 %v2476, %v2474
    %v2535 = vpack.c.b16 %v2477, %v2475
    %v2536 = vpack.c.b16 %v2480, %v2478
    %v2537 = vpack.c.b16 %v2481, %v2479
    %v2538 = vpack.c.b16 %v2484, %v2482
    %v2539 = vpack.c.b16 %v2485, %v2483
    %v2540 = vpack.c.b16 %v2488, %v2486
    %v2541 = vpack.c.b16 %v2489, %v2487
    %v2542 = vpack.c.b16 %v2492, %v2490
    %v2543 = vpack.c.b16 %v2493, %v2491
    %v2544 = vpack.c.b16 %v2496, %v2494
    %v2545 = vpack.c.b16 %v2497, %v2495
    %v2546 = vpack.c.b16 %v2500, %v2498
    %v2547 = vpack.c.b16 %v2501, %v2499
    %v2548 = vpack.c.b16 %v2504, %v2502
    %v2549 = vpack.c.b16 %v2505, %v2503
    %v2550 = vpack.c.b16 %v2508, %v2506
    %v2551 = vpack.c.b16 %v2509, %v2507
    %v2552 = vpack.c.b16 %v2512, %v2510
    %v2553 = vpack.c.b16 %v2513, %v2511
    %v2554 = vpack.c.b16 %v2516, %v2514
    %v2555 = vpack.c.b16 %v2517, %v2515
    %v2556 = vpack.c.b16 %v2520, %v2518
    %v2557 = vpack.c.b16 %v2521, %v2519
    %v2558 = vpack.c.b16 %v2524, %v2522
    %v2559 = vpack.c.b16 %v2525, %v2523
    %v2560 = vpack.c.b16 %v2528, %v2526
    %v2561 = vpack.c.b16 %v2529, %v2527
    %2594 = vmatprep.subr.bf16.mxu0 %v2531
    %2595 = vmatpush1.bf16.msra.mxu0 %v2530
    %2596 = vmatprep.subr.bf16.mxu0 %v2533
    %2597 = vmatpush1.bf16.msra.mxu0 %v2532
    %2598 = vmatprep.subr.bf16.mxu0 %v2535
    %2599 = vmatpush1.bf16.msra.mxu0 %v2534
    %2600 = vmatprep.subr.bf16.mxu0 %v2537
    %2601 = vmatpush1.bf16.msra.mxu0 %v2536
    %2602 = vmatprep.subr.bf16.mxu0 %v2539
    %2603 = vmatpush1.bf16.msra.mxu0 %v2538
    %2604 = vmatprep.subr.bf16.mxu0 %v2541
    %2605 = vmatpush1.bf16.msra.mxu0 %v2540
    %2606 = vmatprep.subr.bf16.mxu0 %v2543
    %2607 = vmatpush1.bf16.msra.mxu0 %v2542
    %2608 = vmatprep.subr.bf16.mxu0 %v2545
    %2609 = vmatpush1.bf16.msra.mxu0 %v2544
    %2610 = vmatprep.subr.bf16.mxu0 %v2547
    %2611 = vmatpush1.bf16.msra.mxu0 %v2546
    %2612 = vmatprep.subr.bf16.mxu0 %v2549
    %2613 = vmatpush1.bf16.msra.mxu0 %v2548
    %2614 = vmatprep.subr.bf16.mxu0 %v2551
    %2615 = vmatpush1.bf16.msra.mxu0 %v2550
    %2616 = vmatprep.subr.bf16.mxu0 %v2553
    %2617 = vmatpush1.bf16.msra.mxu0 %v2552
    %2618 = vmatprep.subr.bf16.mxu0 %v2555
    %2619 = vmatpush1.bf16.msra.mxu0 %v2554
    %2620 = vmatprep.subr.bf16.mxu0 %v2557
    %2621 = vmatpush1.bf16.msra.mxu0 %v2556
    %2622 = vmatprep.subr.bf16.mxu0 %v2559
    %2623 = vmatpush1.bf16.msra.mxu0 %v2558
    %2624 = vmatprep.subr.bf16.mxu0 %v2561
    %2625 = vmatpush1.bf16.msra.mxu0 %v2560
    %2626 = vmatprep.mubr.bf16.mxu0 %v2327
    %2627 = vmatmul.mubr.bf16.gmra.mrb[0].mxu0 %v2326
    %v2628 = vpop.f32.mrb[0].mxu0
    %v2629 = vadd.f32 %v2427, %v2628
    %v2630 = vpop.f32.mrb[0].mxu0
    %v2631 = vadd.f32 %v2431, %v2630
    %v2632 = vpop.f32.mrb[0].mxu0
    %v2633 = vadd.f32 %v2427, %v2632
    %v2634 = vpop.f32.mrb[0].mxu0
    %v2635 = vadd.f32 %v2431, %v2634
    %2636 = vmatprep.mubr.bf16.mxu0 %v2329
    %2637 = vmatmul.mubr.bf16.gmra.mrb[0].mxu0 %v2328
    %v2638 = vpop.f32.mrb[0].mxu0
    %v2639 = vadd.f32 %v2427, %v2638
    %v2640 = vpop.f32.mrb[0].mxu0
    %v2641 = vadd.f32 %v2431, %v2640
    %v2642 = vpop.f32.mrb[0].mxu0
    %v2643 = vadd.f32 %v2427, %v2642
    %v2644 = vpop.f32.mrb[0].mxu0
    %v2645 = vadd.f32 %v2431, %v2644
    %2646 = vmatprep.mubr.bf16.mxu0 %v2331
    %2647 = vmatmul.mubr.bf16.gmra.mrb[0].mxu0 %v2330
    %v2648 = vpop.f32.mrb[0].mxu0
    %v2649 = vadd.f32 %v2427, %v2648
    %v2650 = vpop.f32.mrb[0].mxu0
    %v2651 = vadd.f32 %v2431, %v2650
    %v2652 = vpop.f32.mrb[0].mxu0
    %v2653 = vadd.f32 %v2427, %v2652
    %v2654 = vpop.f32.mrb[0].mxu0
    %v2655 = vadd.f32 %v2431, %v2654
    %2656 = vmatprep.mubr.bf16.mxu0 %v2333
    %2657 = vmatmul.mubr.bf16.gmra.mrb[0].mxu0 %v2332
    %v2658 = vpop.f32.mrb[0].mxu0
    %v2659 = vadd.f32 %v2427, %v2658
    %v2660 = vpop.f32.mrb[0].mxu0
    %v2661 = vadd.f32 %v2431, %v2660
    %v2662 = vpop.f32.mrb[0].mxu0
    %v2663 = vadd.f32 %v2427, %v2662
    %v2664 = vpop.f32.mrb[0].mxu0
    %v2665 = vadd.f32 %v2431, %v2664
    %2666 = vmatprep.mubr.bf16.mxu0 %v2335
    %2667 = vmatmul.mubr.bf16.gmra.mrb[0].mxu0 %v2334
    %v2668 = vpop.f32.mrb[0].mxu0
    %v2669 = vadd.f32 %v2427, %v2668
    %v2670 = vpop.f32.mrb[0].mxu0
    %v2671 = vadd.f32 %v2431, %v2670
    %v2672 = vpop.f32.mrb[0].mxu0
    %v2673 = vadd.f32 %v2427, %v2672
    %v2674 = vpop.f32.mrb[0].mxu0
    %v2675 = vadd.f32 %v2431, %v2674
    %2676 = vmatprep.mubr.bf16.mxu0 %v2337
    %2677 = vmatmul.mubr.bf16.gmra.mrb[0].mxu0 %v2336
    %v2678 = vpop.f32.mrb[0].mxu0
    %v2679 = vadd.f32 %v2427, %v2678
    %v2680 = vpop.f32.mrb[0].mxu0
    %v2681 = vadd.f32 %v2431, %v2680
    %v2682 = vpop.f32.mrb[0].mxu0
    %v2683 = vadd.f32 %v2427, %v2682
    %v2684 = vpop.f32.mrb[0].mxu0
    %v2685 = vadd.f32 %v2431, %v2684
    %2686 = vmatprep.mubr.bf16.mxu0 %v2339
    %2687 = vmatmul.mubr.bf16.gmra.mrb[0].mxu0 %v2338
    %v2688 = vpop.f32.mrb[0].mxu0
    %v2689 = vadd.f32 %v2427, %v2688
    %v2690 = vpop.f32.mrb[0].mxu0
    %v2691 = vadd.f32 %v2431, %v2690
    %v2692 = vpop.f32.mrb[0].mxu0
    %v2693 = vadd.f32 %v2427, %v2692
    %v2694 = vpop.f32.mrb[0].mxu0
    %v2695 = vadd.f32 %v2431, %v2694
    %2696 = vmatprep.mubr.bf16.mxu0 %v2341
    %2697 = vmatmul.mubr.bf16.gmra.mrb[0].mxu0 %v2340
    %v2698 = vpop.f32.mrb[0].mxu0
    %v2699 = vadd.f32 %v2427, %v2698
    %v2700 = vpop.f32.mrb[0].mxu0
    %v2701 = vadd.f32 %v2431, %v2700
    %v2702 = vpop.f32.mrb[0].mxu0
    %v2703 = vadd.f32 %v2427, %v2702
    %v2704 = vpop.f32.mrb[0].mxu0
    %v2705 = vadd.f32 %v2431, %v2704
    %2706 = vmatprep.mubr.bf16.mxu0 %v2343
    %2707 = vmatmul.mubr.bf16.gmra.mrb[0].mxu0 %v2342
    %v2708 = vpop.f32.mrb[0].mxu0
    %v2709 = vadd.f32 %v2427, %v2708
    %v2710 = vpop.f32.mrb[0].mxu0
    %v2711 = vadd.f32 %v2431, %v2710
    %v2712 = vpop.f32.mrb[0].mxu0
    %v2713 = vadd.f32 %v2427, %v2712
    %v2714 = vpop.f32.mrb[0].mxu0
    %v2715 = vadd.f32 %v2431, %v2714
    %2716 = vmatprep.mubr.bf16.mxu0 %v2345
    %2717 = vmatmul.mubr.bf16.gmra.mrb[0].mxu0 %v2344
    %v2718 = vpop.f32.mrb[0].mxu0
    %v2719 = vadd.f32 %v2427, %v2718
    %v2720 = vpop.f32.mrb[0].mxu0
    %v2721 = vadd.f32 %v2431, %v2720
    %v2722 = vpop.f32.mrb[0].mxu0
    %v2723 = vadd.f32 %v2427, %v2722
    %v2724 = vpop.f32.mrb[0].mxu0
    %v2725 = vadd.f32 %v2431, %v2724
    %2726 = vmatprep.mubr.bf16.mxu0 %v2347
    %2727 = vmatmul.mubr.bf16.gmra.mrb[0].mxu0 %v2346
    %v2728 = vpop.f32.mrb[0].mxu0
    %v2729 = vadd.f32 %v2427, %v2728
    %v2730 = vpop.f32.mrb[0].mxu0
    %v2731 = vadd.f32 %v2431, %v2730
    %v2732 = vpop.f32.mrb[0].mxu0
    %v2733 = vadd.f32 %v2427, %v2732
    %v2734 = vpop.f32.mrb[0].mxu0
    %v2735 = vadd.f32 %v2431, %v2734
    %2736 = vmatprep.mubr.bf16.mxu0 %v2349
    %2737 = vmatmul.mubr.bf16.gmra.mrb[0].mxu0 %v2348
    %v2738 = vpop.f32.mrb[0].mxu0
    %v2739 = vadd.f32 %v2427, %v2738
    %v2740 = vpop.f32.mrb[0].mxu0
    %v2741 = vadd.f32 %v2431, %v2740
    %v2742 = vpop.f32.mrb[0].mxu0
    %v2743 = vadd.f32 %v2427, %v2742
    %v2744 = vpop.f32.mrb[0].mxu0
    %v2745 = vadd.f32 %v2431, %v2744
    %2746 = vmatprep.mubr.bf16.mxu0 %v2351
    %2747 = vmatmul.mubr.bf16.gmra.mrb[0].mxu0 %v2350
    %v2748 = vpop.f32.mrb[0].mxu0
    %v2749 = vadd.f32 %v2427, %v2748
    %v2750 = vpop.f32.mrb[0].mxu0
    %v2751 = vadd.f32 %v2431, %v2750
    %v2752 = vpop.f32.mrb[0].mxu0
    %v2753 = vadd.f32 %v2427, %v2752
    %v2754 = vpop.f32.mrb[0].mxu0
    %v2755 = vadd.f32 %v2431, %v2754
    %2756 = vmatprep.mubr.bf16.mxu0 %v2353
    %2757 = vmatmul.mubr.bf16.gmra.mrb[0].mxu0 %v2352
    %v2758 = vpop.f32.mrb[0].mxu0
    %v2759 = vadd.f32 %v2427, %v2758
    %v2760 = vpop.f32.mrb[0].mxu0
    %v2761 = vadd.f32 %v2431, %v2760
    %v2762 = vpop.f32.mrb[0].mxu0
    %v2763 = vadd.f32 %v2427, %v2762
    %v2764 = vpop.f32.mrb[0].mxu0
    %v2765 = vadd.f32 %v2431, %v2764
    %2766 = vmatprep.mubr.bf16.mxu0 %v2355
    %2767 = vmatmul.mubr.bf16.gmra.mrb[0].mxu0 %v2354
    %v2768 = vpop.f32.mrb[0].mxu0
    %v2769 = vadd.f32 %v2427, %v2768
    %v2770 = vpop.f32.mrb[0].mxu0
    %v2771 = vadd.f32 %v2431, %v2770
    %v2772 = vpop.f32.mrb[0].mxu0
    %v2773 = vadd.f32 %v2427, %v2772
    %v2774 = vpop.f32.mrb[0].mxu0
    %v2775 = vadd.f32 %v2431, %v2774
    %2776 = vmatprep.mubr.bf16.mxu0 %v2357
    %2777 = vmatmul.mubr.bf16.gmra.mrb[0].mxu0 %v2356
    %v2778 = vpop.f32.mrb[0].mxu0
    %v2779 = vadd.f32 %v2427, %v2778
    %v2780 = vpop.f32.mrb[0].mxu0
    %v2781 = vadd.f32 %v2431, %v2780
    %v2782 = vpop.f32.mrb[0].mxu0
    %v2783 = vadd.f32 %v2427, %v2782
    %v2784 = vpop.f32.mrb[0].mxu0
    %v2785 = vadd.f32 %v2431, %v2784
    %2786 = vmatprep.mubr.bf16.mxu0 %v2359
    %2787 = vmatmul.mubr.bf16.gmra.mrb[0].mxu0 %v2358
    %v2788 = vpop.f32.mrb[0].mxu0
    %v2789 = vadd.f32 %v2427, %v2788
    %v2790 = vpop.f32.mrb[0].mxu0
    %v2791 = vadd.f32 %v2431, %v2790
    %v2792 = vpop.f32.mrb[0].mxu0
    %v2793 = vadd.f32 %v2427, %v2792
    %v2794 = vpop.f32.mrb[0].mxu0
    %v2795 = vadd.f32 %v2431, %v2794
    %2796 = vmatprep.mubr.bf16.mxu0 %v2361
    %2797 = vmatmul.mubr.bf16.gmra.mrb[0].mxu0 %v2360
    %v2798 = vpop.f32.mrb[0].mxu0
    %v2799 = vadd.f32 %v2427, %v2798
    %v2800 = vpop.f32.mrb[0].mxu0
    %v2801 = vadd.f32 %v2431, %v2800
    %v2802 = vpop.f32.mrb[0].mxu0
    %v2803 = vadd.f32 %v2427, %v2802
    %v2804 = vpop.f32.mrb[0].mxu0
    %v2805 = vadd.f32 %v2431, %v2804
    %2806 = vmatprep.mubr.bf16.mxu0 %v2363
    %2807 = vmatmul.mubr.bf16.gmra.mrb[0].mxu0 %v2362
    %v2808 = vpop.f32.mrb[0].mxu0
    %v2809 = vadd.f32 %v2427, %v2808
    %v2810 = vpop.f32.mrb[0].mxu0
    %v2811 = vadd.f32 %v2431, %v2810
    %v2812 = vpop.f32.mrb[0].mxu0
    %v2813 = vadd.f32 %v2427, %v2812
    %v2814 = vpop.f32.mrb[0].mxu0
    %v2815 = vadd.f32 %v2431, %v2814
    %2816 = vmatprep.mubr.bf16.mxu0 %v2365
    %2817 = vmatmul.mubr.bf16.gmra.mrb[0].mxu0 %v2364
    %v2818 = vpop.f32.mrb[0].mxu0
    %v2819 = vadd.f32 %v2427, %v2818
    %v2820 = vpop.f32.mrb[0].mxu0
    %v2821 = vadd.f32 %v2431, %v2820
    %v2822 = vpop.f32.mrb[0].mxu0
    %v2823 = vadd.f32 %v2427, %v2822
    %v2824 = vpop.f32.mrb[0].mxu0
    %v2825 = vadd.f32 %v2431, %v2824
    %2826 = vmatprep.mubr.bf16.mxu0 %v2367
    %2827 = vmatmul.mubr.bf16.gmra.mrb[0].mxu0 %v2366
    %v2828 = vpop.f32.mrb[0].mxu0
    %v2829 = vadd.f32 %v2427, %v2828
    %v2830 = vpop.f32.mrb[0].mxu0
    %v2831 = vadd.f32 %v2431, %v2830
    %v2832 = vpop.f32.mrb[0].mxu0
    %v2833 = vadd.f32 %v2427, %v2832
    %v2834 = vpop.f32.mrb[0].mxu0
    %v2835 = vadd.f32 %v2431, %v2834
    %2836 = vmatprep.mubr.bf16.mxu0 %v2369
    %2837 = vmatmul.mubr.bf16.gmra.mrb[0].mxu0 %v2368
    %v2838 = vpop.f32.mrb[0].mxu0
    %v2839 = vadd.f32 %v2427, %v2838
    %v2840 = vpop.f32.mrb[0].mxu0
    %v2841 = vadd.f32 %v2431, %v2840
    %v2842 = vpop.f32.mrb[0].mxu0
    %v2843 = vadd.f32 %v2427, %v2842
    %v2844 = vpop.f32.mrb[0].mxu0
    %v2845 = vadd.f32 %v2431, %v2844
    %2846 = vmatprep.mubr.bf16.mxu0 %v2371
    %2847 = vmatmul.mubr.bf16.gmra.mrb[0].mxu0 %v2370
    %v2848 = vpop.f32.mrb[0].mxu0
    %v2849 = vadd.f32 %v2427, %v2848
    %v2850 = vpop.f32.mrb[0].mxu0
    %v2851 = vadd.f32 %v2431, %v2850
    %v2852 = vpop.f32.mrb[0].mxu0
    %v2853 = vadd.f32 %v2427, %v2852
    %v2854 = vpop.f32.mrb[0].mxu0
    %v2855 = vadd.f32 %v2431, %v2854
    %2856 = vmatprep.mubr.bf16.mxu0 %v2373
    %2857 = vmatmul.mubr.bf16.gmra.mrb[0].mxu0 %v2372
    %v2858 = vpop.f32.mrb[0].mxu0
    %v2859 = vadd.f32 %v2427, %v2858
    %v2860 = vpop.f32.mrb[0].mxu0
    %v2861 = vadd.f32 %v2431, %v2860
    %v2862 = vpop.f32.mrb[0].mxu0
    %v2863 = vadd.f32 %v2427, %v2862
    %v2864 = vpop.f32.mrb[0].mxu0
    %v2865 = vadd.f32 %v2431, %v2864
    %2866 = vmatprep.mubr.bf16.mxu0 %v2375
    %2867 = vmatmul.mubr.bf16.gmra.mrb[0].mxu0 %v2374
    %v2868 = vpop.f32.mrb[0].mxu0
    %v2869 = vadd.f32 %v2427, %v2868
    %v2870 = vpop.f32.mrb[0].mxu0
    %v2871 = vadd.f32 %v2431, %v2870
    %v2872 = vpop.f32.mrb[0].mxu0
    %v2873 = vadd.f32 %v2427, %v2872
    %v2874 = vpop.f32.mrb[0].mxu0
    %v2875 = vadd.f32 %v2431, %v2874
    %2876 = vmatprep.mubr.bf16.mxu0 %v2377
    %2877 = vmatmul.mubr.bf16.gmra.mrb[0].mxu0 %v2376
    %v2878 = vpop.f32.mrb[0].mxu0
    %v2879 = vadd.f32 %v2427, %v2878
    %v2880 = vpop.f32.mrb[0].mxu0
    %v2881 = vadd.f32 %v2431, %v2880
    %v2882 = vpop.f32.mrb[0].mxu0
    %v2883 = vadd.f32 %v2427, %v2882
    %v2884 = vpop.f32.mrb[0].mxu0
    %v2885 = vadd.f32 %v2431, %v2884
    %2886 = vmatprep.mubr.bf16.mxu0 %v2379
    %2887 = vmatmul.mubr.bf16.gmra.mrb[0].mxu0 %v2378
    %v2888 = vpop.f32.mrb[0].mxu0
    %v2889 = vadd.f32 %v2427, %v2888
    %v2890 = vpop.f32.mrb[0].mxu0
    %v2891 = vadd.f32 %v2431, %v2890
    %v2892 = vpop.f32.mrb[0].mxu0
    %v2893 = vadd.f32 %v2427, %v2892
    %v2894 = vpop.f32.mrb[0].mxu0
    %v2895 = vadd.f32 %v2431, %v2894
    %2896 = vmatprep.mubr.bf16.mxu0 %v2381
    %2897 = vmatmul.mubr.bf16.gmra.mrb[0].mxu0 %v2380
    %v2898 = vpop.f32.mrb[0].mxu0
    %v2899 = vadd.f32 %v2427, %v2898
    %v2900 = vpop.f32.mrb[0].mxu0
    %v2901 = vadd.f32 %v2431, %v2900
    %v2902 = vpop.f32.mrb[0].mxu0
    %v2903 = vadd.f32 %v2427, %v2902
    %v2904 = vpop.f32.mrb[0].mxu0
    %v2905 = vadd.f32 %v2431, %v2904
    %2906 = vmatprep.mubr.bf16.mxu0 %v2383
    %2907 = vmatmul.mubr.bf16.gmra.mrb[0].mxu0 %v2382
    %v2908 = vpop.f32.mrb[0].mxu0
    %v2909 = vadd.f32 %v2427, %v2908
    %v2910 = vpop.f32.mrb[0].mxu0
    %v2911 = vadd.f32 %v2431, %v2910
    %v2912 = vpop.f32.mrb[0].mxu0
    %v2913 = vadd.f32 %v2427, %v2912
    %v2914 = vpop.f32.mrb[0].mxu0
    %v2915 = vadd.f32 %v2431, %v2914
    %2916 = vmatprep.mubr.bf16.mxu0 %v2385
    %2917 = vmatmul.mubr.bf16.gmra.mrb[0].mxu0 %v2384
    %v2918 = vpop.f32.mrb[0].mxu0
    %v2919 = vadd.f32 %v2427, %v2918
    %v2920 = vpop.f32.mrb[0].mxu0
    %v2921 = vadd.f32 %v2431, %v2920
    %v2922 = vpop.f32.mrb[0].mxu0
    %v2923 = vadd.f32 %v2427, %v2922
    %v2924 = vpop.f32.mrb[0].mxu0
    %v2925 = vadd.f32 %v2431, %v2924
    %2926 = vmatprep.mubr.bf16.mxu0 %v2387
    %2927 = vmatmul.mubr.bf16.gmra.mrb[0].mxu0 %v2386
    %v2928 = vpop.f32.mrb[0].mxu0
    %v2929 = vadd.f32 %v2427, %v2928
    %v2930 = vpop.f32.mrb[0].mxu0
    %v2931 = vadd.f32 %v2431, %v2930
    %v2932 = vpop.f32.mrb[0].mxu0
    %v2933 = vadd.f32 %v2427, %v2932
    %v2934 = vpop.f32.mrb[0].mxu0
    %v2935 = vadd.f32 %v2431, %v2934
    %2936 = vmatprep.mubr.bf16.mxu0 %v2389
    %2937 = vmatmul.mubr.bf16.gmra.mrb[0].mxu0 %v2388
    %v2938 = vpop.f32.mrb[0].mxu0
    %v2939 = vadd.f32 %v2427, %v2938
    %v2940 = vpop.f32.mrb[0].mxu0
    %v2941 = vadd.f32 %v2431, %v2940
    %v2942 = vpop.f32.mrb[0].mxu0
    %v2943 = vadd.f32 %v2427, %v2942
    %v2944 = vpop.f32.mrb[0].mxu0
    %v2945 = vadd.f32 %v2431, %v2944
    %2946 = vdwg.mxu0
    %v2947 = vmax.f32 %v2629, 0.0
    %v2948 = vmax.f32 %v2631, 0.0
    %v2949 = vmax.f32 %v2633, 0.0
    %v2950 = vmax.f32 %v2635, 0.0
    %v2951 = vmax.f32 %v2639, 0.0
    %v2952 = vmax.f32 %v2641, 0.0
    %v2953 = vmax.f32 %v2643, 0.0
    %v2954 = vmax.f32 %v2645, 0.0
    %v2955 = vmax.f32 %v2649, 0.0
    %v2956 = vmax.f32 %v2651, 0.0
    %v2957 = vmax.f32 %v2653, 0.0
    %v2958 = vmax.f32 %v2655, 0.0
    %v2959 = vmax.f32 %v2659, 0.0
    %v2960 = vmax.f32 %v2661, 0.0
    %v2961 = vmax.f32 %v2663, 0.0
    %v2962 = vmax.f32 %v2665, 0.0
    %v2963 = vmax.f32 %v2669, 0.0
    %v2964 = vmax.f32 %v2671, 0.0
    %v2965 = vmax.f32 %v2673, 0.0
    %v2966 = vmax.f32 %v2675, 0.0
    %v2967 = vmax.f32 %v2679, 0.0
    %v2968 = vmax.f32 %v2681, 0.0
    %v2969 = vmax.f32 %v2683, 0.0
    %v2970 = vmax.f32 %v2685, 0.0
    %v2971 = vmax.f32 %v2689, 0.0
    %v2972 = vmax.f32 %v2691, 0.0
    %v2973 = vmax.f32 %v2693, 0.0
    %v2974 = vmax.f32 %v2695, 0.0
    %v2975 = vmax.f32 %v2699, 0.0
    %v2976 = vmax.f32 %v2701, 0.0
    %v2977 = vmax.f32 %v2703, 0.0
    %v2978 = vmax.f32 %v2705, 0.0
    %v2979 = vmax.f32 %v2709, 0.0
    %v2980 = vmax.f32 %v2711, 0.0
    %v2981 = vmax.f32 %v2713, 0.0
    %v2982 = vmax.f32 %v2715, 0.0
    %v2983 = vmax.f32 %v2719, 0.0
    %v2984 = vmax.f32 %v2721, 0.0
    %v2985 = vmax.f32 %v2723, 0.0
    %v2986 = vmax.f32 %v2725, 0.0
    %v2987 = vmax.f32 %v2729, 0.0
    %v2988 = vmax.f32 %v2731, 0.0
    %v2989 = vmax.f32 %v2733, 0.0
    %v2990 = vmax.f32 %v2735, 0.0
    %v2991 = vmax.f32 %v2739, 0.0
    %v2992 = vmax.f32 %v2741, 0.0
    %v2993 = vmax.f32 %v2743, 0.0
    %v2994 = vmax.f32 %v2745, 0.0
    %v2995 = vmax.f32 %v2749, 0.0
    %v2996 = vmax.f32 %v2751, 0.0
    %v2997 = vmax.f32 %v2753, 0.0
    %v2998 = vmax.f32 %v2755, 0.0
    %v2999 = vmax.f32 %v2759, 0.0
    %v3000 = vmax.f32 %v2761, 0.0
    %v3001 = vmax.f32 %v2763, 0.0
    %v3002 = vmax.f32 %v2765, 0.0
    %v3003 = vmax.f32 %v2769, 0.0
    %v3004 = vmax.f32 %v2771, 0.0
    %v3005 = vmax.f32 %v2773, 0.0
    %v3006 = vmax.f32 %v2775, 0.0
    %v3007 = vmax.f32 %v2779, 0.0
    %v3008 = vmax.f32 %v2781, 0.0
    %v3009 = vmax.f32 %v2783, 0.0
    %v3010 = vmax.f32 %v2785, 0.0
    %v3011 = vmax.f32 %v2789, 0.0
    %v3012 = vmax.f32 %v2791, 0.0
    %v3013 = vmax.f32 %v2793, 0.0
    %v3014 = vmax.f32 %v2795, 0.0
    %v3015 = vmax.f32 %v2799, 0.0
    %v3016 = vmax.f32 %v2801, 0.0
    %v3017 = vmax.f32 %v2803, 0.0
    %v3018 = vmax.f32 %v2805, 0.0
    %v3019 = vmax.f32 %v2809, 0.0
    %v3020 = vmax.f32 %v2811, 0.0
    %v3021 = vmax.f32 %v2813, 0.0
    %v3022 = vmax.f32 %v2815, 0.0
    %v3023 = vmax.f32 %v2819, 0.0
    %v3024 = vmax.f32 %v2821, 0.0
    %v3025 = vmax.f32 %v2823, 0.0
    %v3026 = vmax.f32 %v2825, 0.0
    %v3027 = vmax.f32 %v2829, 0.0
    %v3028 = vmax.f32 %v2831, 0.0
    %v3029 = vmax.f32 %v2833, 0.0
    %v3030 = vmax.f32 %v2835, 0.0
    %v3031 = vmax.f32 %v2839, 0.0
    %v3032 = vmax.f32 %v2841, 0.0
    %v3033 = vmax.f32 %v2843, 0.0
    %v3034 = vmax.f32 %v2845, 0.0
    %v3035 = vmax.f32 %v2849, 0.0
    %v3036 = vmax.f32 %v2851, 0.0
    %v3037 = vmax.f32 %v2853, 0.0
    %v3038 = vmax.f32 %v2855, 0.0
    %v3039 = vmax.f32 %v2859, 0.0
    %v3040 = vmax.f32 %v2861, 0.0
    %v3041 = vmax.f32 %v2863, 0.0
    %v3042 = vmax.f32 %v2865, 0.0
    %v3043 = vmax.f32 %v2869, 0.0
    %v3044 = vmax.f32 %v2871, 0.0
    %v3045 = vmax.f32 %v2873, 0.0
    %v3046 = vmax.f32 %v2875, 0.0
    %v3047 = vmax.f32 %v2879, 0.0
    %v3048 = vmax.f32 %v2881, 0.0
    %v3049 = vmax.f32 %v2883, 0.0
    %v3050 = vmax.f32 %v2885, 0.0
    %v3051 = vmax.f32 %v2889, 0.0
    %v3052 = vmax.f32 %v2891, 0.0
    %v3053 = vmax.f32 %v2893, 0.0
    %v3054 = vmax.f32 %v2895, 0.0
    %v3055 = vmax.f32 %v2899, 0.0
    %v3056 = vmax.f32 %v2901, 0.0
    %v3057 = vmax.f32 %v2903, 0.0
    %v3058 = vmax.f32 %v2905, 0.0
    %v3059 = vmax.f32 %v2909, 0.0
    %v3060 = vmax.f32 %v2911, 0.0
    %v3061 = vmax.f32 %v2913, 0.0
    %v3062 = vmax.f32 %v2915, 0.0
    %v3063 = vmax.f32 %v2919, 0.0
    %v3064 = vmax.f32 %v2921, 0.0
    %v3065 = vmax.f32 %v2923, 0.0
    %v3066 = vmax.f32 %v2925, 0.0
    %v3067 = vmax.f32 %v2929, 0.0
    %v3068 = vmax.f32 %v2931, 0.0
    %v3069 = vmax.f32 %v2933, 0.0
    %v3070 = vmax.f32 %v2935, 0.0
    %v3071 = vmax.f32 %v2939, 0.0
    %v3072 = vmax.f32 %v2941, 0.0
    %v3073 = vmax.f32 %v2943, 0.0
    %v3074 = vmax.f32 %v2945, 0.0
    %v3075 = vpack.c.bf16 %v2949, %v2947
    %v3076 = vpack.c.bf16 %v2950, %v2948
    %v3077 = vpack.c.bf16 %v2953, %v2951
    %v3078 = vpack.c.bf16 %v2954, %v2952
    %v3079 = vpack.c.bf16 %v2957, %v2955
    %v3080 = vpack.c.bf16 %v2958, %v2956
    %v3081 = vpack.c.bf16 %v2961, %v2959
    %v3082 = vpack.c.bf16 %v2962, %v2960
    %v3083 = vpack.c.bf16 %v2965, %v2963
    %v3084 = vpack.c.bf16 %v2966, %v2964
    %v3085 = vpack.c.bf16 %v2969, %v2967
    %v3086 = vpack.c.bf16 %v2970, %v2968
    %v3087 = vpack.c.bf16 %v2973, %v2971
    %v3088 = vpack.c.bf16 %v2974, %v2972
    %v3089 = vpack.c.bf16 %v2977, %v2975
    %v3090 = vpack.c.bf16 %v2978, %v2976
    %v3091 = vpack.c.bf16 %v2981, %v2979
    %v3092 = vpack.c.bf16 %v2982, %v2980
    %v3093 = vpack.c.bf16 %v2985, %v2983
    %v3094 = vpack.c.bf16 %v2986, %v2984
    %v3095 = vpack.c.bf16 %v2989, %v2987
    %v3096 = vpack.c.bf16 %v2990, %v2988
    %v3097 = vpack.c.bf16 %v2993, %v2991
    %v3098 = vpack.c.bf16 %v2994, %v2992
    %v3099 = vpack.c.bf16 %v2997, %v2995
    %v3100 = vpack.c.bf16 %v2998, %v2996
    %v3101 = vpack.c.bf16 %v3001, %v2999
    %v3102 = vpack.c.bf16 %v3002, %v3000
    %v3103 = vpack.c.bf16 %v3005, %v3003
    %v3104 = vpack.c.bf16 %v3006, %v3004
    %v3105 = vpack.c.bf16 %v3009, %v3007
    %v3106 = vpack.c.bf16 %v3010, %v3008
    %v3107 = vpack.c.bf16 %v3013, %v3011
    %v3108 = vpack.c.bf16 %v3014, %v3012
    %v3109 = vpack.c.bf16 %v3017, %v3015
    %v3110 = vpack.c.bf16 %v3018, %v3016
    %v3111 = vpack.c.bf16 %v3021, %v3019
    %v3112 = vpack.c.bf16 %v3022, %v3020
    %v3113 = vpack.c.bf16 %v3025, %v3023
    %v3114 = vpack.c.bf16 %v3026, %v3024
    %v3115 = vpack.c.bf16 %v3029, %v3027
    %v3116 = vpack.c.bf16 %v3030, %v3028
    %v3117 = vpack.c.bf16 %v3033, %v3031
    %v3118 = vpack.c.bf16 %v3034, %v3032
    %v3119 = vpack.c.bf16 %v3037, %v3035
    %v3120 = vpack.c.bf16 %v3038, %v3036
    %v3121 = vpack.c.bf16 %v3041, %v3039
    %v3122 = vpack.c.bf16 %v3042, %v3040
    %v3123 = vpack.c.bf16 %v3045, %v3043
    %v3124 = vpack.c.bf16 %v3046, %v3044
    %v3125 = vpack.c.bf16 %v3049, %v3047
    %v3126 = vpack.c.bf16 %v3050, %v3048
    %v3127 = vpack.c.bf16 %v3053, %v3051
    %v3128 = vpack.c.bf16 %v3054, %v3052
    %v3129 = vpack.c.bf16 %v3057, %v3055
    %v3130 = vpack.c.bf16 %v3058, %v3056
    %v3131 = vpack.c.bf16 %v3061, %v3059
    %v3132 = vpack.c.bf16 %v3062, %v3060
    %v3133 = vpack.c.bf16 %v3065, %v3063
    %v3134 = vpack.c.bf16 %v3066, %v3064
    %v3135 = vpack.c.bf16 %v3069, %v3067
    %v3136 = vpack.c.bf16 %v3070, %v3068
    %v3137 = vpack.c.bf16 %v3073, %v3071
    %v3138 = vpack.c.bf16 %v3074, %v3072
    %v3139 = vld [vmem:[%s5] sm:$0xff]
    %v3140 = vld [vmem:[#allocation5] sm:$0xff]
    %v3141 = vld [vmem:[#allocation5 + $0x8] sm:$0xff]
    %v3142 = vld [vmem:[#allocation5 + $0x10] sm:$0xff]
    %v3143 = vld [vmem:[#allocation5 + $0x18] sm:$0xff]
    %v3144 = vld [vmem:[#allocation5 + $0x20] sm:$0xff]
    %v3145 = vld [vmem:[#allocation5 + $0x28] sm:$0xff]
    %v3146 = vld [vmem:[#allocation5 + $0x30] sm:$0xff]
    %v3147 = vld [vmem:[#allocation5 + $0x38] sm:$0xff]
    %v3148 = vld [vmem:[#allocation5 + $0x40] sm:$0xff]
    %v3149 = vld [vmem:[#allocation5 + $0x48] sm:$0xff]
    %v3150 = vld [vmem:[#allocation5 + $0x50] sm:$0xff]
    %v3151 = vld [vmem:[#allocation5 + $0x58] sm:$0xff]
    %v3152 = vld [vmem:[#allocation5 + $0x60] sm:$0xff]
    %v3153 = vld [vmem:[#allocation5 + $0x68] sm:$0xff]
    %v3154 = vld [vmem:[#allocation5 + $0x70] sm:$0xff]
    %v3155 = vld [vmem:[#allocation5 + $0x78] sm:$0xff]
    %v3156 = vld [vmem:[#allocation5 + $0x80] sm:$0xff]
    %v3157 = vld [vmem:[#allocation5 + $0x88] sm:$0xff]
    %v3158 = vld [vmem:[#allocation5 + $0x90] sm:$0xff]
    %v3159 = vld [vmem:[#allocation5 + $0x98] sm:$0xff]
    %v3160 = vld [vmem:[#allocation5 + $0xa0] sm:$0xff]
    %v3161 = vld [vmem:[#allocation5 + $0xa8] sm:$0xff]
    %v3162 = vld [vmem:[#allocation5 + $0xb0] sm:$0xff]
    %v3163 = vld [vmem:[#allocation5 + $0xb8] sm:$0xff]
    %v3164 = vld [vmem:[#allocation5 + $0xc0] sm:$0xff]
    %v3165 = vld [vmem:[#allocation5 + $0xc8] sm:$0xff]
    %v3166 = vld [vmem:[#allocation5 + $0xd0] sm:$0xff]
    %v3167 = vld [vmem:[#allocation5 + $0xd8] sm:$0xff]
    %v3168 = vld [vmem:[#allocation5 + $0xe0] sm:$0xff]
    %v3169 = vld [vmem:[#allocation5 + $0xe8] sm:$0xff]
    %v3170 = vld [vmem:[#allocation5 + $0xf0] sm:$0xff]
    %v3171 = vld [vmem:[#allocation5 + $0xf8] sm:$0xff]
    %v3204 = vunpack.c.l.b16 %v3140
    %v3205 = vunpack.c.h.b16 %v3140
    %v3206 = vunpack.c.l.b16 %v3141
    %v3207 = vunpack.c.h.b16 %v3141
    %v3208 = vunpack.c.l.b16 %v3142
    %v3209 = vunpack.c.h.b16 %v3142
    %v3210 = vunpack.c.l.b16 %v3143
    %v3211 = vunpack.c.h.b16 %v3143
    %v3212 = vunpack.c.l.b16 %v3144
    %v3213 = vunpack.c.h.b16 %v3144
    %v3214 = vunpack.c.l.b16 %v3145
    %v3215 = vunpack.c.h.b16 %v3145
    %v3216 = vunpack.c.l.b16 %v3146
    %v3217 = vunpack.c.h.b16 %v3146
    %v3218 = vunpack.c.l.b16 %v3147
    %v3219 = vunpack.c.h.b16 %v3147
    %v3220 = vunpack.c.l.b16 %v3148
    %v3221 = vunpack.c.h.b16 %v3148
    %v3222 = vunpack.c.l.b16 %v3149
    %v3223 = vunpack.c.h.b16 %v3149
    %v3224 = vunpack.c.l.b16 %v3150
    %v3225 = vunpack.c.h.b16 %v3150
    %v3226 = vunpack.c.l.b16 %v3151
    %v3227 = vunpack.c.h.b16 %v3151
    %v3228 = vunpack.c.l.b16 %v3152
    %v3229 = vunpack.c.h.b16 %v3152
    %v3230 = vunpack.c.l.b16 %v3153
    %v3231 = vunpack.c.h.b16 %v3153
    %v3232 = vunpack.c.l.b16 %v3154
    %v3233 = vunpack.c.h.b16 %v3154
    %v3234 = vunpack.c.l.b16 %v3155
    %v3235 = vunpack.c.h.b16 %v3155
    %v3236 = vunpack.c.l.b16 %v3156
    %v3237 = vunpack.c.h.b16 %v3156
    %v3238 = vunpack.c.l.b16 %v3157
    %v3239 = vunpack.c.h.b16 %v3157
    %v3240 = vunpack.c.l.b16 %v3158
    %v3241 = vunpack.c.h.b16 %v3158
    %v3242 = vunpack.c.l.b16 %v3159
    %v3243 = vunpack.c.h.b16 %v3159
    %v3244 = vunpack.c.l.b16 %v3160
    %v3245 = vunpack.c.h.b16 %v3160
    %v3246 = vunpack.c.l.b16 %v3161
    %v3247 = vunpack.c.h.b16 %v3161
    %v3248 = vunpack.c.l.b16 %v3162
    %v3249 = vunpack.c.h.b16 %v3162
    %v3250 = vunpack.c.l.b16 %v3163
    %v3251 = vunpack.c.h.b16 %v3163
    %v3252 = vunpack.c.l.b16 %v3164
    %v3253 = vunpack.c.h.b16 %v3164
    %v3254 = vunpack.c.l.b16 %v3165
    %v3255 = vunpack.c.h.b16 %v3165
    %v3256 = vunpack.c.l.b16 %v3166
    %v3257 = vunpack.c.h.b16 %v3166
    %v3258 = vunpack.c.l.b16 %v3167
    %v3259 = vunpack.c.h.b16 %v3167
    %v3260 = vunpack.c.l.b16 %v3168
    %v3261 = vunpack.c.h.b16 %v3168
    %v3262 = vunpack.c.l.b16 %v3169
    %v3263 = vunpack.c.h.b16 %v3169
    %v3264 = vunpack.c.l.b16 %v3170
    %v3265 = vunpack.c.h.b16 %v3170
    %v3266 = vunpack.c.l.b16 %v3171
    %v3267 = vunpack.c.h.b16 %v3171
    %v3268 = vpack.c.b16 %v3206, %v3204
    %v3269 = vpack.c.b16 %v3207, %v3205
    %v3270 = vpack.c.b16 %v3210, %v3208
    %v3271 = vpack.c.b16 %v3211, %v3209
    %v3272 = vpack.c.b16 %v3214, %v3212
    %v3273 = vpack.c.b16 %v3215, %v3213
    %v3274 = vpack.c.b16 %v3218, %v3216
    %v3275 = vpack.c.b16 %v3219, %v3217
    %v3276 = vpack.c.b16 %v3222, %v3220
    %v3277 = vpack.c.b16 %v3223, %v3221
    %v3278 = vpack.c.b16 %v3226, %v3224
    %v3279 = vpack.c.b16 %v3227, %v3225
    %v3280 = vpack.c.b16 %v3230, %v3228
    %v3281 = vpack.c.b16 %v3231, %v3229
    %v3282 = vpack.c.b16 %v3234, %v3232
    %v3283 = vpack.c.b16 %v3235, %v3233
    %v3284 = vpack.c.b16 %v3238, %v3236
    %v3285 = vpack.c.b16 %v3239, %v3237
    %v3286 = vpack.c.b16 %v3242, %v3240
    %v3287 = vpack.c.b16 %v3243, %v3241
    %v3288 = vpack.c.b16 %v3246, %v3244
    %v3289 = vpack.c.b16 %v3247, %v3245
    %v3290 = vpack.c.b16 %v3250, %v3248
    %v3291 = vpack.c.b16 %v3251, %v3249
    %v3292 = vpack.c.b16 %v3254, %v3252
    %v3293 = vpack.c.b16 %v3255, %v3253
    %v3294 = vpack.c.b16 %v3258, %v3256
    %v3295 = vpack.c.b16 %v3259, %v3257
    %v3296 = vpack.c.b16 %v3262, %v3260
    %v3297 = vpack.c.b16 %v3263, %v3261
    %v3298 = vpack.c.b16 %v3266, %v3264
    %v3299 = vpack.c.b16 %v3267, %v3265
    %3332 = vmatprep.subr.bf16.mxu0 %v3269
    %3333 = vmatpush1.bf16.msra.mxu0 %v3268
    %3334 = vmatprep.subr.bf16.mxu0 %v3271
    %3335 = vmatpush1.bf16.msra.mxu0 %v3270
    %3336 = vmatprep.subr.bf16.mxu0 %v3273
    %3337 = vmatpush1.bf16.msra.mxu0 %v3272
    %3338 = vmatprep.subr.bf16.mxu0 %v3275
    %3339 = vmatpush1.bf16.msra.mxu0 %v3274
    %3340 = vmatprep.subr.bf16.mxu0 %v3277
    %3341 = vmatpush1.bf16.msra.mxu0 %v3276
    %3342 = vmatprep.subr.bf16.mxu0 %v3279
    %3343 = vmatpush1.bf16.msra.mxu0 %v3278
    %3344 = vmatprep.subr.bf16.mxu0 %v3281
    %3345 = vmatpush1.bf16.msra.mxu0 %v3280
    %3346 = vmatprep.subr.bf16.mxu0 %v3283
    %3347 = vmatpush1.bf16.msra.mxu0 %v3282
    %3348 = vmatprep.subr.bf16.mxu0 %v3285
    %3349 = vmatpush1.bf16.msra.mxu0 %v3284
    %3350 = vmatprep.subr.bf16.mxu0 %v3287
    %3351 = vmatpush1.bf16.msra.mxu0 %v3286
    %3352 = vmatprep.subr.bf16.mxu0 %v3289
    %3353 = vmatpush1.bf16.msra.mxu0 %v3288
    %3354 = vmatprep.subr.bf16.mxu0 %v3291
    %3355 = vmatpush1.bf16.msra.mxu0 %v3290
    %3356 = vmatprep.subr.bf16.mxu0 %v3293
    %3357 = vmatpush1.bf16.msra.mxu0 %v3292
    %3358 = vmatprep.subr.bf16.mxu0 %v3295
    %3359 = vmatpush1.bf16.msra.mxu0 %v3294
    %3360 = vmatprep.subr.bf16.mxu0 %v3297
    %3361 = vmatpush1.bf16.msra.mxu0 %v3296
    %3362 = vmatprep.subr.bf16.mxu0 %v3299
    %3363 = vmatpush1.bf16.msra.mxu0 %v3298
    %3364 = vmatprep.mubr.bf16.mxu0 %v3076
    %3365 = vmatmul.mubr.bf16.gmra.mrb[0].mxu0 %v3075
    %v3366 = vpop.f32.mrb[0].mxu0
    %v3367 = vadd.f32 0.0, %v3366
    %v3368 = vpop.f32.mrb[0].mxu0
    %v3369 = vadd.f32 0.0, %v3368
    %v3370 = vpop.f32.mrb[0].mxu0
    %v3371 = vadd.f32 0.0, %v3370
    %v3372 = vpop.f32.mrb[0].mxu0
    %v3373 = vadd.f32 0.0, %v3372
    %3374 = vmatprep.mubr.bf16.mxu0 %v3078
    %3375 = vmatmul.mubr.bf16.gmra.mrb[0].mxu0 %v3077
    %v3376 = vpop.f32.mrb[0].mxu0
    %v3377 = vadd.f32 0.0, %v3376
    %v3378 = vpop.f32.mrb[0].mxu0
    %v3379 = vadd.f32 0.0, %v3378
    %v3380 = vpop.f32.mrb[0].mxu0
    %v3381 = vadd.f32 0.0, %v3380
    %v3382 = vpop.f32.mrb[0].mxu0
    %v3383 = vadd.f32 0.0, %v3382
    %3384 = vmatprep.mubr.bf16.mxu0 %v3080
    %3385 = vmatmul.mubr.bf16.gmra.mrb[0].mxu0 %v3079
    %v3386 = vpop.f32.mrb[0].mxu0
    %v3387 = vadd.f32 0.0, %v3386
    %v3388 = vpop.f32.mrb[0].mxu0
    %v3389 = vadd.f32 0.0, %v3388
    %v3390 = vpop.f32.mrb[0].mxu0
    %v3391 = vadd.f32 0.0, %v3390
    %v3392 = vpop.f32.mrb[0].mxu0
    %v3393 = vadd.f32 0.0, %v3392
    %3394 = vmatprep.mubr.bf16.mxu0 %v3082
    %3395 = vmatmul.mubr.bf16.gmra.mrb[0].mxu0 %v3081
    %v3396 = vpop.f32.mrb[0].mxu0
    %v3397 = vadd.f32 0.0, %v3396
    %v3398 = vpop.f32.mrb[0].mxu0
    %v3399 = vadd.f32 0.0, %v3398
    %v3400 = vpop.f32.mrb[0].mxu0
    %v3401 = vadd.f32 0.0, %v3400
    %v3402 = vpop.f32.mrb[0].mxu0
    %v3403 = vadd.f32 0.0, %v3402
    %3404 = vmatprep.mubr.bf16.mxu0 %v3084
    %3405 = vmatmul.mubr.bf16.gmra.mrb[0].mxu0 %v3083
    %v3406 = vpop.f32.mrb[0].mxu0
    %v3407 = vadd.f32 0.0, %v3406
    %v3408 = vpop.f32.mrb[0].mxu0
    %v3409 = vadd.f32 0.0, %v3408
    %v3410 = vpop.f32.mrb[0].mxu0
    %v3411 = vadd.f32 0.0, %v3410
    %v3412 = vpop.f32.mrb[0].mxu0
    %v3413 = vadd.f32 0.0, %v3412
    %3414 = vmatprep.mubr.bf16.mxu0 %v3086
    %3415 = vmatmul.mubr.bf16.gmra.mrb[0].mxu0 %v3085
    %v3416 = vpop.f32.mrb[0].mxu0
    %v3417 = vadd.f32 0.0, %v3416
    %v3418 = vpop.f32.mrb[0].mxu0
    %v3419 = vadd.f32 0.0, %v3418
    %v3420 = vpop.f32.mrb[0].mxu0
    %v3421 = vadd.f32 0.0, %v3420
    %v3422 = vpop.f32.mrb[0].mxu0
    %v3423 = vadd.f32 0.0, %v3422
    %3424 = vmatprep.mubr.bf16.mxu0 %v3088
    %3425 = vmatmul.mubr.bf16.gmra.mrb[0].mxu0 %v3087
    %v3426 = vpop.f32.mrb[0].mxu0
    %v3427 = vadd.f32 0.0, %v3426
    %v3428 = vpop.f32.mrb[0].mxu0
    %v3429 = vadd.f32 0.0, %v3428
    %v3430 = vpop.f32.mrb[0].mxu0
    %v3431 = vadd.f32 0.0, %v3430
    %v3432 = vpop.f32.mrb[0].mxu0
    %v3433 = vadd.f32 0.0, %v3432
    %3434 = vmatprep.mubr.bf16.mxu0 %v3090
    %3435 = vmatmul.mubr.bf16.gmra.mrb[0].mxu0 %v3089
    %v3436 = vpop.f32.mrb[0].mxu0
    %v3437 = vadd.f32 0.0, %v3436
    %v3438 = vpop.f32.mrb[0].mxu0
    %v3439 = vadd.f32 0.0, %v3438
    %v3440 = vpop.f32.mrb[0].mxu0
    %v3441 = vadd.f32 0.0, %v3440
    %v3442 = vpop.f32.mrb[0].mxu0
    %v3443 = vadd.f32 0.0, %v3442
    %3444 = vmatprep.mubr.bf16.mxu0 %v3092
    %3445 = vmatmul.mubr.bf16.gmra.mrb[0].mxu0 %v3091
    %v3446 = vpop.f32.mrb[0].mxu0
    %v3447 = vadd.f32 0.0, %v3446
    %v3448 = vpop.f32.mrb[0].mxu0
    %v3449 = vadd.f32 0.0, %v3448
    %v3450 = vpop.f32.mrb[0].mxu0
    %v3451 = vadd.f32 0.0, %v3450
    %v3452 = vpop.f32.mrb[0].mxu0
    %v3453 = vadd.f32 0.0, %v3452
    %3454 = vmatprep.mubr.bf16.mxu0 %v3094
    %3455 = vmatmul.mubr.bf16.gmra.mrb[0].mxu0 %v3093
    %v3456 = vpop.f32.mrb[0].mxu0
    %v3457 = vadd.f32 0.0, %v3456
    %v3458 = vpop.f32.mrb[0].mxu0
    %v3459 = vadd.f32 0.0, %v3458
    %v3460 = vpop.f32.mrb[0].mxu0
    %v3461 = vadd.f32 0.0, %v3460
    %v3462 = vpop.f32.mrb[0].mxu0
    %v3463 = vadd.f32 0.0, %v3462
    %3464 = vmatprep.mubr.bf16.mxu0 %v3096
    %3465 = vmatmul.mubr.bf16.gmra.mrb[0].mxu0 %v3095
    %v3466 = vpop.f32.mrb[0].mxu0
    %v3467 = vadd.f32 0.0, %v3466
    %v3468 = vpop.f32.mrb[0].mxu0
    %v3469 = vadd.f32 0.0, %v3468
    %v3470 = vpop.f32.mrb[0].mxu0
    %v3471 = vadd.f32 0.0, %v3470
    %v3472 = vpop.f32.mrb[0].mxu0
    %v3473 = vadd.f32 0.0, %v3472
    %3474 = vmatprep.mubr.bf16.mxu0 %v3098
    %3475 = vmatmul.mubr.bf16.gmra.mrb[0].mxu0 %v3097
    %v3476 = vpop.f32.mrb[0].mxu0
    %v3477 = vadd.f32 0.0, %v3476
    %v3478 = vpop.f32.mrb[0].mxu0
    %v3479 = vadd.f32 0.0, %v3478
    %v3480 = vpop.f32.mrb[0].mxu0
    %v3481 = vadd.f32 0.0, %v3480
    %v3482 = vpop.f32.mrb[0].mxu0
    %v3483 = vadd.f32 0.0, %v3482
    %3484 = vmatprep.mubr.bf16.mxu0 %v3100
    %3485 = vmatmul.mubr.bf16.gmra.mrb[0].mxu0 %v3099
    %v3486 = vpop.f32.mrb[0].mxu0
    %v3487 = vadd.f32 0.0, %v3486
    %v3488 = vpop.f32.mrb[0].mxu0
    %v3489 = vadd.f32 0.0, %v3488
    %v3490 = vpop.f32.mrb[0].mxu0
    %v3491 = vadd.f32 0.0, %v3490
    %v3492 = vpop.f32.mrb[0].mxu0
    %v3493 = vadd.f32 0.0, %v3492
    %3494 = vmatprep.mubr.bf16.mxu0 %v3102
    %3495 = vmatmul.mubr.bf16.gmra.mrb[0].mxu0 %v3101
    %v3496 = vpop.f32.mrb[0].mxu0
    %v3497 = vadd.f32 0.0, %v3496
    %v3498 = vpop.f32.mrb[0].mxu0
    %v3499 = vadd.f32 0.0, %v3498
    %v3500 = vpop.f32.mrb[0].mxu0
    %v3501 = vadd.f32 0.0, %v3500
    %v3502 = vpop.f32.mrb[0].mxu0
    %v3503 = vadd.f32 0.0, %v3502
    %3504 = vmatprep.mubr.bf16.mxu0 %v3104
    %3505 = vmatmul.mubr.bf16.gmra.mrb[0].mxu0 %v3103
    %v3506 = vpop.f32.mrb[0].mxu0
    %v3507 = vadd.f32 0.0, %v3506
    %v3508 = vpop.f32.mrb[0].mxu0
    %v3509 = vadd.f32 0.0, %v3508
    %v3510 = vpop.f32.mrb[0].mxu0
    %v3511 = vadd.f32 0.0, %v3510
    %v3512 = vpop.f32.mrb[0].mxu0
    %v3513 = vadd.f32 0.0, %v3512
    %3514 = vmatprep.mubr.bf16.mxu0 %v3106
    %3515 = vmatmul.mubr.bf16.gmra.mrb[0].mxu0 %v3105
    %v3516 = vpop.f32.mrb[0].mxu0
    %v3517 = vadd.f32 0.0, %v3516
    %v3518 = vpop.f32.mrb[0].mxu0
    %v3519 = vadd.f32 0.0, %v3518
    %v3520 = vpop.f32.mrb[0].mxu0
    %v3521 = vadd.f32 0.0, %v3520
    %v3522 = vpop.f32.mrb[0].mxu0
    %v3523 = vadd.f32 0.0, %v3522
    %3524 = vmatprep.mubr.bf16.mxu0 %v3108
    %3525 = vmatmul.mubr.bf16.gmra.mrb[0].mxu0 %v3107
    %v3526 = vpop.f32.mrb[0].mxu0
    %v3527 = vadd.f32 0.0, %v3526
    %v3528 = vpop.f32.mrb[0].mxu0
    %v3529 = vadd.f32 0.0, %v3528
    %v3530 = vpop.f32.mrb[0].mxu0
    %v3531 = vadd.f32 0.0, %v3530
    %v3532 = vpop.f32.mrb[0].mxu0
    %v3533 = vadd.f32 0.0, %v3532
    %3534 = vmatprep.mubr.bf16.mxu0 %v3110
    %3535 = vmatmul.mubr.bf16.gmra.mrb[0].mxu0 %v3109
    %v3536 = vpop.f32.mrb[0].mxu0
    %v3537 = vadd.f32 0.0, %v3536
    %v3538 = vpop.f32.mrb[0].mxu0
    %v3539 = vadd.f32 0.0, %v3538
    %v3540 = vpop.f32.mrb[0].mxu0
    %v3541 = vadd.f32 0.0, %v3540
    %v3542 = vpop.f32.mrb[0].mxu0
    %v3543 = vadd.f32 0.0, %v3542
    %3544 = vmatprep.mubr.bf16.mxu0 %v3112
    %3545 = vmatmul.mubr.bf16.gmra.mrb[0].mxu0 %v3111
    %v3546 = vpop.f32.mrb[0].mxu0
    %v3547 = vadd.f32 0.0, %v3546
    %v3548 = vpop.f32.mrb[0].mxu0
    %v3549 = vadd.f32 0.0, %v3548
    %v3550 = vpop.f32.mrb[0].mxu0
    %v3551 = vadd.f32 0.0, %v3550
    %v3552 = vpop.f32.mrb[0].mxu0
    %v3553 = vadd.f32 0.0, %v3552
    %3554 = vmatprep.mubr.bf16.mxu0 %v3114
    %3555 = vmatmul.mubr.bf16.gmra.mrb[0].mxu0 %v3113
    %v3556 = vpop.f32.mrb[0].mxu0
    %v3557 = vadd.f32 0.0, %v3556
    %v3558 = vpop.f32.mrb[0].mxu0
    %v3559 = vadd.f32 0.0, %v3558
    %v3560 = vpop.f32.mrb[0].mxu0
    %v3561 = vadd.f32 0.0, %v3560
    %v3562 = vpop.f32.mrb[0].mxu0
    %v3563 = vadd.f32 0.0, %v3562
    %3564 = vmatprep.mubr.bf16.mxu0 %v3116
    %3565 = vmatmul.mubr.bf16.gmra.mrb[0].mxu0 %v3115
    %v3566 = vpop.f32.mrb[0].mxu0
    %v3567 = vadd.f32 0.0, %v3566
    %v3568 = vpop.f32.mrb[0].mxu0
    %v3569 = vadd.f32 0.0, %v3568
    %v3570 = vpop.f32.mrb[0].mxu0
    %v3571 = vadd.f32 0.0, %v3570
    %v3572 = vpop.f32.mrb[0].mxu0
    %v3573 = vadd.f32 0.0, %v3572
    %3574 = vmatprep.mubr.bf16.mxu0 %v3118
    %3575 = vmatmul.mubr.bf16.gmra.mrb[0].mxu0 %v3117
    %v3576 = vpop.f32.mrb[0].mxu0
    %v3577 = vadd.f32 0.0, %v3576
    %v3578 = vpop.f32.mrb[0].mxu0
    %v3579 = vadd.f32 0.0, %v3578
    %v3580 = vpop.f32.mrb[0].mxu0
    %v3581 = vadd.f32 0.0, %v3580
    %v3582 = vpop.f32.mrb[0].mxu0
    %v3583 = vadd.f32 0.0, %v3582
    %3584 = vmatprep.mubr.bf16.mxu0 %v3120
    %3585 = vmatmul.mubr.bf16.gmra.mrb[0].mxu0 %v3119
    %v3586 = vpop.f32.mrb[0].mxu0
    %v3587 = vadd.f32 0.0, %v3586
    %v3588 = vpop.f32.mrb[0].mxu0
    %v3589 = vadd.f32 0.0, %v3588
    %v3590 = vpop.f32.mrb[0].mxu0
    %v3591 = vadd.f32 0.0, %v3590
    %v3592 = vpop.f32.mrb[0].mxu0
    %v3593 = vadd.f32 0.0, %v3592
    %3594 = vmatprep.mubr.bf16.mxu0 %v3122
    %3595 = vmatmul.mubr.bf16.gmra.mrb[0].mxu0 %v3121
    %v3596 = vpop.f32.mrb[0].mxu0
    %v3597 = vadd.f32 0.0, %v3596
    %v3598 = vpop.f32.mrb[0].mxu0
    %v3599 = vadd.f32 0.0, %v3598
    %v3600 = vpop.f32.mrb[0].mxu0
    %v3601 = vadd.f32 0.0, %v3600
    %v3602 = vpop.f32.mrb[0].mxu0
    %v3603 = vadd.f32 0.0, %v3602
    %3604 = vmatprep.mubr.bf16.mxu0 %v3124
    %3605 = vmatmul.mubr.bf16.gmra.mrb[0].mxu0 %v3123
    %v3606 = vpop.f32.mrb[0].mxu0
    %v3607 = vadd.f32 0.0, %v3606
    %v3608 = vpop.f32.mrb[0].mxu0
    %v3609 = vadd.f32 0.0, %v3608
    %v3610 = vpop.f32.mrb[0].mxu0
    %v3611 = vadd.f32 0.0, %v3610
    %v3612 = vpop.f32.mrb[0].mxu0
    %v3613 = vadd.f32 0.0, %v3612
    %3614 = vmatprep.mubr.bf16.mxu0 %v3126
    %3615 = vmatmul.mubr.bf16.gmra.mrb[0].mxu0 %v3125
    %v3616 = vpop.f32.mrb[0].mxu0
    %v3617 = vadd.f32 0.0, %v3616
    %v3618 = vpop.f32.mrb[0].mxu0
    %v3619 = vadd.f32 0.0, %v3618
    %v3620 = vpop.f32.mrb[0].mxu0
    %v3621 = vadd.f32 0.0, %v3620
    %v3622 = vpop.f32.mrb[0].mxu0
    %v3623 = vadd.f32 0.0, %v3622
    %3624 = vmatprep.mubr.bf16.mxu0 %v3128
    %3625 = vmatmul.mubr.bf16.gmra.mrb[0].mxu0 %v3127
    %v3626 = vpop.f32.mrb[0].mxu0
    %v3627 = vadd.f32 0.0, %v3626
    %v3628 = vpop.f32.mrb[0].mxu0
    %v3629 = vadd.f32 0.0, %v3628
    %v3630 = vpop.f32.mrb[0].mxu0
    %v3631 = vadd.f32 0.0, %v3630
    %v3632 = vpop.f32.mrb[0].mxu0
    %v3633 = vadd.f32 0.0, %v3632
    %3634 = vmatprep.mubr.bf16.mxu0 %v3130
    %3635 = vmatmul.mubr.bf16.gmra.mrb[0].mxu0 %v3129
    %v3636 = vpop.f32.mrb[0].mxu0
    %v3637 = vadd.f32 0.0, %v3636
    %v3638 = vpop.f32.mrb[0].mxu0
    %v3639 = vadd.f32 0.0, %v3638
    %v3640 = vpop.f32.mrb[0].mxu0
    %v3641 = vadd.f32 0.0, %v3640
    %v3642 = vpop.f32.mrb[0].mxu0
    %v3643 = vadd.f32 0.0, %v3642
    %3644 = vmatprep.mubr.bf16.mxu0 %v3132
    %3645 = vmatmul.mubr.bf16.gmra.mrb[0].mxu0 %v3131
    %v3646 = vpop.f32.mrb[0].mxu0
    %v3647 = vadd.f32 0.0, %v3646
    %v3648 = vpop.f32.mrb[0].mxu0
    %v3649 = vadd.f32 0.0, %v3648
    %v3650 = vpop.f32.mrb[0].mxu0
    %v3651 = vadd.f32 0.0, %v3650
    %v3652 = vpop.f32.mrb[0].mxu0
    %v3653 = vadd.f32 0.0, %v3652
    %3654 = vmatprep.mubr.bf16.mxu0 %v3134
    %3655 = vmatmul.mubr.bf16.gmra.mrb[0].mxu0 %v3133
    %v3656 = vpop.f32.mrb[0].mxu0
    %v3657 = vadd.f32 0.0, %v3656
    %v3658 = vpop.f32.mrb[0].mxu0
    %v3659 = vadd.f32 0.0, %v3658
    %v3660 = vpop.f32.mrb[0].mxu0
    %v3661 = vadd.f32 0.0, %v3660
    %v3662 = vpop.f32.mrb[0].mxu0
    %v3663 = vadd.f32 0.0, %v3662
    %3664 = vmatprep.mubr.bf16.mxu0 %v3136
    %3665 = vmatmul.mubr.bf16.gmra.mrb[0].mxu0 %v3135
    %v3666 = vpop.f32.mrb[0].mxu0
    %v3667 = vadd.f32 0.0, %v3666
    %v3668 = vpop.f32.mrb[0].mxu0
    %v3669 = vadd.f32 0.0, %v3668
    %v3670 = vpop.f32.mrb[0].mxu0
    %v3671 = vadd.f32 0.0, %v3670
    %v3672 = vpop.f32.mrb[0].mxu0
    %v3673 = vadd.f32 0.0, %v3672
    %3674 = vmatprep.mubr.bf16.mxu0 %v3138
    %3675 = vmatmul.mubr.bf16.gmra.mrb[0].mxu0 %v3137
    %v3676 = vpop.f32.mrb[0].mxu0
    %v3677 = vadd.f32 0.0, %v3676
    %v3678 = vpop.f32.mrb[0].mxu0
    %v3679 = vadd.f32 0.0, %v3678
    %v3680 = vpop.f32.mrb[0].mxu0
    %v3681 = vadd.f32 0.0, %v3680
    %v3682 = vpop.f32.mrb[0].mxu0
    %v3683 = vadd.f32 0.0, %v3682
    %3684 = vdwg.mxu0
    %v3686 = vunpack.c.l.b16 %v3139
    %v3687 = vunpack.c.h.b16 %v3139
    %v3688 = vpack.c.b16 %v3686, %v3686
    %v3689 = vpack.c.b16 %v3687, %v3687
    %v3691 = vsel %vm340, %v3688, 0
    %v3694 = vsel %vm340, %v3689, 0
    %3696 = vmatprep.subr.bf16.mxu0 %v3694
    %3697 = vmatpush1.bf16.msra.mxu0 %v3691
    %3698 = vmatprep.subr.bf16.mxu0 0
    %3699 = vmatpush1.bf16.msra.mxu0 0
    %3700 = vmatprep.subr.bf16.mxu0 0
    %3701 = vmatpush1.bf16.msra.mxu0 0
    %3702 = vmatprep.subr.bf16.mxu0 0
    %3703 = vmatpush1.bf16.msra.mxu0 0
    %3704 = vmatprep.subr.bf16.mxu0 0
    %3705 = vmatpush1.bf16.msra.mxu0 0
    %3706 = vmatprep.subr.bf16.mxu0 0
    %3707 = vmatpush1.bf16.msra.mxu0 0
    %3708 = vmatprep.subr.bf16.mxu0 0
    %3709 = vmatpush1.bf16.msra.mxu0 0
    %3710 = vmatprep.subr.bf16.mxu0 0
    %3711 = vmatpush1.bf16.msra.mxu0 0
    %3712 = vmatprep.subr.bf16.mxu0 0
    %3713 = vmatpush1.bf16.msra.mxu0 0
    %3714 = vmatprep.subr.bf16.mxu0 0
    %3715 = vmatpush1.bf16.msra.mxu0 0
    %3716 = vmatprep.subr.bf16.mxu0 0
    %3717 = vmatpush1.bf16.msra.mxu0 0
    %3718 = vmatprep.subr.bf16.mxu0 0
    %3719 = vmatpush1.bf16.msra.mxu0 0
    %3720 = vmatprep.subr.bf16.mxu0 0
    %3721 = vmatpush1.bf16.msra.mxu0 0
    %3722 = vmatprep.subr.bf16.mxu0 0
    %3723 = vmatpush1.bf16.msra.mxu0 0
    %3724 = vmatprep.subr.bf16.mxu0 0
    %3725 = vmatpush1.bf16.msra.mxu0 0
    %3726 = vmatprep.subr.bf16.mxu0 0
    %3727 = vmatpush1.bf16.msra.mxu0 0
    %3728 = vmatprep.mubr.bf16.mxu0 0
    %3729 = vmatmul.mubr.bf16.gmra.mrb[0].mxu0 %v245
    %v3730 = vpop.f32.mrb[0].mxu0
    %v3731 = vadd.f32 %v3367, %v3730
    %v3732 = vpop.f32.mrb[0].mxu0
    %v3733 = vadd.f32 %v3369, %v3732
    %v3734 = vpop.f32.mrb[0].mxu0
    %v3735 = vadd.f32 %v3371, %v3734
    %v3736 = vpop.f32.mrb[0].mxu0
    %v3737 = vadd.f32 %v3373, %v3736
    %3738 = vmatprep.mubr.bf16.mxu0 0
    %3739 = vmatmul.mubr.bf16.gmra.mrb[0].mxu0 %v248
    %v3740 = vpop.f32.mrb[0].mxu0
    %v3741 = vadd.f32 %v3377, %v3740
    %v3742 = vpop.f32.mrb[0].mxu0
    %v3743 = vadd.f32 %v3379, %v3742
    %v3744 = vpop.f32.mrb[0].mxu0
    %v3745 = vadd.f32 %v3381, %v3744
    %v3746 = vpop.f32.mrb[0].mxu0
    %v3747 = vadd.f32 %v3383, %v3746
    %3748 = vmatprep.mubr.bf16.mxu0 0
    %3749 = vmatmul.mubr.bf16.gmra.mrb[0].mxu0 %v251
    %v3750 = vpop.f32.mrb[0].mxu0
    %v3751 = vadd.f32 %v3387, %v3750
    %v3752 = vpop.f32.mrb[0].mxu0
    %v3753 = vadd.f32 %v3389, %v3752
    %v3754 = vpop.f32.mrb[0].mxu0
    %v3755 = vadd.f32 %v3391, %v3754
    %v3756 = vpop.f32.mrb[0].mxu0
    %v3757 = vadd.f32 %v3393, %v3756
    %3758 = vmatprep.mubr.bf16.mxu0 0
    %3759 = vmatmul.mubr.bf16.gmra.mrb[0].mxu0 %v254
    %v3760 = vpop.f32.mrb[0].mxu0
    %v3761 = vadd.f32 %v3397, %v3760
    %v3762 = vpop.f32.mrb[0].mxu0
    %v3763 = vadd.f32 %v3399, %v3762
    %v3764 = vpop.f32.mrb[0].mxu0
    %v3765 = vadd.f32 %v3401, %v3764
    %v3766 = vpop.f32.mrb[0].mxu0
    %v3767 = vadd.f32 %v3403, %v3766
    %3768 = vmatprep.mubr.bf16.mxu0 0
    %3769 = vmatmul.mubr.bf16.gmra.mrb[0].mxu0 %v257
    %v3770 = vpop.f32.mrb[0].mxu0
    %v3771 = vadd.f32 %v3407, %v3770
    %v3772 = vpop.f32.mrb[0].mxu0
    %v3773 = vadd.f32 %v3409, %v3772
    %v3774 = vpop.f32.mrb[0].mxu0
    %v3775 = vadd.f32 %v3411, %v3774
    %v3776 = vpop.f32.mrb[0].mxu0
    %v3777 = vadd.f32 %v3413, %v3776
    %3778 = vmatprep.mubr.bf16.mxu0 0
    %3779 = vmatmul.mubr.bf16.gmra.mrb[0].mxu0 %v260
    %v3780 = vpop.f32.mrb[0].mxu0
    %v3781 = vadd.f32 %v3417, %v3780
    %v3782 = vpop.f32.mrb[0].mxu0
    %v3783 = vadd.f32 %v3419, %v3782
    %v3784 = vpop.f32.mrb[0].mxu0
    %v3785 = vadd.f32 %v3421, %v3784
    %v3786 = vpop.f32.mrb[0].mxu0
    %v3787 = vadd.f32 %v3423, %v3786
    %3788 = vmatprep.mubr.bf16.mxu0 0
    %3789 = vmatmul.mubr.bf16.gmra.mrb[0].mxu0 %v263
    %v3790 = vpop.f32.mrb[0].mxu0
    %v3791 = vadd.f32 %v3427, %v3790
    %v3792 = vpop.f32.mrb[0].mxu0
    %v3793 = vadd.f32 %v3429, %v3792
    %v3794 = vpop.f32.mrb[0].mxu0
    %v3795 = vadd.f32 %v3431, %v3794
    %v3796 = vpop.f32.mrb[0].mxu0
    %v3797 = vadd.f32 %v3433, %v3796
    %3798 = vmatprep.mubr.bf16.mxu0 0
    %3799 = vmatmul.mubr.bf16.gmra.mrb[0].mxu0 %v266
    %v3800 = vpop.f32.mrb[0].mxu0
    %v3801 = vadd.f32 %v3437, %v3800
    %v3802 = vpop.f32.mrb[0].mxu0
    %v3803 = vadd.f32 %v3439, %v3802
    %v3804 = vpop.f32.mrb[0].mxu0
    %v3805 = vadd.f32 %v3441, %v3804
    %v3806 = vpop.f32.mrb[0].mxu0
    %v3807 = vadd.f32 %v3443, %v3806
    %3808 = vmatprep.mubr.bf16.mxu0 0
    %3809 = vmatmul.mubr.bf16.gmra.mrb[0].mxu0 %v269
    %v3810 = vpop.f32.mrb[0].mxu0
    %v3811 = vadd.f32 %v3447, %v3810
    %v3812 = vpop.f32.mrb[0].mxu0
    %v3813 = vadd.f32 %v3449, %v3812
    %v3814 = vpop.f32.mrb[0].mxu0
    %v3815 = vadd.f32 %v3451, %v3814
    %v3816 = vpop.f32.mrb[0].mxu0
    %v3817 = vadd.f32 %v3453, %v3816
    %3818 = vmatprep.mubr.bf16.mxu0 0
    %3819 = vmatmul.mubr.bf16.gmra.mrb[0].mxu0 %v272
    %v3820 = vpop.f32.mrb[0].mxu0
    %v3821 = vadd.f32 %v3457, %v3820
    %v3822 = vpop.f32.mrb[0].mxu0
    %v3823 = vadd.f32 %v3459, %v3822
    %v3824 = vpop.f32.mrb[0].mxu0
    %v3825 = vadd.f32 %v3461, %v3824
    %v3826 = vpop.f32.mrb[0].mxu0
    %v3827 = vadd.f32 %v3463, %v3826
    %3828 = vmatprep.mubr.bf16.mxu0 0
    %3829 = vmatmul.mubr.bf16.gmra.mrb[0].mxu0 %v275
    %v3830 = vpop.f32.mrb[0].mxu0
    %v3831 = vadd.f32 %v3467, %v3830
    %v3832 = vpop.f32.mrb[0].mxu0
    %v3833 = vadd.f32 %v3469, %v3832
    %v3834 = vpop.f32.mrb[0].mxu0
    %v3835 = vadd.f32 %v3471, %v3834
    %v3836 = vpop.f32.mrb[0].mxu0
    %v3837 = vadd.f32 %v3473, %v3836
    %3838 = vmatprep.mubr.bf16.mxu0 0
    %3839 = vmatmul.mubr.bf16.gmra.mrb[0].mxu0 %v278
    %v3840 = vpop.f32.mrb[0].mxu0
    %v3841 = vadd.f32 %v3477, %v3840
    %v3842 = vpop.f32.mrb[0].mxu0
    %v3843 = vadd.f32 %v3479, %v3842
    %v3844 = vpop.f32.mrb[0].mxu0
    %v3845 = vadd.f32 %v3481, %v3844
    %v3846 = vpop.f32.mrb[0].mxu0
    %v3847 = vadd.f32 %v3483, %v3846
    %3848 = vmatprep.mubr.bf16.mxu0 0
    %3849 = vmatmul.mubr.bf16.gmra.mrb[0].mxu0 %v281
    %v3850 = vpop.f32.mrb[0].mxu0
    %v3851 = vadd.f32 %v3487, %v3850
    %v3852 = vpop.f32.mrb[0].mxu0
    %v3853 = vadd.f32 %v3489, %v3852
    %v3854 = vpop.f32.mrb[0].mxu0
    %v3855 = vadd.f32 %v3491, %v3854
    %v3856 = vpop.f32.mrb[0].mxu0
    %v3857 = vadd.f32 %v3493, %v3856
    %3858 = vmatprep.mubr.bf16.mxu0 0
    %3859 = vmatmul.mubr.bf16.gmra.mrb[0].mxu0 %v284
    %v3860 = vpop.f32.mrb[0].mxu0
    %v3861 = vadd.f32 %v3497, %v3860
    %v3862 = vpop.f32.mrb[0].mxu0
    %v3863 = vadd.f32 %v3499, %v3862
    %v3864 = vpop.f32.mrb[0].mxu0
    %v3865 = vadd.f32 %v3501, %v3864
    %v3866 = vpop.f32.mrb[0].mxu0
    %v3867 = vadd.f32 %v3503, %v3866
    %3868 = vmatprep.mubr.bf16.mxu0 0
    %3869 = vmatmul.mubr.bf16.gmra.mrb[0].mxu0 %v287
    %v3870 = vpop.f32.mrb[0].mxu0
    %v3871 = vadd.f32 %v3507, %v3870
    %v3872 = vpop.f32.mrb[0].mxu0
    %v3873 = vadd.f32 %v3509, %v3872
    %v3874 = vpop.f32.mrb[0].mxu0
    %v3875 = vadd.f32 %v3511, %v3874
    %v3876 = vpop.f32.mrb[0].mxu0
    %v3877 = vadd.f32 %v3513, %v3876
    %3878 = vmatprep.mubr.bf16.mxu0 0
    %3879 = vmatmul.mubr.bf16.gmra.mrb[0].mxu0 %v290
    %v3880 = vpop.f32.mrb[0].mxu0
    %v3881 = vadd.f32 %v3517, %v3880
    %v3882 = vpop.f32.mrb[0].mxu0
    %v3883 = vadd.f32 %v3519, %v3882
    %v3884 = vpop.f32.mrb[0].mxu0
    %v3885 = vadd.f32 %v3521, %v3884
    %v3886 = vpop.f32.mrb[0].mxu0
    %v3887 = vadd.f32 %v3523, %v3886
    %3888 = vmatprep.mubr.bf16.mxu0 0
    %3889 = vmatmul.mubr.bf16.gmra.mrb[0].mxu0 %v293
    %v3890 = vpop.f32.mrb[0].mxu0
    %v3891 = vadd.f32 %v3527, %v3890
    %v3892 = vpop.f32.mrb[0].mxu0
    %v3893 = vadd.f32 %v3529, %v3892
    %v3894 = vpop.f32.mrb[0].mxu0
    %v3895 = vadd.f32 %v3531, %v3894
    %v3896 = vpop.f32.mrb[0].mxu0
    %v3897 = vadd.f32 %v3533, %v3896
    %3898 = vmatprep.mubr.bf16.mxu0 0
    %3899 = vmatmul.mubr.bf16.gmra.mrb[0].mxu0 %v296
    %v3900 = vpop.f32.mrb[0].mxu0
    %v3901 = vadd.f32 %v3537, %v3900
    %v3902 = vpop.f32.mrb[0].mxu0
    %v3903 = vadd.f32 %v3539, %v3902
    %v3904 = vpop.f32.mrb[0].mxu0
    %v3905 = vadd.f32 %v3541, %v3904
    %v3906 = vpop.f32.mrb[0].mxu0
    %v3907 = vadd.f32 %v3543, %v3906
    %3908 = vmatprep.mubr.bf16.mxu0 0
    %3909 = vmatmul.mubr.bf16.gmra.mrb[0].mxu0 %v299
    %v3910 = vpop.f32.mrb[0].mxu0
    %v3911 = vadd.f32 %v3547, %v3910
    %v3912 = vpop.f32.mrb[0].mxu0
    %v3913 = vadd.f32 %v3549, %v3912
    %v3914 = vpop.f32.mrb[0].mxu0
    %v3915 = vadd.f32 %v3551, %v3914
    %v3916 = vpop.f32.mrb[0].mxu0
    %v3917 = vadd.f32 %v3553, %v3916
    %3918 = vmatprep.mubr.bf16.mxu0 0
    %3919 = vmatmul.mubr.bf16.gmra.mrb[0].mxu0 %v302
    %v3920 = vpop.f32.mrb[0].mxu0
    %v3921 = vadd.f32 %v3557, %v3920
    %v3922 = vpop.f32.mrb[0].mxu0
    %v3923 = vadd.f32 %v3559, %v3922
    %v3924 = vpop.f32.mrb[0].mxu0
    %v3925 = vadd.f32 %v3561, %v3924
    %v3926 = vpop.f32.mrb[0].mxu0
    %v3927 = vadd.f32 %v3563, %v3926
    %3928 = vmatprep.mubr.bf16.mxu0 0
    %3929 = vmatmul.mubr.bf16.gmra.mrb[0].mxu0 %v305
    %v3930 = vpop.f32.mrb[0].mxu0
    %v3931 = vadd.f32 %v3567, %v3930
    %v3932 = vpop.f32.mrb[0].mxu0
    %v3933 = vadd.f32 %v3569, %v3932
    %v3934 = vpop.f32.mrb[0].mxu0
    %v3935 = vadd.f32 %v3571, %v3934
    %v3936 = vpop.f32.mrb[0].mxu0
    %v3937 = vadd.f32 %v3573, %v3936
    %3938 = vmatprep.mubr.bf16.mxu0 0
    %3939 = vmatmul.mubr.bf16.gmra.mrb[0].mxu0 %v308
    %v3940 = vpop.f32.mrb[0].mxu0
    %v3941 = vadd.f32 %v3577, %v3940
    %v3942 = vpop.f32.mrb[0].mxu0
    %v3943 = vadd.f32 %v3579, %v3942
    %v3944 = vpop.f32.mrb[0].mxu0
    %v3945 = vadd.f32 %v3581, %v3944
    %v3946 = vpop.f32.mrb[0].mxu0
    %v3947 = vadd.f32 %v3583, %v3946
    %3948 = vmatprep.mubr.bf16.mxu0 0
    %3949 = vmatmul.mubr.bf16.gmra.mrb[0].mxu0 %v311
    %v3950 = vpop.f32.mrb[0].mxu0
    %v3951 = vadd.f32 %v3587, %v3950
    %v3952 = vpop.f32.mrb[0].mxu0
    %v3953 = vadd.f32 %v3589, %v3952
    %v3954 = vpop.f32.mrb[0].mxu0
    %v3955 = vadd.f32 %v3591, %v3954
    %v3956 = vpop.f32.mrb[0].mxu0
    %v3957 = vadd.f32 %v3593, %v3956
    %3958 = vmatprep.mubr.bf16.mxu0 0
    %3959 = vmatmul.mubr.bf16.gmra.mrb[0].mxu0 %v314
    %v3960 = vpop.f32.mrb[0].mxu0
    %v3961 = vadd.f32 %v3597, %v3960
    %v3962 = vpop.f32.mrb[0].mxu0
    %v3963 = vadd.f32 %v3599, %v3962
    %v3964 = vpop.f32.mrb[0].mxu0
    %v3965 = vadd.f32 %v3601, %v3964
    %v3966 = vpop.f32.mrb[0].mxu0
    %v3967 = vadd.f32 %v3603, %v3966
    %3968 = vmatprep.mubr.bf16.mxu0 0
    %3969 = vmatmul.mubr.bf16.gmra.mrb[0].mxu0 %v317
    %v3970 = vpop.f32.mrb[0].mxu0
    %v3971 = vadd.f32 %v3607, %v3970
    %v3972 = vpop.f32.mrb[0].mxu0
    %v3973 = vadd.f32 %v3609, %v3972
    %v3974 = vpop.f32.mrb[0].mxu0
    %v3975 = vadd.f32 %v3611, %v3974
    %v3976 = vpop.f32.mrb[0].mxu0
    %v3977 = vadd.f32 %v3613, %v3976
    %3978 = vmatprep.mubr.bf16.mxu0 0
    %3979 = vmatmul.mubr.bf16.gmra.mrb[0].mxu0 %v320
    %v3980 = vpop.f32.mrb[0].mxu0
    %v3981 = vadd.f32 %v3617, %v3980
    %v3982 = vpop.f32.mrb[0].mxu0
    %v3983 = vadd.f32 %v3619, %v3982
    %v3984 = vpop.f32.mrb[0].mxu0
    %v3985 = vadd.f32 %v3621, %v3984
    %v3986 = vpop.f32.mrb[0].mxu0
    %v3987 = vadd.f32 %v3623, %v3986
    %3988 = vmatprep.mubr.bf16.mxu0 0
    %3989 = vmatmul.mubr.bf16.gmra.mrb[0].mxu0 %v323
    %v3990 = vpop.f32.mrb[0].mxu0
    %v3991 = vadd.f32 %v3627, %v3990
    %v3992 = vpop.f32.mrb[0].mxu0
    %v3993 = vadd.f32 %v3629, %v3992
    %v3994 = vpop.f32.mrb[0].mxu0
    %v3995 = vadd.f32 %v3631, %v3994
    %v3996 = vpop.f32.mrb[0].mxu0
    %v3997 = vadd.f32 %v3633, %v3996
    %3998 = vmatprep.mubr.bf16.mxu0 0
    %3999 = vmatmul.mubr.bf16.gmra.mrb[0].mxu0 %v326
    %v4000 = vpop.f32.mrb[0].mxu0
    %v4001 = vadd.f32 %v3637, %v4000
    %v4002 = vpop.f32.mrb[0].mxu0
    %v4003 = vadd.f32 %v3639, %v4002
    %v4004 = vpop.f32.mrb[0].mxu0
    %v4005 = vadd.f32 %v3641, %v4004
    %v4006 = vpop.f32.mrb[0].mxu0
    %v4007 = vadd.f32 %v3643, %v4006
    %4008 = vmatprep.mubr.bf16.mxu0 0
    %4009 = vmatmul.mubr.bf16.gmra.mrb[0].mxu0 %v329
    %v4010 = vpop.f32.mrb[0].mxu0
    %v4011 = vadd.f32 %v3647, %v4010
    %v4012 = vpop.f32.mrb[0].mxu0
    %v4013 = vadd.f32 %v3649, %v4012
    %v4014 = vpop.f32.mrb[0].mxu0
    %v4015 = vadd.f32 %v3651, %v4014
    %v4016 = vpop.f32.mrb[0].mxu0
    %v4017 = vadd.f32 %v3653, %v4016
    %4018 = vmatprep.mubr.bf16.mxu0 0
    %4019 = vmatmul.mubr.bf16.gmra.mrb[0].mxu0 %v332
    %v4020 = vpop.f32.mrb[0].mxu0
    %v4021 = vadd.f32 %v3657, %v4020
    %v4022 = vpop.f32.mrb[0].mxu0
    %v4023 = vadd.f32 %v3659, %v4022
    %v4024 = vpop.f32.mrb[0].mxu0
    %v4025 = vadd.f32 %v3661, %v4024
    %v4026 = vpop.f32.mrb[0].mxu0
    %v4027 = vadd.f32 %v3663, %v4026
    %4028 = vmatprep.mubr.bf16.mxu0 0
    %4029 = vmatmul.mubr.bf16.gmra.mrb[0].mxu0 %v335
    %v4030 = vpop.f32.mrb[0].mxu0
    %v4031 = vadd.f32 %v3667, %v4030
    %v4032 = vpop.f32.mrb[0].mxu0
    %v4033 = vadd.f32 %v3669, %v4032
    %v4034 = vpop.f32.mrb[0].mxu0
    %v4035 = vadd.f32 %v3671, %v4034
    %v4036 = vpop.f32.mrb[0].mxu0
    %v4037 = vadd.f32 %v3673, %v4036
    %4038 = vmatprep.mubr.bf16.mxu0 0
    %4039 = vmatmul.mubr.bf16.gmra.mrb[0].mxu0 %v338
    %v4040 = vpop.f32.mrb[0].mxu0
    %v4041 = vadd.f32 %v3677, %v4040
    %v4042 = vpop.f32.mrb[0].mxu0
    %v4043 = vadd.f32 %v3679, %v4042
    %v4044 = vpop.f32.mrb[0].mxu0
    %v4045 = vadd.f32 %v3681, %v4044
    %v4046 = vpop.f32.mrb[0].mxu0
    %v4047 = vadd.f32 %v3683, %v4046
    %4048 = vdwg.mxu0
    %v4049 = vld [vmem:[%s14] sm:$0x3]
    %v4051 = vlaneseq
    %v4052 = vshrl.u32 %v4051, 7
    %v4053 = vsub.s32 0, %v4052
    %v4054 = vrot.slane %v4049, %v4053
    %v4055 = vlaneseq
    %v4056 = vshrl.u32 %v4055, 7
    %v4057 = vsub.s32 1, %v4056
    %v4058 = vrot.slane %v4049, %v4057
    %v4061 = vadd.f32 %v3731, %v4054
    %v4062 = vadd.f32 %v3733, %v4058
    %v4063 = vadd.f32 %v3735, %v4054
    %v4064 = vadd.f32 %v3737, %v4058
    %v4065 = vadd.f32 %v3741, %v4054
    %v4066 = vadd.f32 %v3743, %v4058
    %v4067 = vadd.f32 %v3745, %v4054
    %v4068 = vadd.f32 %v3747, %v4058
    %v4069 = vadd.f32 %v3751, %v4054
    %v4070 = vadd.f32 %v3753, %v4058
    %v4071 = vadd.f32 %v3755, %v4054
    %v4072 = vadd.f32 %v3757, %v4058
    %v4073 = vadd.f32 %v3761, %v4054
    %v4074 = vadd.f32 %v3763, %v4058
    %v4075 = vadd.f32 %v3765, %v4054
    %v4076 = vadd.f32 %v3767, %v4058
    %v4077 = vadd.f32 %v3771, %v4054
    %v4078 = vadd.f32 %v3773, %v4058
    %v4079 = vadd.f32 %v3775, %v4054
    %v4080 = vadd.f32 %v3777, %v4058
    %v4081 = vadd.f32 %v3781, %v4054
    %v4082 = vadd.f32 %v3783, %v4058
    %v4083 = vadd.f32 %v3785, %v4054
    %v4084 = vadd.f32 %v3787, %v4058
    %v4085 = vadd.f32 %v3791, %v4054
    %v4086 = vadd.f32 %v3793, %v4058
    %v4087 = vadd.f32 %v3795, %v4054
    %v4088 = vadd.f32 %v3797, %v4058
    %v4089 = vadd.f32 %v3801, %v4054
    %v4090 = vadd.f32 %v3803, %v4058
    %v4091 = vadd.f32 %v3805, %v4054
    %v4092 = vadd.f32 %v3807, %v4058
    %v4093 = vadd.f32 %v3811, %v4054
    %v4094 = vadd.f32 %v3813, %v4058
    %v4095 = vadd.f32 %v3815, %v4054
    %v4096 = vadd.f32 %v3817, %v4058
    %v4097 = vadd.f32 %v3821, %v4054
    %v4098 = vadd.f32 %v3823, %v4058
    %v4099 = vadd.f32 %v3825, %v4054
    %v4100 = vadd.f32 %v3827, %v4058
    %v4101 = vadd.f32 %v3831, %v4054
    %v4102 = vadd.f32 %v3833, %v4058
    %v4103 = vadd.f32 %v3835, %v4054
    %v4104 = vadd.f32 %v3837, %v4058
    %v4105 = vadd.f32 %v3841, %v4054
    %v4106 = vadd.f32 %v3843, %v4058
    %v4107 = vadd.f32 %v3845, %v4054
    %v4108 = vadd.f32 %v3847, %v4058
    %v4109 = vadd.f32 %v3851, %v4054
    %v4110 = vadd.f32 %v3853, %v4058
    %v4111 = vadd.f32 %v3855, %v4054
    %v4112 = vadd.f32 %v3857, %v4058
    %v4113 = vadd.f32 %v3861, %v4054
    %v4114 = vadd.f32 %v3863, %v4058
    %v4115 = vadd.f32 %v3865, %v4054
    %v4116 = vadd.f32 %v3867, %v4058
    %v4117 = vadd.f32 %v3871, %v4054
    %v4118 = vadd.f32 %v3873, %v4058
    %v4119 = vadd.f32 %v3875, %v4054
    %v4120 = vadd.f32 %v3877, %v4058
    %v4121 = vadd.f32 %v3881, %v4054
    %v4122 = vadd.f32 %v3883, %v4058
    %v4123 = vadd.f32 %v3885, %v4054
    %v4124 = vadd.f32 %v3887, %v4058
    %v4125 = vadd.f32 %v3891, %v4054
    %v4126 = vadd.f32 %v3893, %v4058
    %v4127 = vadd.f32 %v3895, %v4054
    %v4128 = vadd.f32 %v3897, %v4058
    %v4129 = vadd.f32 %v3901, %v4054
    %v4130 = vadd.f32 %v3903, %v4058
    %v4131 = vadd.f32 %v3905, %v4054
    %v4132 = vadd.f32 %v3907, %v4058
    %v4133 = vadd.f32 %v3911, %v4054
    %v4134 = vadd.f32 %v3913, %v4058
    %v4135 = vadd.f32 %v3915, %v4054
    %v4136 = vadd.f32 %v3917, %v4058
    %v4137 = vadd.f32 %v3921, %v4054
    %v4138 = vadd.f32 %v3923, %v4058
    %v4139 = vadd.f32 %v3925, %v4054
    %v4140 = vadd.f32 %v3927, %v4058
    %v4141 = vadd.f32 %v3931, %v4054
    %v4142 = vadd.f32 %v3933, %v4058
    %v4143 = vadd.f32 %v3935, %v4054
    %v4144 = vadd.f32 %v3937, %v4058
    %v4145 = vadd.f32 %v3941, %v4054
    %v4146 = vadd.f32 %v3943, %v4058
    %v4147 = vadd.f32 %v3945, %v4054
    %v4148 = vadd.f32 %v3947, %v4058
    %v4149 = vadd.f32 %v3951, %v4054
    %v4150 = vadd.f32 %v3953, %v4058
    %v4151 = vadd.f32 %v3955, %v4054
    %v4152 = vadd.f32 %v3957, %v4058
    %v4153 = vadd.f32 %v3961, %v4054
    %v4154 = vadd.f32 %v3963, %v4058
    %v4155 = vadd.f32 %v3965, %v4054
    %v4156 = vadd.f32 %v3967, %v4058
    %v4157 = vadd.f32 %v3971, %v4054
    %v4158 = vadd.f32 %v3973, %v4058
    %v4159 = vadd.f32 %v3975, %v4054
    %v4160 = vadd.f32 %v3977, %v4058
    %v4161 = vadd.f32 %v3981, %v4054
    %v4162 = vadd.f32 %v3983, %v4058
    %v4163 = vadd.f32 %v3985, %v4054
    %v4164 = vadd.f32 %v3987, %v4058
    %v4165 = vadd.f32 %v3991, %v4054
    %v4166 = vadd.f32 %v3993, %v4058
    %v4167 = vadd.f32 %v3995, %v4054
    %v4168 = vadd.f32 %v3997, %v4058
    %v4169 = vadd.f32 %v4001, %v4054
    %v4170 = vadd.f32 %v4003, %v4058
    %v4171 = vadd.f32 %v4005, %v4054
    %v4172 = vadd.f32 %v4007, %v4058
    %v4173 = vadd.f32 %v4011, %v4054
    %v4174 = vadd.f32 %v4013, %v4058
    %v4175 = vadd.f32 %v4015, %v4054
    %v4176 = vadd.f32 %v4017, %v4058
    %v4177 = vadd.f32 %v4021, %v4054
    %v4178 = vadd.f32 %v4023, %v4058
    %v4179 = vadd.f32 %v4025, %v4054
    %v4180 = vadd.f32 %v4027, %v4058
    %v4181 = vadd.f32 %v4031, %v4054
    %v4182 = vadd.f32 %v4033, %v4058
    %v4183 = vadd.f32 %v4035, %v4054
    %v4184 = vadd.f32 %v4037, %v4058
    %v4185 = vadd.f32 %v4041, %v4054
    %v4186 = vadd.f32 %v4043, %v4058
    %v4187 = vadd.f32 %v4045, %v4054
    %v4188 = vadd.f32 %v4047, %v4058
    %v4189 = vmax.f32 %v4061, 0.0
    %v4190 = vmax.f32 %v4062, 0.0
    %v4191 = vmax.f32 %v4063, 0.0
    %v4192 = vmax.f32 %v4064, 0.0
    %v4193 = vmax.f32 %v4065, 0.0
    %v4194 = vmax.f32 %v4066, 0.0
    %v4195 = vmax.f32 %v4067, 0.0
    %v4196 = vmax.f32 %v4068, 0.0
    %v4197 = vmax.f32 %v4069, 0.0
    %v4198 = vmax.f32 %v4070, 0.0
    %v4199 = vmax.f32 %v4071, 0.0
    %v4200 = vmax.f32 %v4072, 0.0
    %v4201 = vmax.f32 %v4073, 0.0
    %v4202 = vmax.f32 %v4074, 0.0
    %v4203 = vmax.f32 %v4075, 0.0
    %v4204 = vmax.f32 %v4076, 0.0
    %v4205 = vmax.f32 %v4077, 0.0
    %v4206 = vmax.f32 %v4078, 0.0
    %v4207 = vmax.f32 %v4079, 0.0
    %v4208 = vmax.f32 %v4080, 0.0
    %v4209 = vmax.f32 %v4081, 0.0
    %v4210 = vmax.f32 %v4082, 0.0
    %v4211 = vmax.f32 %v4083, 0.0
    %v4212 = vmax.f32 %v4084, 0.0
    %v4213 = vmax.f32 %v4085, 0.0
    %v4214 = vmax.f32 %v4086, 0.0
    %v4215 = vmax.f32 %v4087, 0.0
    %v4216 = vmax.f32 %v4088, 0.0
    %v4217 = vmax.f32 %v4089, 0.0
    %v4218 = vmax.f32 %v4090, 0.0
    %v4219 = vmax.f32 %v4091, 0.0
    %v4220 = vmax.f32 %v4092, 0.0
    %v4221 = vmax.f32 %v4093, 0.0
    %v4222 = vmax.f32 %v4094, 0.0
    %v4223 = vmax.f32 %v4095, 0.0
    %v4224 = vmax.f32 %v4096, 0.0
    %v4225 = vmax.f32 %v4097, 0.0
    %v4226 = vmax.f32 %v4098, 0.0
    %v4227 = vmax.f32 %v4099, 0.0
    %v4228 = vmax.f32 %v4100, 0.0
    %v4229 = vmax.f32 %v4101, 0.0
    %v4230 = vmax.f32 %v4102, 0.0
    %v4231 = vmax.f32 %v4103, 0.0
    %v4232 = vmax.f32 %v4104, 0.0
    %v4233 = vmax.f32 %v4105, 0.0
    %v4234 = vmax.f32 %v4106, 0.0
    %v4235 = vmax.f32 %v4107, 0.0
    %v4236 = vmax.f32 %v4108, 0.0
    %v4237 = vmax.f32 %v4109, 0.0
    %v4238 = vmax.f32 %v4110, 0.0
    %v4239 = vmax.f32 %v4111, 0.0
    %v4240 = vmax.f32 %v4112, 0.0
    %v4241 = vmax.f32 %v4113, 0.0
    %v4242 = vmax.f32 %v4114, 0.0
    %v4243 = vmax.f32 %v4115, 0.0
    %v4244 = vmax.f32 %v4116, 0.0
    %v4245 = vmax.f32 %v4117, 0.0
    %v4246 = vmax.f32 %v4118, 0.0
    %v4247 = vmax.f32 %v4119, 0.0
    %v4248 = vmax.f32 %v4120, 0.0
    %v4249 = vmax.f32 %v4121, 0.0
    %v4250 = vmax.f32 %v4122, 0.0
    %v4251 = vmax.f32 %v4123, 0.0
    %v4252 = vmax.f32 %v4124, 0.0
    %v4253 = vmax.f32 %v4125, 0.0
    %v4254 = vmax.f32 %v4126, 0.0
    %v4255 = vmax.f32 %v4127, 0.0
    %v4256 = vmax.f32 %v4128, 0.0
    %v4257 = vmax.f32 %v4129, 0.0
    %v4258 = vmax.f32 %v4130, 0.0
    %v4259 = vmax.f32 %v4131, 0.0
    %v4260 = vmax.f32 %v4132, 0.0
    %v4261 = vmax.f32 %v4133, 0.0
    %v4262 = vmax.f32 %v4134, 0.0
    %v4263 = vmax.f32 %v4135, 0.0
    %v4264 = vmax.f32 %v4136, 0.0
    %v4265 = vmax.f32 %v4137, 0.0
    %v4266 = vmax.f32 %v4138, 0.0
    %v4267 = vmax.f32 %v4139, 0.0
    %v4268 = vmax.f32 %v4140, 0.0
    %v4269 = vmax.f32 %v4141, 0.0
    %v4270 = vmax.f32 %v4142, 0.0
    %v4271 = vmax.f32 %v4143, 0.0
    %v4272 = vmax.f32 %v4144, 0.0
    %v4273 = vmax.f32 %v4145, 0.0
    %v4274 = vmax.f32 %v4146, 0.0
    %v4275 = vmax.f32 %v4147, 0.0
    %v4276 = vmax.f32 %v4148, 0.0
    %v4277 = vmax.f32 %v4149, 0.0
    %v4278 = vmax.f32 %v4150, 0.0
    %v4279 = vmax.f32 %v4151, 0.0
    %v4280 = vmax.f32 %v4152, 0.0
    %v4281 = vmax.f32 %v4153, 0.0
    %v4282 = vmax.f32 %v4154, 0.0
    %v4283 = vmax.f32 %v4155, 0.0
    %v4284 = vmax.f32 %v4156, 0.0
    %v4285 = vmax.f32 %v4157, 0.0
    %v4286 = vmax.f32 %v4158, 0.0
    %v4287 = vmax.f32 %v4159, 0.0
    %v4288 = vmax.f32 %v4160, 0.0
    %v4289 = vmax.f32 %v4161, 0.0
    %v4290 = vmax.f32 %v4162, 0.0
    %v4291 = vmax.f32 %v4163, 0.0
    %v4292 = vmax.f32 %v4164, 0.0
    %v4293 = vmax.f32 %v4165, 0.0
    %v4294 = vmax.f32 %v4166, 0.0
    %v4295 = vmax.f32 %v4167, 0.0
    %v4296 = vmax.f32 %v4168, 0.0
    %v4297 = vmax.f32 %v4169, 0.0
    %v4298 = vmax.f32 %v4170, 0.0
    %v4299 = vmax.f32 %v4171, 0.0
    %v4300 = vmax.f32 %v4172, 0.0
    %v4301 = vmax.f32 %v4173, 0.0
    %v4302 = vmax.f32 %v4174, 0.0
    %v4303 = vmax.f32 %v4175, 0.0
    %v4304 = vmax.f32 %v4176, 0.0
    %v4305 = vmax.f32 %v4177, 0.0
    %v4306 = vmax.f32 %v4178, 0.0
    %v4307 = vmax.f32 %v4179, 0.0
    %v4308 = vmax.f32 %v4180, 0.0
    %v4309 = vmax.f32 %v4181, 0.0
    %v4310 = vmax.f32 %v4182, 0.0
    %v4311 = vmax.f32 %v4183, 0.0
    %v4312 = vmax.f32 %v4184, 0.0
    %v4313 = vmax.f32 %v4185, 0.0
    %v4314 = vmax.f32 %v4186, 0.0
    %v4315 = vmax.f32 %v4187, 0.0
    %v4316 = vmax.f32 %v4188, 0.0
    %v4317 = vpack.c.bf16 %v4191, %v4189
    %v4318 = vpack.c.bf16 %v4192, %v4190
    %v4319 = vpack.c.bf16 %v4195, %v4193
    %v4320 = vpack.c.bf16 %v4196, %v4194
    %v4321 = vpack.c.bf16 %v4199, %v4197
    %v4322 = vpack.c.bf16 %v4200, %v4198
    %v4323 = vpack.c.bf16 %v4203, %v4201
    %v4324 = vpack.c.bf16 %v4204, %v4202
    %v4325 = vpack.c.bf16 %v4207, %v4205
    %v4326 = vpack.c.bf16 %v4208, %v4206
    %v4327 = vpack.c.bf16 %v4211, %v4209
    %v4328 = vpack.c.bf16 %v4212, %v4210
    %v4329 = vpack.c.bf16 %v4215, %v4213
    %v4330 = vpack.c.bf16 %v4216, %v4214
    %v4331 = vpack.c.bf16 %v4219, %v4217
    %v4332 = vpack.c.bf16 %v4220, %v4218
    %v4333 = vpack.c.bf16 %v4223, %v4221
    %v4334 = vpack.c.bf16 %v4224, %v4222
    %v4335 = vpack.c.bf16 %v4227, %v4225
    %v4336 = vpack.c.bf16 %v4228, %v4226
    %v4337 = vpack.c.bf16 %v4231, %v4229
    %v4338 = vpack.c.bf16 %v4232, %v4230
    %v4339 = vpack.c.bf16 %v4235, %v4233
    %v4340 = vpack.c.bf16 %v4236, %v4234
    %v4341 = vpack.c.bf16 %v4239, %v4237
    %v4342 = vpack.c.bf16 %v4240, %v4238
    %v4343 = vpack.c.bf16 %v4243, %v4241
    %v4344 = vpack.c.bf16 %v4244, %v4242
    %v4345 = vpack.c.bf16 %v4247, %v4245
    %v4346 = vpack.c.bf16 %v4248, %v4246
    %v4347 = vpack.c.bf16 %v4251, %v4249
    %v4348 = vpack.c.bf16 %v4252, %v4250
    %v4349 = vpack.c.bf16 %v4255, %v4253
    %v4350 = vpack.c.bf16 %v4256, %v4254
    %v4351 = vpack.c.bf16 %v4259, %v4257
    %v4352 = vpack.c.bf16 %v4260, %v4258
    %v4353 = vpack.c.bf16 %v4263, %v4261
    %v4354 = vpack.c.bf16 %v4264, %v4262
    %v4355 = vpack.c.bf16 %v4267, %v4265
    %v4356 = vpack.c.bf16 %v4268, %v4266
    %v4357 = vpack.c.bf16 %v4271, %v4269
    %v4358 = vpack.c.bf16 %v4272, %v4270
    %v4359 = vpack.c.bf16 %v4275, %v4273
    %v4360 = vpack.c.bf16 %v4276, %v4274
    %v4361 = vpack.c.bf16 %v4279, %v4277
    %v4362 = vpack.c.bf16 %v4280, %v4278
    %v4363 = vpack.c.bf16 %v4283, %v4281
    %v4364 = vpack.c.bf16 %v4284, %v4282
    %v4365 = vpack.c.bf16 %v4287, %v4285
    %v4366 = vpack.c.bf16 %v4288, %v4286
    %v4367 = vpack.c.bf16 %v4291, %v4289
    %v4368 = vpack.c.bf16 %v4292, %v4290
    %v4369 = vpack.c.bf16 %v4295, %v4293
    %v4370 = vpack.c.bf16 %v4296, %v4294
    %v4371 = vpack.c.bf16 %v4299, %v4297
    %v4372 = vpack.c.bf16 %v4300, %v4298
    %v4373 = vpack.c.bf16 %v4303, %v4301
    %v4374 = vpack.c.bf16 %v4304, %v4302
    %v4375 = vpack.c.bf16 %v4307, %v4305
    %v4376 = vpack.c.bf16 %v4308, %v4306
    %v4377 = vpack.c.bf16 %v4311, %v4309
    %v4378 = vpack.c.bf16 %v4312, %v4310
    %v4379 = vpack.c.bf16 %v4315, %v4313
    %v4380 = vpack.c.bf16 %v4316, %v4314
    %v4381 = vld [vmem:[#allocation7] sm:$0xff]
    %v4382 = vld [vmem:[#allocation7 + $0x8] sm:$0xff]
    %v4383 = vld [vmem:[#allocation7 + $0x10] sm:$0xff]
    %v4384 = vld [vmem:[#allocation7 + $0x18] sm:$0xff]
    %v4385 = vld [vmem:[#allocation7 + $0x20] sm:$0xff]
    %v4386 = vld [vmem:[#allocation7 + $0x28] sm:$0xff]
    %v4387 = vld [vmem:[#allocation7 + $0x30] sm:$0xff]
    %v4388 = vld [vmem:[#allocation7 + $0x38] sm:$0xff]
    %v4389 = vld [vmem:[#allocation7 + $0x40] sm:$0xff]
    %v4390 = vld [vmem:[#allocation7 + $0x48] sm:$0xff]
    %v4391 = vld [vmem:[#allocation7 + $0x50] sm:$0xff]
    %v4392 = vld [vmem:[#allocation7 + $0x58] sm:$0xff]
    %v4393 = vld [vmem:[#allocation7 + $0x60] sm:$0xff]
    %v4394 = vld [vmem:[#allocation7 + $0x68] sm:$0xff]
    %v4395 = vld [vmem:[#allocation7 + $0x70] sm:$0xff]
    %v4396 = vld [vmem:[#allocation7 + $0x78] sm:$0xff]
    %v4397 = vld [vmem:[#allocation7 + $0x80] sm:$0xff]
    %v4398 = vld [vmem:[#allocation7 + $0x88] sm:$0xff]
    %v4399 = vld [vmem:[#allocation7 + $0x90] sm:$0xff]
    %v4400 = vld [vmem:[#allocation7 + $0x98] sm:$0xff]
    %v4401 = vld [vmem:[#allocation7 + $0xa0] sm:$0xff]
    %v4402 = vld [vmem:[#allocation7 + $0xa8] sm:$0xff]
    %v4403 = vld [vmem:[#allocation7 + $0xb0] sm:$0xff]
    %v4404 = vld [vmem:[#allocation7 + $0xb8] sm:$0xff]
    %v4405 = vld [vmem:[#allocation7 + $0xc0] sm:$0xff]
    %v4406 = vld [vmem:[#allocation7 + $0xc8] sm:$0xff]
    %v4407 = vld [vmem:[#allocation7 + $0xd0] sm:$0xff]
    %v4408 = vld [vmem:[#allocation7 + $0xd8] sm:$0xff]
    %v4409 = vld [vmem:[#allocation7 + $0xe0] sm:$0xff]
    %v4410 = vld [vmem:[#allocation7 + $0xe8] sm:$0xff]
    %v4411 = vld [vmem:[#allocation7 + $0xf0] sm:$0xff]
    %v4412 = vld [vmem:[#allocation7 + $0xf8] sm:$0xff]
    %v4413 = vld [vmem:[%s15] sm:$0x3]
    %v4415 = vlaneseq
    %v4416 = vshrl.u32 %v4415, 7
    %v4417 = vsub.s32 0, %v4416
    %v4418 = vrot.slane %v4413, %v4417
    %v4419 = vlaneseq
    %v4420 = vshrl.u32 %v4419, 7
    %v4421 = vsub.s32 1, %v4420
    %v4422 = vrot.slane %v4413, %v4421
    %v4457 = vunpack.c.l.b16 %v4381
    %v4458 = vunpack.c.h.b16 %v4381
    %v4459 = vunpack.c.l.b16 %v4382
    %v4460 = vunpack.c.h.b16 %v4382
    %v4461 = vunpack.c.l.b16 %v4383
    %v4462 = vunpack.c.h.b16 %v4383
    %v4463 = vunpack.c.l.b16 %v4384
    %v4464 = vunpack.c.h.b16 %v4384
    %v4465 = vunpack.c.l.b16 %v4385
    %v4466 = vunpack.c.h.b16 %v4385
    %v4467 = vunpack.c.l.b16 %v4386
    %v4468 = vunpack.c.h.b16 %v4386
    %v4469 = vunpack.c.l.b16 %v4387
    %v4470 = vunpack.c.h.b16 %v4387
    %v4471 = vunpack.c.l.b16 %v4388
    %v4472 = vunpack.c.h.b16 %v4388
    %v4473 = vunpack.c.l.b16 %v4389
    %v4474 = vunpack.c.h.b16 %v4389
    %v4475 = vunpack.c.l.b16 %v4390
    %v4476 = vunpack.c.h.b16 %v4390
    %v4477 = vunpack.c.l.b16 %v4391
    %v4478 = vunpack.c.h.b16 %v4391
    %v4479 = vunpack.c.l.b16 %v4392
    %v4480 = vunpack.c.h.b16 %v4392
    %v4481 = vunpack.c.l.b16 %v4393
    %v4482 = vunpack.c.h.b16 %v4393
    %v4483 = vunpack.c.l.b16 %v4394
    %v4484 = vunpack.c.h.b16 %v4394
    %v4485 = vunpack.c.l.b16 %v4395
    %v4486 = vunpack.c.h.b16 %v4395
    %v4487 = vunpack.c.l.b16 %v4396
    %v4488 = vunpack.c.h.b16 %v4396
    %v4489 = vunpack.c.l.b16 %v4397
    %v4490 = vunpack.c.h.b16 %v4397
    %v4491 = vunpack.c.l.b16 %v4398
    %v4492 = vunpack.c.h.b16 %v4398
    %v4493 = vunpack.c.l.b16 %v4399
    %v4494 = vunpack.c.h.b16 %v4399
    %v4495 = vunpack.c.l.b16 %v4400
    %v4496 = vunpack.c.h.b16 %v4400
    %v4497 = vunpack.c.l.b16 %v4401
    %v4498 = vunpack.c.h.b16 %v4401
    %v4499 = vunpack.c.l.b16 %v4402
    %v4500 = vunpack.c.h.b16 %v4402
    %v4501 = vunpack.c.l.b16 %v4403
    %v4502 = vunpack.c.h.b16 %v4403
    %v4503 = vunpack.c.l.b16 %v4404
    %v4504 = vunpack.c.h.b16 %v4404
    %v4505 = vunpack.c.l.b16 %v4405
    %v4506 = vunpack.c.h.b16 %v4405
    %v4507 = vunpack.c.l.b16 %v4406
    %v4508 = vunpack.c.h.b16 %v4406
    %v4509 = vunpack.c.l.b16 %v4407
    %v4510 = vunpack.c.h.b16 %v4407
    %v4511 = vunpack.c.l.b16 %v4408
    %v4512 = vunpack.c.h.b16 %v4408
    %v4513 = vunpack.c.l.b16 %v4409
    %v4514 = vunpack.c.h.b16 %v4409
    %v4515 = vunpack.c.l.b16 %v4410
    %v4516 = vunpack.c.h.b16 %v4410
    %v4517 = vunpack.c.l.b16 %v4411
    %v4518 = vunpack.c.h.b16 %v4411
    %v4519 = vunpack.c.l.b16 %v4412
    %v4520 = vunpack.c.h.b16 %v4412
    %v4521 = vpack.c.b16 %v4459, %v4457
    %v4522 = vpack.c.b16 %v4460, %v4458
    %v4523 = vpack.c.b16 %v4463, %v4461
    %v4524 = vpack.c.b16 %v4464, %v4462
    %v4525 = vpack.c.b16 %v4467, %v4465
    %v4526 = vpack.c.b16 %v4468, %v4466
    %v4527 = vpack.c.b16 %v4471, %v4469
    %v4528 = vpack.c.b16 %v4472, %v4470
    %v4529 = vpack.c.b16 %v4475, %v4473
    %v4530 = vpack.c.b16 %v4476, %v4474
    %v4531 = vpack.c.b16 %v4479, %v4477
    %v4532 = vpack.c.b16 %v4480, %v4478
    %v4533 = vpack.c.b16 %v4483, %v4481
    %v4534 = vpack.c.b16 %v4484, %v4482
    %v4535 = vpack.c.b16 %v4487, %v4485
    %v4536 = vpack.c.b16 %v4488, %v4486
    %v4537 = vpack.c.b16 %v4491, %v4489
    %v4538 = vpack.c.b16 %v4492, %v4490
    %v4539 = vpack.c.b16 %v4495, %v4493
    %v4540 = vpack.c.b16 %v4496, %v4494
    %v4541 = vpack.c.b16 %v4499, %v4497
    %v4542 = vpack.c.b16 %v4500, %v4498
    %v4543 = vpack.c.b16 %v4503, %v4501
    %v4544 = vpack.c.b16 %v4504, %v4502
    %v4545 = vpack.c.b16 %v4507, %v4505
    %v4546 = vpack.c.b16 %v4508, %v4506
    %v4547 = vpack.c.b16 %v4511, %v4509
    %v4548 = vpack.c.b16 %v4512, %v4510
    %v4549 = vpack.c.b16 %v4515, %v4513
    %v4550 = vpack.c.b16 %v4516, %v4514
    %v4551 = vpack.c.b16 %v4519, %v4517
    %v4552 = vpack.c.b16 %v4520, %v4518
    %4585 = vmatprep.subr.bf16.mxu0 %v4522
    %4586 = vmatpush1.bf16.msra.mxu0 %v4521
    %4587 = vmatprep.subr.bf16.mxu0 %v4524
    %4588 = vmatpush1.bf16.msra.mxu0 %v4523
    %4589 = vmatprep.subr.bf16.mxu0 %v4526
    %4590 = vmatpush1.bf16.msra.mxu0 %v4525
    %4591 = vmatprep.subr.bf16.mxu0 %v4528
    %4592 = vmatpush1.bf16.msra.mxu0 %v4527
    %4593 = vmatprep.subr.bf16.mxu0 %v4530
    %4594 = vmatpush1.bf16.msra.mxu0 %v4529
    %4595 = vmatprep.subr.bf16.mxu0 %v4532
    %4596 = vmatpush1.bf16.msra.mxu0 %v4531
    %4597 = vmatprep.subr.bf16.mxu0 %v4534
    %4598 = vmatpush1.bf16.msra.mxu0 %v4533
    %4599 = vmatprep.subr.bf16.mxu0 %v4536
    %4600 = vmatpush1.bf16.msra.mxu0 %v4535
    %4601 = vmatprep.subr.bf16.mxu0 %v4538
    %4602 = vmatpush1.bf16.msra.mxu0 %v4537
    %4603 = vmatprep.subr.bf16.mxu0 %v4540
    %4604 = vmatpush1.bf16.msra.mxu0 %v4539
    %4605 = vmatprep.subr.bf16.mxu0 %v4542
    %4606 = vmatpush1.bf16.msra.mxu0 %v4541
    %4607 = vmatprep.subr.bf16.mxu0 %v4544
    %4608 = vmatpush1.bf16.msra.mxu0 %v4543
    %4609 = vmatprep.subr.bf16.mxu0 %v4546
    %4610 = vmatpush1.bf16.msra.mxu0 %v4545
    %4611 = vmatprep.subr.bf16.mxu0 %v4548
    %4612 = vmatpush1.bf16.msra.mxu0 %v4547
    %4613 = vmatprep.subr.bf16.mxu0 %v4550
    %4614 = vmatpush1.bf16.msra.mxu0 %v4549
    %4615 = vmatprep.subr.bf16.mxu0 %v4552
    %4616 = vmatpush1.bf16.msra.mxu0 %v4551
    %4617 = vmatprep.mubr.bf16.mxu0 %v4318
    %4618 = vmatmul.mubr.bf16.gmra.mrb[0].mxu0 %v4317
    %v4619 = vpop.f32.mrb[0].mxu0
    %v4620 = vadd.f32 %v4418, %v4619
    %v4621 = vpop.f32.mrb[0].mxu0
    %v4622 = vadd.f32 %v4422, %v4621
    %v4623 = vpop.f32.mrb[0].mxu0
    %v4624 = vadd.f32 %v4418, %v4623
    %v4625 = vpop.f32.mrb[0].mxu0
    %v4626 = vadd.f32 %v4422, %v4625
    %4627 = vmatprep.mubr.bf16.mxu0 %v4320
    %4628 = vmatmul.mubr.bf16.gmra.mrb[0].mxu0 %v4319
    %v4629 = vpop.f32.mrb[0].mxu0
    %v4630 = vadd.f32 %v4418, %v4629
    %v4631 = vpop.f32.mrb[0].mxu0
    %v4632 = vadd.f32 %v4422, %v4631
    %v4633 = vpop.f32.mrb[0].mxu0
    %v4634 = vadd.f32 %v4418, %v4633
    %v4635 = vpop.f32.mrb[0].mxu0
    %v4636 = vadd.f32 %v4422, %v4635
    %4637 = vmatprep.mubr.bf16.mxu0 %v4322
    %4638 = vmatmul.mubr.bf16.gmra.mrb[0].mxu0 %v4321
    %v4639 = vpop.f32.mrb[0].mxu0
    %v4640 = vadd.f32 %v4418, %v4639
    %v4641 = vpop.f32.mrb[0].mxu0
    %v4642 = vadd.f32 %v4422, %v4641
    %v4643 = vpop.f32.mrb[0].mxu0
    %v4644 = vadd.f32 %v4418, %v4643
    %v4645 = vpop.f32.mrb[0].mxu0
    %v4646 = vadd.f32 %v4422, %v4645
    %4647 = vmatprep.mubr.bf16.mxu0 %v4324
    %4648 = vmatmul.mubr.bf16.gmra.mrb[0].mxu0 %v4323
    %v4649 = vpop.f32.mrb[0].mxu0
    %v4650 = vadd.f32 %v4418, %v4649
    %v4651 = vpop.f32.mrb[0].mxu0
    %v4652 = vadd.f32 %v4422, %v4651
    %v4653 = vpop.f32.mrb[0].mxu0
    %v4654 = vadd.f32 %v4418, %v4653
    %v4655 = vpop.f32.mrb[0].mxu0
    %v4656 = vadd.f32 %v4422, %v4655
    %4657 = vmatprep.mubr.bf16.mxu0 %v4326
    %4658 = vmatmul.mubr.bf16.gmra.mrb[0].mxu0 %v4325
    %v4659 = vpop.f32.mrb[0].mxu0
    %v4660 = vadd.f32 %v4418, %v4659
    %v4661 = vpop.f32.mrb[0].mxu0
    %v4662 = vadd.f32 %v4422, %v4661
    %v4663 = vpop.f32.mrb[0].mxu0
    %v4664 = vadd.f32 %v4418, %v4663
    %v4665 = vpop.f32.mrb[0].mxu0
    %v4666 = vadd.f32 %v4422, %v4665
    %4667 = vmatprep.mubr.bf16.mxu0 %v4328
    %4668 = vmatmul.mubr.bf16.gmra.mrb[0].mxu0 %v4327
    %v4669 = vpop.f32.mrb[0].mxu0
    %v4670 = vadd.f32 %v4418, %v4669
    %v4671 = vpop.f32.mrb[0].mxu0
    %v4672 = vadd.f32 %v4422, %v4671
    %v4673 = vpop.f32.mrb[0].mxu0
    %v4674 = vadd.f32 %v4418, %v4673
    %v4675 = vpop.f32.mrb[0].mxu0
    %v4676 = vadd.f32 %v4422, %v4675
    %4677 = vmatprep.mubr.bf16.mxu0 %v4330
    %4678 = vmatmul.mubr.bf16.gmra.mrb[0].mxu0 %v4329
    %v4679 = vpop.f32.mrb[0].mxu0
    %v4680 = vadd.f32 %v4418, %v4679
    %v4681 = vpop.f32.mrb[0].mxu0
    %v4682 = vadd.f32 %v4422, %v4681
    %v4683 = vpop.f32.mrb[0].mxu0
    %v4684 = vadd.f32 %v4418, %v4683
    %v4685 = vpop.f32.mrb[0].mxu0
    %v4686 = vadd.f32 %v4422, %v4685
    %4687 = vmatprep.mubr.bf16.mxu0 %v4332
    %4688 = vmatmul.mubr.bf16.gmra.mrb[0].mxu0 %v4331
    %v4689 = vpop.f32.mrb[0].mxu0
    %v4690 = vadd.f32 %v4418, %v4689
    %v4691 = vpop.f32.mrb[0].mxu0
    %v4692 = vadd.f32 %v4422, %v4691
    %v4693 = vpop.f32.mrb[0].mxu0
    %v4694 = vadd.f32 %v4418, %v4693
    %v4695 = vpop.f32.mrb[0].mxu0
    %v4696 = vadd.f32 %v4422, %v4695
    %4697 = vmatprep.mubr.bf16.mxu0 %v4334
    %4698 = vmatmul.mubr.bf16.gmra.mrb[0].mxu0 %v4333
    %v4699 = vpop.f32.mrb[0].mxu0
    %v4700 = vadd.f32 %v4418, %v4699
    %v4701 = vpop.f32.mrb[0].mxu0
    %v4702 = vadd.f32 %v4422, %v4701
    %v4703 = vpop.f32.mrb[0].mxu0
    %v4704 = vadd.f32 %v4418, %v4703
    %v4705 = vpop.f32.mrb[0].mxu0
    %v4706 = vadd.f32 %v4422, %v4705
    %4707 = vmatprep.mubr.bf16.mxu0 %v4336
    %4708 = vmatmul.mubr.bf16.gmra.mrb[0].mxu0 %v4335
    %v4709 = vpop.f32.mrb[0].mxu0
    %v4710 = vadd.f32 %v4418, %v4709
    %v4711 = vpop.f32.mrb[0].mxu0
    %v4712 = vadd.f32 %v4422, %v4711
    %v4713 = vpop.f32.mrb[0].mxu0
    %v4714 = vadd.f32 %v4418, %v4713
    %v4715 = vpop.f32.mrb[0].mxu0
    %v4716 = vadd.f32 %v4422, %v4715
    %4717 = vmatprep.mubr.bf16.mxu0 %v4338
    %4718 = vmatmul.mubr.bf16.gmra.mrb[0].mxu0 %v4337
    %v4719 = vpop.f32.mrb[0].mxu0
    %v4720 = vadd.f32 %v4418, %v4719
    %v4721 = vpop.f32.mrb[0].mxu0
    %v4722 = vadd.f32 %v4422, %v4721
    %v4723 = vpop.f32.mrb[0].mxu0
    %v4724 = vadd.f32 %v4418, %v4723
    %v4725 = vpop.f32.mrb[0].mxu0
    %v4726 = vadd.f32 %v4422, %v4725
    %4727 = vmatprep.mubr.bf16.mxu0 %v4340
    %4728 = vmatmul.mubr.bf16.gmra.mrb[0].mxu0 %v4339
    %v4729 = vpop.f32.mrb[0].mxu0
    %v4730 = vadd.f32 %v4418, %v4729
    %v4731 = vpop.f32.mrb[0].mxu0
    %v4732 = vadd.f32 %v4422, %v4731
    %v4733 = vpop.f32.mrb[0].mxu0
    %v4734 = vadd.f32 %v4418, %v4733
    %v4735 = vpop.f32.mrb[0].mxu0
    %v4736 = vadd.f32 %v4422, %v4735
    %4737 = vmatprep.mubr.bf16.mxu0 %v4342
    %4738 = vmatmul.mubr.bf16.gmra.mrb[0].mxu0 %v4341
    %v4739 = vpop.f32.mrb[0].mxu0
    %v4740 = vadd.f32 %v4418, %v4739
    %v4741 = vpop.f32.mrb[0].mxu0
    %v4742 = vadd.f32 %v4422, %v4741
    %v4743 = vpop.f32.mrb[0].mxu0
    %v4744 = vadd.f32 %v4418, %v4743
    %v4745 = vpop.f32.mrb[0].mxu0
    %v4746 = vadd.f32 %v4422, %v4745
    %4747 = vmatprep.mubr.bf16.mxu0 %v4344
    %4748 = vmatmul.mubr.bf16.gmra.mrb[0].mxu0 %v4343
    %v4749 = vpop.f32.mrb[0].mxu0
    %v4750 = vadd.f32 %v4418, %v4749
    %v4751 = vpop.f32.mrb[0].mxu0
    %v4752 = vadd.f32 %v4422, %v4751
    %v4753 = vpop.f32.mrb[0].mxu0
    %v4754 = vadd.f32 %v4418, %v4753
    %v4755 = vpop.f32.mrb[0].mxu0
    %v4756 = vadd.f32 %v4422, %v4755
    %4757 = vmatprep.mubr.bf16.mxu0 %v4346
    %4758 = vmatmul.mubr.bf16.gmra.mrb[0].mxu0 %v4345
    %v4759 = vpop.f32.mrb[0].mxu0
    %v4760 = vadd.f32 %v4418, %v4759
    %v4761 = vpop.f32.mrb[0].mxu0
    %v4762 = vadd.f32 %v4422, %v4761
    %v4763 = vpop.f32.mrb[0].mxu0
    %v4764 = vadd.f32 %v4418, %v4763
    %v4765 = vpop.f32.mrb[0].mxu0
    %v4766 = vadd.f32 %v4422, %v4765
    %4767 = vmatprep.mubr.bf16.mxu0 %v4348
    %4768 = vmatmul.mubr.bf16.gmra.mrb[0].mxu0 %v4347
    %v4769 = vpop.f32.mrb[0].mxu0
    %v4770 = vadd.f32 %v4418, %v4769
    %v4771 = vpop.f32.mrb[0].mxu0
    %v4772 = vadd.f32 %v4422, %v4771
    %v4773 = vpop.f32.mrb[0].mxu0
    %v4774 = vadd.f32 %v4418, %v4773
    %v4775 = vpop.f32.mrb[0].mxu0
    %v4776 = vadd.f32 %v4422, %v4775
    %4777 = vmatprep.mubr.bf16.mxu0 %v4350
    %4778 = vmatmul.mubr.bf16.gmra.mrb[0].mxu0 %v4349
    %v4779 = vpop.f32.mrb[0].mxu0
    %v4780 = vadd.f32 %v4418, %v4779
    %v4781 = vpop.f32.mrb[0].mxu0
    %v4782 = vadd.f32 %v4422, %v4781
    %v4783 = vpop.f32.mrb[0].mxu0
    %v4784 = vadd.f32 %v4418, %v4783
    %v4785 = vpop.f32.mrb[0].mxu0
    %v4786 = vadd.f32 %v4422, %v4785
    %4787 = vmatprep.mubr.bf16.mxu0 %v4352
    %4788 = vmatmul.mubr.bf16.gmra.mrb[0].mxu0 %v4351
    %v4789 = vpop.f32.mrb[0].mxu0
    %v4790 = vadd.f32 %v4418, %v4789
    %v4791 = vpop.f32.mrb[0].mxu0
    %v4792 = vadd.f32 %v4422, %v4791
    %v4793 = vpop.f32.mrb[0].mxu0
    %v4794 = vadd.f32 %v4418, %v4793
    %v4795 = vpop.f32.mrb[0].mxu0
    %v4796 = vadd.f32 %v4422, %v4795
    %4797 = vmatprep.mubr.bf16.mxu0 %v4354
    %4798 = vmatmul.mubr.bf16.gmra.mrb[0].mxu0 %v4353
    %v4799 = vpop.f32.mrb[0].mxu0
    %v4800 = vadd.f32 %v4418, %v4799
    %v4801 = vpop.f32.mrb[0].mxu0
    %v4802 = vadd.f32 %v4422, %v4801
    %v4803 = vpop.f32.mrb[0].mxu0
    %v4804 = vadd.f32 %v4418, %v4803
    %v4805 = vpop.f32.mrb[0].mxu0
    %v4806 = vadd.f32 %v4422, %v4805
    %4807 = vmatprep.mubr.bf16.mxu0 %v4356
    %4808 = vmatmul.mubr.bf16.gmra.mrb[0].mxu0 %v4355
    %v4809 = vpop.f32.mrb[0].mxu0
    %v4810 = vadd.f32 %v4418, %v4809
    %v4811 = vpop.f32.mrb[0].mxu0
    %v4812 = vadd.f32 %v4422, %v4811
    %v4813 = vpop.f32.mrb[0].mxu0
    %v4814 = vadd.f32 %v4418, %v4813
    %v4815 = vpop.f32.mrb[0].mxu0
    %v4816 = vadd.f32 %v4422, %v4815
    %4817 = vmatprep.mubr.bf16.mxu0 %v4358
    %4818 = vmatmul.mubr.bf16.gmra.mrb[0].mxu0 %v4357
    %v4819 = vpop.f32.mrb[0].mxu0
    %v4820 = vadd.f32 %v4418, %v4819
    %v4821 = vpop.f32.mrb[0].mxu0
    %v4822 = vadd.f32 %v4422, %v4821
    %v4823 = vpop.f32.mrb[0].mxu0
    %v4824 = vadd.f32 %v4418, %v4823
    %v4825 = vpop.f32.mrb[0].mxu0
    %v4826 = vadd.f32 %v4422, %v4825
    %4827 = vmatprep.mubr.bf16.mxu0 %v4360
    %4828 = vmatmul.mubr.bf16.gmra.mrb[0].mxu0 %v4359
    %v4829 = vpop.f32.mrb[0].mxu0
    %v4830 = vadd.f32 %v4418, %v4829
    %v4831 = vpop.f32.mrb[0].mxu0
    %v4832 = vadd.f32 %v4422, %v4831
    %v4833 = vpop.f32.mrb[0].mxu0
    %v4834 = vadd.f32 %v4418, %v4833
    %v4835 = vpop.f32.mrb[0].mxu0
    %v4836 = vadd.f32 %v4422, %v4835
    %4837 = vmatprep.mubr.bf16.mxu0 %v4362
    %4838 = vmatmul.mubr.bf16.gmra.mrb[0].mxu0 %v4361
    %v4839 = vpop.f32.mrb[0].mxu0
    %v4840 = vadd.f32 %v4418, %v4839
    %v4841 = vpop.f32.mrb[0].mxu0
    %v4842 = vadd.f32 %v4422, %v4841
    %v4843 = vpop.f32.mrb[0].mxu0
    %v4844 = vadd.f32 %v4418, %v4843
    %v4845 = vpop.f32.mrb[0].mxu0
    %v4846 = vadd.f32 %v4422, %v4845
    %4847 = vmatprep.mubr.bf16.mxu0 %v4364
    %4848 = vmatmul.mubr.bf16.gmra.mrb[0].mxu0 %v4363
    %v4849 = vpop.f32.mrb[0].mxu0
    %v4850 = vadd.f32 %v4418, %v4849
    %v4851 = vpop.f32.mrb[0].mxu0
    %v4852 = vadd.f32 %v4422, %v4851
    %v4853 = vpop.f32.mrb[0].mxu0
    %v4854 = vadd.f32 %v4418, %v4853
    %v4855 = vpop.f32.mrb[0].mxu0
    %v4856 = vadd.f32 %v4422, %v4855
    %4857 = vmatprep.mubr.bf16.mxu0 %v4366
    %4858 = vmatmul.mubr.bf16.gmra.mrb[0].mxu0 %v4365
    %v4859 = vpop.f32.mrb[0].mxu0
    %v4860 = vadd.f32 %v4418, %v4859
    %v4861 = vpop.f32.mrb[0].mxu0
    %v4862 = vadd.f32 %v4422, %v4861
    %v4863 = vpop.f32.mrb[0].mxu0
    %v4864 = vadd.f32 %v4418, %v4863
    %v4865 = vpop.f32.mrb[0].mxu0
    %v4866 = vadd.f32 %v4422, %v4865
    %4867 = vmatprep.mubr.bf16.mxu0 %v4368
    %4868 = vmatmul.mubr.bf16.gmra.mrb[0].mxu0 %v4367
    %v4869 = vpop.f32.mrb[0].mxu0
    %v4870 = vadd.f32 %v4418, %v4869
    %v4871 = vpop.f32.mrb[0].mxu0
    %v4872 = vadd.f32 %v4422, %v4871
    %v4873 = vpop.f32.mrb[0].mxu0
    %v4874 = vadd.f32 %v4418, %v4873
    %v4875 = vpop.f32.mrb[0].mxu0
    %v4876 = vadd.f32 %v4422, %v4875
    %4877 = vmatprep.mubr.bf16.mxu0 %v4370
    %4878 = vmatmul.mubr.bf16.gmra.mrb[0].mxu0 %v4369
    %v4879 = vpop.f32.mrb[0].mxu0
    %v4880 = vadd.f32 %v4418, %v4879
    %v4881 = vpop.f32.mrb[0].mxu0
    %v4882 = vadd.f32 %v4422, %v4881
    %v4883 = vpop.f32.mrb[0].mxu0
    %v4884 = vadd.f32 %v4418, %v4883
    %v4885 = vpop.f32.mrb[0].mxu0
    %v4886 = vadd.f32 %v4422, %v4885
    %4887 = vmatprep.mubr.bf16.mxu0 %v4372
    %4888 = vmatmul.mubr.bf16.gmra.mrb[0].mxu0 %v4371
    %v4889 = vpop.f32.mrb[0].mxu0
    %v4890 = vadd.f32 %v4418, %v4889
    %v4891 = vpop.f32.mrb[0].mxu0
    %v4892 = vadd.f32 %v4422, %v4891
    %v4893 = vpop.f32.mrb[0].mxu0
    %v4894 = vadd.f32 %v4418, %v4893
    %v4895 = vpop.f32.mrb[0].mxu0
    %v4896 = vadd.f32 %v4422, %v4895
    %4897 = vmatprep.mubr.bf16.mxu0 %v4374
    %4898 = vmatmul.mubr.bf16.gmra.mrb[0].mxu0 %v4373
    %v4899 = vpop.f32.mrb[0].mxu0
    %v4900 = vadd.f32 %v4418, %v4899
    %v4901 = vpop.f32.mrb[0].mxu0
    %v4902 = vadd.f32 %v4422, %v4901
    %v4903 = vpop.f32.mrb[0].mxu0
    %v4904 = vadd.f32 %v4418, %v4903
    %v4905 = vpop.f32.mrb[0].mxu0
    %v4906 = vadd.f32 %v4422, %v4905
    %4907 = vmatprep.mubr.bf16.mxu0 %v4376
    %4908 = vmatmul.mubr.bf16.gmra.mrb[0].mxu0 %v4375
    %v4909 = vpop.f32.mrb[0].mxu0
    %v4910 = vadd.f32 %v4418, %v4909
    %v4911 = vpop.f32.mrb[0].mxu0
    %v4912 = vadd.f32 %v4422, %v4911
    %v4913 = vpop.f32.mrb[0].mxu0
    %v4914 = vadd.f32 %v4418, %v4913
    %v4915 = vpop.f32.mrb[0].mxu0
    %v4916 = vadd.f32 %v4422, %v4915
    %4917 = vmatprep.mubr.bf16.mxu0 %v4378
    %4918 = vmatmul.mubr.bf16.gmra.mrb[0].mxu0 %v4377
    %v4919 = vpop.f32.mrb[0].mxu0
    %v4920 = vadd.f32 %v4418, %v4919
    %v4921 = vpop.f32.mrb[0].mxu0
    %v4922 = vadd.f32 %v4422, %v4921
    %v4923 = vpop.f32.mrb[0].mxu0
    %v4924 = vadd.f32 %v4418, %v4923
    %v4925 = vpop.f32.mrb[0].mxu0
    %v4926 = vadd.f32 %v4422, %v4925
    %4927 = vmatprep.mubr.bf16.mxu0 %v4380
    %4928 = vmatmul.mubr.bf16.gmra.mrb[0].mxu0 %v4379
    %v4929 = vpop.f32.mrb[0].mxu0
    %v4930 = vadd.f32 %v4418, %v4929
    %v4931 = vpop.f32.mrb[0].mxu0
    %v4932 = vadd.f32 %v4422, %v4931
    %v4933 = vpop.f32.mrb[0].mxu0
    %v4934 = vadd.f32 %v4418, %v4933
    %v4935 = vpop.f32.mrb[0].mxu0
    %v4936 = vadd.f32 %v4422, %v4935
    %4937 = vdwg.mxu0
    %v4938 = vmax.f32 %v4620, 0.0
    %v4939 = vmax.f32 %v4622, 0.0
    %v4940 = vmax.f32 %v4624, 0.0
    %v4941 = vmax.f32 %v4626, 0.0
    %v4942 = vmax.f32 %v4630, 0.0
    %v4943 = vmax.f32 %v4632, 0.0
    %v4944 = vmax.f32 %v4634, 0.0
    %v4945 = vmax.f32 %v4636, 0.0
    %v4946 = vmax.f32 %v4640, 0.0
    %v4947 = vmax.f32 %v4642, 0.0
    %v4948 = vmax.f32 %v4644, 0.0
    %v4949 = vmax.f32 %v4646, 0.0
    %v4950 = vmax.f32 %v4650, 0.0
    %v4951 = vmax.f32 %v4652, 0.0
    %v4952 = vmax.f32 %v4654, 0.0
    %v4953 = vmax.f32 %v4656, 0.0
    %v4954 = vmax.f32 %v4660, 0.0
    %v4955 = vmax.f32 %v4662, 0.0
    %v4956 = vmax.f32 %v4664, 0.0
    %v4957 = vmax.f32 %v4666, 0.0
    %v4958 = vmax.f32 %v4670, 0.0
    %v4959 = vmax.f32 %v4672, 0.0
    %v4960 = vmax.f32 %v4674, 0.0
    %v4961 = vmax.f32 %v4676, 0.0
    %v4962 = vmax.f32 %v4680, 0.0
    %v4963 = vmax.f32 %v4682, 0.0
    %v4964 = vmax.f32 %v4684, 0.0
    %v4965 = vmax.f32 %v4686, 0.0
    %v4966 = vmax.f32 %v4690, 0.0
    %v4967 = vmax.f32 %v4692, 0.0
    %v4968 = vmax.f32 %v4694, 0.0
    %v4969 = vmax.f32 %v4696, 0.0
    %v4970 = vmax.f32 %v4700, 0.0
    %v4971 = vmax.f32 %v4702, 0.0
    %v4972 = vmax.f32 %v4704, 0.0
    %v4973 = vmax.f32 %v4706, 0.0
    %v4974 = vmax.f32 %v4710, 0.0
    %v4975 = vmax.f32 %v4712, 0.0
    %v4976 = vmax.f32 %v4714, 0.0
    %v4977 = vmax.f32 %v4716, 0.0
    %v4978 = vmax.f32 %v4720, 0.0
    %v4979 = vmax.f32 %v4722, 0.0
    %v4980 = vmax.f32 %v4724, 0.0
    %v4981 = vmax.f32 %v4726, 0.0
    %v4982 = vmax.f32 %v4730, 0.0
    %v4983 = vmax.f32 %v4732, 0.0
    %v4984 = vmax.f32 %v4734, 0.0
    %v4985 = vmax.f32 %v4736, 0.0
    %v4986 = vmax.f32 %v4740, 0.0
    %v4987 = vmax.f32 %v4742, 0.0
    %v4988 = vmax.f32 %v4744, 0.0
    %v4989 = vmax.f32 %v4746, 0.0
    %v4990 = vmax.f32 %v4750, 0.0
    %v4991 = vmax.f32 %v4752, 0.0
    %v4992 = vmax.f32 %v4754, 0.0
    %v4993 = vmax.f32 %v4756, 0.0
    %v4994 = vmax.f32 %v4760, 0.0
    %v4995 = vmax.f32 %v4762, 0.0
    %v4996 = vmax.f32 %v4764, 0.0
    %v4997 = vmax.f32 %v4766, 0.0
    %v4998 = vmax.f32 %v4770, 0.0
    %v4999 = vmax.f32 %v4772, 0.0
    %v5000 = vmax.f32 %v4774, 0.0
    %v5001 = vmax.f32 %v4776, 0.0
    %v5002 = vmax.f32 %v4780, 0.0
    %v5003 = vmax.f32 %v4782, 0.0
    %v5004 = vmax.f32 %v4784, 0.0
    %v5005 = vmax.f32 %v4786, 0.0
    %v5006 = vmax.f32 %v4790, 0.0
    %v5007 = vmax.f32 %v4792, 0.0
    %v5008 = vmax.f32 %v4794, 0.0
    %v5009 = vmax.f32 %v4796, 0.0
    %v5010 = vmax.f32 %v4800, 0.0
    %v5011 = vmax.f32 %v4802, 0.0
    %v5012 = vmax.f32 %v4804, 0.0
    %v5013 = vmax.f32 %v4806, 0.0
    %v5014 = vmax.f32 %v4810, 0.0
    %v5015 = vmax.f32 %v4812, 0.0
    %v5016 = vmax.f32 %v4814, 0.0
    %v5017 = vmax.f32 %v4816, 0.0
    %v5018 = vmax.f32 %v4820, 0.0
    %v5019 = vmax.f32 %v4822, 0.0
    %v5020 = vmax.f32 %v4824, 0.0
    %v5021 = vmax.f32 %v4826, 0.0
    %v5022 = vmax.f32 %v4830, 0.0
    %v5023 = vmax.f32 %v4832, 0.0
    %v5024 = vmax.f32 %v4834, 0.0
    %v5025 = vmax.f32 %v4836, 0.0
    %v5026 = vmax.f32 %v4840, 0.0
    %v5027 = vmax.f32 %v4842, 0.0
    %v5028 = vmax.f32 %v4844, 0.0
    %v5029 = vmax.f32 %v4846, 0.0
    %v5030 = vmax.f32 %v4850, 0.0
    %v5031 = vmax.f32 %v4852, 0.0
    %v5032 = vmax.f32 %v4854, 0.0
    %v5033 = vmax.f32 %v4856, 0.0
    %v5034 = vmax.f32 %v4860, 0.0
    %v5035 = vmax.f32 %v4862, 0.0
    %v5036 = vmax.f32 %v4864, 0.0
    %v5037 = vmax.f32 %v4866, 0.0
    %v5038 = vmax.f32 %v4870, 0.0
    %v5039 = vmax.f32 %v4872, 0.0
    %v5040 = vmax.f32 %v4874, 0.0
    %v5041 = vmax.f32 %v4876, 0.0
    %v5042 = vmax.f32 %v4880, 0.0
    %v5043 = vmax.f32 %v4882, 0.0
    %v5044 = vmax.f32 %v4884, 0.0
    %v5045 = vmax.f32 %v4886, 0.0
    %v5046 = vmax.f32 %v4890, 0.0
    %v5047 = vmax.f32 %v4892, 0.0
    %v5048 = vmax.f32 %v4894, 0.0
    %v5049 = vmax.f32 %v4896, 0.0
    %v5050 = vmax.f32 %v4900, 0.0
    %v5051 = vmax.f32 %v4902, 0.0
    %v5052 = vmax.f32 %v4904, 0.0
    %v5053 = vmax.f32 %v4906, 0.0
    %v5054 = vmax.f32 %v4910, 0.0
    %v5055 = vmax.f32 %v4912, 0.0
    %v5056 = vmax.f32 %v4914, 0.0
    %v5057 = vmax.f32 %v4916, 0.0
    %v5058 = vmax.f32 %v4920, 0.0
    %v5059 = vmax.f32 %v4922, 0.0
    %v5060 = vmax.f32 %v4924, 0.0
    %v5061 = vmax.f32 %v4926, 0.0
    %v5062 = vmax.f32 %v4930, 0.0
    %v5063 = vmax.f32 %v4932, 0.0
    %v5064 = vmax.f32 %v4934, 0.0
    %v5065 = vmax.f32 %v4936, 0.0
    %v5066 = vpack.c.bf16 %v4940, %v4938
    %v5067 = vpack.c.bf16 %v4941, %v4939
    %v5068 = vpack.c.bf16 %v4944, %v4942
    %v5069 = vpack.c.bf16 %v4945, %v4943
    %v5070 = vpack.c.bf16 %v4948, %v4946
    %v5071 = vpack.c.bf16 %v4949, %v4947
    %v5072 = vpack.c.bf16 %v4952, %v4950
    %v5073 = vpack.c.bf16 %v4953, %v4951
    %v5074 = vpack.c.bf16 %v4956, %v4954
    %v5075 = vpack.c.bf16 %v4957, %v4955
    %v5076 = vpack.c.bf16 %v4960, %v4958
    %v5077 = vpack.c.bf16 %v4961, %v4959
    %v5078 = vpack.c.bf16 %v4964, %v4962
    %v5079 = vpack.c.bf16 %v4965, %v4963
    %v5080 = vpack.c.bf16 %v4968, %v4966
    %v5081 = vpack.c.bf16 %v4969, %v4967
    %v5082 = vpack.c.bf16 %v4972, %v4970
    %v5083 = vpack.c.bf16 %v4973, %v4971
    %v5084 = vpack.c.bf16 %v4976, %v4974
    %v5085 = vpack.c.bf16 %v4977, %v4975
    %v5086 = vpack.c.bf16 %v4980, %v4978
    %v5087 = vpack.c.bf16 %v4981, %v4979
    %v5088 = vpack.c.bf16 %v4984, %v4982
    %v5089 = vpack.c.bf16 %v4985, %v4983
    %v5090 = vpack.c.bf16 %v4988, %v4986
    %v5091 = vpack.c.bf16 %v4989, %v4987
    %v5092 = vpack.c.bf16 %v4992, %v4990
    %v5093 = vpack.c.bf16 %v4993, %v4991
    %v5094 = vpack.c.bf16 %v4996, %v4994
    %v5095 = vpack.c.bf16 %v4997, %v4995
    %v5096 = vpack.c.bf16 %v5000, %v4998
    %v5097 = vpack.c.bf16 %v5001, %v4999
    %v5098 = vpack.c.bf16 %v5004, %v5002
    %v5099 = vpack.c.bf16 %v5005, %v5003
    %v5100 = vpack.c.bf16 %v5008, %v5006
    %v5101 = vpack.c.bf16 %v5009, %v5007
    %v5102 = vpack.c.bf16 %v5012, %v5010
    %v5103 = vpack.c.bf16 %v5013, %v5011
    %v5104 = vpack.c.bf16 %v5016, %v5014
    %v5105 = vpack.c.bf16 %v5017, %v5015
    %v5106 = vpack.c.bf16 %v5020, %v5018
    %v5107 = vpack.c.bf16 %v5021, %v5019
    %v5108 = vpack.c.bf16 %v5024, %v5022
    %v5109 = vpack.c.bf16 %v5025, %v5023
    %v5110 = vpack.c.bf16 %v5028, %v5026
    %v5111 = vpack.c.bf16 %v5029, %v5027
    %v5112 = vpack.c.bf16 %v5032, %v5030
    %v5113 = vpack.c.bf16 %v5033, %v5031
    %v5114 = vpack.c.bf16 %v5036, %v5034
    %v5115 = vpack.c.bf16 %v5037, %v5035
    %v5116 = vpack.c.bf16 %v5040, %v5038
    %v5117 = vpack.c.bf16 %v5041, %v5039
    %v5118 = vpack.c.bf16 %v5044, %v5042
    %v5119 = vpack.c.bf16 %v5045, %v5043
    %v5120 = vpack.c.bf16 %v5048, %v5046
    %v5121 = vpack.c.bf16 %v5049, %v5047
    %v5122 = vpack.c.bf16 %v5052, %v5050
    %v5123 = vpack.c.bf16 %v5053, %v5051
    %v5124 = vpack.c.bf16 %v5056, %v5054
    %v5125 = vpack.c.bf16 %v5057, %v5055
    %v5126 = vpack.c.bf16 %v5060, %v5058
    %v5127 = vpack.c.bf16 %v5061, %v5059
    %v5128 = vpack.c.bf16 %v5064, %v5062
    %v5129 = vpack.c.bf16 %v5065, %v5063
    %v5130 = vld [vmem:[#allocation8] sm:$0xff]
    %v5131 = vld [vmem:[#allocation8 + $0x8] sm:$0xff]
    %v5132 = vld [vmem:[#allocation8 + $0x10] sm:$0xff]
    %v5133 = vld [vmem:[#allocation8 + $0x18] sm:$0xff]
    %v5134 = vld [vmem:[#allocation8 + $0x20] sm:$0xff]
    %v5135 = vld [vmem:[#allocation8 + $0x28] sm:$0xff]
    %v5136 = vld [vmem:[#allocation8 + $0x30] sm:$0xff]
    %v5137 = vld [vmem:[#allocation8 + $0x38] sm:$0xff]
    %v5138 = vld [vmem:[#allocation8 + $0x40] sm:$0xff]
    %v5139 = vld [vmem:[#allocation8 + $0x48] sm:$0xff]
    %v5140 = vld [vmem:[#allocation8 + $0x50] sm:$0xff]
    %v5141 = vld [vmem:[#allocation8 + $0x58] sm:$0xff]
    %v5142 = vld [vmem:[#allocation8 + $0x60] sm:$0xff]
    %v5143 = vld [vmem:[#allocation8 + $0x68] sm:$0xff]
    %v5144 = vld [vmem:[#allocation8 + $0x70] sm:$0xff]
    %v5145 = vld [vmem:[#allocation8 + $0x78] sm:$0xff]
    %v5146 = vld [vmem:[#allocation8 + $0x80] sm:$0xff]
    %v5147 = vld [vmem:[#allocation8 + $0x88] sm:$0xff]
    %v5148 = vld [vmem:[#allocation8 + $0x90] sm:$0xff]
    %v5149 = vld [vmem:[#allocation8 + $0x98] sm:$0xff]
    %v5150 = vld [vmem:[#allocation8 + $0xa0] sm:$0xff]
    %v5151 = vld [vmem:[#allocation8 + $0xa8] sm:$0xff]
    %v5152 = vld [vmem:[#allocation8 + $0xb0] sm:$0xff]
    %v5153 = vld [vmem:[#allocation8 + $0xb8] sm:$0xff]
    %v5154 = vld [vmem:[#allocation8 + $0xc0] sm:$0xff]
    %v5155 = vld [vmem:[#allocation8 + $0xc8] sm:$0xff]
    %v5156 = vld [vmem:[#allocation8 + $0xd0] sm:$0xff]
    %v5157 = vld [vmem:[#allocation8 + $0xd8] sm:$0xff]
    %v5158 = vld [vmem:[#allocation8 + $0xe0] sm:$0xff]
    %v5159 = vld [vmem:[#allocation8 + $0xe8] sm:$0xff]
    %v5160 = vld [vmem:[#allocation8 + $0xf0] sm:$0xff]
    %v5161 = vld [vmem:[#allocation8 + $0xf8] sm:$0xff]
    %v5162 = vld [vmem:[%s16] sm:$0x3]
    %v5164 = vlaneseq
    %v5165 = vshrl.u32 %v5164, 7
    %v5166 = vsub.s32 0, %v5165
    %v5167 = vrot.slane %v5162, %v5166
    %v5168 = vlaneseq
    %v5169 = vshrl.u32 %v5168, 7
    %v5170 = vsub.s32 1, %v5169
    %v5171 = vrot.slane %v5162, %v5170
    %v5206 = vunpack.c.l.b16 %v5130
    %v5207 = vunpack.c.h.b16 %v5130
    %v5208 = vunpack.c.l.b16 %v5131
    %v5209 = vunpack.c.h.b16 %v5131
    %v5210 = vunpack.c.l.b16 %v5132
    %v5211 = vunpack.c.h.b16 %v5132
    %v5212 = vunpack.c.l.b16 %v5133
    %v5213 = vunpack.c.h.b16 %v5133
    %v5214 = vunpack.c.l.b16 %v5134
    %v5215 = vunpack.c.h.b16 %v5134
    %v5216 = vunpack.c.l.b16 %v5135
    %v5217 = vunpack.c.h.b16 %v5135
    %v5218 = vunpack.c.l.b16 %v5136
    %v5219 = vunpack.c.h.b16 %v5136
    %v5220 = vunpack.c.l.b16 %v5137
    %v5221 = vunpack.c.h.b16 %v5137
    %v5222 = vunpack.c.l.b16 %v5138
    %v5223 = vunpack.c.h.b16 %v5138
    %v5224 = vunpack.c.l.b16 %v5139
    %v5225 = vunpack.c.h.b16 %v5139
    %v5226 = vunpack.c.l.b16 %v5140
    %v5227 = vunpack.c.h.b16 %v5140
    %v5228 = vunpack.c.l.b16 %v5141
    %v5229 = vunpack.c.h.b16 %v5141
    %v5230 = vunpack.c.l.b16 %v5142
    %v5231 = vunpack.c.h.b16 %v5142
    %v5232 = vunpack.c.l.b16 %v5143
    %v5233 = vunpack.c.h.b16 %v5143
    %v5234 = vunpack.c.l.b16 %v5144
    %v5235 = vunpack.c.h.b16 %v5144
    %v5236 = vunpack.c.l.b16 %v5145
    %v5237 = vunpack.c.h.b16 %v5145
    %v5238 = vunpack.c.l.b16 %v5146
    %v5239 = vunpack.c.h.b16 %v5146
    %v5240 = vunpack.c.l.b16 %v5147
    %v5241 = vunpack.c.h.b16 %v5147
    %v5242 = vunpack.c.l.b16 %v5148
    %v5243 = vunpack.c.h.b16 %v5148
    %v5244 = vunpack.c.l.b16 %v5149
    %v5245 = vunpack.c.h.b16 %v5149
    %v5246 = vunpack.c.l.b16 %v5150
    %v5247 = vunpack.c.h.b16 %v5150
    %v5248 = vunpack.c.l.b16 %v5151
    %v5249 = vunpack.c.h.b16 %v5151
    %v5250 = vunpack.c.l.b16 %v5152
    %v5251 = vunpack.c.h.b16 %v5152
    %v5252 = vunpack.c.l.b16 %v5153
    %v5253 = vunpack.c.h.b16 %v5153
    %v5254 = vunpack.c.l.b16 %v5154
    %v5255 = vunpack.c.h.b16 %v5154
    %v5256 = vunpack.c.l.b16 %v5155
    %v5257 = vunpack.c.h.b16 %v5155
    %v5258 = vunpack.c.l.b16 %v5156
    %v5259 = vunpack.c.h.b16 %v5156
    %v5260 = vunpack.c.l.b16 %v5157
    %v5261 = vunpack.c.h.b16 %v5157
    %v5262 = vunpack.c.l.b16 %v5158
    %v5263 = vunpack.c.h.b16 %v5158
    %v5264 = vunpack.c.l.b16 %v5159
    %v5265 = vunpack.c.h.b16 %v5159
    %v5266 = vunpack.c.l.b16 %v5160
    %v5267 = vunpack.c.h.b16 %v5160
    %v5268 = vunpack.c.l.b16 %v5161
    %v5269 = vunpack.c.h.b16 %v5161
    %v5270 = vpack.c.b16 %v5208, %v5206
    %v5271 = vpack.c.b16 %v5209, %v5207
    %v5272 = vpack.c.b16 %v5212, %v5210
    %v5273 = vpack.c.b16 %v5213, %v5211
    %v5274 = vpack.c.b16 %v5216, %v5214
    %v5275 = vpack.c.b16 %v5217, %v5215
    %v5276 = vpack.c.b16 %v5220, %v5218
    %v5277 = vpack.c.b16 %v5221, %v5219
    %v5278 = vpack.c.b16 %v5224, %v5222
    %v5279 = vpack.c.b16 %v5225, %v5223
    %v5280 = vpack.c.b16 %v5228, %v5226
    %v5281 = vpack.c.b16 %v5229, %v5227
    %v5282 = vpack.c.b16 %v5232, %v5230
    %v5283 = vpack.c.b16 %v5233, %v5231
    %v5284 = vpack.c.b16 %v5236, %v5234
    %v5285 = vpack.c.b16 %v5237, %v5235
    %v5286 = vpack.c.b16 %v5240, %v5238
    %v5287 = vpack.c.b16 %v5241, %v5239
    %v5288 = vpack.c.b16 %v5244, %v5242
    %v5289 = vpack.c.b16 %v5245, %v5243
    %v5290 = vpack.c.b16 %v5248, %v5246
    %v5291 = vpack.c.b16 %v5249, %v5247
    %v5292 = vpack.c.b16 %v5252, %v5250
    %v5293 = vpack.c.b16 %v5253, %v5251
    %v5294 = vpack.c.b16 %v5256, %v5254
    %v5295 = vpack.c.b16 %v5257, %v5255
    %v5296 = vpack.c.b16 %v5260, %v5258
    %v5297 = vpack.c.b16 %v5261, %v5259
    %v5298 = vpack.c.b16 %v5264, %v5262
    %v5299 = vpack.c.b16 %v5265, %v5263
    %v5300 = vpack.c.b16 %v5268, %v5266
    %v5301 = vpack.c.b16 %v5269, %v5267
    %5334 = vmatprep.subr.bf16.mxu0 %v5271
    %5335 = vmatpush1.bf16.msra.mxu0 %v5270
    %5336 = vmatprep.subr.bf16.mxu0 %v5273
    %5337 = vmatpush1.bf16.msra.mxu0 %v5272
    %5338 = vmatprep.subr.bf16.mxu0 %v5275
    %5339 = vmatpush1.bf16.msra.mxu0 %v5274
    %5340 = vmatprep.subr.bf16.mxu0 %v5277
    %5341 = vmatpush1.bf16.msra.mxu0 %v5276
    %5342 = vmatprep.subr.bf16.mxu0 %v5279
    %5343 = vmatpush1.bf16.msra.mxu0 %v5278
    %5344 = vmatprep.subr.bf16.mxu0 %v5281
    %5345 = vmatpush1.bf16.msra.mxu0 %v5280
    %5346 = vmatprep.subr.bf16.mxu0 %v5283
    %5347 = vmatpush1.bf16.msra.mxu0 %v5282
    %5348 = vmatprep.subr.bf16.mxu0 %v5285
    %5349 = vmatpush1.bf16.msra.mxu0 %v5284
    %5350 = vmatprep.subr.bf16.mxu0 %v5287
    %5351 = vmatpush1.bf16.msra.mxu0 %v5286
    %5352 = vmatprep.subr.bf16.mxu0 %v5289
    %5353 = vmatpush1.bf16.msra.mxu0 %v5288
    %5354 = vmatprep.subr.bf16.mxu0 %v5291
    %5355 = vmatpush1.bf16.msra.mxu0 %v5290
    %5356 = vmatprep.subr.bf16.mxu0 %v5293
    %5357 = vmatpush1.bf16.msra.mxu0 %v5292
    %5358 = vmatprep.subr.bf16.mxu0 %v5295
    %5359 = vmatpush1.bf16.msra.mxu0 %v5294
    %5360 = vmatprep.subr.bf16.mxu0 %v5297
    %5361 = vmatpush1.bf16.msra.mxu0 %v5296
    %5362 = vmatprep.subr.bf16.mxu0 %v5299
    %5363 = vmatpush1.bf16.msra.mxu0 %v5298
    %5364 = vmatprep.subr.bf16.mxu0 %v5301
    %5365 = vmatpush1.bf16.msra.mxu0 %v5300
    %5366 = vmatprep.mubr.bf16.mxu0 %v5067
    %5367 = vmatmul.mubr.bf16.gmra.mrb[0].mxu0 %v5066
    %v5368 = vpop.f32.mrb[0].mxu0
    %v5369 = vadd.f32 %v5167, %v5368
    %v5370 = vpop.f32.mrb[0].mxu0
    %v5371 = vadd.f32 %v5171, %v5370
    %v5372 = vpop.f32.mrb[0].mxu0
    %v5373 = vadd.f32 %v5167, %v5372
    %v5374 = vpop.f32.mrb[0].mxu0
    %v5375 = vadd.f32 %v5171, %v5374
    %5376 = vmatprep.mubr.bf16.mxu0 %v5069
    %5377 = vmatmul.mubr.bf16.gmra.mrb[0].mxu0 %v5068
    %v5378 = vpop.f32.mrb[0].mxu0
    %v5379 = vadd.f32 %v5167, %v5378
    %v5380 = vpop.f32.mrb[0].mxu0
    %v5381 = vadd.f32 %v5171, %v5380
    %v5382 = vpop.f32.mrb[0].mxu0
    %v5383 = vadd.f32 %v5167, %v5382
    %v5384 = vpop.f32.mrb[0].mxu0
    %v5385 = vadd.f32 %v5171, %v5384
    %5386 = vmatprep.mubr.bf16.mxu0 %v5071
    %5387 = vmatmul.mubr.bf16.gmra.mrb[0].mxu0 %v5070
    %v5388 = vpop.f32.mrb[0].mxu0
    %v5389 = vadd.f32 %v5167, %v5388
    %v5390 = vpop.f32.mrb[0].mxu0
    %v5391 = vadd.f32 %v5171, %v5390
    %v5392 = vpop.f32.mrb[0].mxu0
    %v5393 = vadd.f32 %v5167, %v5392
    %v5394 = vpop.f32.mrb[0].mxu0
    %v5395 = vadd.f32 %v5171, %v5394
    %5396 = vmatprep.mubr.bf16.mxu0 %v5073
    %5397 = vmatmul.mubr.bf16.gmra.mrb[0].mxu0 %v5072
    %v5398 = vpop.f32.mrb[0].mxu0
    %v5399 = vadd.f32 %v5167, %v5398
    %v5400 = vpop.f32.mrb[0].mxu0
    %v5401 = vadd.f32 %v5171, %v5400
    %v5402 = vpop.f32.mrb[0].mxu0
    %v5403 = vadd.f32 %v5167, %v5402
    %v5404 = vpop.f32.mrb[0].mxu0
    %v5405 = vadd.f32 %v5171, %v5404
    %5406 = vmatprep.mubr.bf16.mxu0 %v5075
    %5407 = vmatmul.mubr.bf16.gmra.mrb[0].mxu0 %v5074
    %v5408 = vpop.f32.mrb[0].mxu0
    %v5409 = vadd.f32 %v5167, %v5408
    %v5410 = vpop.f32.mrb[0].mxu0
    %v5411 = vadd.f32 %v5171, %v5410
    %v5412 = vpop.f32.mrb[0].mxu0
    %v5413 = vadd.f32 %v5167, %v5412
    %v5414 = vpop.f32.mrb[0].mxu0
    %v5415 = vadd.f32 %v5171, %v5414
    %5416 = vmatprep.mubr.bf16.mxu0 %v5077
    %5417 = vmatmul.mubr.bf16.gmra.mrb[0].mxu0 %v5076
    %v5418 = vpop.f32.mrb[0].mxu0
    %v5419 = vadd.f32 %v5167, %v5418
    %v5420 = vpop.f32.mrb[0].mxu0
    %v5421 = vadd.f32 %v5171, %v5420
    %v5422 = vpop.f32.mrb[0].mxu0
    %v5423 = vadd.f32 %v5167, %v5422
    %v5424 = vpop.f32.mrb[0].mxu0
    %v5425 = vadd.f32 %v5171, %v5424
    %5426 = vmatprep.mubr.bf16.mxu0 %v5079
    %5427 = vmatmul.mubr.bf16.gmra.mrb[0].mxu0 %v5078
    %v5428 = vpop.f32.mrb[0].mxu0
    %v5429 = vadd.f32 %v5167, %v5428
    %v5430 = vpop.f32.mrb[0].mxu0
    %v5431 = vadd.f32 %v5171, %v5430
    %v5432 = vpop.f32.mrb[0].mxu0
    %v5433 = vadd.f32 %v5167, %v5432
    %v5434 = vpop.f32.mrb[0].mxu0
    %v5435 = vadd.f32 %v5171, %v5434
    %5436 = vmatprep.mubr.bf16.mxu0 %v5081
    %5437 = vmatmul.mubr.bf16.gmra.mrb[0].mxu0 %v5080
    %v5438 = vpop.f32.mrb[0].mxu0
    %v5439 = vadd.f32 %v5167, %v5438
    %v5440 = vpop.f32.mrb[0].mxu0
    %v5441 = vadd.f32 %v5171, %v5440
    %v5442 = vpop.f32.mrb[0].mxu0
    %v5443 = vadd.f32 %v5167, %v5442
    %v5444 = vpop.f32.mrb[0].mxu0
    %v5445 = vadd.f32 %v5171, %v5444
    %5446 = vmatprep.mubr.bf16.mxu0 %v5083
    %5447 = vmatmul.mubr.bf16.gmra.mrb[0].mxu0 %v5082
    %v5448 = vpop.f32.mrb[0].mxu0
    %v5449 = vadd.f32 %v5167, %v5448
    %v5450 = vpop.f32.mrb[0].mxu0
    %v5451 = vadd.f32 %v5171, %v5450
    %v5452 = vpop.f32.mrb[0].mxu0
    %v5453 = vadd.f32 %v5167, %v5452
    %v5454 = vpop.f32.mrb[0].mxu0
    %v5455 = vadd.f32 %v5171, %v5454
    %5456 = vmatprep.mubr.bf16.mxu0 %v5085
    %5457 = vmatmul.mubr.bf16.gmra.mrb[0].mxu0 %v5084
    %v5458 = vpop.f32.mrb[0].mxu0
    %v5459 = vadd.f32 %v5167, %v5458
    %v5460 = vpop.f32.mrb[0].mxu0
    %v5461 = vadd.f32 %v5171, %v5460
    %v5462 = vpop.f32.mrb[0].mxu0
    %v5463 = vadd.f32 %v5167, %v5462
    %v5464 = vpop.f32.mrb[0].mxu0
    %v5465 = vadd.f32 %v5171, %v5464
    %5466 = vmatprep.mubr.bf16.mxu0 %v5087
    %5467 = vmatmul.mubr.bf16.gmra.mrb[0].mxu0 %v5086
    %v5468 = vpop.f32.mrb[0].mxu0
    %v5469 = vadd.f32 %v5167, %v5468
    %v5470 = vpop.f32.mrb[0].mxu0
    %v5471 = vadd.f32 %v5171, %v5470
    %v5472 = vpop.f32.mrb[0].mxu0
    %v5473 = vadd.f32 %v5167, %v5472
    %v5474 = vpop.f32.mrb[0].mxu0
    %v5475 = vadd.f32 %v5171, %v5474
    %5476 = vmatprep.mubr.bf16.mxu0 %v5089
    %5477 = vmatmul.mubr.bf16.gmra.mrb[0].mxu0 %v5088
    %v5478 = vpop.f32.mrb[0].mxu0
    %v5479 = vadd.f32 %v5167, %v5478
    %v5480 = vpop.f32.mrb[0].mxu0
    %v5481 = vadd.f32 %v5171, %v5480
    %v5482 = vpop.f32.mrb[0].mxu0
    %v5483 = vadd.f32 %v5167, %v5482
    %v5484 = vpop.f32.mrb[0].mxu0
    %v5485 = vadd.f32 %v5171, %v5484
    %5486 = vmatprep.mubr.bf16.mxu0 %v5091
    %5487 = vmatmul.mubr.bf16.gmra.mrb[0].mxu0 %v5090
    %v5488 = vpop.f32.mrb[0].mxu0
    %v5489 = vadd.f32 %v5167, %v5488
    %v5490 = vpop.f32.mrb[0].mxu0
    %v5491 = vadd.f32 %v5171, %v5490
    %v5492 = vpop.f32.mrb[0].mxu0
    %v5493 = vadd.f32 %v5167, %v5492
    %v5494 = vpop.f32.mrb[0].mxu0
    %v5495 = vadd.f32 %v5171, %v5494
    %5496 = vmatprep.mubr.bf16.mxu0 %v5093
    %5497 = vmatmul.mubr.bf16.gmra.mrb[0].mxu0 %v5092
    %v5498 = vpop.f32.mrb[0].mxu0
    %v5499 = vadd.f32 %v5167, %v5498
    %v5500 = vpop.f32.mrb[0].mxu0
    %v5501 = vadd.f32 %v5171, %v5500
    %v5502 = vpop.f32.mrb[0].mxu0
    %v5503 = vadd.f32 %v5167, %v5502
    %v5504 = vpop.f32.mrb[0].mxu0
    %v5505 = vadd.f32 %v5171, %v5504
    %5506 = vmatprep.mubr.bf16.mxu0 %v5095
    %5507 = vmatmul.mubr.bf16.gmra.mrb[0].mxu0 %v5094
    %v5508 = vpop.f32.mrb[0].mxu0
    %v5509 = vadd.f32 %v5167, %v5508
    %v5510 = vpop.f32.mrb[0].mxu0
    %v5511 = vadd.f32 %v5171, %v5510
    %v5512 = vpop.f32.mrb[0].mxu0
    %v5513 = vadd.f32 %v5167, %v5512
    %v5514 = vpop.f32.mrb[0].mxu0
    %v5515 = vadd.f32 %v5171, %v5514
    %5516 = vmatprep.mubr.bf16.mxu0 %v5097
    %5517 = vmatmul.mubr.bf16.gmra.mrb[0].mxu0 %v5096
    %v5518 = vpop.f32.mrb[0].mxu0
    %v5519 = vadd.f32 %v5167, %v5518
    %v5520 = vpop.f32.mrb[0].mxu0
    %v5521 = vadd.f32 %v5171, %v5520
    %v5522 = vpop.f32.mrb[0].mxu0
    %v5523 = vadd.f32 %v5167, %v5522
    %v5524 = vpop.f32.mrb[0].mxu0
    %v5525 = vadd.f32 %v5171, %v5524
    %5526 = vmatprep.mubr.bf16.mxu0 %v5099
    %5527 = vmatmul.mubr.bf16.gmra.mrb[0].mxu0 %v5098
    %v5528 = vpop.f32.mrb[0].mxu0
    %v5529 = vadd.f32 %v5167, %v5528
    %v5530 = vpop.f32.mrb[0].mxu0
    %v5531 = vadd.f32 %v5171, %v5530
    %v5532 = vpop.f32.mrb[0].mxu0
    %v5533 = vadd.f32 %v5167, %v5532
    %v5534 = vpop.f32.mrb[0].mxu0
    %v5535 = vadd.f32 %v5171, %v5534
    %5536 = vmatprep.mubr.bf16.mxu0 %v5101
    %5537 = vmatmul.mubr.bf16.gmra.mrb[0].mxu0 %v5100
    %v5538 = vpop.f32.mrb[0].mxu0
    %v5539 = vadd.f32 %v5167, %v5538
    %v5540 = vpop.f32.mrb[0].mxu0
    %v5541 = vadd.f32 %v5171, %v5540
    %v5542 = vpop.f32.mrb[0].mxu0
    %v5543 = vadd.f32 %v5167, %v5542
    %v5544 = vpop.f32.mrb[0].mxu0
    %v5545 = vadd.f32 %v5171, %v5544
    %5546 = vmatprep.mubr.bf16.mxu0 %v5103
    %5547 = vmatmul.mubr.bf16.gmra.mrb[0].mxu0 %v5102
    %v5548 = vpop.f32.mrb[0].mxu0
    %v5549 = vadd.f32 %v5167, %v5548
    %v5550 = vpop.f32.mrb[0].mxu0
    %v5551 = vadd.f32 %v5171, %v5550
    %v5552 = vpop.f32.mrb[0].mxu0
    %v5553 = vadd.f32 %v5167, %v5552
    %v5554 = vpop.f32.mrb[0].mxu0
    %v5555 = vadd.f32 %v5171, %v5554
    %5556 = vmatprep.mubr.bf16.mxu0 %v5105
    %5557 = vmatmul.mubr.bf16.gmra.mrb[0].mxu0 %v5104
    %v5558 = vpop.f32.mrb[0].mxu0
    %v5559 = vadd.f32 %v5167, %v5558
    %v5560 = vpop.f32.mrb[0].mxu0
    %v5561 = vadd.f32 %v5171, %v5560
    %v5562 = vpop.f32.mrb[0].mxu0
    %v5563 = vadd.f32 %v5167, %v5562
    %v5564 = vpop.f32.mrb[0].mxu0
    %v5565 = vadd.f32 %v5171, %v5564
    %5566 = vmatprep.mubr.bf16.mxu0 %v5107
    %5567 = vmatmul.mubr.bf16.gmra.mrb[0].mxu0 %v5106
    %v5568 = vpop.f32.mrb[0].mxu0
    %v5569 = vadd.f32 %v5167, %v5568
    %v5570 = vpop.f32.mrb[0].mxu0
    %v5571 = vadd.f32 %v5171, %v5570
    %v5572 = vpop.f32.mrb[0].mxu0
    %v5573 = vadd.f32 %v5167, %v5572
    %v5574 = vpop.f32.mrb[0].mxu0
    %v5575 = vadd.f32 %v5171, %v5574
    %5576 = vmatprep.mubr.bf16.mxu0 %v5109
    %5577 = vmatmul.mubr.bf16.gmra.mrb[0].mxu0 %v5108
    %v5578 = vpop.f32.mrb[0].mxu0
    %v5579 = vadd.f32 %v5167, %v5578
    %v5580 = vpop.f32.mrb[0].mxu0
    %v5581 = vadd.f32 %v5171, %v5580
    %v5582 = vpop.f32.mrb[0].mxu0
    %v5583 = vadd.f32 %v5167, %v5582
    %v5584 = vpop.f32.mrb[0].mxu0
    %v5585 = vadd.f32 %v5171, %v5584
    %5586 = vmatprep.mubr.bf16.mxu0 %v5111
    %5587 = vmatmul.mubr.bf16.gmra.mrb[0].mxu0 %v5110
    %v5588 = vpop.f32.mrb[0].mxu0
    %v5589 = vadd.f32 %v5167, %v5588
    %v5590 = vpop.f32.mrb[0].mxu0
    %v5591 = vadd.f32 %v5171, %v5590
    %v5592 = vpop.f32.mrb[0].mxu0
    %v5593 = vadd.f32 %v5167, %v5592
    %v5594 = vpop.f32.mrb[0].mxu0
    %v5595 = vadd.f32 %v5171, %v5594
    %5596 = vmatprep.mubr.bf16.mxu0 %v5113
    %5597 = vmatmul.mubr.bf16.gmra.mrb[0].mxu0 %v5112
    %v5598 = vpop.f32.mrb[0].mxu0
    %v5599 = vadd.f32 %v5167, %v5598
    %v5600 = vpop.f32.mrb[0].mxu0
    %v5601 = vadd.f32 %v5171, %v5600
    %v5602 = vpop.f32.mrb[0].mxu0
    %v5603 = vadd.f32 %v5167, %v5602
    %v5604 = vpop.f32.mrb[0].mxu0
    %v5605 = vadd.f32 %v5171, %v5604
    %5606 = vmatprep.mubr.bf16.mxu0 %v5115
    %5607 = vmatmul.mubr.bf16.gmra.mrb[0].mxu0 %v5114
    %v5608 = vpop.f32.mrb[0].mxu0
    %v5609 = vadd.f32 %v5167, %v5608
    %v5610 = vpop.f32.mrb[0].mxu0
    %v5611 = vadd.f32 %v5171, %v5610
    %v5612 = vpop.f32.mrb[0].mxu0
    %v5613 = vadd.f32 %v5167, %v5612
    %v5614 = vpop.f32.mrb[0].mxu0
    %v5615 = vadd.f32 %v5171, %v5614
    %5616 = vmatprep.mubr.bf16.mxu0 %v5117
    %5617 = vmatmul.mubr.bf16.gmra.mrb[0].mxu0 %v5116
    %v5618 = vpop.f32.mrb[0].mxu0
    %v5619 = vadd.f32 %v5167, %v5618
    %v5620 = vpop.f32.mrb[0].mxu0
    %v5621 = vadd.f32 %v5171, %v5620
    %v5622 = vpop.f32.mrb[0].mxu0
    %v5623 = vadd.f32 %v5167, %v5622
    %v5624 = vpop.f32.mrb[0].mxu0
    %v5625 = vadd.f32 %v5171, %v5624
    %5626 = vmatprep.mubr.bf16.mxu0 %v5119
    %5627 = vmatmul.mubr.bf16.gmra.mrb[0].mxu0 %v5118
    %v5628 = vpop.f32.mrb[0].mxu0
    %v5629 = vadd.f32 %v5167, %v5628
    %v5630 = vpop.f32.mrb[0].mxu0
    %v5631 = vadd.f32 %v5171, %v5630
    %v5632 = vpop.f32.mrb[0].mxu0
    %v5633 = vadd.f32 %v5167, %v5632
    %v5634 = vpop.f32.mrb[0].mxu0
    %v5635 = vadd.f32 %v5171, %v5634
    %5636 = vmatprep.mubr.bf16.mxu0 %v5121
    %5637 = vmatmul.mubr.bf16.gmra.mrb[0].mxu0 %v5120
    %v5638 = vpop.f32.mrb[0].mxu0
    %v5639 = vadd.f32 %v5167, %v5638
    %v5640 = vpop.f32.mrb[0].mxu0
    %v5641 = vadd.f32 %v5171, %v5640
    %v5642 = vpop.f32.mrb[0].mxu0
    %v5643 = vadd.f32 %v5167, %v5642
    %v5644 = vpop.f32.mrb[0].mxu0
    %v5645 = vadd.f32 %v5171, %v5644
    %5646 = vmatprep.mubr.bf16.mxu0 %v5123
    %5647 = vmatmul.mubr.bf16.gmra.mrb[0].mxu0 %v5122
    %v5648 = vpop.f32.mrb[0].mxu0
    %v5649 = vadd.f32 %v5167, %v5648
    %v5650 = vpop.f32.mrb[0].mxu0
    %v5651 = vadd.f32 %v5171, %v5650
    %v5652 = vpop.f32.mrb[0].mxu0
    %v5653 = vadd.f32 %v5167, %v5652
    %v5654 = vpop.f32.mrb[0].mxu0
    %v5655 = vadd.f32 %v5171, %v5654
    %5656 = vmatprep.mubr.bf16.mxu0 %v5125
    %5657 = vmatmul.mubr.bf16.gmra.mrb[0].mxu0 %v5124
    %v5658 = vpop.f32.mrb[0].mxu0
    %v5659 = vadd.f32 %v5167, %v5658
    %v5660 = vpop.f32.mrb[0].mxu0
    %v5661 = vadd.f32 %v5171, %v5660
    %v5662 = vpop.f32.mrb[0].mxu0
    %v5663 = vadd.f32 %v5167, %v5662
    %v5664 = vpop.f32.mrb[0].mxu0
    %v5665 = vadd.f32 %v5171, %v5664
    %5666 = vmatprep.mubr.bf16.mxu0 %v5127
    %5667 = vmatmul.mubr.bf16.gmra.mrb[0].mxu0 %v5126
    %v5668 = vpop.f32.mrb[0].mxu0
    %v5669 = vadd.f32 %v5167, %v5668
    %v5670 = vpop.f32.mrb[0].mxu0
    %v5671 = vadd.f32 %v5171, %v5670
    %v5672 = vpop.f32.mrb[0].mxu0
    %v5673 = vadd.f32 %v5167, %v5672
    %v5674 = vpop.f32.mrb[0].mxu0
    %v5675 = vadd.f32 %v5171, %v5674
    %5676 = vmatprep.mubr.bf16.mxu0 %v5129
    %5677 = vmatmul.mubr.bf16.gmra.mrb[0].mxu0 %v5128
    %v5678 = vpop.f32.mrb[0].mxu0
    %v5679 = vadd.f32 %v5167, %v5678
    %v5680 = vpop.f32.mrb[0].mxu0
    %v5681 = vadd.f32 %v5171, %v5680
    %v5682 = vpop.f32.mrb[0].mxu0
    %v5683 = vadd.f32 %v5167, %v5682
    %v5684 = vpop.f32.mrb[0].mxu0
    %v5685 = vadd.f32 %v5171, %v5684
    %5686 = vdwg.mxu0
    %v5687 = vmax.f32 %v5369, 0.0
    %v5688 = vmax.f32 %v5371, 0.0
    %v5689 = vmax.f32 %v5373, 0.0
    %v5690 = vmax.f32 %v5375, 0.0
    %v5691 = vmax.f32 %v5379, 0.0
    %v5692 = vmax.f32 %v5381, 0.0
    %v5693 = vmax.f32 %v5383, 0.0
    %v5694 = vmax.f32 %v5385, 0.0
    %v5695 = vmax.f32 %v5389, 0.0
    %v5696 = vmax.f32 %v5391, 0.0
    %v5697 = vmax.f32 %v5393, 0.0
    %v5698 = vmax.f32 %v5395, 0.0
    %v5699 = vmax.f32 %v5399, 0.0
    %v5700 = vmax.f32 %v5401, 0.0
    %v5701 = vmax.f32 %v5403, 0.0
    %v5702 = vmax.f32 %v5405, 0.0
    %v5703 = vmax.f32 %v5409, 0.0
    %v5704 = vmax.f32 %v5411, 0.0
    %v5705 = vmax.f32 %v5413, 0.0
    %v5706 = vmax.f32 %v5415, 0.0
    %v5707 = vmax.f32 %v5419, 0.0
    %v5708 = vmax.f32 %v5421, 0.0
    %v5709 = vmax.f32 %v5423, 0.0
    %v5710 = vmax.f32 %v5425, 0.0
    %v5711 = vmax.f32 %v5429, 0.0
    %v5712 = vmax.f32 %v5431, 0.0
    %v5713 = vmax.f32 %v5433, 0.0
    %v5714 = vmax.f32 %v5435, 0.0
    %v5715 = vmax.f32 %v5439, 0.0
    %v5716 = vmax.f32 %v5441, 0.0
    %v5717 = vmax.f32 %v5443, 0.0
    %v5718 = vmax.f32 %v5445, 0.0
    %v5719 = vmax.f32 %v5449, 0.0
    %v5720 = vmax.f32 %v5451, 0.0
    %v5721 = vmax.f32 %v5453, 0.0
    %v5722 = vmax.f32 %v5455, 0.0
    %v5723 = vmax.f32 %v5459, 0.0
    %v5724 = vmax.f32 %v5461, 0.0
    %v5725 = vmax.f32 %v5463, 0.0
    %v5726 = vmax.f32 %v5465, 0.0
    %v5727 = vmax.f32 %v5469, 0.0
    %v5728 = vmax.f32 %v5471, 0.0
    %v5729 = vmax.f32 %v5473, 0.0
    %v5730 = vmax.f32 %v5475, 0.0
    %v5731 = vmax.f32 %v5479, 0.0
    %v5732 = vmax.f32 %v5481, 0.0
    %v5733 = vmax.f32 %v5483, 0.0
    %v5734 = vmax.f32 %v5485, 0.0
    %v5735 = vmax.f32 %v5489, 0.0
    %v5736 = vmax.f32 %v5491, 0.0
    %v5737 = vmax.f32 %v5493, 0.0
    %v5738 = vmax.f32 %v5495, 0.0
    %v5739 = vmax.f32 %v5499, 0.0
    %v5740 = vmax.f32 %v5501, 0.0
    %v5741 = vmax.f32 %v5503, 0.0
    %v5742 = vmax.f32 %v5505, 0.0
    %v5743 = vmax.f32 %v5509, 0.0
    %v5744 = vmax.f32 %v5511, 0.0
    %v5745 = vmax.f32 %v5513, 0.0
    %v5746 = vmax.f32 %v5515, 0.0
    %v5747 = vmax.f32 %v5519, 0.0
    %v5748 = vmax.f32 %v5521, 0.0
    %v5749 = vmax.f32 %v5523, 0.0
    %v5750 = vmax.f32 %v5525, 0.0
    %v5751 = vmax.f32 %v5529, 0.0
    %v5752 = vmax.f32 %v5531, 0.0
    %v5753 = vmax.f32 %v5533, 0.0
    %v5754 = vmax.f32 %v5535, 0.0
    %v5755 = vmax.f32 %v5539, 0.0
    %v5756 = vmax.f32 %v5541, 0.0
    %v5757 = vmax.f32 %v5543, 0.0
    %v5758 = vmax.f32 %v5545, 0.0
    %v5759 = vmax.f32 %v5549, 0.0
    %v5760 = vmax.f32 %v5551, 0.0
    %v5761 = vmax.f32 %v5553, 0.0
    %v5762 = vmax.f32 %v5555, 0.0
    %v5763 = vmax.f32 %v5559, 0.0
    %v5764 = vmax.f32 %v5561, 0.0
    %v5765 = vmax.f32 %v5563, 0.0
    %v5766 = vmax.f32 %v5565, 0.0
    %v5767 = vmax.f32 %v5569, 0.0
    %v5768 = vmax.f32 %v5571, 0.0
    %v5769 = vmax.f32 %v5573, 0.0
    %v5770 = vmax.f32 %v5575, 0.0
    %v5771 = vmax.f32 %v5579, 0.0
    %v5772 = vmax.f32 %v5581, 0.0
    %v5773 = vmax.f32 %v5583, 0.0
    %v5774 = vmax.f32 %v5585, 0.0
    %v5775 = vmax.f32 %v5589, 0.0
    %v5776 = vmax.f32 %v5591, 0.0
    %v5777 = vmax.f32 %v5593, 0.0
    %v5778 = vmax.f32 %v5595, 0.0
    %v5779 = vmax.f32 %v5599, 0.0
    %v5780 = vmax.f32 %v5601, 0.0
    %v5781 = vmax.f32 %v5603, 0.0
    %v5782 = vmax.f32 %v5605, 0.0
    %v5783 = vmax.f32 %v5609, 0.0
    %v5784 = vmax.f32 %v5611, 0.0
    %v5785 = vmax.f32 %v5613, 0.0
    %v5786 = vmax.f32 %v5615, 0.0
    %v5787 = vmax.f32 %v5619, 0.0
    %v5788 = vmax.f32 %v5621, 0.0
    %v5789 = vmax.f32 %v5623, 0.0
    %v5790 = vmax.f32 %v5625, 0.0
    %v5791 = vmax.f32 %v5629, 0.0
    %v5792 = vmax.f32 %v5631, 0.0
    %v5793 = vmax.f32 %v5633, 0.0
    %v5794 = vmax.f32 %v5635, 0.0
    %v5795 = vmax.f32 %v5639, 0.0
    %v5796 = vmax.f32 %v5641, 0.0
    %v5797 = vmax.f32 %v5643, 0.0
    %v5798 = vmax.f32 %v5645, 0.0
    %v5799 = vmax.f32 %v5649, 0.0
    %v5800 = vmax.f32 %v5651, 0.0
    %v5801 = vmax.f32 %v5653, 0.0
    %v5802 = vmax.f32 %v5655, 0.0
    %v5803 = vmax.f32 %v5659, 0.0
    %v5804 = vmax.f32 %v5661, 0.0
    %v5805 = vmax.f32 %v5663, 0.0
    %v5806 = vmax.f32 %v5665, 0.0
    %v5807 = vmax.f32 %v5669, 0.0
    %v5808 = vmax.f32 %v5671, 0.0
    %v5809 = vmax.f32 %v5673, 0.0
    %v5810 = vmax.f32 %v5675, 0.0
    %v5811 = vmax.f32 %v5679, 0.0
    %v5812 = vmax.f32 %v5681, 0.0
    %v5813 = vmax.f32 %v5683, 0.0
    %v5814 = vmax.f32 %v5685, 0.0
    %v5815 = vpack.c.bf16 %v5689, %v5687
    %v5816 = vpack.c.bf16 %v5690, %v5688
    %v5817 = vpack.c.bf16 %v5693, %v5691
    %v5818 = vpack.c.bf16 %v5694, %v5692
    %v5819 = vpack.c.bf16 %v5697, %v5695
    %v5820 = vpack.c.bf16 %v5698, %v5696
    %v5821 = vpack.c.bf16 %v5701, %v5699
    %v5822 = vpack.c.bf16 %v5702, %v5700
    %v5823 = vpack.c.bf16 %v5705, %v5703
    %v5824 = vpack.c.bf16 %v5706, %v5704
    %v5825 = vpack.c.bf16 %v5709, %v5707
    %v5826 = vpack.c.bf16 %v5710, %v5708
    %v5827 = vpack.c.bf16 %v5713, %v5711
    %v5828 = vpack.c.bf16 %v5714, %v5712
    %v5829 = vpack.c.bf16 %v5717, %v5715
    %v5830 = vpack.c.bf16 %v5718, %v5716
    %v5831 = vpack.c.bf16 %v5721, %v5719
    %v5832 = vpack.c.bf16 %v5722, %v5720
    %v5833 = vpack.c.bf16 %v5725, %v5723
    %v5834 = vpack.c.bf16 %v5726, %v5724
    %v5835 = vpack.c.bf16 %v5729, %v5727
    %v5836 = vpack.c.bf16 %v5730, %v5728
    %v5837 = vpack.c.bf16 %v5733, %v5731
    %v5838 = vpack.c.bf16 %v5734, %v5732
    %v5839 = vpack.c.bf16 %v5737, %v5735
    %v5840 = vpack.c.bf16 %v5738, %v5736
    %v5841 = vpack.c.bf16 %v5741, %v5739
    %v5842 = vpack.c.bf16 %v5742, %v5740
    %v5843 = vpack.c.bf16 %v5745, %v5743
    %v5844 = vpack.c.bf16 %v5746, %v5744
    %v5845 = vpack.c.bf16 %v5749, %v5747
    %v5846 = vpack.c.bf16 %v5750, %v5748
    %v5847 = vpack.c.bf16 %v5753, %v5751
    %v5848 = vpack.c.bf16 %v5754, %v5752
    %v5849 = vpack.c.bf16 %v5757, %v5755
    %v5850 = vpack.c.bf16 %v5758, %v5756
    %v5851 = vpack.c.bf16 %v5761, %v5759
    %v5852 = vpack.c.bf16 %v5762, %v5760
    %v5853 = vpack.c.bf16 %v5765, %v5763
    %v5854 = vpack.c.bf16 %v5766, %v5764
    %v5855 = vpack.c.bf16 %v5769, %v5767
    %v5856 = vpack.c.bf16 %v5770, %v5768
    %v5857 = vpack.c.bf16 %v5773, %v5771
    %v5858 = vpack.c.bf16 %v5774, %v5772
    %v5859 = vpack.c.bf16 %v5777, %v5775
    %v5860 = vpack.c.bf16 %v5778, %v5776
    %v5861 = vpack.c.bf16 %v5781, %v5779
    %v5862 = vpack.c.bf16 %v5782, %v5780
    %v5863 = vpack.c.bf16 %v5785, %v5783
    %v5864 = vpack.c.bf16 %v5786, %v5784
    %v5865 = vpack.c.bf16 %v5789, %v5787
    %v5866 = vpack.c.bf16 %v5790, %v5788
    %v5867 = vpack.c.bf16 %v5793, %v5791
    %v5868 = vpack.c.bf16 %v5794, %v5792
    %v5869 = vpack.c.bf16 %v5797, %v5795
    %v5870 = vpack.c.bf16 %v5798, %v5796
    %v5871 = vpack.c.bf16 %v5801, %v5799
    %v5872 = vpack.c.bf16 %v5802, %v5800
    %v5873 = vpack.c.bf16 %v5805, %v5803
    %v5874 = vpack.c.bf16 %v5806, %v5804
    %v5875 = vpack.c.bf16 %v5809, %v5807
    %v5876 = vpack.c.bf16 %v5810, %v5808
    %v5877 = vpack.c.bf16 %v5813, %v5811
    %v5878 = vpack.c.bf16 %v5814, %v5812
    %v5879 = vld [vmem:[#allocation10] sm:$0xf]
    %v5880 = vld [vmem:[#allocation10 + $0x4] sm:$0xf]
    %v5881 = vld [vmem:[#allocation10 + $0x8] sm:$0xf]
    %v5882 = vld [vmem:[#allocation10 + $0xc] sm:$0xf]
    %v5883 = vld [vmem:[#allocation10 + $0x10] sm:$0xf]
    %v5884 = vld [vmem:[#allocation10 + $0x14] sm:$0xf]
    %v5885 = vld [vmem:[#allocation10 + $0x18] sm:$0xf]
    %v5886 = vld [vmem:[#allocation10 + $0x1c] sm:$0xf]
    %v5887 = vld [vmem:[#allocation10 + $0x20] sm:$0xf]
    %v5888 = vld [vmem:[#allocation10 + $0x24] sm:$0xf]
    %v5889 = vld [vmem:[#allocation10 + $0x28] sm:$0xf]
    %v5890 = vld [vmem:[#allocation10 + $0x2c] sm:$0xf]
    %v5891 = vld [vmem:[#allocation10 + $0x30] sm:$0xf]
    %v5892 = vld [vmem:[#allocation10 + $0x34] sm:$0xf]
    %v5893 = vld [vmem:[#allocation10 + $0x38] sm:$0xf]
    %v5894 = vld [vmem:[#allocation10 + $0x3c] sm:$0xf]
    %v5895 = vld [vmem:[#allocation10 + $0x40] sm:$0xf]
    %v5896 = vld [vmem:[#allocation10 + $0x44] sm:$0xf]
    %v5897 = vld [vmem:[#allocation10 + $0x48] sm:$0xf]
    %v5898 = vld [vmem:[#allocation10 + $0x4c] sm:$0xf]
    %v5899 = vld [vmem:[#allocation10 + $0x50] sm:$0xf]
    %v5900 = vld [vmem:[#allocation10 + $0x54] sm:$0xf]
    %v5901 = vld [vmem:[#allocation10 + $0x58] sm:$0xf]
    %v5902 = vld [vmem:[#allocation10 + $0x5c] sm:$0xf]
    %v5903 = vld [vmem:[#allocation10 + $0x60] sm:$0xf]
    %v5904 = vld [vmem:[#allocation10 + $0x64] sm:$0xf]
    %v5905 = vld [vmem:[#allocation10 + $0x68] sm:$0xf]
    %v5906 = vld [vmem:[#allocation10 + $0x6c] sm:$0xf]
    %v5907 = vld [vmem:[#allocation10 + $0x70] sm:$0xf]
    %v5908 = vld [vmem:[#allocation10 + $0x74] sm:$0xf]
    %v5909 = vld [vmem:[#allocation10 + $0x78] sm:$0xf]
    %v5910 = vld [vmem:[#allocation10 + $0x7c] sm:$0xf]
    %v5911 = vld [vmem:[%s17] sm:$0x1]
    %v5913 = vlaneseq
    %v5914 = vshrl.u32 %v5913, 7
    %v5915 = vsub.s32 0, %v5914
    %v5916 = vrot.slane %v5911, %v5915
    %v5950 = vunpack.c.l.b16 %v5879
    %v5951 = vunpack.c.l.b16 %v5880
    %v5952 = vunpack.c.l.b16 %v5881
    %v5953 = vunpack.c.l.b16 %v5882
    %v5954 = vunpack.c.l.b16 %v5883
    %v5955 = vunpack.c.l.b16 %v5884
    %v5956 = vunpack.c.l.b16 %v5885
    %v5957 = vunpack.c.l.b16 %v5886
    %v5958 = vunpack.c.l.b16 %v5887
    %v5959 = vunpack.c.l.b16 %v5888
    %v5960 = vunpack.c.l.b16 %v5889
    %v5961 = vunpack.c.l.b16 %v5890
    %v5962 = vunpack.c.l.b16 %v5891
    %v5963 = vunpack.c.l.b16 %v5892
    %v5964 = vunpack.c.l.b16 %v5893
    %v5965 = vunpack.c.l.b16 %v5894
    %v5966 = vunpack.c.l.b16 %v5895
    %v5967 = vunpack.c.l.b16 %v5896
    %v5968 = vunpack.c.l.b16 %v5897
    %v5969 = vunpack.c.l.b16 %v5898
    %v5970 = vunpack.c.l.b16 %v5899
    %v5971 = vunpack.c.l.b16 %v5900
    %v5972 = vunpack.c.l.b16 %v5901
    %v5973 = vunpack.c.l.b16 %v5902
    %v5974 = vunpack.c.l.b16 %v5903
    %v5975 = vunpack.c.l.b16 %v5904
    %v5976 = vunpack.c.l.b16 %v5905
    %v5977 = vunpack.c.l.b16 %v5906
    %v5978 = vunpack.c.l.b16 %v5907
    %v5979 = vunpack.c.l.b16 %v5908
    %v5980 = vunpack.c.l.b16 %v5909
    %v5981 = vunpack.c.l.b16 %v5910
    %v5982 = vpack.c.b16 %v5951, %v5950
    %v5983 = vpack.c.b16 %v5953, %v5952
    %v5984 = vpack.c.b16 %v5955, %v5954
    %v5985 = vpack.c.b16 %v5957, %v5956
    %v5986 = vpack.c.b16 %v5959, %v5958
    %v5987 = vpack.c.b16 %v5961, %v5960
    %v5988 = vpack.c.b16 %v5963, %v5962
    %v5989 = vpack.c.b16 %v5965, %v5964
    %v5990 = vpack.c.b16 %v5967, %v5966
    %v5991 = vpack.c.b16 %v5969, %v5968
    %v5992 = vpack.c.b16 %v5971, %v5970
    %v5993 = vpack.c.b16 %v5973, %v5972
    %v5994 = vpack.c.b16 %v5975, %v5974
    %v5995 = vpack.c.b16 %v5977, %v5976
    %v5996 = vpack.c.b16 %v5979, %v5978
    %v5997 = vpack.c.b16 %v5981, %v5980
    %6014 = vmatprep.subr.bf16.mxu0 0
    %6015 = vmatpush1.bf16.msra.mxu0 %v5982
    %6016 = vmatprep.subr.bf16.mxu0 0
    %6017 = vmatpush1.bf16.msra.mxu0 %v5983
    %6018 = vmatprep.subr.bf16.mxu0 0
    %6019 = vmatpush1.bf16.msra.mxu0 %v5984
    %6020 = vmatprep.subr.bf16.mxu0 0
    %6021 = vmatpush1.bf16.msra.mxu0 %v5985
    %6022 = vmatprep.subr.bf16.mxu0 0
    %6023 = vmatpush1.bf16.msra.mxu0 %v5986
    %6024 = vmatprep.subr.bf16.mxu0 0
    %6025 = vmatpush1.bf16.msra.mxu0 %v5987
    %6026 = vmatprep.subr.bf16.mxu0 0
    %6027 = vmatpush1.bf16.msra.mxu0 %v5988
    %6028 = vmatprep.subr.bf16.mxu0 0
    %6029 = vmatpush1.bf16.msra.mxu0 %v5989
    %6030 = vmatprep.subr.bf16.mxu0 0
    %6031 = vmatpush1.bf16.msra.mxu0 %v5990
    %6032 = vmatprep.subr.bf16.mxu0 0
    %6033 = vmatpush1.bf16.msra.mxu0 %v5991
    %6034 = vmatprep.subr.bf16.mxu0 0
    %6035 = vmatpush1.bf16.msra.mxu0 %v5992
    %6036 = vmatprep.subr.bf16.mxu0 0
    %6037 = vmatpush1.bf16.msra.mxu0 %v5993
    %6038 = vmatprep.subr.bf16.mxu0 0
    %6039 = vmatpush1.bf16.msra.mxu0 %v5994
    %6040 = vmatprep.subr.bf16.mxu0 0
    %6041 = vmatpush1.bf16.msra.mxu0 %v5995
    %6042 = vmatprep.subr.bf16.mxu0 0
    %6043 = vmatpush1.bf16.msra.mxu0 %v5996
    %6044 = vmatprep.subr.bf16.mxu0 0
    %6045 = vmatpush1.bf16.msra.mxu0 %v5997
    %6046 = vmatprep.mubr.bf16.mxu0 %v5816
    %6047 = vmatmul.mubr.bf16.gmra.mrb[0].mxu0 %v5815
    %v6048 = vpop.f32.mrb[0].mxu0
    %v6049 = vadd.f32 %v5916, %v6048
    %v6050 = vpop.f32.mrb[0].mxu0
    %v6051 = vpop.f32.mrb[0].mxu0
    %v6052 = vadd.f32 %v5916, %v6051
    %v6053 = vpop.f32.mrb[0].mxu0
    %6054 = vmatprep.mubr.bf16.mxu0 %v5818
    %6055 = vmatmul.mubr.bf16.gmra.mrb[0].mxu0 %v5817
    %v6056 = vpop.f32.mrb[0].mxu0
    %v6057 = vadd.f32 %v5916, %v6056
    %v6058 = vpop.f32.mrb[0].mxu0
    %v6059 = vpop.f32.mrb[0].mxu0
    %v6060 = vadd.f32 %v5916, %v6059
    %v6061 = vpop.f32.mrb[0].mxu0
    %6062 = vmatprep.mubr.bf16.mxu0 %v5820
    %6063 = vmatmul.mubr.bf16.gmra.mrb[0].mxu0 %v5819
    %v6064 = vpop.f32.mrb[0].mxu0
    %v6065 = vadd.f32 %v5916, %v6064
    %v6066 = vpop.f32.mrb[0].mxu0
    %v6067 = vpop.f32.mrb[0].mxu0
    %v6068 = vadd.f32 %v5916, %v6067
    %v6069 = vpop.f32.mrb[0].mxu0
    %6070 = vmatprep.mubr.bf16.mxu0 %v5822
    %6071 = vmatmul.mubr.bf16.gmra.mrb[0].mxu0 %v5821
    %v6072 = vpop.f32.mrb[0].mxu0
    %v6073 = vadd.f32 %v5916, %v6072
    %v6074 = vpop.f32.mrb[0].mxu0
    %v6075 = vpop.f32.mrb[0].mxu0
    %v6076 = vadd.f32 %v5916, %v6075
    %v6077 = vpop.f32.mrb[0].mxu0
    %6078 = vmatprep.mubr.bf16.mxu0 %v5824
    %6079 = vmatmul.mubr.bf16.gmra.mrb[0].mxu0 %v5823
    %v6080 = vpop.f32.mrb[0].mxu0
    %v6081 = vadd.f32 %v5916, %v6080
    %v6082 = vpop.f32.mrb[0].mxu0
    %v6083 = vpop.f32.mrb[0].mxu0
    %v6084 = vadd.f32 %v5916, %v6083
    %v6085 = vpop.f32.mrb[0].mxu0
    %6086 = vmatprep.mubr.bf16.mxu0 %v5826
    %6087 = vmatmul.mubr.bf16.gmra.mrb[0].mxu0 %v5825
    %v6088 = vpop.f32.mrb[0].mxu0
    %v6089 = vadd.f32 %v5916, %v6088
    %v6090 = vpop.f32.mrb[0].mxu0
    %v6091 = vpop.f32.mrb[0].mxu0
    %v6092 = vadd.f32 %v5916, %v6091
    %v6093 = vpop.f32.mrb[0].mxu0
    %6094 = vmatprep.mubr.bf16.mxu0 %v5828
    %6095 = vmatmul.mubr.bf16.gmra.mrb[0].mxu0 %v5827
    %v6096 = vpop.f32.mrb[0].mxu0
    %v6097 = vadd.f32 %v5916, %v6096
    %v6098 = vpop.f32.mrb[0].mxu0
    %v6099 = vpop.f32.mrb[0].mxu0
    %v6100 = vadd.f32 %v5916, %v6099
    %v6101 = vpop.f32.mrb[0].mxu0
    %6102 = vmatprep.mubr.bf16.mxu0 %v5830
    %6103 = vmatmul.mubr.bf16.gmra.mrb[0].mxu0 %v5829
    %v6104 = vpop.f32.mrb[0].mxu0
    %v6105 = vadd.f32 %v5916, %v6104
    %v6106 = vpop.f32.mrb[0].mxu0
    %v6107 = vpop.f32.mrb[0].mxu0
    %v6108 = vadd.f32 %v5916, %v6107
    %v6109 = vpop.f32.mrb[0].mxu0
    %6110 = vmatprep.mubr.bf16.mxu0 %v5832
    %6111 = vmatmul.mubr.bf16.gmra.mrb[0].mxu0 %v5831
    %v6112 = vpop.f32.mrb[0].mxu0
    %v6113 = vadd.f32 %v5916, %v6112
    %v6114 = vpop.f32.mrb[0].mxu0
    %v6115 = vpop.f32.mrb[0].mxu0
    %v6116 = vadd.f32 %v5916, %v6115
    %v6117 = vpop.f32.mrb[0].mxu0
    %6118 = vmatprep.mubr.bf16.mxu0 %v5834
    %6119 = vmatmul.mubr.bf16.gmra.mrb[0].mxu0 %v5833
    %v6120 = vpop.f32.mrb[0].mxu0
    %v6121 = vadd.f32 %v5916, %v6120
    %v6122 = vpop.f32.mrb[0].mxu0
    %v6123 = vpop.f32.mrb[0].mxu0
    %v6124 = vadd.f32 %v5916, %v6123
    %v6125 = vpop.f32.mrb[0].mxu0
    %6126 = vmatprep.mubr.bf16.mxu0 %v5836
    %6127 = vmatmul.mubr.bf16.gmra.mrb[0].mxu0 %v5835
    %v6128 = vpop.f32.mrb[0].mxu0
    %v6129 = vadd.f32 %v5916, %v6128
    %v6130 = vpop.f32.mrb[0].mxu0
    %v6131 = vpop.f32.mrb[0].mxu0
    %v6132 = vadd.f32 %v5916, %v6131
    %v6133 = vpop.f32.mrb[0].mxu0
    %6134 = vmatprep.mubr.bf16.mxu0 %v5838
    %6135 = vmatmul.mubr.bf16.gmra.mrb[0].mxu0 %v5837
    %v6136 = vpop.f32.mrb[0].mxu0
    %v6137 = vadd.f32 %v5916, %v6136
    %v6138 = vpop.f32.mrb[0].mxu0
    %v6139 = vpop.f32.mrb[0].mxu0
    %v6140 = vadd.f32 %v5916, %v6139
    %v6141 = vpop.f32.mrb[0].mxu0
    %6142 = vmatprep.mubr.bf16.mxu0 %v5840
    %6143 = vmatmul.mubr.bf16.gmra.mrb[0].mxu0 %v5839
    %v6144 = vpop.f32.mrb[0].mxu0
    %v6145 = vadd.f32 %v5916, %v6144
    %v6146 = vpop.f32.mrb[0].mxu0
    %v6147 = vpop.f32.mrb[0].mxu0
    %v6148 = vadd.f32 %v5916, %v6147
    %v6149 = vpop.f32.mrb[0].mxu0
    %6150 = vmatprep.mubr.bf16.mxu0 %v5842
    %6151 = vmatmul.mubr.bf16.gmra.mrb[0].mxu0 %v5841
    %v6152 = vpop.f32.mrb[0].mxu0
    %v6153 = vadd.f32 %v5916, %v6152
    %v6154 = vpop.f32.mrb[0].mxu0
    %v6155 = vpop.f32.mrb[0].mxu0
    %v6156 = vadd.f32 %v5916, %v6155
    %v6157 = vpop.f32.mrb[0].mxu0
    %6158 = vmatprep.mubr.bf16.mxu0 %v5844
    %6159 = vmatmul.mubr.bf16.gmra.mrb[0].mxu0 %v5843
    %v6160 = vpop.f32.mrb[0].mxu0
    %v6161 = vadd.f32 %v5916, %v6160
    %v6162 = vpop.f32.mrb[0].mxu0
    %v6163 = vpop.f32.mrb[0].mxu0
    %v6164 = vadd.f32 %v5916, %v6163
    %v6165 = vpop.f32.mrb[0].mxu0
    %6166 = vmatprep.mubr.bf16.mxu0 %v5846
    %6167 = vmatmul.mubr.bf16.gmra.mrb[0].mxu0 %v5845
    %v6168 = vpop.f32.mrb[0].mxu0
    %v6169 = vadd.f32 %v5916, %v6168
    %v6170 = vpop.f32.mrb[0].mxu0
    %v6171 = vpop.f32.mrb[0].mxu0
    %v6172 = vadd.f32 %v5916, %v6171
    %v6173 = vpop.f32.mrb[0].mxu0
    %6174 = vmatprep.mubr.bf16.mxu0 %v5848
    %6175 = vmatmul.mubr.bf16.gmra.mrb[0].mxu0 %v5847
    %v6176 = vpop.f32.mrb[0].mxu0
    %v6177 = vadd.f32 %v5916, %v6176
    %v6178 = vpop.f32.mrb[0].mxu0
    %v6179 = vpop.f32.mrb[0].mxu0
    %v6180 = vadd.f32 %v5916, %v6179
    %v6181 = vpop.f32.mrb[0].mxu0
    %6182 = vmatprep.mubr.bf16.mxu0 %v5850
    %6183 = vmatmul.mubr.bf16.gmra.mrb[0].mxu0 %v5849
    %v6184 = vpop.f32.mrb[0].mxu0
    %v6185 = vadd.f32 %v5916, %v6184
    %v6186 = vpop.f32.mrb[0].mxu0
    %v6187 = vpop.f32.mrb[0].mxu0
    %v6188 = vadd.f32 %v5916, %v6187
    %v6189 = vpop.f32.mrb[0].mxu0
    %6190 = vmatprep.mubr.bf16.mxu0 %v5852
    %6191 = vmatmul.mubr.bf16.gmra.mrb[0].mxu0 %v5851
    %v6192 = vpop.f32.mrb[0].mxu0
    %v6193 = vadd.f32 %v5916, %v6192
    %v6194 = vpop.f32.mrb[0].mxu0
    %v6195 = vpop.f32.mrb[0].mxu0
    %v6196 = vadd.f32 %v5916, %v6195
    %v6197 = vpop.f32.mrb[0].mxu0
    %6198 = vmatprep.mubr.bf16.mxu0 %v5854
    %6199 = vmatmul.mubr.bf16.gmra.mrb[0].mxu0 %v5853
    %v6200 = vpop.f32.mrb[0].mxu0
    %v6201 = vadd.f32 %v5916, %v6200
    %v6202 = vpop.f32.mrb[0].mxu0
    %v6203 = vpop.f32.mrb[0].mxu0
    %v6204 = vadd.f32 %v5916, %v6203
    %v6205 = vpop.f32.mrb[0].mxu0
    %6206 = vmatprep.mubr.bf16.mxu0 %v5856
    %6207 = vmatmul.mubr.bf16.gmra.mrb[0].mxu0 %v5855
    %v6208 = vpop.f32.mrb[0].mxu0
    %v6209 = vadd.f32 %v5916, %v6208
    %v6210 = vpop.f32.mrb[0].mxu0
    %v6211 = vpop.f32.mrb[0].mxu0
    %v6212 = vadd.f32 %v5916, %v6211
    %v6213 = vpop.f32.mrb[0].mxu0
    %6214 = vmatprep.mubr.bf16.mxu0 %v5858
    %6215 = vmatmul.mubr.bf16.gmra.mrb[0].mxu0 %v5857
    %v6216 = vpop.f32.mrb[0].mxu0
    %v6217 = vadd.f32 %v5916, %v6216
    %v6218 = vpop.f32.mrb[0].mxu0
    %v6219 = vpop.f32.mrb[0].mxu0
    %v6220 = vadd.f32 %v5916, %v6219
    %v6221 = vpop.f32.mrb[0].mxu0
    %6222 = vmatprep.mubr.bf16.mxu0 %v5860
    %6223 = vmatmul.mubr.bf16.gmra.mrb[0].mxu0 %v5859
    %v6224 = vpop.f32.mrb[0].mxu0
    %v6225 = vadd.f32 %v5916, %v6224
    %v6226 = vpop.f32.mrb[0].mxu0
    %v6227 = vpop.f32.mrb[0].mxu0
    %v6228 = vadd.f32 %v5916, %v6227
    %v6229 = vpop.f32.mrb[0].mxu0
    %6230 = vmatprep.mubr.bf16.mxu0 %v5862
    %6231 = vmatmul.mubr.bf16.gmra.mrb[0].mxu0 %v5861
    %v6232 = vpop.f32.mrb[0].mxu0
    %v6233 = vadd.f32 %v5916, %v6232
    %v6234 = vpop.f32.mrb[0].mxu0
    %v6235 = vpop.f32.mrb[0].mxu0
    %v6236 = vadd.f32 %v5916, %v6235
    %v6237 = vpop.f32.mrb[0].mxu0
    %6238 = vmatprep.mubr.bf16.mxu0 %v5864
    %6239 = vmatmul.mubr.bf16.gmra.mrb[0].mxu0 %v5863
    %v6240 = vpop.f32.mrb[0].mxu0
    %v6241 = vadd.f32 %v5916, %v6240
    %v6242 = vpop.f32.mrb[0].mxu0
    %v6243 = vpop.f32.mrb[0].mxu0
    %v6244 = vadd.f32 %v5916, %v6243
    %v6245 = vpop.f32.mrb[0].mxu0
    %6246 = vmatprep.mubr.bf16.mxu0 %v5866
    %6247 = vmatmul.mubr.bf16.gmra.mrb[0].mxu0 %v5865
    %v6248 = vpop.f32.mrb[0].mxu0
    %v6249 = vadd.f32 %v5916, %v6248
    %v6250 = vpop.f32.mrb[0].mxu0
    %v6251 = vpop.f32.mrb[0].mxu0
    %v6252 = vadd.f32 %v5916, %v6251
    %v6253 = vpop.f32.mrb[0].mxu0
    %6254 = vmatprep.mubr.bf16.mxu0 %v5868
    %6255 = vmatmul.mubr.bf16.gmra.mrb[0].mxu0 %v5867
    %v6256 = vpop.f32.mrb[0].mxu0
    %v6257 = vadd.f32 %v5916, %v6256
    %v6258 = vpop.f32.mrb[0].mxu0
    %v6259 = vpop.f32.mrb[0].mxu0
    %v6260 = vadd.f32 %v5916, %v6259
    %v6261 = vpop.f32.mrb[0].mxu0
    %6262 = vmatprep.mubr.bf16.mxu0 %v5870
    %6263 = vmatmul.mubr.bf16.gmra.mrb[0].mxu0 %v5869
    %v6264 = vpop.f32.mrb[0].mxu0
    %v6265 = vadd.f32 %v5916, %v6264
    %v6266 = vpop.f32.mrb[0].mxu0
    %v6267 = vpop.f32.mrb[0].mxu0
    %v6268 = vadd.f32 %v5916, %v6267
    %v6269 = vpop.f32.mrb[0].mxu0
    %6270 = vmatprep.mubr.bf16.mxu0 %v5872
    %6271 = vmatmul.mubr.bf16.gmra.mrb[0].mxu0 %v5871
    %v6272 = vpop.f32.mrb[0].mxu0
    %v6273 = vadd.f32 %v5916, %v6272
    %v6274 = vpop.f32.mrb[0].mxu0
    %v6275 = vpop.f32.mrb[0].mxu0
    %v6276 = vadd.f32 %v5916, %v6275
    %v6277 = vpop.f32.mrb[0].mxu0
    %6278 = vmatprep.mubr.bf16.mxu0 %v5874
    %6279 = vmatmul.mubr.bf16.gmra.mrb[0].mxu0 %v5873
    %v6280 = vpop.f32.mrb[0].mxu0
    %v6281 = vadd.f32 %v5916, %v6280
    %v6282 = vpop.f32.mrb[0].mxu0
    %v6283 = vpop.f32.mrb[0].mxu0
    %v6284 = vadd.f32 %v5916, %v6283
    %v6285 = vpop.f32.mrb[0].mxu0
    %6286 = vmatprep.mubr.bf16.mxu0 %v5876
    %6287 = vmatmul.mubr.bf16.gmra.mrb[0].mxu0 %v5875
    %v6288 = vpop.f32.mrb[0].mxu0
    %v6289 = vadd.f32 %v5916, %v6288
    %v6290 = vpop.f32.mrb[0].mxu0
    %v6291 = vpop.f32.mrb[0].mxu0
    %v6292 = vadd.f32 %v5916, %v6291
    %v6293 = vpop.f32.mrb[0].mxu0
    %6294 = vmatprep.mubr.bf16.mxu0 %v5878
    %6295 = vmatmul.mubr.bf16.gmra.mrb[0].mxu0 %v5877
    %v6296 = vpop.f32.mrb[0].mxu0
    %v6297 = vadd.f32 %v5916, %v6296
    %v6298 = vpop.f32.mrb[0].mxu0
    %v6299 = vpop.f32.mrb[0].mxu0
    %v6300 = vadd.f32 %v5916, %v6299
    %v6301 = vpop.f32.mrb[0].mxu0
    %6302 = vdwg.mxu0
    %6303 = vst [vmem:[#allocation11] sm:$0xff] %v6049
    %6304 = vst [vmem:[#allocation11 + $0x8] sm:$0xff] %v6052
    %6305 = vst [vmem:[#allocation11 + $0x10] sm:$0xff] %v6057
    %6306 = vst [vmem:[#allocation11 + $0x18] sm:$0xff] %v6060
    %6307 = vst [vmem:[#allocation11 + $0x20] sm:$0xff] %v6065
    %6308 = vst [vmem:[#allocation11 + $0x28] sm:$0xff] %v6068
    %6309 = vst [vmem:[#allocation11 + $0x30] sm:$0xff] %v6073
    %6310 = vst [vmem:[#allocation11 + $0x38] sm:$0xff] %v6076
    %6311 = vst [vmem:[#allocation11 + $0x40] sm:$0xff] %v6081
    %6312 = vst [vmem:[#allocation11 + $0x48] sm:$0xff] %v6084
    %6313 = vst [vmem:[#allocation11 + $0x50] sm:$0xff] %v6089
    %6314 = vst [vmem:[#allocation11 + $0x58] sm:$0xff] %v6092
    %6315 = vst [vmem:[#allocation11 + $0x60] sm:$0xff] %v6097
    %6316 = vst [vmem:[#allocation11 + $0x68] sm:$0xff] %v6100
    %6317 = vst [vmem:[#allocation11 + $0x70] sm:$0xff] %v6105
    %6318 = vst [vmem:[#allocation11 + $0x78] sm:$0xff] %v6108
    %6319 = vst [vmem:[#allocation11 + $0x80] sm:$0xff] %v6113
    %6320 = vst [vmem:[#allocation11 + $0x88] sm:$0xff] %v6116
    %6321 = vst [vmem:[#allocation11 + $0x90] sm:$0xff] %v6121
    %6322 = vst [vmem:[#allocation11 + $0x98] sm:$0xff] %v6124
    %6323 = vst [vmem:[#allocation11 + $0xa0] sm:$0xff] %v6129
    %6324 = vst [vmem:[#allocation11 + $0xa8] sm:$0xff] %v6132
    %6325 = vst [vmem:[#allocation11 + $0xb0] sm:$0xff] %v6137
    %6326 = vst [vmem:[#allocation11 + $0xb8] sm:$0xff] %v6140
    %6327 = vst [vmem:[#allocation11 + $0xc0] sm:$0xff] %v6145
    %6328 = vst [vmem:[#allocation11 + $0xc8] sm:$0xff] %v6148
    %6329 = vst [vmem:[#allocation11 + $0xd0] sm:$0xff] %v6153
    %6330 = vst [vmem:[#allocation11 + $0xd8] sm:$0xff] %v6156
    %6331 = vst [vmem:[#allocation11 + $0xe0] sm:$0xff] %v6161
    %6332 = vst [vmem:[#allocation11 + $0xe8] sm:$0xff] %v6164
    %6333 = vst [vmem:[#allocation11 + $0xf0] sm:$0xff] %v6169
    %6334 = vst [vmem:[#allocation11 + $0xf8] sm:$0xff] %v6172
    %6335 = vst [vmem:[#allocation11 + $0x100] sm:$0xff] %v6177
    %6336 = vst [vmem:[#allocation11 + $0x108] sm:$0xff] %v6180
    %6337 = vst [vmem:[#allocation11 + $0x110] sm:$0xff] %v6185
    %6338 = vst [vmem:[#allocation11 + $0x118] sm:$0xff] %v6188
    %6339 = vst [vmem:[#allocation11 + $0x120] sm:$0xff] %v6193
    %6340 = vst [vmem:[#allocation11 + $0x128] sm:$0xff] %v6196
    %6341 = vst [vmem:[#allocation11 + $0x130] sm:$0xff] %v6201
    %6342 = vst [vmem:[#allocation11 + $0x138] sm:$0xff] %v6204
    %6343 = vst [vmem:[#allocation11 + $0x140] sm:$0xff] %v6209
    %6344 = vst [vmem:[#allocation11 + $0x148] sm:$0xff] %v6212
    %6345 = vst [vmem:[#allocation11 + $0x150] sm:$0xff] %v6217
    %6346 = vst [vmem:[#allocation11 + $0x158] sm:$0xff] %v6220
    %6347 = vst [vmem:[#allocation11 + $0x160] sm:$0xff] %v6225
    %6348 = vst [vmem:[#allocation11 + $0x168] sm:$0xff] %v6228
    %6349 = vst [vmem:[#allocation11 + $0x170] sm:$0xff] %v6233
    %6350 = vst [vmem:[#allocation11 + $0x178] sm:$0xff] %v6236
    %6351 = vst [vmem:[#allocation11 + $0x180] sm:$0xff] %v6241
    %6352 = vst [vmem:[#allocation11 + $0x188] sm:$0xff] %v6244
    %6353 = vst [vmem:[#allocation11 + $0x190] sm:$0xff] %v6249
    %6354 = vst [vmem:[#allocation11 + $0x198] sm:$0xff] %v6252
    %6355 = vst [vmem:[#allocation11 + $0x1a0] sm:$0xff] %v6257
    %6356 = vst [vmem:[#allocation11 + $0x1a8] sm:$0xff] %v6260
    %6357 = vst [vmem:[#allocation11 + $0x1b0] sm:$0xff] %v6265
    %6358 = vst [vmem:[#allocation11 + $0x1b8] sm:$0xff] %v6268
    %6359 = vst [vmem:[#allocation11 + $0x1c0] sm:$0xff] %v6273
    %6360 = vst [vmem:[#allocation11 + $0x1c8] sm:$0xff] %v6276
    %6361 = vst [vmem:[#allocation11 + $0x1d0] sm:$0xff] %v6281
    %6362 = vst [vmem:[#allocation11 + $0x1d8] sm:$0xff] %v6284
    %6363 = vst [vmem:[#allocation11 + $0x1e0] sm:$0xff] %v6289
    %6364 = vst [vmem:[#allocation11 + $0x1e8] sm:$0xff] %v6292
    %6365 = vst [vmem:[#allocation11 + $0x1f0] sm:$0xff] %v6297
    %6366 = vst [vmem:[#allocation11 + $0x1f8] sm:$0xff] %v6300
    // Predicated region
    $region94: #{tpu_custom_call.1} parent=1 // pred_check
      _
    $region95: #{tpu_custom_call.1} parent=1 // pred_check_branch
      %6368 = sbr.rel (0) target = $region97
    $region96: #{tpu_custom_call.1} parent=1 // pred_region
      %s6370 = ssub.s32 8192, 8192
      %6371 = vsyncadd [#allocation4], %s6370
      %s6372 = sshll.u32 [#allocation11], 4
      %s6373 = int_to_ptr.vmem [resolvable:$true] %s6372
      %6378 = dma.vmem_to_hbm [thread:$0]  %s6373, 8192, %s18, [#allocation4], 128, 128, 8
    $region97: #{tpu_custom_call.1} parent=1 // pred_fallthru
      _
    // Predicated region
    $region98: #{tpu_custom_call.1} parent=1 // pred_check
      _
    $region99: #{tpu_custom_call.1} parent=1 // pred_check_branch
      %6380 = sbr.rel (0) target = $region101
    $region100: #{tpu_custom_call.1} parent=1 // pred_region
      %6381 = dma.done [#allocation4], 8192
    $region101: #{tpu_custom_call.1} parent=1 // pred_fallthru
      _
    %6382 = vsyncpa [#allocation3], 1
    %6383 = vsyncpa [#allocation6], 1
    %6384 = vsyncpa [#allocation9], 1
    %6385 = vsyncpa [#allocation4], 1

</llo_original>
